<compile_context>
chip_gen: v6e
topology: v6e:2x2x1
jax: 0.10.0
libtpu: 0.0.40
codegen_flags: <defaults>
</compile_context>

<pallas_src>
import random

import jax
import jax.numpy as jnp
from jax import lax
from jax.experimental import pallas as pl
from jax.experimental.pallas import tpu as pltpu

# Structural constants implied by the module (weights [64,3,8] / [4,3,32] and
# the hard-coded reshape to (*, 64, 4, 28, 28)).  Batch is parametrized small.
K1, KH, J1 = 64, 3, 8          # stage-1 weight: (k, tap, j)
NG, KW, J2 = 4, 3, 32          # stage-2 weight: (n, tap, j2)
H = W = 28
HW = H * W                     # 784 lanes (flattened spatial)
C = K1 * NG                    # 256 input channels, c = k*4 + n
M1 = NG * J1                   # 32  stage-1 rows per tap  (n*8 + j)
R1 = KH * M1                   # 96  stacked stage-1 rows == stage-2 contraction
COUT = J2 * J1                 # 256 output channels, c_out = j2*8 + jp


def _lane_roll(v, s):
    """Static circular roll of the last (lane) axis by s, 0 <= s < HW."""
    if s == 0:
        return v
    return jnp.concatenate([v[:, HW - s:], v[:, :HW - s]], axis=1)


def _make_fused_kernel(shift, lb):
    # H-tap i reads input row (h + i - 1 - shift) mod H  ->  lane roll amount:
    s_taps = tuple(((shift + 1 - i) * W) % HW for i in range(KH))

    def kernel(x_ref, w1_ref, w2_ref, o_ref, ys_ref):
        # x_ref : (lb, 256, 784) f32   sublane c = k*4+n,   lane = h*28+w
        # w1_ref: (96, 256)      bf16  row tap*32 + n*8+j,  col k*4+n'
        # w2_ref: (256, 96)      bf16  row j2*8+jp,         col tap*32 + n*8+jp'
        # o_ref : (lb, 256, 784) f32   row j2*8+jp (y channel), lane = h*28+w
        # ys_ref: (lb, 96, 784)  bf16  stage-2 stacked input (persistent scratch)
        w1b = w1_ref[...]
        w2b = w2_ref[...]

        # hoisted lane-index constants, shared by all lb images and both stages
        lane = lax.broadcasted_iota(jnp.int32, (M1, HW), 1)
        w_idx = lane % W
        m_h0 = lane < W               # output row h == 0    (H-tap 0 boundary)
        m_hL = lane >= HW - W         # output row h == H-1  (H-tap 2 boundary)
        m_w0 = w_idx == 0             # output col w == 0    (W-tap 0 boundary)
        m_wL = w_idx == W - 1         # output col w == W-1  (W-tap 2 boundary)

        # ---- phase 1: all lb stage-1 matmuls + W-tap construction ----------
        for b in range(lb):
            xb = x_ref[b].astype(jnp.bfloat16)                     # single cast
            r = jnp.dot(w1b, xb, preferred_element_type=jnp.float32)  # (96,784)
            # roll/H-taps commuted past the matmul: act on 32x784, not 256x784
            t4 = _lane_roll(r[M1:2 * M1], s_taps[1])
            t4 = t4 + jnp.where(m_h0, 0.0, _lane_roll(r[0:M1], s_taps[0]))
            t4 = t4 + jnp.where(m_hL, 0.0, _lane_roll(r[2 * M1:R1], s_taps[2]))
            # W-conv taps (+-1 lane inside each 28-lane row), written straight
            # into the persistent stage-2 scratch (no concat / no zero pad)
            t4m = jnp.where(m_w0, 0.0, _lane_roll(t4, 1))
            t4p = jnp.where(m_wL, 0.0, _lane_roll(t4, HW - 1))
            ys_ref[b, 0:M1, :] = t4m.astype(jnp.bfloat16)
            ys_ref[b, M1:2 * M1, :] = t4.astype(jnp.bfloat16)
            ys_ref[b, 2 * M1:R1, :] = t4p.astype(jnp.bfloat16)

        # ---- phase 2: all lb stage-2 matmuls back-to-back -------------------
        for b in range(lb):
            # rows of this result are already the final y channels j2*8+jp
            o_ref[b] = jnp.dot(w2b, ys_ref[b],
                               preferred_element_type=jnp.float32)  # (256,784)

    return kernel


def _pick_tiling(B):
    """Images per grid step + VMEM limit, sized per TPU generation."""
    try:
        kind = jax.devices()[0].device_kind.lower()
    except Exception:
        kind = ""
    big_vmem = ("v5" in kind) or ("v6" in kind)      # 128 MiB VMEM parts
    lb = 8 if big_vmem else 4                        # v7x / unknown: 64 MiB VMEM
    while lb > 1 and (B % lb != 0 or B // lb < 2):   # keep grid >= 2 (megacore)
        lb //= 2
    if B % lb != 0:
        lb = 1
    vmem_bytes = (96 if big_vmem else 48) * 1024 * 1024
    return lb, vmem_bytes


def kernel_generated_1_forward(x, w1, w2, shift):
    """x: (B, 256, 28, 28) f32 (NCHW) -> (B, 256, 28, 28) f32."""
    B = x.shape[0]
    lb, vmem_bytes = _pick_tiling(B)

    x2 = x.reshape(B, C, HW)                         # metadata-only reshape

    # Tap-folded block-diagonal weights (tiny; built once in XLA, cast bf16).
    #   w1_all[i*32 + n*8 + j, k*4 + n'] = W1[k, i, j] * delta(n, n')
    eye_n = jnp.eye(NG, dtype=w1.dtype)
    w1_all = jnp.einsum('kij,nm->injkm', w1, eye_n).reshape(R1, C)
    w1_all = w1_all.astype(jnp.bfloat16)
    #   w2_all[j2*8 + jp, i*32 + n*8 + jp'] = W2[n, i, j2] * delta(jp, jp')
    eye_j = jnp.eye(J1, dtype=w2.dtype)
    w2_all = jnp.einsum('nij,pq->jpinq', w2, eye_j).reshape(COUT, R1)
    w2_all = w2_all.astype(jnp.bfloat16)

    kernel = _make_fused_kernel(int(shift), lb)
    y2 = pl.pallas_call(
        kernel,
        out_shape=jax.ShapeDtypeStruct((B, C, HW), jnp.float32),
        grid=(B // lb,),
        in_specs=[pl.BlockSpec((lb, C, HW), lambda l: (l, 0, 0)),
                  pl.BlockSpec((R1, C), lambda l: (0, 0)),
                  pl.BlockSpec((COUT, R1), lambda l: (0, 0))],
        out_specs=pl.BlockSpec((lb, C, HW), lambda l: (l, 0, 0)),
        scratch_shapes=[pltpu.VMEM((lb, R1, HW), jnp.bfloat16)],
        compiler_params=pltpu.CompilerParams(
            dimension_semantics=("parallel",),
            vmem_limit_bytes=vmem_bytes),
    )(x2, w1_all, w2_all)
    return y2.reshape(B, C, H, W)


def reference_forward(x, w1, w2, shift):
    """Pure-JAX mirror of the PyTorch forward (roll + unfold + einsum chain)."""
    L = x.shape[0]
    t3 = jnp.roll(x.reshape(L, K1, NG, H, W), shift, axis=3)
    t3p = jnp.pad(t3, ((0, 0), (0, 0), (0, 0), (1, 1), (0, 0)))
    pat = jnp.stack([t3p[:, :, :, i:i + H, :] for i in range(KH)], axis=3)
    pat = jnp.transpose(pat, (0, 1, 2, 4, 3, 5))                    # (l,k,n,m,i,o)
    t4 = jnp.einsum('lknmio,kij->lnmoj', pat, w1, precision='highest')
    t4p = jnp.pad(t4, ((0, 0), (0, 0), (0, 0), (1, 1), (0, 0)))
    pat2 = jnp.stack([t4p[:, :, :, i:i + W, :] for i in range(KW)], axis=4)
    t6 = jnp.einsum('limnko,ikj->lmnoj', pat2, w2, precision='highest')
    t7 = jnp.transpose(t6, (0, 1, 2, 4, 3)).reshape(L, H, W, J2 * J1)
    return jnp.transpose(t7, (0, 3, 1, 2))


if __name__ == "__main__":
    # Deterministic stand-in for the module's random shift_direction (+-1).
    random.seed(0)
    shift = int((random.random() > 0.5) * 2 - 1)

    key = jax.random.PRNGKey(0)
    kx, kw1, kw2 = jax.random.split(key, 3)
    B = 4  # module hardcodes batch 128; use a small batch with the same structure
    x = jax.random.normal(kx, (B, C, H, W), dtype=jnp.float32)
    w1 = jax.random.normal(kw1, (K1, KH, J1), dtype=jnp.float32)   # torch.randn([64,3,8])
    w2 = jax.random.normal(kw2, (NG, KW, J2), dtype=jnp.float32)   # torch.randn([4,3,32])

    fwd = jax.jit(kernel_generated_1_forward, static_argnums=3)
    y = jax.block_until_ready(fwd(x, w1, w2, shift))
    assert y.shape == (B, C, H, W) and y.dtype == jnp.float32

    ref = jax.block_until_ready(reference_forward(x, w1, w2, shift))
    rel_err = float(jnp.linalg.norm(y - ref) / jnp.linalg.norm(ref))
    # NOTE: activations run through the MXU in bf16 (f32 accumulation), so a
    # ~1e-2 relative error vs the f32 'highest' reference is expected.
    if rel_err < 2e-2:
        print("KERNEL_OK")
    else:
        raise SystemExit(f"mismatch: rel_err={rel_err}")
</pallas_src>

<mosaic_0001>
module attributes {stable_mosaic.version = 11 : i64} {
  func.func @kernel(%arg0: i32, %arg1: memref<2x256x784xf32, #tpu.memory_space<vmem>>, %arg2: memref<96x256xbf16, #tpu.memory_space<vmem>>, %arg3: memref<256x96xbf16, #tpu.memory_space<vmem>>, %arg4: memref<2x256x784xf32, #tpu.memory_space<vmem>>, %arg5: memref<2x96x784xbf16, #tpu.memory_space<vmem>>) attributes {dimension_semantics = [#tpu.dimension_semantics<parallel>], iteration_bounds = array<i64: 2>, scalar_prefetch = 0 : i64, scratch_operands = 1 : i64, tpu.core_type = #tpu.core_type<tc>, window_params = [{transform_indices = @transform_0, window_bounds = array<i64: 2, 256, 784>}, {pipeline_mode = #tpu.pipeline_mode<synchronous>, transform_indices = @transform_1, window_bounds = array<i64: 96, 256>}, {pipeline_mode = #tpu.pipeline_mode<synchronous>, transform_indices = @transform_2, window_bounds = array<i64: 256, 96>}, {transform_indices = @transform_3, window_bounds = array<i64: 2, 256, 784>}]} {
    %c0 = arith.constant 0 : index
    %c0_0 = arith.constant 0 : index
    %0 = vector.load %arg2[%c0, %c0_0] : memref<96x256xbf16, #tpu.memory_space<vmem>>, vector<96x256xbf16>
    %c0_1 = arith.constant 0 : index
    %c0_2 = arith.constant 0 : index
    %1 = vector.load %arg3[%c0_1, %c0_2] : memref<256x96xbf16, #tpu.memory_space<vmem>>, vector<256x96xbf16>
    %2 = tpu.iota {dimensions = array<i32: 1>} : vector<32x784xi32>
    %c28_i32 = arith.constant 28 : i32
    %c0_i32 = arith.constant 0 : i32
    %3 = arith.cmpi eq, %c28_i32, %c0_i32 : i32
    %c1_i32 = arith.constant 1 : i32
    %4 = arith.select %3, %c1_i32, %c28_i32 : i32
    %5 = vector.broadcast %4 : i32 to vector<32x784xi32>
    %6 = arith.remsi %2, %5 : vector<32x784xi32>
    %c0_i32_3 = arith.constant 0 : i32
    %7 = vector.broadcast %c0_i32_3 : i32 to vector<32x784xi32>
    %8 = arith.cmpi ne, %6, %7 : vector<32x784xi32>
    %c0_i32_4 = arith.constant 0 : i32
    %9 = vector.broadcast %c0_i32_4 : i32 to vector<32x784xi32>
    %10 = arith.cmpi slt, %6, %9 : vector<32x784xi32>
    %c0_i32_5 = arith.constant 0 : i32
    %11 = arith.cmpi slt, %4, %c0_i32_5 : i32
    %12 = vector.broadcast %11 : i1 to vector<32x784xi1>
    %13 = vector.broadcast %12 : vector<32x784xi1> to vector<32x784xi1>
    %14 = arith.xori %10, %13 : vector<32x784xi1>
    %15 = arith.andi %14, %8 : vector<32x784xi1>
    %16 = vector.broadcast %4 : i32 to vector<32x784xi32>
    %17 = arith.addi %6, %16 : vector<32x784xi32>
    %18 = arith.select %15, %17, %6 : vector<32x784xi1>, vector<32x784xi32>
    %c28_i32_6 = arith.constant 28 : i32
    %19 = vector.broadcast %c28_i32_6 : i32 to vector<32x784xi32>
    %20 = arith.cmpi slt, %2, %19 : vector<32x784xi32>
    %c756_i32 = arith.constant 756 : i32
    %21 = vector.broadcast %c756_i32 : i32 to vector<32x784xi32>
    %22 = arith.cmpi sge, %2, %21 : vector<32x784xi32>
    %c0_i32_7 = arith.constant 0 : i32
    %23 = vector.broadcast %c0_i32_7 : i32 to vector<32x784xi32>
    %24 = arith.cmpi eq, %18, %23 : vector<32x784xi32>
    %c27_i32 = arith.constant 27 : i32
    %25 = vector.broadcast %c27_i32 : i32 to vector<32x784xi32>
    %26 = arith.cmpi eq, %18, %25 : vector<32x784xi32>
    %c0_8 = arith.constant 0 : index
    %c0_9 = arith.constant 0 : index
    %c0_10 = arith.constant 0 : index
    %27 = vector.load %arg1[%c0_8, %c0_9, %c0_10] : memref<2x256x784xf32, #tpu.memory_space<vmem>>, vector<1x256x784xf32>
    %28 = vector.shape_cast %27 : vector<1x256x784xf32> to vector<256x784xf32>
    %29 = arith.truncf %28 : vector<256x784xf32> to vector<256x784xbf16>
    %cst = arith.constant dense<0.000000e+00> : vector<96x784xf32>
    %30 = tpu.matmul %0, %29, %cst {dimension_numbers = #tpu.dot_dimension_numbers<[1], [0], [0], [1], [0, 0, 1, 1], [], []>} : vector<96x256xbf16>, vector<256x784xbf16>, vector<96x784xf32> -> vector<96x784xf32>
    %31 = vector.extract_strided_slice %30 {offsets = [32, 0], sizes = [32, 784], strides = [1, 1]} : vector<96x784xf32> to vector<32x784xf32>
    %32 = vector.extract_strided_slice %31 {offsets = [0, 756], sizes = [32, 28], strides = [1, 1]} : vector<32x784xf32> to vector<32x28xf32>
    %33 = vector.extract_strided_slice %31 {offsets = [0, 0], sizes = [32, 756], strides = [1, 1]} : vector<32x784xf32> to vector<32x756xf32>
    %34 = tpu.concatenate %32, %33 in 1 : vector<32x28xf32>, vector<32x756xf32> -> vector<32x784xf32>
    %35 = vector.extract_strided_slice %30 {offsets = [0, 0], sizes = [32, 784], strides = [1, 1]} : vector<96x784xf32> to vector<32x784xf32>
    %36 = vector.extract_strided_slice %35 {offsets = [0, 728], sizes = [32, 56], strides = [1, 1]} : vector<32x784xf32> to vector<32x56xf32>
    %37 = vector.extract_strided_slice %35 {offsets = [0, 0], sizes = [32, 728], strides = [1, 1]} : vector<32x784xf32> to vector<32x728xf32>
    %38 = tpu.concatenate %36, %37 in 1 : vector<32x56xf32>, vector<32x728xf32> -> vector<32x784xf32>
    %cst_11 = arith.constant 0.000000e+00 : f32
    %39 = vector.broadcast %cst_11 : f32 to vector<32x784xf32>
    %40 = arith.select %20, %39, %38 : vector<32x784xi1>, vector<32x784xf32>
    %41 = arith.addf %34, %40 : vector<32x784xf32>
    %42 = vector.extract_strided_slice %30 {offsets = [64, 0], sizes = [32, 784], strides = [1, 1]} : vector<96x784xf32> to vector<32x784xf32>
    %cst_12 = arith.constant 0.000000e+00 : f32
    %43 = vector.broadcast %cst_12 : f32 to vector<32x784xf32>
    %44 = arith.select %22, %43, %42 : vector<32x784xi1>, vector<32x784xf32>
    %45 = arith.addf %41, %44 : vector<32x784xf32>
    %46 = vector.extract_strided_slice %45 {offsets = [0, 783], sizes = [32, 1], strides = [1, 1]} : vector<32x784xf32> to vector<32x1xf32>
    %47 = vector.extract_strided_slice %45 {offsets = [0, 0], sizes = [32, 783], strides = [1, 1]} : vector<32x784xf32> to vector<32x783xf32>
    %48 = tpu.concatenate %46, %47 in 1 : vector<32x1xf32>, vector<32x783xf32> -> vector<32x784xf32>
    %cst_13 = arith.constant 0.000000e+00 : f32
    %49 = vector.broadcast %cst_13 : f32 to vector<32x784xf32>
    %50 = arith.select %24, %49, %48 : vector<32x784xi1>, vector<32x784xf32>
    %51 = vector.extract_strided_slice %45 {offsets = [0, 1], sizes = [32, 783], strides = [1, 1]} : vector<32x784xf32> to vector<32x783xf32>
    %52 = vector.extract_strided_slice %45 {offsets = [0, 0], sizes = [32, 1], strides = [1, 1]} : vector<32x784xf32> to vector<32x1xf32>
    %53 = tpu.concatenate %51, %52 in 1 : vector<32x783xf32>, vector<32x1xf32> -> vector<32x784xf32>
    %cst_14 = arith.constant 0.000000e+00 : f32
    %54 = vector.broadcast %cst_14 : f32 to vector<32x784xf32>
    %55 = arith.select %26, %54, %53 : vector<32x784xi1>, vector<32x784xf32>
    %56 = arith.truncf %50 : vector<32x784xf32> to vector<32x784xbf16>
    %c0_15 = arith.constant 0 : index
    %c0_16 = arith.constant 0 : index
    %c0_17 = arith.constant 0 : index
    %57 = vector.load %arg5[%c0_15, %c0_16, %c0_17] : memref<2x96x784xbf16, #tpu.memory_space<vmem>>, vector<1x32x784xbf16>
    %58 = vector.shape_cast %57 : vector<1x32x784xbf16> to vector<32x784xbf16>
    %59 = vector.shape_cast %56 : vector<32x784xbf16> to vector<1x32x784xbf16>
    tpu.vector_store %arg5[%c0_15, %c0_16, %c0_17], %59 {strides = array<i32>} : memref<2x96x784xbf16, #tpu.memory_space<vmem>>, vector<1x32x784xbf16>,
    %60 = arith.truncf %45 : vector<32x784xf32> to vector<32x784xbf16>
    %c0_18 = arith.constant 0 : index
    %c32 = arith.constant 32 : index
    %c0_19 = arith.constant 0 : index
    %61 = vector.load %arg5[%c0_18, %c32, %c0_19] : memref<2x96x784xbf16, #tpu.memory_space<vmem>>, vector<1x32x784xbf16>
    %62 = vector.shape_cast %61 : vector<1x32x784xbf16> to vector<32x784xbf16>
    %63 = vector.shape_cast %60 : vector<32x784xbf16> to vector<1x32x784xbf16>
    tpu.vector_store %arg5[%c0_18, %c32, %c0_19], %63 {strides = array<i32>} : memref<2x96x784xbf16, #tpu.memory_space<vmem>>, vector<1x32x784xbf16>,
    %64 = arith.truncf %55 : vector<32x784xf32> to vector<32x784xbf16>
    %c0_20 = arith.constant 0 : index
    %c64 = arith.constant 64 : index
    %c0_21 = arith.constant 0 : index
    %65 = vector.load %arg5[%c0_20, %c64, %c0_21] : memref<2x96x784xbf16, #tpu.memory_space<vmem>>, vector<1x32x784xbf16>
    %66 = vector.shape_cast %65 : vector<1x32x784xbf16> to vector<32x784xbf16>
    %67 = vector.shape_cast %64 : vector<32x784xbf16> to vector<1x32x784xbf16>
    tpu.vector_store %arg5[%c0_20, %c64, %c0_21], %67 {strides = array<i32>} : memref<2x96x784xbf16, #tpu.memory_space<vmem>>, vector<1x32x784xbf16>,
    %c1 = arith.constant 1 : index
    %c0_22 = arith.constant 0 : index
    %c0_23 = arith.constant 0 : index
    %68 = vector.load %arg1[%c1, %c0_22, %c0_23] : memref<2x256x784xf32, #tpu.memory_space<vmem>>, vector<1x256x784xf32>
    %69 = vector.shape_cast %68 : vector<1x256x784xf32> to vector<256x784xf32>
    %70 = arith.truncf %69 : vector<256x784xf32> to vector<256x784xbf16>
    %cst_24 = arith.constant dense<0.000000e+00> : vector<96x784xf32>
    %71 = tpu.matmul %0, %70, %cst_24 {dimension_numbers = #tpu.dot_dimension_numbers<[1], [0], [0], [1], [0, 0, 1, 1], [], []>} : vector<96x256xbf16>, vector<256x784xbf16>, vector<96x784xf32> -> vector<96x784xf32>
    %72 = vector.extract_strided_slice %71 {offsets = [32, 0], sizes = [32, 784], strides = [1, 1]} : vector<96x784xf32> to vector<32x784xf32>
    %73 = vector.extract_strided_slice %72 {offsets = [0, 756], sizes = [32, 28], strides = [1, 1]} : vector<32x784xf32> to vector<32x28xf32>
    %74 = vector.extract_strided_slice %72 {offsets = [0, 0], sizes = [32, 756], strides = [1, 1]} : vector<32x784xf32> to vector<32x756xf32>
    %75 = tpu.concatenate %73, %74 in 1 : vector<32x28xf32>, vector<32x756xf32> -> vector<32x784xf32>
    %76 = vector.extract_strided_slice %71 {offsets = [0, 0], sizes = [32, 784], strides = [1, 1]} : vector<96x784xf32> to vector<32x784xf32>
    %77 = vector.extract_strided_slice %76 {offsets = [0, 728], sizes = [32, 56], strides = [1, 1]} : vector<32x784xf32> to vector<32x56xf32>
    %78 = vector.extract_strided_slice %76 {offsets = [0, 0], sizes = [32, 728], strides = [1, 1]} : vector<32x784xf32> to vector<32x728xf32>
    %79 = tpu.concatenate %77, %78 in 1 : vector<32x56xf32>, vector<32x728xf32> -> vector<32x784xf32>
    %cst_25 = arith.constant 0.000000e+00 : f32
    %80 = vector.broadcast %cst_25 : f32 to vector<32x784xf32>
    %81 = arith.select %20, %80, %79 : vector<32x784xi1>, vector<32x784xf32>
    %82 = arith.addf %75, %81 : vector<32x784xf32>
    %83 = vector.extract_strided_slice %71 {offsets = [64, 0], sizes = [32, 784], strides = [1, 1]} : vector<96x784xf32> to vector<32x784xf32>
    %cst_26 = arith.constant 0.000000e+00 : f32
    %84 = vector.broadcast %cst_26 : f32 to vector<32x784xf32>
    %85 = arith.select %22, %84, %83 : vector<32x784xi1>, vector<32x784xf32>
    %86 = arith.addf %82, %85 : vector<32x784xf32>
    %87 = vector.extract_strided_slice %86 {offsets = [0, 783], sizes = [32, 1], strides = [1, 1]} : vector<32x784xf32> to vector<32x1xf32>
    %88 = vector.extract_strided_slice %86 {offsets = [0, 0], sizes = [32, 783], strides = [1, 1]} : vector<32x784xf32> to vector<32x783xf32>
    %89 = tpu.concatenate %87, %88 in 1 : vector<32x1xf32>, vector<32x783xf32> -> vector<32x784xf32>
    %cst_27 = arith.constant 0.000000e+00 : f32
    %90 = vector.broadcast %cst_27 : f32 to vector<32x784xf32>
    %91 = arith.select %24, %90, %89 : vector<32x784xi1>, vector<32x784xf32>
    %92 = vector.extract_strided_slice %86 {offsets = [0, 1], sizes = [32, 783], strides = [1, 1]} : vector<32x784xf32> to vector<32x783xf32>
    %93 = vector.extract_strided_slice %86 {offsets = [0, 0], sizes = [32, 1], strides = [1, 1]} : vector<32x784xf32> to vector<32x1xf32>
    %94 = tpu.concatenate %92, %93 in 1 : vector<32x783xf32>, vector<32x1xf32> -> vector<32x784xf32>
    %cst_28 = arith.constant 0.000000e+00 : f32
    %95 = vector.broadcast %cst_28 : f32 to vector<32x784xf32>
    %96 = arith.select %26, %95, %94 : vector<32x784xi1>, vector<32x784xf32>
    %97 = arith.truncf %91 : vector<32x784xf32> to vector<32x784xbf16>
    %c1_29 = arith.constant 1 : index
    %c0_30 = arith.constant 0 : index
    %c0_31 = arith.constant 0 : index
    %98 = vector.load %arg5[%c1_29, %c0_30, %c0_31] : memref<2x96x784xbf16, #tpu.memory_space<vmem>>, vector<1x32x784xbf16>
    %99 = vector.shape_cast %98 : vector<1x32x784xbf16> to vector<32x784xbf16>
    %100 = vector.shape_cast %97 : vector<32x784xbf16> to vector<1x32x784xbf16>
    tpu.vector_store %arg5[%c1_29, %c0_30, %c0_31], %100 {strides = array<i32>} : memref<2x96x784xbf16, #tpu.memory_space<vmem>>, vector<1x32x784xbf16>,
    %101 = arith.truncf %86 : vector<32x784xf32> to vector<32x784xbf16>
    %c1_32 = arith.constant 1 : index
    %c32_33 = arith.constant 32 : index
    %c0_34 = arith.constant 0 : index
    %102 = vector.load %arg5[%c1_32, %c32_33, %c0_34] : memref<2x96x784xbf16, #tpu.memory_space<vmem>>, vector<1x32x784xbf16>
    %103 = vector.shape_cast %102 : vector<1x32x784xbf16> to vector<32x784xbf16>
    %104 = vector.shape_cast %101 : vector<32x784xbf16> to vector<1x32x784xbf16>
    tpu.vector_store %arg5[%c1_32, %c32_33, %c0_34], %104 {strides = array<i32>} : memref<2x96x784xbf16, #tpu.memory_space<vmem>>, vector<1x32x784xbf16>,
    %105 = arith.truncf %96 : vector<32x784xf32> to vector<32x784xbf16>
    %c1_35 = arith.constant 1 : index
    %c64_36 = arith.constant 64 : index
    %c0_37 = arith.constant 0 : index
    %106 = vector.load %arg5[%c1_35, %c64_36, %c0_37] : memref<2x96x784xbf16, #tpu.memory_space<vmem>>, vector<1x32x784xbf16>
    %107 = vector.shape_cast %106 : vector<1x32x784xbf16> to vector<32x784xbf16>
    %108 = vector.shape_cast %105 : vector<32x784xbf16> to vector<1x32x784xbf16>
    tpu.vector_store %arg5[%c1_35, %c64_36, %c0_37], %108 {strides = array<i32>} : memref<2x96x784xbf16, #tpu.memory_space<vmem>>, vector<1x32x784xbf16>,
    %c0_38 = arith.constant 0 : index
    %c0_39 = arith.constant 0 : index
    %c0_40 = arith.constant 0 : index
    %109 = vector.load %arg5[%c0_38, %c0_39, %c0_40] : memref<2x96x784xbf16, #tpu.memory_space<vmem>>, vector<1x96x784xbf16>
    %110 = vector.shape_cast %109 : vector<1x96x784xbf16> to vector<96x784xbf16>
    %cst_41 = arith.constant dense<0.000000e+00> : vector<256x784xf32>
    %111 = tpu.matmul %1, %110, %cst_41 {dimension_numbers = #tpu.dot_dimension_numbers<[1], [0], [0], [1], [0, 0, 1, 1], [], []>} : vector<256x96xbf16>, vector<96x784xbf16>, vector<256x784xf32> -> vector<256x784xf32>
    %c0_42 = arith.constant 0 : index
    %c0_43 = arith.constant 0 : index
    %c0_44 = arith.constant 0 : index
    %112 = vector.load %arg4[%c0_42, %c0_43, %c0_44] : memref<2x256x784xf32, #tpu.memory_space<vmem>>, vector<1x256x784xf32>
    %113 = vector.shape_cast %112 : vector<1x256x784xf32> to vector<256x784xf32>
    %114 = vector.shape_cast %111 : vector<256x784xf32> to vector<1x256x784xf32>
    tpu.vector_store %arg4[%c0_42, %c0_43, %c0_44], %114 {strides = array<i32>} : memref<2x256x784xf32, #tpu.memory_space<vmem>>, vector<1x256x784xf32>,
    %c1_45 = arith.constant 1 : index
    %c0_46 = arith.constant 0 : index
    %c0_47 = arith.constant 0 : index
    %115 = vector.load %arg5[%c1_45, %c0_46, %c0_47] : memref<2x96x784xbf16, #tpu.memory_space<vmem>>, vector<1x96x784xbf16>
    %116 = vector.shape_cast %115 : vector<1x96x784xbf16> to vector<96x784xbf16>
    %cst_48 = arith.constant dense<0.000000e+00> : vector<256x784xf32>
    %117 = tpu.matmul %1, %116, %cst_48 {dimension_numbers = #tpu.dot_dimension_numbers<[1], [0], [0], [1], [0, 0, 1, 1], [], []>} : vector<256x96xbf16>, vector<96x784xbf16>, vector<256x784xf32> -> vector<256x784xf32>
    %c1_49 = arith.constant 1 : index
    %c0_50 = arith.constant 0 : index
    %c0_51 = arith.constant 0 : index
    %118 = vector.load %arg4[%c1_49, %c0_50, %c0_51] : memref<2x256x784xf32, #tpu.memory_space<vmem>>, vector<1x256x784xf32>
    %119 = vector.shape_cast %118 : vector<1x256x784xf32> to vector<256x784xf32>
    %120 = vector.shape_cast %117 : vector<256x784xf32> to vector<1x256x784xf32>
    tpu.vector_store %arg4[%c1_49, %c0_50, %c0_51], %120 {strides = array<i32>} : memref<2x256x784xf32, #tpu.memory_space<vmem>>, vector<1x256x784xf32>,
    return
  }
  func.func @transform_0(%arg0: i32) -> (i32, i32, i32) {
    %c0_i32 = arith.constant 0 : i32
    %c0_i32_0 = arith.constant 0 : i32
    %c0_i32_1 = arith.constant 0 : i32
    return %arg0, %c0_i32, %c0_i32_0 : i32, i32, i32
  }
  func.func @transform_1(%arg0: i32) -> (i32, i32) {
    %c0_i32 = arith.constant 0 : i32
    %c0_i32_0 = arith.constant 0 : i32
    %c0_i32_1 = arith.constant 0 : i32
    return %c0_i32, %c0_i32_0 : i32, i32
  }
  func.func @transform_2(%arg0: i32) -> (i32, i32) {
    %c0_i32 = arith.constant 0 : i32
    %c0_i32_0 = arith.constant 0 : i32
    %c0_i32_1 = arith.constant 0 : i32
    return %c0_i32, %c0_i32_0 : i32, i32
  }
  func.func @transform_3(%arg0: i32) -> (i32, i32, i32) {
    %c0_i32 = arith.constant 0 : i32
    %c0_i32_0 = arith.constant 0 : i32
    %c0_i32_1 = arith.constant 0 : i32
    return %arg0, %c0_i32, %c0_i32_0 : i32, i32, i32
  }
}

</mosaic_0001>

<llo_original>
// kernel: kernel_generated_1_forward.1
$region0: #{kernel_generated_1_forward.1}
  #allocation0 [shape = 'u32[]', space=smem, size = 0x4, offset = 0x4, fixed_abs, tag = 'smem constant byte address 0x4 - core index']
  #allocation1 [shape = 'u32[144,128]{1,0:T(1,128)}', space=vmem, size = 0x12000, scoped, tag = 'internal scratch']
  #allocation2 [shape = 'bf16[2,96,784]{2,1,0:T(8,128)(2,1)}', space=vmem, size = 0x54000, scoped, tag = 'scratch operand']
  %s0 = inlined_call_operand.vmem [shape: f32[4,256,784], index: 0, kind: input, shape index: {}]
  %s1 = inlined_call_operand.vmem [shape: bf16[96,256], index: 1, kind: input, shape index: {}]
  %s2 = inlined_call_operand.vmem [shape: bf16[256,96], index: 2, kind: input, shape index: {}]
  %s3 = inlined_call_operand.vmem [shape: f32[4,256,784], index: 3, kind: output, shape index: {}]
  %s4 = sld [smem:[#allocation0]]
  $region45: #{kernel_generated_1_forward.1} parent=0
    _
  %s6 = ssub.s32 1, %s4
  %s7 = scalar_select 0, %s6, %s4
  loop: start=0, step=1, limit=4
  $region2: #{kernel_generated_1_forward.1} parent=0 // loop_pre_header
    _
  $region3: #{kernel_generated_1_forward.1} parent=0 // loop_header
    %s9 = sphi 0, %s13
    %p10 = scmp.ge.s32.totalorder %s9, 4
    %s19 = sphi 0, %s21
    %s22 = sphi 0, %s19
    %s23 = sphi 0, %s22
    %s39 = sphi 0, %s23
    %s43 = sphi 0, %s43
    %s45 = sphi 0, %s43
    %s46 = sphi 0, %s45
    %s60 = sphi 0, %s46
    %s64 = sphi 0, %s64
    %s66 = sphi 0, %s64
    %s67 = sphi 0, %s66
    %s81 = sphi 0, %s67
    %s87 = sphi 0, %s89
    %s90 = sphi 0, %s87
    %s91 = sphi 0, %s90
    %s107 = sphi 0, %s91
  $region4: #{kernel_generated_1_forward.1} parent=0 // loop_header_branch
    %12 = sbr.rel (%p10) target = $region8
  $region5: #{kernel_generated_1_forward.1} parent=0 // loop_body
    %s14 = ssub.s32 %s9, 1
    %s15 = ssub.s32 %s9, 2
    %s16 = sadd.s32 %s9, 1
    %s17 = ssub.s32 %s9, %s16
    %p18 = scmp.eq.s32.totalorder %s17, 0
    %s20 = sadd.s32 %s19, 1
    %s21 = scalar_select %p18, %s19, %s20
    %p24 = pneg %p18
    %p25 = scmp.eq.s32.totalorder %s9, 1
    %p26 = por %p24, %p25
    %p27 = scmp.ne.s32.totalorder %s19, %s22
    %p28 = scmp.eq.s32.totalorder %s9, 0
    %p29 = por %p27, %p28
    %p30 = scmp.ne.s32.totalorder %s19, %s22
    %p31 = scmp.eq.s32.totalorder %s14, 1
    %p32 = por %p30, %p31
    %p33 = scmp.ne.s32.totalorder %s22, %s23
    %p34 = scmp.eq.s32.totalorder %s14, 0
    %p35 = por %p33, %p34
    %p36 = scmp.ne.s32.totalorder %s22, %s23
    %p37 = scmp.eq.s32.totalorder %s15, 1
    %p38 = por %p36, %p37
    %p40 = scmp.ne.s32.totalorder %s23, %s39
    %p41 = scmp.eq.s32.totalorder %s15, 0
    %p42 = por %p40, %p41
    %s44 = sadd.s32 %s43, 1
    %p47 = scmp.eq.s32.totalorder %s9, 1
    %p48 = scmp.ne.s32.totalorder %s43, %s45
    %p49 = scmp.eq.s32.totalorder %s9, 0
    %p50 = por %p48, %p49
    %p51 = scmp.ne.s32.totalorder %s43, %s45
    %p52 = scmp.eq.s32.totalorder %s14, 1
    %p53 = por %p51, %p52
    %p54 = scmp.ne.s32.totalorder %s45, %s46
    %p55 = scmp.eq.s32.totalorder %s14, 0
    %p56 = por %p54, %p55
    %p57 = scmp.ne.s32.totalorder %s45, %s46
    %p58 = scmp.eq.s32.totalorder %s15, 1
    %p59 = por %p57, %p58
    %p61 = scmp.ne.s32.totalorder %s46, %s60
    %p62 = scmp.eq.s32.totalorder %s15, 0
    %p63 = por %p61, %p62
    %s65 = sadd.s32 %s64, 1
    %p68 = scmp.eq.s32.totalorder %s9, 1
    %p69 = scmp.ne.s32.totalorder %s64, %s66
    %p70 = scmp.eq.s32.totalorder %s9, 0
    %p71 = por %p69, %p70
    %p72 = scmp.ne.s32.totalorder %s64, %s66
    %p73 = scmp.eq.s32.totalorder %s14, 1
    %p74 = por %p72, %p73
    %p75 = scmp.ne.s32.totalorder %s66, %s67
    %p76 = scmp.eq.s32.totalorder %s14, 0
    %p77 = por %p75, %p76
    %p78 = scmp.ne.s32.totalorder %s66, %s67
    %p79 = scmp.eq.s32.totalorder %s15, 1
    %p80 = por %p78, %p79
    %p82 = scmp.ne.s32.totalorder %s67, %s81
    %p83 = scmp.eq.s32.totalorder %s15, 0
    %p84 = por %p82, %p83
    %s85 = ssub.s32 %s9, %s16
    %p86 = scmp.eq.s32.totalorder %s85, 0
    %s88 = sadd.s32 %s87, 1
    %s89 = scalar_select %p86, %s87, %s88
    %p92 = pneg %p86
    %p93 = scmp.eq.s32.totalorder %s9, 1
    %p94 = por %p92, %p93
    %p95 = scmp.ne.s32.totalorder %s87, %s90
    %p96 = scmp.eq.s32.totalorder %s9, 0
    %p97 = por %p95, %p96
    %p98 = scmp.ne.s32.totalorder %s87, %s90
    %p99 = scmp.eq.s32.totalorder %s14, 1
    %p100 = por %p98, %p99
    %p101 = scmp.ne.s32.totalorder %s90, %s91
    %p102 = scmp.eq.s32.totalorder %s14, 0
    %p103 = por %p101, %p102
    %p104 = scmp.ne.s32.totalorder %s90, %s91
    %p105 = scmp.eq.s32.totalorder %s15, 1
    %p106 = por %p104, %p105
    %p108 = scmp.ne.s32.totalorder %s91, %s107
    %p109 = scmp.eq.s32.totalorder %s15, 0
    %p110 = por %p108, %p109
    %p111 = scmp.le.s32.totalorder 1, %s9
    %p112 = scmp.lt.s32.totalorder %s9, 3
    %p113 = pnand %p111, %p112
    %p114 = pneg %p113
    // Predicated region
    $region9: #{kernel_generated_1_forward.1} parent=5 // pred_check
      _
    $region10: #{kernel_generated_1_forward.1} parent=5 // pred_check_branch
      %116 = sbr.rel (%p113) target = $region12
    $region11: #{kernel_generated_1_forward.1} parent=5 // pred_region
      %s117 = ssub.s32 %s9, 1
      // Predicated region
      $region13: #{kernel_generated_1_forward.1} parent=11 // pred_check
        %p118 = pneg %p56
      $region14: #{kernel_generated_1_forward.1} parent=11 // pred_check_branch
        %120 = sbr.rel (%p118) target = $region16
      $region15: #{kernel_generated_1_forward.1} parent=11 // pred_region
        _
      $region16: #{kernel_generated_1_forward.1} parent=11 // pred_fallthru
        _
      // Predicated region
      $region17: #{kernel_generated_1_forward.1} parent=11 // pred_check
        %p121 = pneg %p77
      $region18: #{kernel_generated_1_forward.1} parent=11 // pred_check_branch
        %123 = sbr.rel (%p121) target = $region20
      $region19: #{kernel_generated_1_forward.1} parent=11 // pred_region
        _
      $region20: #{kernel_generated_1_forward.1} parent=11 // pred_fallthru
        _
    $region12: #{kernel_generated_1_forward.1} parent=5 // pred_fallthru
      _
    %p124 = scmp.lt.s32.totalorder %s9, 2
    // Predicated region
    $region21: #{kernel_generated_1_forward.1} parent=5 // pred_check
      %p125 = pneg %p124
    $region22: #{kernel_generated_1_forward.1} parent=5 // pred_check_branch
      %127 = sbr.rel (%p125) target = $region24
    $region23: #{kernel_generated_1_forward.1} parent=5 // pred_region
      // Predicated region
      $region25: #{kernel_generated_1_forward.1} parent=23 // pred_check
        %p128 = pneg %p29
      $region26: #{kernel_generated_1_forward.1} parent=23 // pred_check_branch
        %130 = sbr.rel (%p128) target = $region28
      $region27: #{kernel_generated_1_forward.1} parent=23 // pred_region
        %s131 = smul.u32 2, %s9
        %p132 = scmp.lt.s32.totalorder %s131, 3
        %s133 = scalar_select %p132, %s131, 3
        %s134 = smul.addr %s133, 224
        %s135 = smul.addr %s134, 8
        %s136 = scalar_lea.vmem %s0, %s135
        %s137 = smul.u32 2, %s9
      $region28: #{kernel_generated_1_forward.1} parent=23 // pred_fallthru
        _
    $region24: #{kernel_generated_1_forward.1} parent=5 // pred_fallthru
      _
    %p138 = scmp.le.s32.totalorder 1, %s9
    %p139 = scmp.lt.s32.totalorder %s9, 3
    %p140 = pnand %p138, %p139
    %p141 = pneg %p140
    // Predicated region
    $region29: #{kernel_generated_1_forward.1} parent=5 // pred_check
      _
    $region30: #{kernel_generated_1_forward.1} parent=5 // pred_check_branch
      %143 = sbr.rel (%p140) target = $region32
    $region31: #{kernel_generated_1_forward.1} parent=5 // pred_region
      %s144 = ssub.s32 %s9, 1
      %s145 = smul.u32 2, %s14
      %p146 = scmp.lt.s32.totalorder %s145, 3
      %s147 = scalar_select %p146, %s145, 3
      %s148 = smul.addr %s147, 224
      %s149 = smul.addr %s148, 8
      %s150 = scalar_lea.vmem %s0, %s149
      %p151 = pneg %p35
      %p152 = pneg %p32
      %p153 = pneg %p56
      %p154 = pneg %p53
      %p155 = pneg %p77
      %p156 = pneg %p74
      %p157 = pneg %p103
      %p158 = pneg %p100
      %s159 = smul.u32 2, %s14
      %p160 = scmp.lt.s32.totalorder %s159, 3
      %s161 = scalar_select %p160, %s159, 3
      %s162 = smul.addr %s161, 224
      %s163 = smul.addr %s162, 8
      %s164 = scalar_lea.vmem %s3, %s163
      %s165 = smul.u32 2, %s14
      %p166 = scmp.lt.s32.totalorder %s165, 3
      %s167 = scalar_select %p166, %s165, 3
      %s168 = smul.addr %s167, 224
      %s169 = smul.addr %s168, 8
      %s170 = scalar_lea.vmem %s0, %s169
      %s171 = smul.u32 2, %s14
      %s172 = smul.u32 2, %s14
      %p173 = scmp.lt.s32.totalorder %s172, 3
      %s174 = scalar_select %p173, %s172, 3
      %s175 = smul.addr %s174, 224
      %s176 = smul.addr %s175, 8
      %s177 = scalar_lea.vmem %s3, %s176
      %s178 = smul.u32 2, %s14
      %v180 = vld [vmem:[%s1] sm:$0xff]
      %v181 = vld [vmem:[%s1 + $0x8] sm:$0xff]
      %v182 = vld [vmem:[%s1 + $0x10] sm:$0xff]
      %v183 = vld [vmem:[%s1 + $0x18] sm:$0xff]
      %v184 = vld [vmem:[%s1 + $0x20] sm:$0xff]
      %v185 = vld [vmem:[%s1 + $0x28] sm:$0xff]
      %v186 = vld [vmem:[%s1 + $0x30] sm:$0xff]
      %v187 = vld [vmem:[%s1 + $0x38] sm:$0xff]
      %v188 = vld [vmem:[%s1 + $0x40] sm:$0xff]
      %v189 = vld [vmem:[%s1 + $0x48] sm:$0xff]
      %v190 = vld [vmem:[%s1 + $0x50] sm:$0xff]
      %v191 = vld [vmem:[%s1 + $0x58] sm:$0xff]
      %v192 = vld [vmem:[%s2] sm:$0xf]
      %v193 = vld [vmem:[%s2 + $0x4] sm:$0xf]
      %v194 = vld [vmem:[%s2 + $0x8] sm:$0xf]
      %v195 = vld [vmem:[%s2 + $0xc] sm:$0xf]
      %v196 = vld [vmem:[%s2 + $0x10] sm:$0xf]
      %v197 = vld [vmem:[%s2 + $0x14] sm:$0xf]
      %v198 = vld [vmem:[%s2 + $0x18] sm:$0xf]
      %v199 = vld [vmem:[%s2 + $0x1c] sm:$0xf]
      %v200 = vld [vmem:[%s2 + $0x20] sm:$0xf]
      %v201 = vld [vmem:[%s2 + $0x24] sm:$0xf]
      %v202 = vld [vmem:[%s2 + $0x28] sm:$0xf]
      %v203 = vld [vmem:[%s2 + $0x2c] sm:$0xf]
      %v204 = vld [vmem:[%s2 + $0x30] sm:$0xf]
      %v205 = vld [vmem:[%s2 + $0x34] sm:$0xf]
      %v206 = vld [vmem:[%s2 + $0x38] sm:$0xf]
      %v207 = vld [vmem:[%s2 + $0x3c] sm:$0xf]
      %v208 = vld [vmem:[%s2 + $0x40] sm:$0xf]
      %v209 = vld [vmem:[%s2 + $0x44] sm:$0xf]
      %v210 = vld [vmem:[%s2 + $0x48] sm:$0xf]
      %v211 = vld [vmem:[%s2 + $0x4c] sm:$0xf]
      %v212 = vld [vmem:[%s2 + $0x50] sm:$0xf]
      %v213 = vld [vmem:[%s2 + $0x54] sm:$0xf]
      %v214 = vld [vmem:[%s2 + $0x58] sm:$0xf]
      %v215 = vld [vmem:[%s2 + $0x5c] sm:$0xf]
      %v216 = vld [vmem:[%s2 + $0x60] sm:$0xf]
      %v217 = vld [vmem:[%s2 + $0x64] sm:$0xf]
      %v218 = vld [vmem:[%s2 + $0x68] sm:$0xf]
      %v219 = vld [vmem:[%s2 + $0x6c] sm:$0xf]
      %v220 = vld [vmem:[%s2 + $0x70] sm:$0xf]
      %v221 = vld [vmem:[%s2 + $0x74] sm:$0xf]
      %v222 = vld [vmem:[%s2 + $0x78] sm:$0xf]
      %v223 = vld [vmem:[%s2 + $0x7c] sm:$0xf]
      %v224 = vlaneseq
      %v225 = vand.u32 %v224, 127
      %v226 = vadd.s32 %v225, 128
      %v227 = vadd.s32 %v225, 256
      %v228 = vadd.s32 %v225, 384
      %v229 = vadd.s32 %v225, 512
      %v230 = vadd.s32 %v225, 640
      %v231 = vadd.s32 %v225, 768
      %vm232 = vcmp.lt.s32.totalorder %v225, 0
      %v233 = vsub.s32 0, %v225
      %v234 = vsel %vm232, %v233, %v225
      %v235 = vmul.u32.u64.compose %v234, 2454267026
      %v236 = vextract.low.u32 %v235
      %v237 = vextract.high.u32 %v235
      %vm238 = vc.u32 %v236, 2454267026
      %v239 = vsel %vm238, 1, 0
      %v240 = vadd.s32 %v237, %v239
      %v241 = vshrl.u32 %v240, 4
      %v242 = vmul.u32 %v241, 28
      %v243 = vsub.s32 %v234, %v242
      %v244 = vsub.s32 0, %v243
      %v245 = vsel %vm232, %v244, %v243
      %vm246 = vcmp.lt.s32.totalorder %v226, 0
      %v247 = vsub.s32 0, %v226
      %v248 = vsel %vm246, %v247, %v226
      %v249 = vmul.u32.u64.compose %v248, 2454267026
      %v250 = vextract.low.u32 %v249
      %v251 = vextract.high.u32 %v249
      %vm252 = vc.u32 %v250, 2454267026
      %v253 = vsel %vm252, 1, 0
      %v254 = vadd.s32 %v251, %v253
      %v255 = vshrl.u32 %v254, 4
      %v256 = vmul.u32 %v255, 28
      %v257 = vsub.s32 %v248, %v256
      %v258 = vsub.s32 0, %v257
      %v259 = vsel %vm246, %v258, %v257
      %vm260 = vcmp.lt.s32.totalorder %v227, 0
      %v261 = vsub.s32 0, %v227
      %v262 = vsel %vm260, %v261, %v227
      %v263 = vmul.u32.u64.compose %v262, 2454267026
      %v264 = vextract.low.u32 %v263
      %v265 = vextract.high.u32 %v263
      %vm266 = vc.u32 %v264, 2454267026
      %v267 = vsel %vm266, 1, 0
      %v268 = vadd.s32 %v265, %v267
      %v269 = vshrl.u32 %v268, 4
      %v270 = vmul.u32 %v269, 28
      %v271 = vsub.s32 %v262, %v270
      %v272 = vsub.s32 0, %v271
      %v273 = vsel %vm260, %v272, %v271
      %vm274 = vcmp.lt.s32.totalorder %v228, 0
      %v275 = vsub.s32 0, %v228
      %v276 = vsel %vm274, %v275, %v228
      %v277 = vmul.u32.u64.compose %v276, 2454267026
      %v278 = vextract.low.u32 %v277
      %v279 = vextract.high.u32 %v277
      %vm280 = vc.u32 %v278, 2454267026
      %v281 = vsel %vm280, 1, 0
      %v282 = vadd.s32 %v279, %v281
      %v283 = vshrl.u32 %v282, 4
      %v284 = vmul.u32 %v283, 28
      %v285 = vsub.s32 %v276, %v284
      %v286 = vsub.s32 0, %v285
      %v287 = vsel %vm274, %v286, %v285
      %vm288 = vcmp.lt.s32.totalorder %v229, 0
      %v289 = vsub.s32 0, %v229
      %v290 = vsel %vm288, %v289, %v229
      %v291 = vmul.u32.u64.compose %v290, 2454267026
      %v292 = vextract.low.u32 %v291
      %v293 = vextract.high.u32 %v291
      %vm294 = vc.u32 %v292, 2454267026
      %v295 = vsel %vm294, 1, 0
      %v296 = vadd.s32 %v293, %v295
      %v297 = vshrl.u32 %v296, 4
      %v298 = vmul.u32 %v297, 28
      %v299 = vsub.s32 %v290, %v298
      %v300 = vsub.s32 0, %v299
      %v301 = vsel %vm288, %v300, %v299
      %vm302 = vcmp.lt.s32.totalorder %v230, 0
      %v303 = vsub.s32 0, %v230
      %v304 = vsel %vm302, %v303, %v230
      %v305 = vmul.u32.u64.compose %v304, 2454267026
      %v306 = vextract.low.u32 %v305
      %v307 = vextract.high.u32 %v305
      %vm308 = vc.u32 %v306, 2454267026
      %v309 = vsel %vm308, 1, 0
      %v310 = vadd.s32 %v307, %v309
      %v311 = vshrl.u32 %v310, 4
      %v312 = vmul.u32 %v311, 28
      %v313 = vsub.s32 %v304, %v312
      %v314 = vsub.s32 0, %v313
      %v315 = vsel %vm302, %v314, %v313
      %vm316 = vcmp.lt.s32.totalorder %v231, 0
      %v317 = vsub.s32 0, %v231
      %v318 = vsel %vm316, %v317, %v231
      %v319 = vmul.u32.u64.compose %v318, 2454267026
      %v320 = vextract.low.u32 %v319
      %v321 = vextract.high.u32 %v319
      %vm322 = vc.u32 %v320, 2454267026
      %v323 = vsel %vm322, 1, 0
      %v324 = vadd.s32 %v321, %v323
      %v325 = vshrl.u32 %v324, 4
      %v326 = vmul.u32 %v325, 28
      %v327 = vsub.s32 %v318, %v326
      %v328 = vsub.s32 0, %v327
      %v329 = vsel %vm316, %v328, %v327
      %vm330 = vcmp.ne.s32.totalorder %v245, 0
      %vm331 = vcmp.ne.s32.totalorder %v259, 0
      %vm332 = vcmp.ne.s32.totalorder %v273, 0
      %vm333 = vcmp.ne.s32.totalorder %v287, 0
      %vm334 = vcmp.ne.s32.totalorder %v301, 0
      %vm335 = vcmp.ne.s32.totalorder %v315, 0
      %vm336 = vcmp.ne.s32.totalorder %v329, 0
      %vm337 = vcmp.lt.s32.totalorder %v245, 0
      %vm338 = vcmp.lt.s32.totalorder %v259, 0
      %vm339 = vcmp.lt.s32.totalorder %v273, 0
      %vm340 = vcmp.lt.s32.totalorder %v287, 0
      %vm341 = vcmp.lt.s32.totalorder %v301, 0
      %vm342 = vcmp.lt.s32.totalorder %v315, 0
      %vm343 = vcmp.lt.s32.totalorder %v329, 0
      %vm344 = vmand %vm337, %vm330
      %vm345 = vmand %vm338, %vm331
      %vm346 = vmand %vm339, %vm332
      %vm347 = vmand %vm340, %vm333
      %vm348 = vmand %vm341, %vm334
      %vm349 = vmand %vm342, %vm335
      %vm350 = vmand %vm343, %vm336
      %v351 = vadd.s32 %v245, 28
      %v352 = vadd.s32 %v259, 28
      %v353 = vadd.s32 %v273, 28
      %v354 = vadd.s32 %v287, 28
      %v355 = vadd.s32 %v301, 28
      %v356 = vadd.s32 %v315, 28
      %v357 = vadd.s32 %v329, 28
      %v358 = vsel %vm344, %v351, %v245
      %v359 = vsel %vm345, %v352, %v259
      %v360 = vsel %vm346, %v353, %v273
      %v361 = vsel %vm347, %v354, %v287
      %v362 = vsel %vm348, %v355, %v301
      %v363 = vsel %vm349, %v356, %v315
      %v364 = vsel %vm350, %v357, %v329
      %vm365 = vcmp.lt.s32.totalorder %v225, 28
      %vm366 = vcmp.lt.s32.totalorder %v226, 28
      %vm367 = vcmp.lt.s32.totalorder %v227, 28
      %vm368 = vcmp.lt.s32.totalorder %v228, 28
      %vm369 = vcmp.lt.s32.totalorder %v229, 28
      %vm370 = vcmp.lt.s32.totalorder %v230, 28
      %vm371 = vcmp.lt.s32.totalorder %v231, 28
      %vm372 = vcmp.ge.s32.totalorder %v225, 756
      %vm373 = vcmp.ge.s32.totalorder %v226, 756
      %vm374 = vcmp.ge.s32.totalorder %v227, 756
      %vm375 = vcmp.ge.s32.totalorder %v228, 756
      %vm376 = vcmp.ge.s32.totalorder %v229, 756
      %vm377 = vcmp.ge.s32.totalorder %v230, 756
      %vm378 = vcmp.ge.s32.totalorder %v231, 756
      %vm379 = vcmp.eq.s32.totalorder %v358, 0
      %vm380 = vcmp.eq.s32.totalorder %v359, 0
      %vm381 = vcmp.eq.s32.totalorder %v360, 0
      %vm382 = vcmp.eq.s32.totalorder %v361, 0
      %vm383 = vcmp.eq.s32.totalorder %v362, 0
      %vm384 = vcmp.eq.s32.totalorder %v363, 0
      %vm385 = vcmp.eq.s32.totalorder %v364, 0
      %vm386 = vcmp.eq.s32.totalorder %v358, 27
      %vm387 = vcmp.eq.s32.totalorder %v359, 27
      %vm388 = vcmp.eq.s32.totalorder %v360, 27
      %vm389 = vcmp.eq.s32.totalorder %v361, 27
      %vm390 = vcmp.eq.s32.totalorder %v362, 27
      %vm391 = vcmp.eq.s32.totalorder %v363, 27
      %vm392 = vcmp.eq.s32.totalorder %v364, 27
      %v393 = vld [vmem:[%s170] sm:$0xff]
      %v394 = vld [vmem:[%s170 + $0x8] sm:$0xff]
      %v395 = vld [vmem:[%s170 + $0x10] sm:$0xff]
      %v396 = vld [vmem:[%s170 + $0x18] sm:$0xff]
      %v397 = vld [vmem:[%s170 + $0x20] sm:$0xff]
      %v398 = vld [vmem:[%s170 + $0x28] sm:$0xff]
      %v399 = vld [vmem:[%s170 + $0x30] sm:$0xff]
      %v400 = vld [vmem:[%s170 + $0x38] sm:$0xff]
      %v401 = vld [vmem:[%s170 + $0x40] sm:$0xff]
      %v402 = vld [vmem:[%s170 + $0x48] sm:$0xff]
      %v403 = vld [vmem:[%s170 + $0x50] sm:$0xff]
      %v404 = vld [vmem:[%s170 + $0x58] sm:$0xff]
      %v405 = vld [vmem:[%s170 + $0x60] sm:$0xff]
      %v406 = vld [vmem:[%s170 + $0x68] sm:$0xff]
      %v407 = vld [vmem:[%s170 + $0x70] sm:$0xff]
      %v408 = vld [vmem:[%s170 + $0x78] sm:$0xff]
      %v409 = vld [vmem:[%s170 + $0x80] sm:$0xff]
      %v410 = vld [vmem:[%s170 + $0x88] sm:$0xff]
      %v411 = vld [vmem:[%s170 + $0x90] sm:$0xff]
      %v412 = vld [vmem:[%s170 + $0x98] sm:$0xff]
      %v413 = vld [vmem:[%s170 + $0xa0] sm:$0xff]
      %v414 = vld [vmem:[%s170 + $0xa8] sm:$0xff]
      %v415 = vld [vmem:[%s170 + $0xb0] sm:$0xff]
      %v416 = vld [vmem:[%s170 + $0xb8] sm:$0xff]
      %v417 = vld [vmem:[%s170 + $0xc0] sm:$0xff]
      %v418 = vld [vmem:[%s170 + $0xc8] sm:$0xff]
      %v419 = vld [vmem:[%s170 + $0xd0] sm:$0xff]
      %v420 = vld [vmem:[%s170 + $0xd8] sm:$0xff]
      %v421 = vld [vmem:[%s170 + $0xe0] sm:$0xff]
      %v422 = vld [vmem:[%s170 + $0xe8] sm:$0xff]
      %v423 = vld [vmem:[%s170 + $0xf0] sm:$0xff]
      %v424 = vld [vmem:[%s170 + $0xf8] sm:$0xff]
      %v425 = vld [vmem:[%s170 + $0x100] sm:$0xff]
      %v426 = vld [vmem:[%s170 + $0x108] sm:$0xff]
      %v427 = vld [vmem:[%s170 + $0x110] sm:$0xff]
      %v428 = vld [vmem:[%s170 + $0x118] sm:$0xff]
      %v429 = vld [vmem:[%s170 + $0x120] sm:$0xff]
      %v430 = vld [vmem:[%s170 + $0x128] sm:$0xff]
      %v431 = vld [vmem:[%s170 + $0x130] sm:$0xff]
      %v432 = vld [vmem:[%s170 + $0x138] sm:$0xff]
      %v433 = vld [vmem:[%s170 + $0x140] sm:$0xff]
      %v434 = vld [vmem:[%s170 + $0x148] sm:$0xff]
      %v435 = vld [vmem:[%s170 + $0x150] sm:$0xff]
      %v436 = vld [vmem:[%s170 + $0x158] sm:$0xff]
      %v437 = vld [vmem:[%s170 + $0x160] sm:$0xff]
      %v438 = vld [vmem:[%s170 + $0x168] sm:$0xff]
      %v439 = vld [vmem:[%s170 + $0x170] sm:$0xff]
      %v440 = vld [vmem:[%s170 + $0x178] sm:$0xff]
      %v441 = vld [vmem:[%s170 + $0x180] sm:$0xff]
      %v442 = vld [vmem:[%s170 + $0x188] sm:$0xff]
      %v443 = vld [vmem:[%s170 + $0x190] sm:$0xff]
      %v444 = vld [vmem:[%s170 + $0x198] sm:$0xff]
      %v445 = vld [vmem:[%s170 + $0x1a0] sm:$0xff]
      %v446 = vld [vmem:[%s170 + $0x1a8] sm:$0xff]
      %v447 = vld [vmem:[%s170 + $0x1b0] sm:$0xff]
      %v448 = vld [vmem:[%s170 + $0x1b8] sm:$0xff]
      %v449 = vld [vmem:[%s170 + $0x1c0] sm:$0xff]
      %v450 = vld [vmem:[%s170 + $0x1c8] sm:$0xff]
      %v451 = vld [vmem:[%s170 + $0x1d0] sm:$0xff]
      %v452 = vld [vmem:[%s170 + $0x1d8] sm:$0xff]
      %v453 = vld [vmem:[%s170 + $0x1e0] sm:$0xff]
      %v454 = vld [vmem:[%s170 + $0x1e8] sm:$0xff]
      %v455 = vld [vmem:[%s170 + $0x1f0] sm:$0xff]
      %v456 = vld [vmem:[%s170 + $0x1f8] sm:$0xff]
      %v457 = vld [vmem:[%s170 + $0x200] sm:$0xff]
      %v458 = vld [vmem:[%s170 + $0x208] sm:$0xff]
      %v459 = vld [vmem:[%s170 + $0x210] sm:$0xff]
      %v460 = vld [vmem:[%s170 + $0x218] sm:$0xff]
      %v461 = vld [vmem:[%s170 + $0x220] sm:$0xff]
      %v462 = vld [vmem:[%s170 + $0x228] sm:$0xff]
      %v463 = vld [vmem:[%s170 + $0x230] sm:$0xff]
      %v464 = vld [vmem:[%s170 + $0x238] sm:$0xff]
      %v465 = vld [vmem:[%s170 + $0x240] sm:$0xff]
      %v466 = vld [vmem:[%s170 + $0x248] sm:$0xff]
      %v467 = vld [vmem:[%s170 + $0x250] sm:$0xff]
      %v468 = vld [vmem:[%s170 + $0x258] sm:$0xff]
      %v469 = vld [vmem:[%s170 + $0x260] sm:$0xff]
      %v470 = vld [vmem:[%s170 + $0x268] sm:$0xff]
      %v471 = vld [vmem:[%s170 + $0x270] sm:$0xff]
      %v472 = vld [vmem:[%s170 + $0x278] sm:$0xff]
      %v473 = vld [vmem:[%s170 + $0x280] sm:$0xff]
      %v474 = vld [vmem:[%s170 + $0x288] sm:$0xff]
      %v475 = vld [vmem:[%s170 + $0x290] sm:$0xff]
      %v476 = vld [vmem:[%s170 + $0x298] sm:$0xff]
      %v477 = vld [vmem:[%s170 + $0x2a0] sm:$0xff]
      %v478 = vld [vmem:[%s170 + $0x2a8] sm:$0xff]
      %v479 = vld [vmem:[%s170 + $0x2b0] sm:$0xff]
      %v480 = vld [vmem:[%s170 + $0x2b8] sm:$0xff]
      %v481 = vld [vmem:[%s170 + $0x2c0] sm:$0xff]
      %v482 = vld [vmem:[%s170 + $0x2c8] sm:$0xff]
      %v483 = vld [vmem:[%s170 + $0x2d0] sm:$0xff]
      %v484 = vld [vmem:[%s170 + $0x2d8] sm:$0xff]
      %v485 = vld [vmem:[%s170 + $0x2e0] sm:$0xff]
      %v486 = vld [vmem:[%s170 + $0x2e8] sm:$0xff]
      %v487 = vld [vmem:[%s170 + $0x2f0] sm:$0xff]
      %v488 = vld [vmem:[%s170 + $0x2f8] sm:$0xff]
      %v489 = vld [vmem:[%s170 + $0x300] sm:$0xff]
      %v490 = vld [vmem:[%s170 + $0x308] sm:$0xff]
      %v491 = vld [vmem:[%s170 + $0x310] sm:$0xff]
      %v492 = vld [vmem:[%s170 + $0x318] sm:$0xff]
      %v493 = vld [vmem:[%s170 + $0x320] sm:$0xff]
      %v494 = vld [vmem:[%s170 + $0x328] sm:$0xff]
      %v495 = vld [vmem:[%s170 + $0x330] sm:$0xff]
      %v496 = vld [vmem:[%s170 + $0x338] sm:$0xff]
      %v497 = vld [vmem:[%s170 + $0x340] sm:$0xff]
      %v498 = vld [vmem:[%s170 + $0x348] sm:$0xff]
      %v499 = vld [vmem:[%s170 + $0x350] sm:$0xff]
      %v500 = vld [vmem:[%s170 + $0x358] sm:$0xff]
      %v501 = vld [vmem:[%s170 + $0x360] sm:$0xff]
      %v502 = vld [vmem:[%s170 + $0x368] sm:$0xff]
      %v503 = vld [vmem:[%s170 + $0x370] sm:$0xff]
      %v504 = vld [vmem:[%s170 + $0x378] sm:$0xff]
      %v505 = vld [vmem:[%s170 + $0x380] sm:$0xff]
      %v506 = vld [vmem:[%s170 + $0x388] sm:$0xff]
      %v507 = vld [vmem:[%s170 + $0x390] sm:$0xff]
      %v508 = vld [vmem:[%s170 + $0x398] sm:$0xff]
      %v509 = vld [vmem:[%s170 + $0x3a0] sm:$0xff]
      %v510 = vld [vmem:[%s170 + $0x3a8] sm:$0xff]
      %v511 = vld [vmem:[%s170 + $0x3b0] sm:$0xff]
      %v512 = vld [vmem:[%s170 + $0x3b8] sm:$0xff]
      %v513 = vld [vmem:[%s170 + $0x3c0] sm:$0xff]
      %v514 = vld [vmem:[%s170 + $0x3c8] sm:$0xff]
      %v515 = vld [vmem:[%s170 + $0x3d0] sm:$0xff]
      %v516 = vld [vmem:[%s170 + $0x3d8] sm:$0xff]
      %v517 = vld [vmem:[%s170 + $0x3e0] sm:$0xff]
      %v518 = vld [vmem:[%s170 + $0x3e8] sm:$0xff]
      %v519 = vld [vmem:[%s170 + $0x3f0] sm:$0xff]
      %v520 = vld [vmem:[%s170 + $0x3f8] sm:$0xff]
      %v521 = vld [vmem:[%s170 + $0x400] sm:$0xff]
      %v522 = vld [vmem:[%s170 + $0x408] sm:$0xff]
      %v523 = vld [vmem:[%s170 + $0x410] sm:$0xff]
      %v524 = vld [vmem:[%s170 + $0x418] sm:$0xff]
      %v525 = vld [vmem:[%s170 + $0x420] sm:$0xff]
      %v526 = vld [vmem:[%s170 + $0x428] sm:$0xff]
      %v527 = vld [vmem:[%s170 + $0x430] sm:$0xff]
      %v528 = vld [vmem:[%s170 + $0x438] sm:$0xff]
      %v529 = vld [vmem:[%s170 + $0x440] sm:$0xff]
      %v530 = vld [vmem:[%s170 + $0x448] sm:$0xff]
      %v531 = vld [vmem:[%s170 + $0x450] sm:$0xff]
      %v532 = vld [vmem:[%s170 + $0x458] sm:$0xff]
      %v533 = vld [vmem:[%s170 + $0x460] sm:$0xff]
      %v534 = vld [vmem:[%s170 + $0x468] sm:$0xff]
      %v535 = vld [vmem:[%s170 + $0x470] sm:$0xff]
      %v536 = vld [vmem:[%s170 + $0x478] sm:$0xff]
      %v537 = vld [vmem:[%s170 + $0x480] sm:$0xff]
      %v538 = vld [vmem:[%s170 + $0x488] sm:$0xff]
      %v539 = vld [vmem:[%s170 + $0x490] sm:$0xff]
      %v540 = vld [vmem:[%s170 + $0x498] sm:$0xff]
      %v541 = vld [vmem:[%s170 + $0x4a0] sm:$0xff]
      %v542 = vld [vmem:[%s170 + $0x4a8] sm:$0xff]
      %v543 = vld [vmem:[%s170 + $0x4b0] sm:$0xff]
      %v544 = vld [vmem:[%s170 + $0x4b8] sm:$0xff]
      %v545 = vld [vmem:[%s170 + $0x4c0] sm:$0xff]
      %v546 = vld [vmem:[%s170 + $0x4c8] sm:$0xff]
      %v547 = vld [vmem:[%s170 + $0x4d0] sm:$0xff]
      %v548 = vld [vmem:[%s170 + $0x4d8] sm:$0xff]
      %v549 = vld [vmem:[%s170 + $0x4e0] sm:$0xff]
      %v550 = vld [vmem:[%s170 + $0x4e8] sm:$0xff]
      %v551 = vld [vmem:[%s170 + $0x4f0] sm:$0xff]
      %v552 = vld [vmem:[%s170 + $0x4f8] sm:$0xff]
      %v553 = vld [vmem:[%s170 + $0x500] sm:$0xff]
      %v554 = vld [vmem:[%s170 + $0x508] sm:$0xff]
      %v555 = vld [vmem:[%s170 + $0x510] sm:$0xff]
      %v556 = vld [vmem:[%s170 + $0x518] sm:$0xff]
      %v557 = vld [vmem:[%s170 + $0x520] sm:$0xff]
      %v558 = vld [vmem:[%s170 + $0x528] sm:$0xff]
      %v559 = vld [vmem:[%s170 + $0x530] sm:$0xff]
      %v560 = vld [vmem:[%s170 + $0x538] sm:$0xff]
      %v561 = vld [vmem:[%s170 + $0x540] sm:$0xff]
      %v562 = vld [vmem:[%s170 + $0x548] sm:$0xff]
      %v563 = vld [vmem:[%s170 + $0x550] sm:$0xff]
      %v564 = vld [vmem:[%s170 + $0x558] sm:$0xff]
      %v565 = vld [vmem:[%s170 + $0x560] sm:$0xff]
      %v566 = vld [vmem:[%s170 + $0x568] sm:$0xff]
      %v567 = vld [vmem:[%s170 + $0x570] sm:$0xff]
      %v568 = vld [vmem:[%s170 + $0x578] sm:$0xff]
      %v569 = vld [vmem:[%s170 + $0x580] sm:$0xff]
      %v570 = vld [vmem:[%s170 + $0x588] sm:$0xff]
      %v571 = vld [vmem:[%s170 + $0x590] sm:$0xff]
      %v572 = vld [vmem:[%s170 + $0x598] sm:$0xff]
      %v573 = vld [vmem:[%s170 + $0x5a0] sm:$0xff]
      %v574 = vld [vmem:[%s170 + $0x5a8] sm:$0xff]
      %v575 = vld [vmem:[%s170 + $0x5b0] sm:$0xff]
      %v576 = vld [vmem:[%s170 + $0x5b8] sm:$0xff]
      %v577 = vld [vmem:[%s170 + $0x5c0] sm:$0xff]
      %v578 = vld [vmem:[%s170 + $0x5c8] sm:$0xff]
      %v579 = vld [vmem:[%s170 + $0x5d0] sm:$0xff]
      %v580 = vld [vmem:[%s170 + $0x5d8] sm:$0xff]
      %v581 = vld [vmem:[%s170 + $0x5e0] sm:$0xff]
      %v582 = vld [vmem:[%s170 + $0x5e8] sm:$0xff]
      %v583 = vld [vmem:[%s170 + $0x5f0] sm:$0xff]
      %v584 = vld [vmem:[%s170 + $0x5f8] sm:$0xff]
      %v585 = vld [vmem:[%s170 + $0x600] sm:$0xff]
      %v586 = vld [vmem:[%s170 + $0x608] sm:$0xff]
      %v587 = vld [vmem:[%s170 + $0x610] sm:$0xff]
      %v588 = vld [vmem:[%s170 + $0x618] sm:$0xff]
      %v589 = vld [vmem:[%s170 + $0x620] sm:$0xff]
      %v590 = vld [vmem:[%s170 + $0x628] sm:$0xff]
      %v591 = vld [vmem:[%s170 + $0x630] sm:$0xff]
      %v592 = vld [vmem:[%s170 + $0x638] sm:$0xff]
      %v593 = vld [vmem:[%s170 + $0x640] sm:$0xff]
      %v594 = vld [vmem:[%s170 + $0x648] sm:$0xff]
      %v595 = vld [vmem:[%s170 + $0x650] sm:$0xff]
      %v596 = vld [vmem:[%s170 + $0x658] sm:$0xff]
      %v597 = vld [vmem:[%s170 + $0x660] sm:$0xff]
      %v598 = vld [vmem:[%s170 + $0x668] sm:$0xff]
      %v599 = vld [vmem:[%s170 + $0x670] sm:$0xff]
      %v600 = vld [vmem:[%s170 + $0x678] sm:$0xff]
      %v601 = vld [vmem:[%s170 + $0x680] sm:$0xff]
      %v602 = vld [vmem:[%s170 + $0x688] sm:$0xff]
      %v603 = vld [vmem:[%s170 + $0x690] sm:$0xff]
      %v604 = vld [vmem:[%s170 + $0x698] sm:$0xff]
      %v605 = vld [vmem:[%s170 + $0x6a0] sm:$0xff]
      %v606 = vld [vmem:[%s170 + $0x6a8] sm:$0xff]
      %v607 = vld [vmem:[%s170 + $0x6b0] sm:$0xff]
      %v608 = vld [vmem:[%s170 + $0x6b8] sm:$0xff]
      %v609 = vld [vmem:[%s170 + $0x6c0] sm:$0xff]
      %v610 = vld [vmem:[%s170 + $0x6c8] sm:$0xff]
      %v611 = vld [vmem:[%s170 + $0x6d0] sm:$0xff]
      %v612 = vld [vmem:[%s170 + $0x6d8] sm:$0xff]
      %v613 = vld [vmem:[%s170 + $0x6e0] sm:$0xff]
      %v614 = vld [vmem:[%s170 + $0x6e8] sm:$0xff]
      %v615 = vld [vmem:[%s170 + $0x6f0] sm:$0xff]
      %v616 = vld [vmem:[%s170 + $0x6f8] sm:$0xff]
      %v617 = vpack.c.bf16 %v400, %v393
      %v618 = vpack.c.bf16 %v401, %v394
      %v619 = vpack.c.bf16 %v402, %v395
      %v620 = vpack.c.bf16 %v403, %v396
      %v621 = vpack.c.bf16 %v404, %v397
      %v622 = vpack.c.bf16 %v405, %v398
      %v623 = vpack.c.bf16 %v406, %v399
      %v624 = vpack.c.bf16 %v414, %v407
      %v625 = vpack.c.bf16 %v415, %v408
      %v626 = vpack.c.bf16 %v416, %v409
      %v627 = vpack.c.bf16 %v417, %v410
      %v628 = vpack.c.bf16 %v418, %v411
      %v629 = vpack.c.bf16 %v419, %v412
      %v630 = vpack.c.bf16 %v420, %v413
      %v631 = vpack.c.bf16 %v428, %v421
      %v632 = vpack.c.bf16 %v429, %v422
      %v633 = vpack.c.bf16 %v430, %v423
      %v634 = vpack.c.bf16 %v431, %v424
      %v635 = vpack.c.bf16 %v432, %v425
      %v636 = vpack.c.bf16 %v433, %v426
      %v637 = vpack.c.bf16 %v434, %v427
      %v638 = vpack.c.bf16 %v442, %v435
      %v639 = vpack.c.bf16 %v443, %v436
      %v640 = vpack.c.bf16 %v444, %v437
      %v641 = vpack.c.bf16 %v445, %v438
      %v642 = vpack.c.bf16 %v446, %v439
      %v643 = vpack.c.bf16 %v447, %v440
      %v644 = vpack.c.bf16 %v448, %v441
      %v645 = vpack.c.bf16 %v456, %v449
      %v646 = vpack.c.bf16 %v457, %v450
      %v647 = vpack.c.bf16 %v458, %v451
      %v648 = vpack.c.bf16 %v459, %v452
      %v649 = vpack.c.bf16 %v460, %v453
      %v650 = vpack.c.bf16 %v461, %v454
      %v651 = vpack.c.bf16 %v462, %v455
      %v652 = vpack.c.bf16 %v470, %v463
      %v653 = vpack.c.bf16 %v471, %v464
      %v654 = vpack.c.bf16 %v472, %v465
      %v655 = vpack.c.bf16 %v473, %v466
      %v656 = vpack.c.bf16 %v474, %v467
      %v657 = vpack.c.bf16 %v475, %v468
      %v658 = vpack.c.bf16 %v476, %v469
      %v659 = vpack.c.bf16 %v484, %v477
      %v660 = vpack.c.bf16 %v485, %v478
      %v661 = vpack.c.bf16 %v486, %v479
      %v662 = vpack.c.bf16 %v487, %v480
      %v663 = vpack.c.bf16 %v488, %v481
      %v664 = vpack.c.bf16 %v489, %v482
      %v665 = vpack.c.bf16 %v490, %v483
      %v666 = vpack.c.bf16 %v498, %v491
      %v667 = vpack.c.bf16 %v499, %v492
      %v668 = vpack.c.bf16 %v500, %v493
      %v669 = vpack.c.bf16 %v501, %v494
      %v670 = vpack.c.bf16 %v502, %v495
      %v671 = vpack.c.bf16 %v503, %v496
      %v672 = vpack.c.bf16 %v504, %v497
      %v673 = vpack.c.bf16 %v512, %v505
      %v674 = vpack.c.bf16 %v513, %v506
      %v675 = vpack.c.bf16 %v514, %v507
      %v676 = vpack.c.bf16 %v515, %v508
      %v677 = vpack.c.bf16 %v516, %v509
      %v678 = vpack.c.bf16 %v517, %v510
      %v679 = vpack.c.bf16 %v518, %v511
      %v680 = vpack.c.bf16 %v526, %v519
      %v681 = vpack.c.bf16 %v527, %v520
      %v682 = vpack.c.bf16 %v528, %v521
      %v683 = vpack.c.bf16 %v529, %v522
      %v684 = vpack.c.bf16 %v530, %v523
      %v685 = vpack.c.bf16 %v531, %v524
      %v686 = vpack.c.bf16 %v532, %v525
      %v687 = vpack.c.bf16 %v540, %v533
      %v688 = vpack.c.bf16 %v541, %v534
      %v689 = vpack.c.bf16 %v542, %v535
      %v690 = vpack.c.bf16 %v543, %v536
      %v691 = vpack.c.bf16 %v544, %v537
      %v692 = vpack.c.bf16 %v545, %v538
      %v693 = vpack.c.bf16 %v546, %v539
      %v694 = vpack.c.bf16 %v554, %v547
      %v695 = vpack.c.bf16 %v555, %v548
      %v696 = vpack.c.bf16 %v556, %v549
      %v697 = vpack.c.bf16 %v557, %v550
      %v698 = vpack.c.bf16 %v558, %v551
      %v699 = vpack.c.bf16 %v559, %v552
      %v700 = vpack.c.bf16 %v560, %v553
      %v701 = vpack.c.bf16 %v568, %v561
      %v702 = vpack.c.bf16 %v569, %v562
      %v703 = vpack.c.bf16 %v570, %v563
      %v704 = vpack.c.bf16 %v571, %v564
      %v705 = vpack.c.bf16 %v572, %v565
      %v706 = vpack.c.bf16 %v573, %v566
      %v707 = vpack.c.bf16 %v574, %v567
      %v708 = vpack.c.bf16 %v582, %v575
      %v709 = vpack.c.bf16 %v583, %v576
      %v710 = vpack.c.bf16 %v584, %v577
      %v711 = vpack.c.bf16 %v585, %v578
      %v712 = vpack.c.bf16 %v586, %v579
      %v713 = vpack.c.bf16 %v587, %v580
      %v714 = vpack.c.bf16 %v588, %v581
      %v715 = vpack.c.bf16 %v596, %v589
      %v716 = vpack.c.bf16 %v597, %v590
      %v717 = vpack.c.bf16 %v598, %v591
      %v718 = vpack.c.bf16 %v599, %v592
      %v719 = vpack.c.bf16 %v600, %v593
      %v720 = vpack.c.bf16 %v601, %v594
      %v721 = vpack.c.bf16 %v602, %v595
      %v722 = vpack.c.bf16 %v610, %v603
      %v723 = vpack.c.bf16 %v611, %v604
      %v724 = vpack.c.bf16 %v612, %v605
      %v725 = vpack.c.bf16 %v613, %v606
      %v726 = vpack.c.bf16 %v614, %v607
      %v727 = vpack.c.bf16 %v615, %v608
      %v728 = vpack.c.bf16 %v616, %v609
      %v741 = vunpack.c.l.b16 %v180
      %v742 = vunpack.c.h.b16 %v180
      %v743 = vunpack.c.l.b16 %v181
      %v744 = vunpack.c.h.b16 %v181
      %v745 = vunpack.c.l.b16 %v182
      %v746 = vunpack.c.h.b16 %v182
      %v747 = vunpack.c.l.b16 %v183
      %v748 = vunpack.c.h.b16 %v183
      %v749 = vunpack.c.l.b16 %v184
      %v750 = vunpack.c.h.b16 %v184
      %v751 = vunpack.c.l.b16 %v185
      %v752 = vunpack.c.h.b16 %v185
      %v753 = vunpack.c.l.b16 %v186
      %v754 = vunpack.c.h.b16 %v186
      %v755 = vunpack.c.l.b16 %v187
      %v756 = vunpack.c.h.b16 %v187
      %v757 = vunpack.c.l.b16 %v188
      %v758 = vunpack.c.h.b16 %v188
      %v759 = vunpack.c.l.b16 %v189
      %v760 = vunpack.c.h.b16 %v189
      %v761 = vunpack.c.l.b16 %v190
      %v762 = vunpack.c.h.b16 %v190
      %v763 = vunpack.c.l.b16 %v191
      %v764 = vunpack.c.h.b16 %v191
      %v765 = vpack.c.b16 %v743, %v741
      %v766 = vpack.c.b16 %v744, %v742
      %v767 = vpack.c.b16 %v747, %v745
      %v768 = vpack.c.b16 %v748, %v746
      %v769 = vpack.c.b16 %v751, %v749
      %v770 = vpack.c.b16 %v752, %v750
      %v771 = vpack.c.b16 %v755, %v753
      %v772 = vpack.c.b16 %v756, %v754
      %v773 = vpack.c.b16 %v759, %v757
      %v774 = vpack.c.b16 %v760, %v758
      %v775 = vpack.c.b16 %v763, %v761
      %v776 = vpack.c.b16 %v764, %v762
      %789 = vmatprep.subr.bf16.mxu0 %v667
      %790 = vmatpush1.bf16.msra.mxu0 %v666
      %791 = vmatprep.subr.bf16.mxu0 %v660
      %792 = vmatpush1.bf16.msra.mxu0 %v659
      %793 = vmatprep.subr.bf16.mxu0 %v653
      %794 = vmatpush1.bf16.msra.mxu0 %v652
      %795 = vmatprep.subr.bf16.mxu0 %v646
      %796 = vmatpush1.bf16.msra.mxu0 %v645
      %797 = vmatprep.subr.bf16.mxu0 %v639
      %798 = vmatpush1.bf16.msra.mxu0 %v638
      %799 = vmatprep.subr.bf16.mxu0 %v632
      %800 = vmatpush1.bf16.msra.mxu0 %v631
      %801 = vmatprep.subr.bf16.mxu0 %v625
      %802 = vmatpush1.bf16.msra.mxu0 %v624
      %803 = vmatprep.subr.bf16.mxu0 %v618
      %804 = vmatpush1.bf16.msra.mxu0 %v617
      %805 = vmatprep.subr.bf16.mxu0 %v723
      %806 = vmatpush2.bf16.msra.mxu0 %v722
      %807 = vmatprep.subr.bf16.mxu0 %v716
      %808 = vmatpush2.bf16.msra.mxu0 %v715
      %809 = vmatprep.subr.bf16.mxu0 %v709
      %810 = vmatpush2.bf16.msra.mxu0 %v708
      %811 = vmatprep.subr.bf16.mxu0 %v702
      %812 = vmatpush2.bf16.msra.mxu0 %v701
      %813 = vmatprep.subr.bf16.mxu0 %v695
      %814 = vmatpush2.bf16.msra.mxu0 %v694
      %815 = vmatprep.subr.bf16.mxu0 %v688
      %816 = vmatpush2.bf16.msra.mxu0 %v687
      %817 = vmatprep.subr.bf16.mxu0 %v681
      %818 = vmatpush2.bf16.msra.mxu0 %v680
      %819 = vmatprep.subr.bf16.mxu0 %v674
      %820 = vmatpush2.bf16.msra.mxu0 %v673
      %821 = vmatprep.mubr.bf16.mxu0 %v766
      %822 = vmatmul.mubr.bf16.gmra.mxu0 %v765
      %v823 = vpop.f32.mrf.mxu0
      %v824 = vadd.f32 0.0, %v823
      %v825 = vpop.f32.mrf.mxu0
      %v826 = vadd.f32 0.0, %v825
      %v827 = vpop.f32.mrf.mxu0
      %v828 = vadd.f32 0.0, %v827
      %v829 = vpop.f32.mrf.mxu0
      %v830 = vadd.f32 0.0, %v829
      %831 = vmatprep.mubr.bf16.mxu0 %v768
      %832 = vmatmul.mubr.bf16.gmra.mxu0 %v767
      %v833 = vpop.f32.mrf.mxu0
      %v834 = vadd.f32 0.0, %v833
      %v835 = vpop.f32.mrf.mxu0
      %v836 = vadd.f32 0.0, %v835
      %v837 = vpop.f32.mrf.mxu0
      %v838 = vadd.f32 0.0, %v837
      %v839 = vpop.f32.mrf.mxu0
      %v840 = vadd.f32 0.0, %v839
      %841 = vmatprep.mubr.bf16.mxu0 %v770
      %842 = vmatmul.mubr.bf16.gmra.mxu0 %v769
      %v843 = vpop.f32.mrf.mxu0
      %v844 = vadd.f32 0.0, %v843
      %v845 = vpop.f32.mrf.mxu0
      %v846 = vadd.f32 0.0, %v845
      %v847 = vpop.f32.mrf.mxu0
      %v848 = vadd.f32 0.0, %v847
      %v849 = vpop.f32.mrf.mxu0
      %v850 = vadd.f32 0.0, %v849
      %851 = vmatprep.mubr.bf16.mxu0 %v772
      %852 = vmatmul.mubr.bf16.gmra.mxu0 %v771
      %v853 = vpop.f32.mrf.mxu0
      %v854 = vadd.f32 0.0, %v853
      %v855 = vpop.f32.mrf.mxu0
      %v856 = vadd.f32 0.0, %v855
      %v857 = vpop.f32.mrf.mxu0
      %v858 = vadd.f32 0.0, %v857
      %v859 = vpop.f32.mrf.mxu0
      %v860 = vadd.f32 0.0, %v859
      %861 = vmatprep.mubr.bf16.mxu0 %v774
      %862 = vmatmul.mubr.bf16.gmra.mxu0 %v773
      %v863 = vpop.f32.mrf.mxu0
      %v864 = vadd.f32 0.0, %v863
      %v865 = vpop.f32.mrf.mxu0
      %v866 = vadd.f32 0.0, %v865
      %v867 = vpop.f32.mrf.mxu0
      %v868 = vadd.f32 0.0, %v867
      %v869 = vpop.f32.mrf.mxu0
      %v870 = vadd.f32 0.0, %v869
      %871 = vmatprep.mubr.bf16.mxu0 %v776
      %872 = vmatmul.mubr.bf16.gmra.mxu0 %v775
      %v873 = vpop.f32.mrf.mxu0
      %v874 = vadd.f32 0.0, %v873
      %v875 = vpop.f32.mrf.mxu0
      %v876 = vadd.f32 0.0, %v875
      %v877 = vpop.f32.mrf.mxu0
      %v878 = vadd.f32 0.0, %v877
      %v879 = vpop.f32.mrf.mxu0
      %v880 = vadd.f32 0.0, %v879
      %881 = vdwg.mxu0
      %882 = vmatprep.subr.bf16.mxu0 %v669
      %883 = vmatpush1.bf16.msra.mxu0 %v668
      %884 = vmatprep.subr.bf16.mxu0 %v662
      %885 = vmatpush1.bf16.msra.mxu0 %v661
      %886 = vmatprep.subr.bf16.mxu0 %v655
      %887 = vmatpush1.bf16.msra.mxu0 %v654
      %888 = vmatprep.subr.bf16.mxu0 %v648
      %889 = vmatpush1.bf16.msra.mxu0 %v647
      %890 = vmatprep.subr.bf16.mxu0 %v641
      %891 = vmatpush1.bf16.msra.mxu0 %v640
      %892 = vmatprep.subr.bf16.mxu0 %v634
      %893 = vmatpush1.bf16.msra.mxu0 %v633
      %894 = vmatprep.subr.bf16.mxu0 %v627
      %895 = vmatpush1.bf16.msra.mxu0 %v626
      %896 = vmatprep.subr.bf16.mxu0 %v620
      %897 = vmatpush1.bf16.msra.mxu0 %v619
      %898 = vmatprep.subr.bf16.mxu0 %v725
      %899 = vmatpush2.bf16.msra.mxu0 %v724
      %900 = vmatprep.subr.bf16.mxu0 %v718
      %901 = vmatpush2.bf16.msra.mxu0 %v717
      %902 = vmatprep.subr.bf16.mxu0 %v711
      %903 = vmatpush2.bf16.msra.mxu0 %v710
      %904 = vmatprep.subr.bf16.mxu0 %v704
      %905 = vmatpush2.bf16.msra.mxu0 %v703
      %906 = vmatprep.subr.bf16.mxu0 %v697
      %907 = vmatpush2.bf16.msra.mxu0 %v696
      %908 = vmatprep.subr.bf16.mxu0 %v690
      %909 = vmatpush2.bf16.msra.mxu0 %v689
      %910 = vmatprep.subr.bf16.mxu0 %v683
      %911 = vmatpush2.bf16.msra.mxu0 %v682
      %912 = vmatprep.subr.bf16.mxu0 %v676
      %913 = vmatpush2.bf16.msra.mxu0 %v675
      %914 = vmatprep.mubr.bf16.mxu0 %v766
      %915 = vmatmul.mubr.bf16.gmra.mxu0 %v765
      %v916 = vpop.f32.mrf.mxu0
      %v917 = vadd.f32 0.0, %v916
      %v918 = vpop.f32.mrf.mxu0
      %v919 = vadd.f32 0.0, %v918
      %v920 = vpop.f32.mrf.mxu0
      %v921 = vadd.f32 0.0, %v920
      %v922 = vpop.f32.mrf.mxu0
      %v923 = vadd.f32 0.0, %v922
      %924 = vmatprep.mubr.bf16.mxu0 %v768
      %925 = vmatmul.mubr.bf16.gmra.mxu0 %v767
      %v926 = vpop.f32.mrf.mxu0
      %v927 = vadd.f32 0.0, %v926
      %v928 = vpop.f32.mrf.mxu0
      %v929 = vadd.f32 0.0, %v928
      %v930 = vpop.f32.mrf.mxu0
      %v931 = vadd.f32 0.0, %v930
      %v932 = vpop.f32.mrf.mxu0
      %v933 = vadd.f32 0.0, %v932
      %934 = vmatprep.mubr.bf16.mxu0 %v770
      %935 = vmatmul.mubr.bf16.gmra.mxu0 %v769
      %v936 = vpop.f32.mrf.mxu0
      %v937 = vadd.f32 0.0, %v936
      %v938 = vpop.f32.mrf.mxu0
      %v939 = vadd.f32 0.0, %v938
      %v940 = vpop.f32.mrf.mxu0
      %v941 = vadd.f32 0.0, %v940
      %v942 = vpop.f32.mrf.mxu0
      %v943 = vadd.f32 0.0, %v942
      %944 = vmatprep.mubr.bf16.mxu0 %v772
      %945 = vmatmul.mubr.bf16.gmra.mxu0 %v771
      %v946 = vpop.f32.mrf.mxu0
      %v947 = vadd.f32 0.0, %v946
      %v948 = vpop.f32.mrf.mxu0
      %v949 = vadd.f32 0.0, %v948
      %v950 = vpop.f32.mrf.mxu0
      %v951 = vadd.f32 0.0, %v950
      %v952 = vpop.f32.mrf.mxu0
      %v953 = vadd.f32 0.0, %v952
      %954 = vmatprep.mubr.bf16.mxu0 %v774
      %955 = vmatmul.mubr.bf16.gmra.mxu0 %v773
      %v956 = vpop.f32.mrf.mxu0
      %v957 = vadd.f32 0.0, %v956
      %v958 = vpop.f32.mrf.mxu0
      %v959 = vadd.f32 0.0, %v958
      %v960 = vpop.f32.mrf.mxu0
      %v961 = vadd.f32 0.0, %v960
      %v962 = vpop.f32.mrf.mxu0
      %v963 = vadd.f32 0.0, %v962
      %964 = vmatprep.mubr.bf16.mxu0 %v776
      %965 = vmatmul.mubr.bf16.gmra.mxu0 %v775
      %v966 = vpop.f32.mrf.mxu0
      %v967 = vadd.f32 0.0, %v966
      %v968 = vpop.f32.mrf.mxu0
      %v969 = vadd.f32 0.0, %v968
      %v970 = vpop.f32.mrf.mxu0
      %v971 = vadd.f32 0.0, %v970
      %v972 = vpop.f32.mrf.mxu0
      %v973 = vadd.f32 0.0, %v972
      %974 = vdwg.mxu0
      %975 = vmatprep.subr.bf16.mxu0 %v671
      %976 = vmatpush1.bf16.msra.mxu0 %v670
      %977 = vmatprep.subr.bf16.mxu0 %v664
      %978 = vmatpush1.bf16.msra.mxu0 %v663
      %979 = vmatprep.subr.bf16.mxu0 %v657
      %980 = vmatpush1.bf16.msra.mxu0 %v656
      %981 = vmatprep.subr.bf16.mxu0 %v650
      %982 = vmatpush1.bf16.msra.mxu0 %v649
      %983 = vmatprep.subr.bf16.mxu0 %v643
      %984 = vmatpush1.bf16.msra.mxu0 %v642
      %985 = vmatprep.subr.bf16.mxu0 %v636
      %986 = vmatpush1.bf16.msra.mxu0 %v635
      %987 = vmatprep.subr.bf16.mxu0 %v629
      %988 = vmatpush1.bf16.msra.mxu0 %v628
      %989 = vmatprep.subr.bf16.mxu0 %v622
      %990 = vmatpush1.bf16.msra.mxu0 %v621
      %991 = vmatprep.subr.bf16.mxu0 %v727
      %992 = vmatpush2.bf16.msra.mxu0 %v726
      %993 = vmatprep.subr.bf16.mxu0 %v720
      %994 = vmatpush2.bf16.msra.mxu0 %v719
      %995 = vmatprep.subr.bf16.mxu0 %v713
      %996 = vmatpush2.bf16.msra.mxu0 %v712
      %997 = vmatprep.subr.bf16.mxu0 %v706
      %998 = vmatpush2.bf16.msra.mxu0 %v705
      %999 = vmatprep.subr.bf16.mxu0 %v699
      %1000 = vmatpush2.bf16.msra.mxu0 %v698
      %1001 = vmatprep.subr.bf16.mxu0 %v692
      %1002 = vmatpush2.bf16.msra.mxu0 %v691
      %1003 = vmatprep.subr.bf16.mxu0 %v685
      %1004 = vmatpush2.bf16.msra.mxu0 %v684
      %1005 = vmatprep.subr.bf16.mxu0 %v678
      %1006 = vmatpush2.bf16.msra.mxu0 %v677
      %1007 = vmatprep.mubr.bf16.mxu0 %v766
      %1008 = vmatmul.mubr.bf16.gmra.mxu0 %v765
      %v1009 = vpop.f32.mrf.mxu0
      %v1010 = vadd.f32 0.0, %v1009
      %v1011 = vpop.f32.mrf.mxu0
      %v1012 = vadd.f32 0.0, %v1011
      %v1013 = vpop.f32.mrf.mxu0
      %v1014 = vadd.f32 0.0, %v1013
      %v1015 = vpop.f32.mrf.mxu0
      %v1016 = vadd.f32 0.0, %v1015
      %1017 = vmatprep.mubr.bf16.mxu0 %v768
      %1018 = vmatmul.mubr.bf16.gmra.mxu0 %v767
      %v1019 = vpop.f32.mrf.mxu0
      %v1020 = vadd.f32 0.0, %v1019
      %v1021 = vpop.f32.mrf.mxu0
      %v1022 = vadd.f32 0.0, %v1021
      %v1023 = vpop.f32.mrf.mxu0
      %v1024 = vadd.f32 0.0, %v1023
      %v1025 = vpop.f32.mrf.mxu0
      %v1026 = vadd.f32 0.0, %v1025
      %1027 = vmatprep.mubr.bf16.mxu0 %v770
      %1028 = vmatmul.mubr.bf16.gmra.mxu0 %v769
      %v1029 = vpop.f32.mrf.mxu0
      %v1030 = vadd.f32 0.0, %v1029
      %v1031 = vpop.f32.mrf.mxu0
      %v1032 = vadd.f32 0.0, %v1031
      %v1033 = vpop.f32.mrf.mxu0
      %v1034 = vadd.f32 0.0, %v1033
      %v1035 = vpop.f32.mrf.mxu0
      %v1036 = vadd.f32 0.0, %v1035
      %1037 = vmatprep.mubr.bf16.mxu0 %v772
      %1038 = vmatmul.mubr.bf16.gmra.mxu0 %v771
      %v1039 = vpop.f32.mrf.mxu0
      %v1040 = vadd.f32 0.0, %v1039
      %v1041 = vpop.f32.mrf.mxu0
      %v1042 = vadd.f32 0.0, %v1041
      %v1043 = vpop.f32.mrf.mxu0
      %v1044 = vadd.f32 0.0, %v1043
      %v1045 = vpop.f32.mrf.mxu0
      %v1046 = vadd.f32 0.0, %v1045
      %1047 = vmatprep.mubr.bf16.mxu0 %v774
      %1048 = vmatmul.mubr.bf16.gmra.mxu0 %v773
      %v1049 = vpop.f32.mrf.mxu0
      %v1050 = vadd.f32 0.0, %v1049
      %v1051 = vpop.f32.mrf.mxu0
      %v1052 = vadd.f32 0.0, %v1051
      %v1053 = vpop.f32.mrf.mxu0
      %v1054 = vadd.f32 0.0, %v1053
      %v1055 = vpop.f32.mrf.mxu0
      %v1056 = vadd.f32 0.0, %v1055
      %1057 = vmatprep.mubr.bf16.mxu0 %v776
      %1058 = vmatmul.mubr.bf16.gmra.mxu0 %v775
      %v1059 = vpop.f32.mrf.mxu0
      %v1060 = vadd.f32 0.0, %v1059
      %v1061 = vpop.f32.mrf.mxu0
      %v1062 = vadd.f32 0.0, %v1061
      %v1063 = vpop.f32.mrf.mxu0
      %v1064 = vadd.f32 0.0, %v1063
      %v1065 = vpop.f32.mrf.mxu0
      %v1066 = vadd.f32 0.0, %v1065
      %1067 = vdwg.mxu0
      %1068 = vmatprep.subr.bf16.mxu0 0
      %1069 = vmatpush1.bf16.msra.mxu0 %v672
      %1070 = vmatprep.subr.bf16.mxu0 0
      %1071 = vmatpush1.bf16.msra.mxu0 %v665
      %1072 = vmatprep.subr.bf16.mxu0 0
      %1073 = vmatpush1.bf16.msra.mxu0 %v658
      %1074 = vmatprep.subr.bf16.mxu0 0
      %1075 = vmatpush1.bf16.msra.mxu0 %v651
      %1076 = vmatprep.subr.bf16.mxu0 0
      %1077 = vmatpush1.bf16.msra.mxu0 %v644
      %1078 = vmatprep.subr.bf16.mxu0 0
      %1079 = vmatpush1.bf16.msra.mxu0 %v637
      %1080 = vmatprep.subr.bf16.mxu0 0
      %1081 = vmatpush1.bf16.msra.mxu0 %v630
      %1082 = vmatprep.subr.bf16.mxu0 0
      %1083 = vmatpush1.bf16.msra.mxu0 %v623
      %1084 = vmatprep.subr.bf16.mxu0 0
      %1085 = vmatpush2.bf16.msra.mxu0 %v728
      %1086 = vmatprep.subr.bf16.mxu0 0
      %1087 = vmatpush2.bf16.msra.mxu0 %v721
      %1088 = vmatprep.subr.bf16.mxu0 0
      %1089 = vmatpush2.bf16.msra.mxu0 %v714
      %1090 = vmatprep.subr.bf16.mxu0 0
      %1091 = vmatpush2.bf16.msra.mxu0 %v707
      %1092 = vmatprep.subr.bf16.mxu0 0
      %1093 = vmatpush2.bf16.msra.mxu0 %v700
      %1094 = vmatprep.subr.bf16.mxu0 0
      %1095 = vmatpush2.bf16.msra.mxu0 %v693
      %1096 = vmatprep.subr.bf16.mxu0 0
      %1097 = vmatpush2.bf16.msra.mxu0 %v686
      %1098 = vmatprep.subr.bf16.mxu0 0
      %1099 = vmatpush2.bf16.msra.mxu0 %v679
      %1100 = vmatprep.mubr.bf16.mxu0 %v766
      %1101 = vmatmul.mubr.bf16.gmra.mxu0 %v765
      %v1102 = vpop.f32.mrf.mxu0
      %v1103 = vadd.f32 0.0, %v1102
      %v1104 = vpop.f32.mrf.mxu0
      %v1105 = vpop.f32.mrf.mxu0
      %v1106 = vadd.f32 0.0, %v1105
      %v1107 = vpop.f32.mrf.mxu0
      %1108 = vmatprep.mubr.bf16.mxu0 %v768
      %1109 = vmatmul.mubr.bf16.gmra.mxu0 %v767
      %v1110 = vpop.f32.mrf.mxu0
      %v1111 = vadd.f32 0.0, %v1110
      %v1112 = vpop.f32.mrf.mxu0
      %v1113 = vpop.f32.mrf.mxu0
      %v1114 = vadd.f32 0.0, %v1113
      %v1115 = vpop.f32.mrf.mxu0
      %1116 = vmatprep.mubr.bf16.mxu0 %v770
      %1117 = vmatmul.mubr.bf16.gmra.mxu0 %v769
      %v1118 = vpop.f32.mrf.mxu0
      %v1119 = vadd.f32 0.0, %v1118
      %v1120 = vpop.f32.mrf.mxu0
      %v1121 = vpop.f32.mrf.mxu0
      %v1122 = vadd.f32 0.0, %v1121
      %v1123 = vpop.f32.mrf.mxu0
      %1124 = vmatprep.mubr.bf16.mxu0 %v772
      %1125 = vmatmul.mubr.bf16.gmra.mxu0 %v771
      %v1126 = vpop.f32.mrf.mxu0
      %v1127 = vadd.f32 0.0, %v1126
      %v1128 = vpop.f32.mrf.mxu0
      %v1129 = vpop.f32.mrf.mxu0
      %v1130 = vadd.f32 0.0, %v1129
      %v1131 = vpop.f32.mrf.mxu0
      %1132 = vmatprep.mubr.bf16.mxu0 %v774
      %1133 = vmatmul.mubr.bf16.gmra.mxu0 %v773
      %v1134 = vpop.f32.mrf.mxu0
      %v1135 = vadd.f32 0.0, %v1134
      %v1136 = vpop.f32.mrf.mxu0
      %v1137 = vpop.f32.mrf.mxu0
      %v1138 = vadd.f32 0.0, %v1137
      %v1139 = vpop.f32.mrf.mxu0
      %1140 = vmatprep.mubr.bf16.mxu0 %v776
      %1141 = vmatmul.mubr.bf16.gmra.mxu0 %v775
      %v1142 = vpop.f32.mrf.mxu0
      %v1143 = vadd.f32 0.0, %v1142
      %v1144 = vpop.f32.mrf.mxu0
      %v1145 = vpop.f32.mrf.mxu0
      %v1146 = vadd.f32 0.0, %v1145
      %v1147 = vpop.f32.mrf.mxu0
      %1148 = vdwg.mxu0
      %1157 = vrot.lane.b32.xlu0 %v1032, 12
      %v1158 = vpop.permute.xlu0 %1157
      %1159 = vrot.lane.b32.xlu0 %v1119, 12
      %v1160 = vpop.permute.xlu0 %1159
      %1161 = vrot.lane.b32.xlu0 %v1036, 12
      %v1162 = vpop.permute.xlu0 %1161
      %1163 = vrot.lane.b32.xlu0 %v1122, 12
      %v1164 = vpop.permute.xlu0 %1163
      %1165 = vrot.lane.b32.xlu0 %v1042, 12
      %v1166 = vpop.permute.xlu0 %1165
      %1167 = vrot.lane.b32.xlu0 %v1127, 12
      %v1168 = vpop.permute.xlu0 %1167
      %1169 = vrot.lane.b32.xlu0 %v1046, 12
      %v1170 = vpop.permute.xlu0 %1169
      %1171 = vrot.lane.b32.xlu0 %v1130, 12
      %v1172 = vpop.permute.xlu0 %1171
      %vm1173 = vcmask 97280
      %v1174 = vsel %vm1173, %v1158, %v1160
      %v1175 = vsel %vm1173, %v1162, %v1164
      %v1176 = vsel %vm1173, %v1166, %v1168
      %v1177 = vsel %vm1173, %v1170, %v1172
      %1202 = vrot.lane.b32.xlu0 %v844, 28
      %v1203 = vpop.permute.xlu0 %1202
      %1204 = vrot.lane.b32.xlu0 %v846, 28
      %v1205 = vpop.permute.xlu0 %1204
      %1206 = vrot.lane.b32.xlu0 %v937, 28
      %v1207 = vpop.permute.xlu0 %1206
      %1208 = vrot.lane.b32.xlu0 %v939, 28
      %v1209 = vpop.permute.xlu0 %1208
      %1210 = vrot.lane.b32.xlu0 %v1030, 28
      %v1211 = vpop.permute.xlu0 %1210
      %1212 = vrot.lane.b32.xlu0 %v1032, 28
      %v1213 = vpop.permute.xlu0 %1212
      %1214 = vrot.lane.b32.xlu0 %v848, 28
      %v1215 = vpop.permute.xlu0 %1214
      %1216 = vrot.lane.b32.xlu0 %v850, 28
      %v1217 = vpop.permute.xlu0 %1216
      %1218 = vrot.lane.b32.xlu0 %v941, 28
      %v1219 = vpop.permute.xlu0 %1218
      %1220 = vrot.lane.b32.xlu0 %v943, 28
      %v1221 = vpop.permute.xlu0 %1220
      %1222 = vrot.lane.b32.xlu0 %v1034, 28
      %v1223 = vpop.permute.xlu0 %1222
      %1224 = vrot.lane.b32.xlu0 %v1036, 28
      %v1225 = vpop.permute.xlu0 %1224
      %1226 = vrot.lane.b32.xlu0 %v854, 28
      %v1227 = vpop.permute.xlu0 %1226
      %1228 = vrot.lane.b32.xlu0 %v856, 28
      %v1229 = vpop.permute.xlu0 %1228
      %1230 = vrot.lane.b32.xlu0 %v947, 28
      %v1231 = vpop.permute.xlu0 %1230
      %1232 = vrot.lane.b32.xlu0 %v949, 28
      %v1233 = vpop.permute.xlu0 %1232
      %1234 = vrot.lane.b32.xlu0 %v1040, 28
      %v1235 = vpop.permute.xlu0 %1234
      %1236 = vrot.lane.b32.xlu0 %v1042, 28
      %v1237 = vpop.permute.xlu0 %1236
      %1238 = vrot.lane.b32.xlu0 %v858, 28
      %v1239 = vpop.permute.xlu0 %1238
      %1240 = vrot.lane.b32.xlu0 %v860, 28
      %v1241 = vpop.permute.xlu0 %1240
      %1242 = vrot.lane.b32.xlu0 %v951, 28
      %v1243 = vpop.permute.xlu0 %1242
      %1244 = vrot.lane.b32.xlu0 %v953, 28
      %v1245 = vpop.permute.xlu0 %1244
      %1246 = vrot.lane.b32.xlu0 %v1044, 28
      %v1247 = vpop.permute.xlu0 %1246
      %1248 = vrot.lane.b32.xlu0 %v1046, 28
      %v1249 = vpop.permute.xlu0 %1248
      %vm1250 = vcmask 228352
      %v1251 = vsel %vm1250, %v1203, %v1205
      %v1252 = vsel %vm1250, %v1205, %v1207
      %v1253 = vsel %vm1250, %v1207, %v1209
      %v1254 = vsel %vm1250, %v1209, %v1211
      %v1255 = vsel %vm1250, %v1211, %v1213
      %v1256 = vsel %vm1250, %v1215, %v1217
      %v1257 = vsel %vm1250, %v1217, %v1219
      %v1258 = vsel %vm1250, %v1219, %v1221
      %v1259 = vsel %vm1250, %v1221, %v1223
      %v1260 = vsel %vm1250, %v1223, %v1225
      %v1261 = vsel %vm1250, %v1227, %v1229
      %v1262 = vsel %vm1250, %v1229, %v1231
      %v1263 = vsel %vm1250, %v1231, %v1233
      %v1264 = vsel %vm1250, %v1233, %v1235
      %v1265 = vsel %vm1250, %v1235, %v1237
      %v1266 = vsel %vm1250, %v1239, %v1241
      %v1267 = vsel %vm1250, %v1241, %v1243
      %v1268 = vsel %vm1250, %v1243, %v1245
      %v1269 = vsel %vm1250, %v1245, %v1247
      %v1270 = vsel %vm1250, %v1247, %v1249
      %v1299 = vsel %vm1250, %v1174, %v1203
      %v1300 = vsel %vm1250, %v1175, %v1215
      %v1301 = vsel %vm1250, %v1176, %v1227
      %v1302 = vsel %vm1250, %v1177, %v1239
      %1311 = vrot.lane.b32.xlu0 %v1012, 40
      %v1312 = vpop.permute.xlu0 %1311
      %1313 = vrot.lane.b32.xlu0 %v1103, 40
      %v1314 = vpop.permute.xlu0 %1313
      %1315 = vrot.lane.b32.xlu0 %v1016, 40
      %v1316 = vpop.permute.xlu0 %1315
      %1317 = vrot.lane.b32.xlu0 %v1106, 40
      %v1318 = vpop.permute.xlu0 %1317
      %1319 = vrot.lane.b32.xlu0 %v1022, 40
      %v1320 = vpop.permute.xlu0 %1319
      %1321 = vrot.lane.b32.xlu0 %v1111, 40
      %v1322 = vpop.permute.xlu0 %1321
      %1323 = vrot.lane.b32.xlu0 %v1026, 40
      %v1324 = vpop.permute.xlu0 %1323
      %1325 = vrot.lane.b32.xlu0 %v1114, 40
      %v1326 = vpop.permute.xlu0 %1325
      %vm1327 = vcmask 326656
      %v1328 = vsel %vm1327, %v1312, %v1314
      %v1329 = vsel %vm1327, %v1316, %v1318
      %v1330 = vsel %vm1327, %v1320, %v1322
      %v1331 = vsel %vm1327, %v1324, %v1326
      %1356 = vrot.lane.b32.xlu0 %v824, 56
      %v1357 = vpop.permute.xlu0 %1356
      %1358 = vrot.lane.b32.xlu0 %v826, 56
      %v1359 = vpop.permute.xlu0 %1358
      %1360 = vrot.lane.b32.xlu0 %v917, 56
      %v1361 = vpop.permute.xlu0 %1360
      %1362 = vrot.lane.b32.xlu0 %v919, 56
      %v1363 = vpop.permute.xlu0 %1362
      %1364 = vrot.lane.b32.xlu0 %v1010, 56
      %v1365 = vpop.permute.xlu0 %1364
      %1366 = vrot.lane.b32.xlu0 %v1012, 56
      %v1367 = vpop.permute.xlu0 %1366
      %1368 = vrot.lane.b32.xlu0 %v828, 56
      %v1369 = vpop.permute.xlu0 %1368
      %1370 = vrot.lane.b32.xlu0 %v830, 56
      %v1371 = vpop.permute.xlu0 %1370
      %1372 = vrot.lane.b32.xlu0 %v921, 56
      %v1373 = vpop.permute.xlu0 %1372
      %1374 = vrot.lane.b32.xlu0 %v923, 56
      %v1375 = vpop.permute.xlu0 %1374
      %1376 = vrot.lane.b32.xlu0 %v1014, 56
      %v1377 = vpop.permute.xlu0 %1376
      %1378 = vrot.lane.b32.xlu0 %v1016, 56
      %v1379 = vpop.permute.xlu0 %1378
      %1380 = vrot.lane.b32.xlu0 %v834, 56
      %v1381 = vpop.permute.xlu0 %1380
      %1382 = vrot.lane.b32.xlu0 %v836, 56
      %v1383 = vpop.permute.xlu0 %1382
      %1384 = vrot.lane.b32.xlu0 %v927, 56
      %v1385 = vpop.permute.xlu0 %1384
      %1386 = vrot.lane.b32.xlu0 %v929, 56
      %v1387 = vpop.permute.xlu0 %1386
      %1388 = vrot.lane.b32.xlu0 %v1020, 56
      %v1389 = vpop.permute.xlu0 %1388
      %1390 = vrot.lane.b32.xlu0 %v1022, 56
      %v1391 = vpop.permute.xlu0 %1390
      %1392 = vrot.lane.b32.xlu0 %v838, 56
      %v1393 = vpop.permute.xlu0 %1392
      %1394 = vrot.lane.b32.xlu0 %v840, 56
      %v1395 = vpop.permute.xlu0 %1394
      %1396 = vrot.lane.b32.xlu0 %v931, 56
      %v1397 = vpop.permute.xlu0 %1396
      %1398 = vrot.lane.b32.xlu0 %v933, 56
      %v1399 = vpop.permute.xlu0 %1398
      %1400 = vrot.lane.b32.xlu0 %v1024, 56
      %v1401 = vpop.permute.xlu0 %1400
      %1402 = vrot.lane.b32.xlu0 %v1026, 56
      %v1403 = vpop.permute.xlu0 %1402
      %vm1404 = vcmask 457728
      %v1405 = vsel %vm1404, %v1357, %v1359
      %v1406 = vsel %vm1404, %v1359, %v1361
      %v1407 = vsel %vm1404, %v1361, %v1363
      %v1408 = vsel %vm1404, %v1363, %v1365
      %v1409 = vsel %vm1404, %v1365, %v1367
      %v1410 = vsel %vm1404, %v1369, %v1371
      %v1411 = vsel %vm1404, %v1371, %v1373
      %v1412 = vsel %vm1404, %v1373, %v1375
      %v1413 = vsel %vm1404, %v1375, %v1377
      %v1414 = vsel %vm1404, %v1377, %v1379
      %v1415 = vsel %vm1404, %v1381, %v1383
      %v1416 = vsel %vm1404, %v1383, %v1385
      %v1417 = vsel %vm1404, %v1385, %v1387
      %v1418 = vsel %vm1404, %v1387, %v1389
      %v1419 = vsel %vm1404, %v1389, %v1391
      %v1420 = vsel %vm1404, %v1393, %v1395
      %v1421 = vsel %vm1404, %v1395, %v1397
      %v1422 = vsel %vm1404, %v1397, %v1399
      %v1423 = vsel %vm1404, %v1399, %v1401
      %v1424 = vsel %vm1404, %v1401, %v1403
      %v1453 = vsel %vm1404, %v1328, %v1357
      %v1454 = vsel %vm1404, %v1329, %v1369
      %v1455 = vsel %vm1404, %v1330, %v1381
      %v1456 = vsel %vm1404, %v1331, %v1393
      %v1457 = vsel %vm365, 0.0, %v1453
      %v1458 = vsel %vm366, 0.0, %v1405
      %v1459 = vsel %vm367, 0.0, %v1406
      %v1460 = vsel %vm368, 0.0, %v1407
      %v1461 = vsel %vm369, 0.0, %v1408
      %v1462 = vsel %vm370, 0.0, %v1409
      %v1463 = vsel %vm371, 0.0, %v1367
      %v1464 = vsel %vm365, 0.0, %v1454
      %v1465 = vsel %vm366, 0.0, %v1410
      %v1466 = vsel %vm367, 0.0, %v1411
      %v1467 = vsel %vm368, 0.0, %v1412
      %v1468 = vsel %vm369, 0.0, %v1413
      %v1469 = vsel %vm370, 0.0, %v1414
      %v1470 = vsel %vm371, 0.0, %v1379
      %v1471 = vsel %vm365, 0.0, %v1455
      %v1472 = vsel %vm366, 0.0, %v1415
      %v1473 = vsel %vm367, 0.0, %v1416
      %v1474 = vsel %vm368, 0.0, %v1417
      %v1475 = vsel %vm369, 0.0, %v1418
      %v1476 = vsel %vm370, 0.0, %v1419
      %v1477 = vsel %vm371, 0.0, %v1391
      %v1478 = vsel %vm365, 0.0, %v1456
      %v1479 = vsel %vm366, 0.0, %v1420
      %v1480 = vsel %vm367, 0.0, %v1421
      %v1481 = vsel %vm368, 0.0, %v1422
      %v1482 = vsel %vm369, 0.0, %v1423
      %v1483 = vsel %vm370, 0.0, %v1424
      %v1484 = vsel %vm371, 0.0, %v1403
      %v1485 = vadd.f32 %v1299, %v1457
      %v1486 = vadd.f32 %v1251, %v1458
      %v1487 = vadd.f32 %v1252, %v1459
      %v1488 = vadd.f32 %v1253, %v1460
      %v1489 = vadd.f32 %v1254, %v1461
      %v1490 = vadd.f32 %v1255, %v1462
      %v1491 = vadd.f32 %v1213, %v1463
      %v1492 = vadd.f32 %v1300, %v1464
      %v1493 = vadd.f32 %v1256, %v1465
      %v1494 = vadd.f32 %v1257, %v1466
      %v1495 = vadd.f32 %v1258, %v1467
      %v1496 = vadd.f32 %v1259, %v1468
      %v1497 = vadd.f32 %v1260, %v1469
      %v1498 = vadd.f32 %v1225, %v1470
      %v1499 = vadd.f32 %v1301, %v1471
      %v1500 = vadd.f32 %v1261, %v1472
      %v1501 = vadd.f32 %v1262, %v1473
      %v1502 = vadd.f32 %v1263, %v1474
      %v1503 = vadd.f32 %v1264, %v1475
      %v1504 = vadd.f32 %v1265, %v1476
      %v1505 = vadd.f32 %v1237, %v1477
      %v1506 = vadd.f32 %v1302, %v1478
      %v1507 = vadd.f32 %v1266, %v1479
      %v1508 = vadd.f32 %v1267, %v1480
      %v1509 = vadd.f32 %v1268, %v1481
      %v1510 = vadd.f32 %v1269, %v1482
      %v1511 = vadd.f32 %v1270, %v1483
      %v1512 = vadd.f32 %v1249, %v1484
      %v1513 = vsel %vm372, 0.0, %v864
      %v1514 = vsel %vm373, 0.0, %v866
      %v1515 = vsel %vm374, 0.0, %v957
      %v1516 = vsel %vm375, 0.0, %v959
      %v1517 = vsel %vm376, 0.0, %v1050
      %v1518 = vsel %vm377, 0.0, %v1052
      %v1519 = vsel %vm378, 0.0, %v1135
      %v1520 = vsel %vm372, 0.0, %v868
      %v1521 = vsel %vm373, 0.0, %v870
      %v1522 = vsel %vm374, 0.0, %v961
      %v1523 = vsel %vm375, 0.0, %v963
      %v1524 = vsel %vm376, 0.0, %v1054
      %v1525 = vsel %vm377, 0.0, %v1056
      %v1526 = vsel %vm378, 0.0, %v1138
      %v1527 = vsel %vm372, 0.0, %v874
      %v1528 = vsel %vm373, 0.0, %v876
      %v1529 = vsel %vm374, 0.0, %v967
      %v1530 = vsel %vm375, 0.0, %v969
      %v1531 = vsel %vm376, 0.0, %v1060
      %v1532 = vsel %vm377, 0.0, %v1062
      %v1533 = vsel %vm378, 0.0, %v1143
      %v1534 = vsel %vm372, 0.0, %v878
      %v1535 = vsel %vm373, 0.0, %v880
      %v1536 = vsel %vm374, 0.0, %v971
      %v1537 = vsel %vm375, 0.0, %v973
      %v1538 = vsel %vm376, 0.0, %v1064
      %v1539 = vsel %vm377, 0.0, %v1066
      %v1540 = vsel %vm378, 0.0, %v1146
      %v1541 = vadd.f32 %v1485, %v1513
      %v1542 = vadd.f32 %v1486, %v1514
      %v1543 = vadd.f32 %v1487, %v1515
      %v1544 = vadd.f32 %v1488, %v1516
      %v1545 = vadd.f32 %v1489, %v1517
      %v1546 = vadd.f32 %v1490, %v1518
      %v1547 = vadd.f32 %v1491, %v1519
      %v1548 = vadd.f32 %v1492, %v1520
      %v1549 = vadd.f32 %v1493, %v1521
      %v1550 = vadd.f32 %v1494, %v1522
      %v1551 = vadd.f32 %v1495, %v1523
      %v1552 = vadd.f32 %v1496, %v1524
      %v1553 = vadd.f32 %v1497, %v1525
      %v1554 = vadd.f32 %v1498, %v1526
      %v1555 = vadd.f32 %v1499, %v1527
      %v1556 = vadd.f32 %v1500, %v1528
      %v1557 = vadd.f32 %v1501, %v1529
      %v1558 = vadd.f32 %v1502, %v1530
      %v1559 = vadd.f32 %v1503, %v1531
      %v1560 = vadd.f32 %v1504, %v1532
      %v1561 = vadd.f32 %v1505, %v1533
      %v1562 = vadd.f32 %v1506, %v1534
      %v1563 = vadd.f32 %v1507, %v1535
      %v1564 = vadd.f32 %v1508, %v1536
      %v1565 = vadd.f32 %v1509, %v1537
      %v1566 = vadd.f32 %v1510, %v1538
      %v1567 = vadd.f32 %v1511, %v1539
      %v1568 = vadd.f32 %v1512, %v1540
      %1573 = vrot.lane.b32.xlu0 %v1547, 113
      %v1574 = vpop.permute.xlu0 %1573
      %1575 = vrot.lane.b32.xlu0 %v1554, 113
      %v1576 = vpop.permute.xlu0 %1575
      %1577 = vrot.lane.b32.xlu0 %v1561, 113
      %v1578 = vpop.permute.xlu0 %1577
      %1579 = vrot.lane.b32.xlu0 %v1568, 113
      %v1580 = vpop.permute.xlu0 %1579
      %1609 = vrot.lane.b32.xlu0 %v1541, 1
      %v1610 = vpop.permute.xlu0 %1609
      %1611 = vrot.lane.b32.xlu0 %v1542, 1
      %v1612 = vpop.permute.xlu0 %1611
      %1613 = vrot.lane.b32.xlu0 %v1543, 1
      %v1614 = vpop.permute.xlu0 %1613
      %1615 = vrot.lane.b32.xlu0 %v1544, 1
      %v1616 = vpop.permute.xlu0 %1615
      %1617 = vrot.lane.b32.xlu0 %v1545, 1
      %v1618 = vpop.permute.xlu0 %1617
      %1619 = vrot.lane.b32.xlu0 %v1546, 1
      %v1620 = vpop.permute.xlu0 %1619
      %1621 = vrot.lane.b32.xlu0 %v1547, 1
      %v1622 = vpop.permute.xlu0 %1621
      %1623 = vrot.lane.b32.xlu0 %v1548, 1
      %v1624 = vpop.permute.xlu0 %1623
      %1625 = vrot.lane.b32.xlu0 %v1549, 1
      %v1626 = vpop.permute.xlu0 %1625
      %1627 = vrot.lane.b32.xlu0 %v1550, 1
      %v1628 = vpop.permute.xlu0 %1627
      %1629 = vrot.lane.b32.xlu0 %v1551, 1
      %v1630 = vpop.permute.xlu0 %1629
      %1631 = vrot.lane.b32.xlu0 %v1552, 1
      %v1632 = vpop.permute.xlu0 %1631
      %1633 = vrot.lane.b32.xlu0 %v1553, 1
      %v1634 = vpop.permute.xlu0 %1633
      %1635 = vrot.lane.b32.xlu0 %v1554, 1
      %v1636 = vpop.permute.xlu0 %1635
      %1637 = vrot.lane.b32.xlu0 %v1555, 1
      %v1638 = vpop.permute.xlu0 %1637
      %1639 = vrot.lane.b32.xlu0 %v1556, 1
      %v1640 = vpop.permute.xlu0 %1639
      %1641 = vrot.lane.b32.xlu0 %v1557, 1
      %v1642 = vpop.permute.xlu0 %1641
      %1643 = vrot.lane.b32.xlu0 %v1558, 1
      %v1644 = vpop.permute.xlu0 %1643
      %1645 = vrot.lane.b32.xlu0 %v1559, 1
      %v1646 = vpop.permute.xlu0 %1645
      %1647 = vrot.lane.b32.xlu0 %v1560, 1
      %v1648 = vpop.permute.xlu0 %1647
      %1649 = vrot.lane.b32.xlu0 %v1561, 1
      %v1650 = vpop.permute.xlu0 %1649
      %1651 = vrot.lane.b32.xlu0 %v1562, 1
      %v1652 = vpop.permute.xlu0 %1651
      %1653 = vrot.lane.b32.xlu0 %v1563, 1
      %v1654 = vpop.permute.xlu0 %1653
      %1655 = vrot.lane.b32.xlu0 %v1564, 1
      %v1656 = vpop.permute.xlu0 %1655
      %1657 = vrot.lane.b32.xlu0 %v1565, 1
      %v1658 = vpop.permute.xlu0 %1657
      %1659 = vrot.lane.b32.xlu0 %v1566, 1
      %v1660 = vpop.permute.xlu0 %1659
      %1661 = vrot.lane.b32.xlu0 %v1567, 1
      %v1662 = vpop.permute.xlu0 %1661
      %1663 = vrot.lane.b32.xlu0 %v1568, 1
      %v1664 = vpop.permute.xlu0 %1663
      %vm1665 = vcmask 7168
      %v1666 = vsel %vm1665, %v1610, %v1612
      %v1667 = vsel %vm1665, %v1612, %v1614
      %v1668 = vsel %vm1665, %v1614, %v1616
      %v1669 = vsel %vm1665, %v1616, %v1618
      %v1670 = vsel %vm1665, %v1618, %v1620
      %v1671 = vsel %vm1665, %v1620, %v1622
      %v1672 = vsel %vm1665, %v1624, %v1626
      %v1673 = vsel %vm1665, %v1626, %v1628
      %v1674 = vsel %vm1665, %v1628, %v1630
      %v1675 = vsel %vm1665, %v1630, %v1632
      %v1676 = vsel %vm1665, %v1632, %v1634
      %v1677 = vsel %vm1665, %v1634, %v1636
      %v1678 = vsel %vm1665, %v1638, %v1640
      %v1679 = vsel %vm1665, %v1640, %v1642
      %v1680 = vsel %vm1665, %v1642, %v1644
      %v1681 = vsel %vm1665, %v1644, %v1646
      %v1682 = vsel %vm1665, %v1646, %v1648
      %v1683 = vsel %vm1665, %v1648, %v1650
      %v1684 = vsel %vm1665, %v1652, %v1654
      %v1685 = vsel %vm1665, %v1654, %v1656
      %v1686 = vsel %vm1665, %v1656, %v1658
      %v1687 = vsel %vm1665, %v1658, %v1660
      %v1688 = vsel %vm1665, %v1660, %v1662
      %v1689 = vsel %vm1665, %v1662, %v1664
      %v1718 = vsel %vm1665, %v1574, %v1610
      %v1719 = vsel %vm1665, %v1576, %v1624
      %v1720 = vsel %vm1665, %v1578, %v1638
      %v1721 = vsel %vm1665, %v1580, %v1652
      %v1722 = vsel %vm379, 0.0, %v1718
      %v1723 = vsel %vm380, 0.0, %v1666
      %v1724 = vsel %vm381, 0.0, %v1667
      %v1725 = vsel %vm382, 0.0, %v1668
      %v1726 = vsel %vm383, 0.0, %v1669
      %v1727 = vsel %vm384, 0.0, %v1670
      %v1728 = vsel %vm385, 0.0, %v1671
      %v1729 = vsel %vm379, 0.0, %v1719
      %v1730 = vsel %vm380, 0.0, %v1672
      %v1731 = vsel %vm381, 0.0, %v1673
      %v1732 = vsel %vm382, 0.0, %v1674
      %v1733 = vsel %vm383, 0.0, %v1675
      %v1734 = vsel %vm384, 0.0, %v1676
      %v1735 = vsel %vm385, 0.0, %v1677
      %v1736 = vsel %vm379, 0.0, %v1720
      %v1737 = vsel %vm380, 0.0, %v1678
      %v1738 = vsel %vm381, 0.0, %v1679
      %v1739 = vsel %vm382, 0.0, %v1680
      %v1740 = vsel %vm383, 0.0, %v1681
      %v1741 = vsel %vm384, 0.0, %v1682
      %v1742 = vsel %vm385, 0.0, %v1683
      %v1743 = vsel %vm379, 0.0, %v1721
      %v1744 = vsel %vm380, 0.0, %v1684
      %v1745 = vsel %vm381, 0.0, %v1685
      %v1746 = vsel %vm382, 0.0, %v1686
      %v1747 = vsel %vm383, 0.0, %v1687
      %v1748 = vsel %vm384, 0.0, %v1688
      %v1749 = vsel %vm385, 0.0, %v1689
      %1750 = vrot.lane.b32.xlu0 %v1541, 127
      %v1751 = vpop.permute.xlu0 %1750
      %1752 = vrot.lane.b32.xlu0 %v1542, 127
      %v1753 = vpop.permute.xlu0 %1752
      %1754 = vrot.lane.b32.xlu0 %v1543, 127
      %v1755 = vpop.permute.xlu0 %1754
      %1756 = vrot.lane.b32.xlu0 %v1544, 127
      %v1757 = vpop.permute.xlu0 %1756
      %1758 = vrot.lane.b32.xlu0 %v1545, 127
      %v1759 = vpop.permute.xlu0 %1758
      %1760 = vrot.lane.b32.xlu0 %v1546, 127
      %v1761 = vpop.permute.xlu0 %1760
      %1762 = vrot.lane.b32.xlu0 %v1547, 127
      %v1763 = vpop.permute.xlu0 %1762
      %1764 = vrot.lane.b32.xlu0 %v1548, 127
      %v1765 = vpop.permute.xlu0 %1764
      %1766 = vrot.lane.b32.xlu0 %v1549, 127
      %v1767 = vpop.permute.xlu0 %1766
      %1768 = vrot.lane.b32.xlu0 %v1550, 127
      %v1769 = vpop.permute.xlu0 %1768
      %1770 = vrot.lane.b32.xlu0 %v1551, 127
      %v1771 = vpop.permute.xlu0 %1770
      %1772 = vrot.lane.b32.xlu0 %v1552, 127
      %v1773 = vpop.permute.xlu0 %1772
      %1774 = vrot.lane.b32.xlu0 %v1553, 127
      %v1775 = vpop.permute.xlu0 %1774
      %1776 = vrot.lane.b32.xlu0 %v1554, 127
      %v1777 = vpop.permute.xlu0 %1776
      %1778 = vrot.lane.b32.xlu0 %v1555, 127
      %v1779 = vpop.permute.xlu0 %1778
      %1780 = vrot.lane.b32.xlu0 %v1556, 127
      %v1781 = vpop.permute.xlu0 %1780
      %1782 = vrot.lane.b32.xlu0 %v1557, 127
      %v1783 = vpop.permute.xlu0 %1782
      %1784 = vrot.lane.b32.xlu0 %v1558, 127
      %v1785 = vpop.permute.xlu0 %1784
      %1786 = vrot.lane.b32.xlu0 %v1559, 127
      %v1787 = vpop.permute.xlu0 %1786
      %1788 = vrot.lane.b32.xlu0 %v1560, 127
      %v1789 = vpop.permute.xlu0 %1788
      %1790 = vrot.lane.b32.xlu0 %v1561, 127
      %v1791 = vpop.permute.xlu0 %1790
      %1792 = vrot.lane.b32.xlu0 %v1562, 127
      %v1793 = vpop.permute.xlu0 %1792
      %1794 = vrot.lane.b32.xlu0 %v1563, 127
      %v1795 = vpop.permute.xlu0 %1794
      %1796 = vrot.lane.b32.xlu0 %v1564, 127
      %v1797 = vpop.permute.xlu0 %1796
      %1798 = vrot.lane.b32.xlu0 %v1565, 127
      %v1799 = vpop.permute.xlu0 %1798
      %1800 = vrot.lane.b32.xlu0 %v1566, 127
      %v1801 = vpop.permute.xlu0 %1800
      %1802 = vrot.lane.b32.xlu0 %v1567, 127
      %v1803 = vpop.permute.xlu0 %1802
      %1804 = vrot.lane.b32.xlu0 %v1568, 127
      %v1805 = vpop.permute.xlu0 %1804
      %vm1806 = vcmask 1039360
      %v1807 = vsel %vm1806, %v1751, %v1753
      %v1808 = vsel %vm1806, %v1753, %v1755
      %v1809 = vsel %vm1806, %v1755, %v1757
      %v1810 = vsel %vm1806, %v1757, %v1759
      %v1811 = vsel %vm1806, %v1759, %v1761
      %v1812 = vsel %vm1806, %v1761, %v1763
      %v1813 = vsel %vm1806, %v1765, %v1767
      %v1814 = vsel %vm1806, %v1767, %v1769
      %v1815 = vsel %vm1806, %v1769, %v1771
      %v1816 = vsel %vm1806, %v1771, %v1773
      %v1817 = vsel %vm1806, %v1773, %v1775
      %v1818 = vsel %vm1806, %v1775, %v1777
      %v1819 = vsel %vm1806, %v1779, %v1781
      %v1820 = vsel %vm1806, %v1781, %v1783
      %v1821 = vsel %vm1806, %v1783, %v1785
      %v1822 = vsel %vm1806, %v1785, %v1787
      %v1823 = vsel %vm1806, %v1787, %v1789
      %v1824 = vsel %vm1806, %v1789, %v1791
      %v1825 = vsel %vm1806, %v1793, %v1795
      %v1826 = vsel %vm1806, %v1795, %v1797
      %v1827 = vsel %vm1806, %v1797, %v1799
      %v1828 = vsel %vm1806, %v1799, %v1801
      %v1829 = vsel %vm1806, %v1801, %v1803
      %v1830 = vsel %vm1806, %v1803, %v1805
      %1859 = vrot.lane.b32.xlu0 %v1541, 15
      %v1860 = vpop.permute.xlu0 %1859
      %1861 = vrot.lane.b32.xlu0 %v1548, 15
      %v1862 = vpop.permute.xlu0 %1861
      %1863 = vrot.lane.b32.xlu0 %v1555, 15
      %v1864 = vpop.permute.xlu0 %1863
      %1865 = vrot.lane.b32.xlu0 %v1562, 15
      %v1866 = vpop.permute.xlu0 %1865
      %vm1871 = vcmask 121856
      %v1872 = vsel %vm1871, %v1763, %v1860
      %v1873 = vsel %vm1871, %v1777, %v1862
      %v1874 = vsel %vm1871, %v1791, %v1864
      %v1875 = vsel %vm1871, %v1805, %v1866
      %v1876 = vsel %vm386, 0.0, %v1807
      %v1877 = vsel %vm387, 0.0, %v1808
      %v1878 = vsel %vm388, 0.0, %v1809
      %v1879 = vsel %vm389, 0.0, %v1810
      %v1880 = vsel %vm390, 0.0, %v1811
      %v1881 = vsel %vm391, 0.0, %v1812
      %v1882 = vsel %vm392, 0.0, %v1872
      %v1883 = vsel %vm386, 0.0, %v1813
      %v1884 = vsel %vm387, 0.0, %v1814
      %v1885 = vsel %vm388, 0.0, %v1815
      %v1886 = vsel %vm389, 0.0, %v1816
      %v1887 = vsel %vm390, 0.0, %v1817
      %v1888 = vsel %vm391, 0.0, %v1818
      %v1889 = vsel %vm392, 0.0, %v1873
      %v1890 = vsel %vm386, 0.0, %v1819
      %v1891 = vsel %vm387, 0.0, %v1820
      %v1892 = vsel %vm388, 0.0, %v1821
      %v1893 = vsel %vm389, 0.0, %v1822
      %v1894 = vsel %vm390, 0.0, %v1823
      %v1895 = vsel %vm391, 0.0, %v1824
      %v1896 = vsel %vm392, 0.0, %v1874
      %v1897 = vsel %vm386, 0.0, %v1825
      %v1898 = vsel %vm387, 0.0, %v1826
      %v1899 = vsel %vm388, 0.0, %v1827
      %v1900 = vsel %vm389, 0.0, %v1828
      %v1901 = vsel %vm390, 0.0, %v1829
      %v1902 = vsel %vm391, 0.0, %v1830
      %v1903 = vsel %vm392, 0.0, %v1875
      %v1904 = vpack.c.bf16 %v1729, %v1722
      %v1905 = vpack.c.bf16 %v1730, %v1723
      %v1906 = vpack.c.bf16 %v1731, %v1724
      %v1907 = vpack.c.bf16 %v1732, %v1725
      %v1908 = vpack.c.bf16 %v1733, %v1726
      %v1909 = vpack.c.bf16 %v1734, %v1727
      %v1910 = vpack.c.bf16 %v1735, %v1728
      %v1911 = vpack.c.bf16 %v1743, %v1736
      %v1912 = vpack.c.bf16 %v1744, %v1737
      %v1913 = vpack.c.bf16 %v1745, %v1738
      %v1914 = vpack.c.bf16 %v1746, %v1739
      %v1915 = vpack.c.bf16 %v1747, %v1740
      %v1916 = vpack.c.bf16 %v1748, %v1741
      %v1917 = vpack.c.bf16 %v1749, %v1742
      %v1932 = vunpack.c.l.b16 %v1904
      %v1933 = vunpack.c.l.b16 %v1905
      %v1934 = vunpack.c.l.b16 %v1906
      %v1935 = vunpack.c.l.b16 %v1907
      %v1936 = vunpack.c.l.b16 %v1908
      %v1937 = vunpack.c.l.b16 %v1909
      %v1938 = vunpack.c.l.b16 %v1910
      %v1939 = vunpack.c.h.b16 %v1904
      %v1940 = vunpack.c.h.b16 %v1905
      %v1941 = vunpack.c.h.b16 %v1906
      %v1942 = vunpack.c.h.b16 %v1907
      %v1943 = vunpack.c.h.b16 %v1908
      %v1944 = vunpack.c.h.b16 %v1909
      %v1945 = vunpack.c.h.b16 %v1910
      %v1946 = vunpack.c.l.b16 %v1911
      %v1947 = vunpack.c.l.b16 %v1912
      %v1948 = vunpack.c.l.b16 %v1913
      %v1949 = vunpack.c.l.b16 %v1914
      %v1950 = vunpack.c.l.b16 %v1915
      %v1951 = vunpack.c.l.b16 %v1916
      %v1952 = vunpack.c.l.b16 %v1917
      %v1953 = vunpack.c.h.b16 %v1911
      %v1954 = vunpack.c.h.b16 %v1912
      %v1955 = vunpack.c.h.b16 %v1913
      %v1956 = vunpack.c.h.b16 %v1914
      %v1957 = vunpack.c.h.b16 %v1915
      %v1958 = vunpack.c.h.b16 %v1916
      %v1959 = vunpack.c.h.b16 %v1917
      %v1960 = vpack.c.b16 %v1933, %v1932
      %v1961 = vpack.c.b16 %v1935, %v1934
      %v1962 = vpack.c.b16 %v1937, %v1936
      %v1963 = vpack.c.b16 %v1938, %v1938
      %v1964 = vpack.c.b16 %v1940, %v1939
      %v1965 = vpack.c.b16 %v1942, %v1941
      %v1966 = vpack.c.b16 %v1944, %v1943
      %v1967 = vpack.c.b16 %v1945, %v1945
      %v1968 = vpack.c.b16 %v1947, %v1946
      %v1969 = vpack.c.b16 %v1949, %v1948
      %v1970 = vpack.c.b16 %v1951, %v1950
      %v1971 = vpack.c.b16 %v1952, %v1952
      %v1972 = vpack.c.b16 %v1954, %v1953
      %v1973 = vpack.c.b16 %v1956, %v1955
      %v1974 = vpack.c.b16 %v1958, %v1957
      %v1975 = vpack.c.b16 %v1959, %v1959
      %1992 = vst [vmem:[#allocation2] sm:$0xff] %v1960
      %1993 = vst [vmem:[#allocation2 + $0x8] sm:$0xff] %v1961
      %1994 = vst [vmem:[#allocation2 + $0x10] sm:$0xff] %v1962
      %vm1995 = vcmask 125952
      %1996 = vst.msk [vmem:[#allocation2 + $0x18] sm:$0xf] %vm1995, %v1963
      %1997 = vst [vmem:[#allocation2 + $0x1c] sm:$0xff] %v1964
      %1998 = vst [vmem:[#allocation2 + $0x24] sm:$0xff] %v1965
      %1999 = vst [vmem:[#allocation2 + $0x2c] sm:$0xff] %v1966
      %2000 = vst.msk [vmem:[#allocation2 + $0x34] sm:$0xf] %vm1995, %v1967
      %2001 = vst [vmem:[#allocation2 + $0x38] sm:$0xff] %v1968
      %2002 = vst [vmem:[#allocation2 + $0x40] sm:$0xff] %v1969
      %2003 = vst [vmem:[#allocation2 + $0x48] sm:$0xff] %v1970
      %2004 = vst.msk [vmem:[#allocation2 + $0x50] sm:$0xf] %vm1995, %v1971
      %2005 = vst [vmem:[#allocation2 + $0x54] sm:$0xff] %v1972
      %2006 = vst [vmem:[#allocation2 + $0x5c] sm:$0xff] %v1973
      %2007 = vst [vmem:[#allocation2 + $0x64] sm:$0xff] %v1974
      %2008 = vst.msk [vmem:[#allocation2 + $0x6c] sm:$0xf] %vm1995, %v1975
      %v2009 = vpack.c.bf16 %v1548, %v1541
      %v2010 = vpack.c.bf16 %v1549, %v1542
      %v2011 = vpack.c.bf16 %v1550, %v1543
      %v2012 = vpack.c.bf16 %v1551, %v1544
      %v2013 = vpack.c.bf16 %v1552, %v1545
      %v2014 = vpack.c.bf16 %v1553, %v1546
      %v2015 = vpack.c.bf16 %v1554, %v1547
      %v2016 = vpack.c.bf16 %v1562, %v1555
      %v2017 = vpack.c.bf16 %v1563, %v1556
      %v2018 = vpack.c.bf16 %v1564, %v1557
      %v2019 = vpack.c.bf16 %v1565, %v1558
      %v2020 = vpack.c.bf16 %v1566, %v1559
      %v2021 = vpack.c.bf16 %v1567, %v1560
      %v2022 = vpack.c.bf16 %v1568, %v1561
      %v2037 = vunpack.c.l.b16 %v2009
      %v2038 = vunpack.c.l.b16 %v2010
      %v2039 = vunpack.c.l.b16 %v2011
      %v2040 = vunpack.c.l.b16 %v2012
      %v2041 = vunpack.c.l.b16 %v2013
      %v2042 = vunpack.c.l.b16 %v2014
      %v2043 = vunpack.c.l.b16 %v2015
      %v2044 = vunpack.c.h.b16 %v2009
      %v2045 = vunpack.c.h.b16 %v2010
      %v2046 = vunpack.c.h.b16 %v2011
      %v2047 = vunpack.c.h.b16 %v2012
      %v2048 = vunpack.c.h.b16 %v2013
      %v2049 = vunpack.c.h.b16 %v2014
      %v2050 = vunpack.c.h.b16 %v2015
      %v2051 = vunpack.c.l.b16 %v2016
      %v2052 = vunpack.c.l.b16 %v2017
      %v2053 = vunpack.c.l.b16 %v2018
      %v2054 = vunpack.c.l.b16 %v2019
      %v2055 = vunpack.c.l.b16 %v2020
      %v2056 = vunpack.c.l.b16 %v2021
      %v2057 = vunpack.c.l.b16 %v2022
      %v2058 = vunpack.c.h.b16 %v2016
      %v2059 = vunpack.c.h.b16 %v2017
      %v2060 = vunpack.c.h.b16 %v2018
      %v2061 = vunpack.c.h.b16 %v2019
      %v2062 = vunpack.c.h.b16 %v2020
      %v2063 = vunpack.c.h.b16 %v2021
      %v2064 = vunpack.c.h.b16 %v2022
      %v2065 = vpack.c.b16 %v2038, %v2037
      %v2066 = vpack.c.b16 %v2040, %v2039
      %v2067 = vpack.c.b16 %v2042, %v2041
      %v2068 = vpack.c.b16 %v2043, %v2043
      %v2069 = vpack.c.b16 %v2045, %v2044
      %v2070 = vpack.c.b16 %v2047, %v2046
      %v2071 = vpack.c.b16 %v2049, %v2048
      %v2072 = vpack.c.b16 %v2050, %v2050
      %v2073 = vpack.c.b16 %v2052, %v2051
      %v2074 = vpack.c.b16 %v2054, %v2053
      %v2075 = vpack.c.b16 %v2056, %v2055
      %v2076 = vpack.c.b16 %v2057, %v2057
      %v2077 = vpack.c.b16 %v2059, %v2058
      %v2078 = vpack.c.b16 %v2061, %v2060
      %v2079 = vpack.c.b16 %v2063, %v2062
      %v2080 = vpack.c.b16 %v2064, %v2064
      %2097 = vst [vmem:[#allocation2 + $0x70] sm:$0xff] %v2065
      %2098 = vst [vmem:[#allocation2 + $0x78] sm:$0xff] %v2066
      %2099 = vst [vmem:[#allocation2 + $0x80] sm:$0xff] %v2067
      %2100 = vst.msk [vmem:[#allocation2 + $0x88] sm:$0xf] %vm1995, %v2068
      %2101 = vst [vmem:[#allocation2 + $0x8c] sm:$0xff] %v2069
      %2102 = vst [vmem:[#allocation2 + $0x94] sm:$0xff] %v2070
      %2103 = vst [vmem:[#allocation2 + $0x9c] sm:$0xff] %v2071
      %2104 = vst.msk [vmem:[#allocation2 + $0xa4] sm:$0xf] %vm1995, %v2072
      %2105 = vst [vmem:[#allocation2 + $0xa8] sm:$0xff] %v2073
      %2106 = vst [vmem:[#allocation2 + $0xb0] sm:$0xff] %v2074
      %2107 = vst [vmem:[#allocation2 + $0xb8] sm:$0xff] %v2075
      %2108 = vst.msk [vmem:[#allocation2 + $0xc0] sm:$0xf] %vm1995, %v2076
      %2109 = vst [vmem:[#allocation2 + $0xc4] sm:$0xff] %v2077
      %2110 = vst [vmem:[#allocation2 + $0xcc] sm:$0xff] %v2078
      %2111 = vst [vmem:[#allocation2 + $0xd4] sm:$0xff] %v2079
      %2112 = vst.msk [vmem:[#allocation2 + $0xdc] sm:$0xf] %vm1995, %v2080
      %v2113 = vpack.c.bf16 %v1883, %v1876
      %v2114 = vpack.c.bf16 %v1884, %v1877
      %v2115 = vpack.c.bf16 %v1885, %v1878
      %v2116 = vpack.c.bf16 %v1886, %v1879
      %v2117 = vpack.c.bf16 %v1887, %v1880
      %v2118 = vpack.c.bf16 %v1888, %v1881
      %v2119 = vpack.c.bf16 %v1889, %v1882
      %v2120 = vpack.c.bf16 %v1897, %v1890
      %v2121 = vpack.c.bf16 %v1898, %v1891
      %v2122 = vpack.c.bf16 %v1899, %v1892
      %v2123 = vpack.c.bf16 %v1900, %v1893
      %v2124 = vpack.c.bf16 %v1901, %v1894
      %v2125 = vpack.c.bf16 %v1902, %v1895
      %v2126 = vpack.c.bf16 %v1903, %v1896
      %v2141 = vunpack.c.l.b16 %v2113
      %v2142 = vunpack.c.l.b16 %v2114
      %v2143 = vunpack.c.l.b16 %v2115
      %v2144 = vunpack.c.l.b16 %v2116
      %v2145 = vunpack.c.l.b16 %v2117
      %v2146 = vunpack.c.l.b16 %v2118
      %v2147 = vunpack.c.l.b16 %v2119
      %v2148 = vunpack.c.h.b16 %v2113
      %v2149 = vunpack.c.h.b16 %v2114
      %v2150 = vunpack.c.h.b16 %v2115
      %v2151 = vunpack.c.h.b16 %v2116
      %v2152 = vunpack.c.h.b16 %v2117
      %v2153 = vunpack.c.h.b16 %v2118
      %v2154 = vunpack.c.h.b16 %v2119
      %v2155 = vunpack.c.l.b16 %v2120
      %v2156 = vunpack.c.l.b16 %v2121
      %v2157 = vunpack.c.l.b16 %v2122
      %v2158 = vunpack.c.l.b16 %v2123
      %v2159 = vunpack.c.l.b16 %v2124
      %v2160 = vunpack.c.l.b16 %v2125
      %v2161 = vunpack.c.l.b16 %v2126
      %v2162 = vunpack.c.h.b16 %v2120
      %v2163 = vunpack.c.h.b16 %v2121
      %v2164 = vunpack.c.h.b16 %v2122
      %v2165 = vunpack.c.h.b16 %v2123
      %v2166 = vunpack.c.h.b16 %v2124
      %v2167 = vunpack.c.h.b16 %v2125
      %v2168 = vunpack.c.h.b16 %v2126
      %v2169 = vpack.c.b16 %v2142, %v2141
      %v2170 = vpack.c.b16 %v2144, %v2143
      %v2171 = vpack.c.b16 %v2146, %v2145
      %v2172 = vpack.c.b16 %v2147, %v2147
      %v2173 = vpack.c.b16 %v2149, %v2148
      %v2174 = vpack.c.b16 %v2151, %v2150
      %v2175 = vpack.c.b16 %v2153, %v2152
      %v2176 = vpack.c.b16 %v2154, %v2154
      %v2177 = vpack.c.b16 %v2156, %v2155
      %v2178 = vpack.c.b16 %v2158, %v2157
      %v2179 = vpack.c.b16 %v2160, %v2159
      %v2180 = vpack.c.b16 %v2161, %v2161
      %v2181 = vpack.c.b16 %v2163, %v2162
      %v2182 = vpack.c.b16 %v2165, %v2164
      %v2183 = vpack.c.b16 %v2167, %v2166
      %v2184 = vpack.c.b16 %v2168, %v2168
      %2201 = vst [vmem:[#allocation2 + $0xe0] sm:$0xff] %v2169
      %2202 = vst [vmem:[#allocation2 + $0xe8] sm:$0xff] %v2170
      %2203 = vst [vmem:[#allocation2 + $0xf0] sm:$0xff] %v2171
      %2204 = vst.msk [vmem:[#allocation2 + $0xf8] sm:$0xf] %vm1995, %v2172
      %2205 = vst [vmem:[#allocation2 + $0xfc] sm:$0xff] %v2173
      %2206 = vst [vmem:[#allocation2 + $0x104] sm:$0xff] %v2174
      %2207 = vst [vmem:[#allocation2 + $0x10c] sm:$0xff] %v2175
      %2208 = vst.msk [vmem:[#allocation2 + $0x114] sm:$0xf] %vm1995, %v2176
      %2209 = vst [vmem:[#allocation2 + $0x118] sm:$0xff] %v2177
      %2210 = vst [vmem:[#allocation2 + $0x120] sm:$0xff] %v2178
      %2211 = vst [vmem:[#allocation2 + $0x128] sm:$0xff] %v2179
      %2212 = vst.msk [vmem:[#allocation2 + $0x130] sm:$0xf] %vm1995, %v2180
      %2213 = vst [vmem:[#allocation2 + $0x134] sm:$0xff] %v2181
      %2214 = vst [vmem:[#allocation2 + $0x13c] sm:$0xff] %v2182
      %2215 = vst [vmem:[#allocation2 + $0x144] sm:$0xff] %v2183
      %2216 = vst.msk [vmem:[#allocation2 + $0x14c] sm:$0xf] %vm1995, %v2184
      %s2217 = scalar_lea.vmem %s170, 1792
      %v2218 = vld [vmem:[%s2217] sm:$0xff]
      %v2219 = vld [vmem:[%s2217 + $0x8] sm:$0xff]
      %v2220 = vld [vmem:[%s2217 + $0x10] sm:$0xff]
      %v2221 = vld [vmem:[%s2217 + $0x18] sm:$0xff]
      %v2222 = vld [vmem:[%s2217 + $0x20] sm:$0xff]
      %v2223 = vld [vmem:[%s2217 + $0x28] sm:$0xff]
      %v2224 = vld [vmem:[%s2217 + $0x30] sm:$0xff]
      %v2225 = vld [vmem:[%s2217 + $0x38] sm:$0xff]
      %v2226 = vld [vmem:[%s2217 + $0x40] sm:$0xff]
      %v2227 = vld [vmem:[%s2217 + $0x48] sm:$0xff]
      %v2228 = vld [vmem:[%s2217 + $0x50] sm:$0xff]
      %v2229 = vld [vmem:[%s2217 + $0x58] sm:$0xff]
      %v2230 = vld [vmem:[%s2217 + $0x60] sm:$0xff]
      %v2231 = vld [vmem:[%s2217 + $0x68] sm:$0xff]
      %v2232 = vld [vmem:[%s2217 + $0x70] sm:$0xff]
      %v2233 = vld [vmem:[%s2217 + $0x78] sm:$0xff]
      %v2234 = vld [vmem:[%s2217 + $0x80] sm:$0xff]
      %v2235 = vld [vmem:[%s2217 + $0x88] sm:$0xff]
      %v2236 = vld [vmem:[%s2217 + $0x90] sm:$0xff]
      %v2237 = vld [vmem:[%s2217 + $0x98] sm:$0xff]
      %v2238 = vld [vmem:[%s2217 + $0xa0] sm:$0xff]
      %v2239 = vld [vmem:[%s2217 + $0xa8] sm:$0xff]
      %v2240 = vld [vmem:[%s2217 + $0xb0] sm:$0xff]
      %v2241 = vld [vmem:[%s2217 + $0xb8] sm:$0xff]
      %v2242 = vld [vmem:[%s2217 + $0xc0] sm:$0xff]
      %v2243 = vld [vmem:[%s2217 + $0xc8] sm:$0xff]
      %v2244 = vld [vmem:[%s2217 + $0xd0] sm:$0xff]
      %v2245 = vld [vmem:[%s2217 + $0xd8] sm:$0xff]
      %v2246 = vld [vmem:[%s2217 + $0xe0] sm:$0xff]
      %v2247 = vld [vmem:[%s2217 + $0xe8] sm:$0xff]
      %v2248 = vld [vmem:[%s2217 + $0xf0] sm:$0xff]
      %v2249 = vld [vmem:[%s2217 + $0xf8] sm:$0xff]
      %v2250 = vld [vmem:[%s2217 + $0x100] sm:$0xff]
      %v2251 = vld [vmem:[%s2217 + $0x108] sm:$0xff]
      %v2252 = vld [vmem:[%s2217 + $0x110] sm:$0xff]
      %v2253 = vld [vmem:[%s2217 + $0x118] sm:$0xff]
      %v2254 = vld [vmem:[%s2217 + $0x120] sm:$0xff]
      %v2255 = vld [vmem:[%s2217 + $0x128] sm:$0xff]
      %v2256 = vld [vmem:[%s2217 + $0x130] sm:$0xff]
      %v2257 = vld [vmem:[%s2217 + $0x138] sm:$0xff]
      %v2258 = vld [vmem:[%s2217 + $0x140] sm:$0xff]
      %v2259 = vld [vmem:[%s2217 + $0x148] sm:$0xff]
      %v2260 = vld [vmem:[%s2217 + $0x150] sm:$0xff]
      %v2261 = vld [vmem:[%s2217 + $0x158] sm:$0xff]
      %v2262 = vld [vmem:[%s2217 + $0x160] sm:$0xff]
      %v2263 = vld [vmem:[%s2217 + $0x168] sm:$0xff]
      %v2264 = vld [vmem:[%s2217 + $0x170] sm:$0xff]
      %v2265 = vld [vmem:[%s2217 + $0x178] sm:$0xff]
      %v2266 = vld [vmem:[%s2217 + $0x180] sm:$0xff]
      %v2267 = vld [vmem:[%s2217 + $0x188] sm:$0xff]
      %v2268 = vld [vmem:[%s2217 + $0x190] sm:$0xff]
      %v2269 = vld [vmem:[%s2217 + $0x198] sm:$0xff]
      %v2270 = vld [vmem:[%s2217 + $0x1a0] sm:$0xff]
      %v2271 = vld [vmem:[%s2217 + $0x1a8] sm:$0xff]
      %v2272 = vld [vmem:[%s2217 + $0x1b0] sm:$0xff]
      %v2273 = vld [vmem:[%s2217 + $0x1b8] sm:$0xff]
      %v2274 = vld [vmem:[%s2217 + $0x1c0] sm:$0xff]
      %v2275 = vld [vmem:[%s2217 + $0x1c8] sm:$0xff]
      %v2276 = vld [vmem:[%s2217 + $0x1d0] sm:$0xff]
      %v2277 = vld [vmem:[%s2217 + $0x1d8] sm:$0xff]
      %v2278 = vld [vmem:[%s2217 + $0x1e0] sm:$0xff]
      %v2279 = vld [vmem:[%s2217 + $0x1e8] sm:$0xff]
      %v2280 = vld [vmem:[%s2217 + $0x1f0] sm:$0xff]
      %v2281 = vld [vmem:[%s2217 + $0x1f8] sm:$0xff]
      %v2282 = vld [vmem:[%s2217 + $0x200] sm:$0xff]
      %v2283 = vld [vmem:[%s2217 + $0x208] sm:$0xff]
      %v2284 = vld [vmem:[%s2217 + $0x210] sm:$0xff]
      %v2285 = vld [vmem:[%s2217 + $0x218] sm:$0xff]
      %v2286 = vld [vmem:[%s2217 + $0x220] sm:$0xff]
      %v2287 = vld [vmem:[%s2217 + $0x228] sm:$0xff]
      %v2288 = vld [vmem:[%s2217 + $0x230] sm:$0xff]
      %v2289 = vld [vmem:[%s2217 + $0x238] sm:$0xff]
      %v2290 = vld [vmem:[%s2217 + $0x240] sm:$0xff]
      %v2291 = vld [vmem:[%s2217 + $0x248] sm:$0xff]
      %v2292 = vld [vmem:[%s2217 + $0x250] sm:$0xff]
      %v2293 = vld [vmem:[%s2217 + $0x258] sm:$0xff]
      %v2294 = vld [vmem:[%s2217 + $0x260] sm:$0xff]
      %v2295 = vld [vmem:[%s2217 + $0x268] sm:$0xff]
      %v2296 = vld [vmem:[%s2217 + $0x270] sm:$0xff]
      %v2297 = vld [vmem:[%s2217 + $0x278] sm:$0xff]
      %v2298 = vld [vmem:[%s2217 + $0x280] sm:$0xff]
      %v2299 = vld [vmem:[%s2217 + $0x288] sm:$0xff]
      %v2300 = vld [vmem:[%s2217 + $0x290] sm:$0xff]
      %v2301 = vld [vmem:[%s2217 + $0x298] sm:$0xff]
      %v2302 = vld [vmem:[%s2217 + $0x2a0] sm:$0xff]
      %v2303 = vld [vmem:[%s2217 + $0x2a8] sm:$0xff]
      %v2304 = vld [vmem:[%s2217 + $0x2b0] sm:$0xff]
      %v2305 = vld [vmem:[%s2217 + $0x2b8] sm:$0xff]
      %v2306 = vld [vmem:[%s2217 + $0x2c0] sm:$0xff]
      %v2307 = vld [vmem:[%s2217 + $0x2c8] sm:$0xff]
      %v2308 = vld [vmem:[%s2217 + $0x2d0] sm:$0xff]
      %v2309 = vld [vmem:[%s2217 + $0x2d8] sm:$0xff]
      %v2310 = vld [vmem:[%s2217 + $0x2e0] sm:$0xff]
      %v2311 = vld [vmem:[%s2217 + $0x2e8] sm:$0xff]
      %v2312 = vld [vmem:[%s2217 + $0x2f0] sm:$0xff]
      %v2313 = vld [vmem:[%s2217 + $0x2f8] sm:$0xff]
      %v2314 = vld [vmem:[%s2217 + $0x300] sm:$0xff]
      %v2315 = vld [vmem:[%s2217 + $0x308] sm:$0xff]
      %v2316 = vld [vmem:[%s2217 + $0x310] sm:$0xff]
      %v2317 = vld [vmem:[%s2217 + $0x318] sm:$0xff]
      %v2318 = vld [vmem:[%s2217 + $0x320] sm:$0xff]
      %v2319 = vld [vmem:[%s2217 + $0x328] sm:$0xff]
      %v2320 = vld [vmem:[%s2217 + $0x330] sm:$0xff]
      %v2321 = vld [vmem:[%s2217 + $0x338] sm:$0xff]
      %v2322 = vld [vmem:[%s2217 + $0x340] sm:$0xff]
      %v2323 = vld [vmem:[%s2217 + $0x348] sm:$0xff]
      %v2324 = vld [vmem:[%s2217 + $0x350] sm:$0xff]
      %v2325 = vld [vmem:[%s2217 + $0x358] sm:$0xff]
      %v2326 = vld [vmem:[%s2217 + $0x360] sm:$0xff]
      %v2327 = vld [vmem:[%s2217 + $0x368] sm:$0xff]
      %v2328 = vld [vmem:[%s2217 + $0x370] sm:$0xff]
      %v2329 = vld [vmem:[%s2217 + $0x378] sm:$0xff]
      %v2330 = vld [vmem:[%s2217 + $0x380] sm:$0xff]
      %v2331 = vld [vmem:[%s2217 + $0x388] sm:$0xff]
      %v2332 = vld [vmem:[%s2217 + $0x390] sm:$0xff]
      %v2333 = vld [vmem:[%s2217 + $0x398] sm:$0xff]
      %v2334 = vld [vmem:[%s2217 + $0x3a0] sm:$0xff]
      %v2335 = vld [vmem:[%s2217 + $0x3a8] sm:$0xff]
      %v2336 = vld [vmem:[%s2217 + $0x3b0] sm:$0xff]
      %v2337 = vld [vmem:[%s2217 + $0x3b8] sm:$0xff]
      %v2338 = vld [vmem:[%s2217 + $0x3c0] sm:$0xff]
      %v2339 = vld [vmem:[%s2217 + $0x3c8] sm:$0xff]
      %v2340 = vld [vmem:[%s2217 + $0x3d0] sm:$0xff]
      %v2341 = vld [vmem:[%s2217 + $0x3d8] sm:$0xff]
      %v2342 = vld [vmem:[%s2217 + $0x3e0] sm:$0xff]
      %v2343 = vld [vmem:[%s2217 + $0x3e8] sm:$0xff]
      %v2344 = vld [vmem:[%s2217 + $0x3f0] sm:$0xff]
      %v2345 = vld [vmem:[%s2217 + $0x3f8] sm:$0xff]
      %v2346 = vld [vmem:[%s2217 + $0x400] sm:$0xff]
      %v2347 = vld [vmem:[%s2217 + $0x408] sm:$0xff]
      %v2348 = vld [vmem:[%s2217 + $0x410] sm:$0xff]
      %v2349 = vld [vmem:[%s2217 + $0x418] sm:$0xff]
      %v2350 = vld [vmem:[%s2217 + $0x420] sm:$0xff]
      %v2351 = vld [vmem:[%s2217 + $0x428] sm:$0xff]
      %v2352 = vld [vmem:[%s2217 + $0x430] sm:$0xff]
      %v2353 = vld [vmem:[%s2217 + $0x438] sm:$0xff]
      %v2354 = vld [vmem:[%s2217 + $0x440] sm:$0xff]
      %v2355 = vld [vmem:[%s2217 + $0x448] sm:$0xff]
      %v2356 = vld [vmem:[%s2217 + $0x450] sm:$0xff]
      %v2357 = vld [vmem:[%s2217 + $0x458] sm:$0xff]
      %v2358 = vld [vmem:[%s2217 + $0x460] sm:$0xff]
      %v2359 = vld [vmem:[%s2217 + $0x468] sm:$0xff]
      %v2360 = vld [vmem:[%s2217 + $0x470] sm:$0xff]
      %v2361 = vld [vmem:[%s2217 + $0x478] sm:$0xff]
      %v2362 = vld [vmem:[%s2217 + $0x480] sm:$0xff]
      %v2363 = vld [vmem:[%s2217 + $0x488] sm:$0xff]
      %v2364 = vld [vmem:[%s2217 + $0x490] sm:$0xff]
      %v2365 = vld [vmem:[%s2217 + $0x498] sm:$0xff]
      %v2366 = vld [vmem:[%s2217 + $0x4a0] sm:$0xff]
      %v2367 = vld [vmem:[%s2217 + $0x4a8] sm:$0xff]
      %v2368 = vld [vmem:[%s2217 + $0x4b0] sm:$0xff]
      %v2369 = vld [vmem:[%s2217 + $0x4b8] sm:$0xff]
      %v2370 = vld [vmem:[%s2217 + $0x4c0] sm:$0xff]
      %v2371 = vld [vmem:[%s2217 + $0x4c8] sm:$0xff]
      %v2372 = vld [vmem:[%s2217 + $0x4d0] sm:$0xff]
      %v2373 = vld [vmem:[%s2217 + $0x4d8] sm:$0xff]
      %v2374 = vld [vmem:[%s2217 + $0x4e0] sm:$0xff]
      %v2375 = vld [vmem:[%s2217 + $0x4e8] sm:$0xff]
      %v2376 = vld [vmem:[%s2217 + $0x4f0] sm:$0xff]
      %v2377 = vld [vmem:[%s2217 + $0x4f8] sm:$0xff]
      %v2378 = vld [vmem:[%s2217 + $0x500] sm:$0xff]
      %v2379 = vld [vmem:[%s2217 + $0x508] sm:$0xff]
      %v2380 = vld [vmem:[%s2217 + $0x510] sm:$0xff]
      %v2381 = vld [vmem:[%s2217 + $0x518] sm:$0xff]
      %v2382 = vld [vmem:[%s2217 + $0x520] sm:$0xff]
      %v2383 = vld [vmem:[%s2217 + $0x528] sm:$0xff]
      %v2384 = vld [vmem:[%s2217 + $0x530] sm:$0xff]
      %v2385 = vld [vmem:[%s2217 + $0x538] sm:$0xff]
      %v2386 = vld [vmem:[%s2217 + $0x540] sm:$0xff]
      %v2387 = vld [vmem:[%s2217 + $0x548] sm:$0xff]
      %v2388 = vld [vmem:[%s2217 + $0x550] sm:$0xff]
      %v2389 = vld [vmem:[%s2217 + $0x558] sm:$0xff]
      %v2390 = vld [vmem:[%s2217 + $0x560] sm:$0xff]
      %v2391 = vld [vmem:[%s2217 + $0x568] sm:$0xff]
      %v2392 = vld [vmem:[%s2217 + $0x570] sm:$0xff]
      %v2393 = vld [vmem:[%s2217 + $0x578] sm:$0xff]
      %v2394 = vld [vmem:[%s2217 + $0x580] sm:$0xff]
      %v2395 = vld [vmem:[%s2217 + $0x588] sm:$0xff]
      %v2396 = vld [vmem:[%s2217 + $0x590] sm:$0xff]
      %v2397 = vld [vmem:[%s2217 + $0x598] sm:$0xff]
      %v2398 = vld [vmem:[%s2217 + $0x5a0] sm:$0xff]
      %v2399 = vld [vmem:[%s2217 + $0x5a8] sm:$0xff]
      %v2400 = vld [vmem:[%s2217 + $0x5b0] sm:$0xff]
      %v2401 = vld [vmem:[%s2217 + $0x5b8] sm:$0xff]
      %v2402 = vld [vmem:[%s2217 + $0x5c0] sm:$0xff]
      %v2403 = vld [vmem:[%s2217 + $0x5c8] sm:$0xff]
      %v2404 = vld [vmem:[%s2217 + $0x5d0] sm:$0xff]
      %v2405 = vld [vmem:[%s2217 + $0x5d8] sm:$0xff]
      %v2406 = vld [vmem:[%s2217 + $0x5e0] sm:$0xff]
      %v2407 = vld [vmem:[%s2217 + $0x5e8] sm:$0xff]
      %v2408 = vld [vmem:[%s2217 + $0x5f0] sm:$0xff]
      %v2409 = vld [vmem:[%s2217 + $0x5f8] sm:$0xff]
      %v2410 = vld [vmem:[%s2217 + $0x600] sm:$0xff]
      %v2411 = vld [vmem:[%s2217 + $0x608] sm:$0xff]
      %v2412 = vld [vmem:[%s2217 + $0x610] sm:$0xff]
      %v2413 = vld [vmem:[%s2217 + $0x618] sm:$0xff]
      %v2414 = vld [vmem:[%s2217 + $0x620] sm:$0xff]
      %v2415 = vld [vmem:[%s2217 + $0x628] sm:$0xff]
      %v2416 = vld [vmem:[%s2217 + $0x630] sm:$0xff]
      %v2417 = vld [vmem:[%s2217 + $0x638] sm:$0xff]
      %v2418 = vld [vmem:[%s2217 + $0x640] sm:$0xff]
      %v2419 = vld [vmem:[%s2217 + $0x648] sm:$0xff]
      %v2420 = vld [vmem:[%s2217 + $0x650] sm:$0xff]
      %v2421 = vld [vmem:[%s2217 + $0x658] sm:$0xff]
      %v2422 = vld [vmem:[%s2217 + $0x660] sm:$0xff]
      %v2423 = vld [vmem:[%s2217 + $0x668] sm:$0xff]
      %v2424 = vld [vmem:[%s2217 + $0x670] sm:$0xff]
      %v2425 = vld [vmem:[%s2217 + $0x678] sm:$0xff]
      %v2426 = vld [vmem:[%s2217 + $0x680] sm:$0xff]
      %v2427 = vld [vmem:[%s2217 + $0x688] sm:$0xff]
      %v2428 = vld [vmem:[%s2217 + $0x690] sm:$0xff]
      %v2429 = vld [vmem:[%s2217 + $0x698] sm:$0xff]
      %v2430 = vld [vmem:[%s2217 + $0x6a0] sm:$0xff]
      %v2431 = vld [vmem:[%s2217 + $0x6a8] sm:$0xff]
      %v2432 = vld [vmem:[%s2217 + $0x6b0] sm:$0xff]
      %v2433 = vld [vmem:[%s2217 + $0x6b8] sm:$0xff]
      %v2434 = vld [vmem:[%s2217 + $0x6c0] sm:$0xff]
      %v2435 = vld [vmem:[%s2217 + $0x6c8] sm:$0xff]
      %v2436 = vld [vmem:[%s2217 + $0x6d0] sm:$0xff]
      %v2437 = vld [vmem:[%s2217 + $0x6d8] sm:$0xff]
      %v2438 = vld [vmem:[%s2217 + $0x6e0] sm:$0xff]
      %v2439 = vld [vmem:[%s2217 + $0x6e8] sm:$0xff]
      %v2440 = vld [vmem:[%s2217 + $0x6f0] sm:$0xff]
      %v2441 = vld [vmem:[%s2217 + $0x6f8] sm:$0xff]
      %v2442 = vpack.c.bf16 %v2225, %v2218
      %v2443 = vpack.c.bf16 %v2226, %v2219
      %v2444 = vpack.c.bf16 %v2227, %v2220
      %v2445 = vpack.c.bf16 %v2228, %v2221
      %v2446 = vpack.c.bf16 %v2229, %v2222
      %v2447 = vpack.c.bf16 %v2230, %v2223
      %v2448 = vpack.c.bf16 %v2231, %v2224
      %v2449 = vpack.c.bf16 %v2239, %v2232
      %v2450 = vpack.c.bf16 %v2240, %v2233
      %v2451 = vpack.c.bf16 %v2241, %v2234
      %v2452 = vpack.c.bf16 %v2242, %v2235
      %v2453 = vpack.c.bf16 %v2243, %v2236
      %v2454 = vpack.c.bf16 %v2244, %v2237
      %v2455 = vpack.c.bf16 %v2245, %v2238
      %v2456 = vpack.c.bf16 %v2253, %v2246
      %v2457 = vpack.c.bf16 %v2254, %v2247
      %v2458 = vpack.c.bf16 %v2255, %v2248
      %v2459 = vpack.c.bf16 %v2256, %v2249
      %v2460 = vpack.c.bf16 %v2257, %v2250
      %v2461 = vpack.c.bf16 %v2258, %v2251
      %v2462 = vpack.c.bf16 %v2259, %v2252
      %v2463 = vpack.c.bf16 %v2267, %v2260
      %v2464 = vpack.c.bf16 %v2268, %v2261
      %v2465 = vpack.c.bf16 %v2269, %v2262
      %v2466 = vpack.c.bf16 %v2270, %v2263
      %v2467 = vpack.c.bf16 %v2271, %v2264
      %v2468 = vpack.c.bf16 %v2272, %v2265
      %v2469 = vpack.c.bf16 %v2273, %v2266
      %v2470 = vpack.c.bf16 %v2281, %v2274
      %v2471 = vpack.c.bf16 %v2282, %v2275
      %v2472 = vpack.c.bf16 %v2283, %v2276
      %v2473 = vpack.c.bf16 %v2284, %v2277
      %v2474 = vpack.c.bf16 %v2285, %v2278
      %v2475 = vpack.c.bf16 %v2286, %v2279
      %v2476 = vpack.c.bf16 %v2287, %v2280
      %v2477 = vpack.c.bf16 %v2295, %v2288
      %v2478 = vpack.c.bf16 %v2296, %v2289
      %v2479 = vpack.c.bf16 %v2297, %v2290
      %v2480 = vpack.c.bf16 %v2298, %v2291
      %v2481 = vpack.c.bf16 %v2299, %v2292
      %v2482 = vpack.c.bf16 %v2300, %v2293
      %v2483 = vpack.c.bf16 %v2301, %v2294
      %v2484 = vpack.c.bf16 %v2309, %v2302
      %v2485 = vpack.c.bf16 %v2310, %v2303
      %v2486 = vpack.c.bf16 %v2311, %v2304
      %v2487 = vpack.c.bf16 %v2312, %v2305
      %v2488 = vpack.c.bf16 %v2313, %v2306
      %v2489 = vpack.c.bf16 %v2314, %v2307
      %v2490 = vpack.c.bf16 %v2315, %v2308
      %v2491 = vpack.c.bf16 %v2323, %v2316
      %v2492 = vpack.c.bf16 %v2324, %v2317
      %v2493 = vpack.c.bf16 %v2325, %v2318
      %v2494 = vpack.c.bf16 %v2326, %v2319
      %v2495 = vpack.c.bf16 %v2327, %v2320
      %v2496 = vpack.c.bf16 %v2328, %v2321
      %v2497 = vpack.c.bf16 %v2329, %v2322
      %v2498 = vpack.c.bf16 %v2337, %v2330
      %v2499 = vpack.c.bf16 %v2338, %v2331
      %v2500 = vpack.c.bf16 %v2339, %v2332
      %v2501 = vpack.c.bf16 %v2340, %v2333
      %v2502 = vpack.c.bf16 %v2341, %v2334
      %v2503 = vpack.c.bf16 %v2342, %v2335
      %v2504 = vpack.c.bf16 %v2343, %v2336
      %v2505 = vpack.c.bf16 %v2351, %v2344
      %v2506 = vpack.c.bf16 %v2352, %v2345
      %v2507 = vpack.c.bf16 %v2353, %v2346
      %v2508 = vpack.c.bf16 %v2354, %v2347
      %v2509 = vpack.c.bf16 %v2355, %v2348
      %v2510 = vpack.c.bf16 %v2356, %v2349
      %v2511 = vpack.c.bf16 %v2357, %v2350
      %v2512 = vpack.c.bf16 %v2365, %v2358
      %v2513 = vpack.c.bf16 %v2366, %v2359
      %v2514 = vpack.c.bf16 %v2367, %v2360
      %v2515 = vpack.c.bf16 %v2368, %v2361
      %v2516 = vpack.c.bf16 %v2369, %v2362
      %v2517 = vpack.c.bf16 %v2370, %v2363
      %v2518 = vpack.c.bf16 %v2371, %v2364
      %v2519 = vpack.c.bf16 %v2379, %v2372
      %v2520 = vpack.c.bf16 %v2380, %v2373
      %v2521 = vpack.c.bf16 %v2381, %v2374
      %v2522 = vpack.c.bf16 %v2382, %v2375
      %v2523 = vpack.c.bf16 %v2383, %v2376
      %v2524 = vpack.c.bf16 %v2384, %v2377
      %v2525 = vpack.c.bf16 %v2385, %v2378
      %v2526 = vpack.c.bf16 %v2393, %v2386
      %v2527 = vpack.c.bf16 %v2394, %v2387
      %v2528 = vpack.c.bf16 %v2395, %v2388
      %v2529 = vpack.c.bf16 %v2396, %v2389
      %v2530 = vpack.c.bf16 %v2397, %v2390
      %v2531 = vpack.c.bf16 %v2398, %v2391
      %v2532 = vpack.c.bf16 %v2399, %v2392
      %v2533 = vpack.c.bf16 %v2407, %v2400
      %v2534 = vpack.c.bf16 %v2408, %v2401
      %v2535 = vpack.c.bf16 %v2409, %v2402
      %v2536 = vpack.c.bf16 %v2410, %v2403
      %v2537 = vpack.c.bf16 %v2411, %v2404
      %v2538 = vpack.c.bf16 %v2412, %v2405
      %v2539 = vpack.c.bf16 %v2413, %v2406
      %v2540 = vpack.c.bf16 %v2421, %v2414
      %v2541 = vpack.c.bf16 %v2422, %v2415
      %v2542 = vpack.c.bf16 %v2423, %v2416
      %v2543 = vpack.c.bf16 %v2424, %v2417
      %v2544 = vpack.c.bf16 %v2425, %v2418
      %v2545 = vpack.c.bf16 %v2426, %v2419
      %v2546 = vpack.c.bf16 %v2427, %v2420
      %v2547 = vpack.c.bf16 %v2435, %v2428
      %v2548 = vpack.c.bf16 %v2436, %v2429
      %v2549 = vpack.c.bf16 %v2437, %v2430
      %v2550 = vpack.c.bf16 %v2438, %v2431
      %v2551 = vpack.c.bf16 %v2439, %v2432
      %v2552 = vpack.c.bf16 %v2440, %v2433
      %v2553 = vpack.c.bf16 %v2441, %v2434
      %2554 = vmatprep.subr.bf16.mxu0 %v2492
      %2555 = vmatpush1.bf16.msra.mxu0 %v2491
      %2556 = vmatprep.subr.bf16.mxu0 %v2485
      %2557 = vmatpush1.bf16.msra.mxu0 %v2484
      %2558 = vmatprep.subr.bf16.mxu0 %v2478
      %2559 = vmatpush1.bf16.msra.mxu0 %v2477
      %2560 = vmatprep.subr.bf16.mxu0 %v2471
      %2561 = vmatpush1.bf16.msra.mxu0 %v2470
      %2562 = vmatprep.subr.bf16.mxu0 %v2464
      %2563 = vmatpush1.bf16.msra.mxu0 %v2463
      %2564 = vmatprep.subr.bf16.mxu0 %v2457
      %2565 = vmatpush1.bf16.msra.mxu0 %v2456
      %2566 = vmatprep.subr.bf16.mxu0 %v2450
      %2567 = vmatpush1.bf16.msra.mxu0 %v2449
      %2568 = vmatprep.subr.bf16.mxu0 %v2443
      %2569 = vmatpush1.bf16.msra.mxu0 %v2442
      %2570 = vmatprep.subr.bf16.mxu0 %v2548
      %2571 = vmatpush2.bf16.msra.mxu0 %v2547
      %2572 = vmatprep.subr.bf16.mxu0 %v2541
      %2573 = vmatpush2.bf16.msra.mxu0 %v2540
      %2574 = vmatprep.subr.bf16.mxu0 %v2534
      %2575 = vmatpush2.bf16.msra.mxu0 %v2533
      %2576 = vmatprep.subr.bf16.mxu0 %v2527
      %2577 = vmatpush2.bf16.msra.mxu0 %v2526
      %2578 = vmatprep.subr.bf16.mxu0 %v2520
      %2579 = vmatpush2.bf16.msra.mxu0 %v2519
      %2580 = vmatprep.subr.bf16.mxu0 %v2513
      %2581 = vmatpush2.bf16.msra.mxu0 %v2512
      %2582 = vmatprep.subr.bf16.mxu0 %v2506
      %2583 = vmatpush2.bf16.msra.mxu0 %v2505
      %2584 = vmatprep.subr.bf16.mxu0 %v2499
      %2585 = vmatpush2.bf16.msra.mxu0 %v2498
      %2586 = vmatprep.mubr.bf16.mxu0 %v766
      %2587 = vmatmul.mubr.bf16.gmra.mxu0 %v765
      %v2588 = vpop.f32.mrf.mxu0
      %v2589 = vadd.f32 0.0, %v2588
      %v2590 = vpop.f32.mrf.mxu0
      %v2591 = vadd.f32 0.0, %v2590
      %v2592 = vpop.f32.mrf.mxu0
      %v2593 = vadd.f32 0.0, %v2592
      %v2594 = vpop.f32.mrf.mxu0
      %v2595 = vadd.f32 0.0, %v2594
      %2596 = vmatprep.mubr.bf16.mxu0 %v768
      %2597 = vmatmul.mubr.bf16.gmra.mxu0 %v767
      %v2598 = vpop.f32.mrf.mxu0
      %v2599 = vadd.f32 0.0, %v2598
      %v2600 = vpop.f32.mrf.mxu0
      %v2601 = vadd.f32 0.0, %v2600
      %v2602 = vpop.f32.mrf.mxu0
      %v2603 = vadd.f32 0.0, %v2602
      %v2604 = vpop.f32.mrf.mxu0
      %v2605 = vadd.f32 0.0, %v2604
      %2606 = vmatprep.mubr.bf16.mxu0 %v770
      %2607 = vmatmul.mubr.bf16.gmra.mxu0 %v769
      %v2608 = vpop.f32.mrf.mxu0
      %v2609 = vadd.f32 0.0, %v2608
      %v2610 = vpop.f32.mrf.mxu0
      %v2611 = vadd.f32 0.0, %v2610
      %v2612 = vpop.f32.mrf.mxu0
      %v2613 = vadd.f32 0.0, %v2612
      %v2614 = vpop.f32.mrf.mxu0
      %v2615 = vadd.f32 0.0, %v2614
      %2616 = vmatprep.mubr.bf16.mxu0 %v772
      %2617 = vmatmul.mubr.bf16.gmra.mxu0 %v771
      %v2618 = vpop.f32.mrf.mxu0
      %v2619 = vadd.f32 0.0, %v2618
      %v2620 = vpop.f32.mrf.mxu0
      %v2621 = vadd.f32 0.0, %v2620
      %v2622 = vpop.f32.mrf.mxu0
      %v2623 = vadd.f32 0.0, %v2622
      %v2624 = vpop.f32.mrf.mxu0
      %v2625 = vadd.f32 0.0, %v2624
      %2626 = vmatprep.mubr.bf16.mxu0 %v774
      %2627 = vmatmul.mubr.bf16.gmra.mxu0 %v773
      %v2628 = vpop.f32.mrf.mxu0
      %v2629 = vadd.f32 0.0, %v2628
      %v2630 = vpop.f32.mrf.mxu0
      %v2631 = vadd.f32 0.0, %v2630
      %v2632 = vpop.f32.mrf.mxu0
      %v2633 = vadd.f32 0.0, %v2632
      %v2634 = vpop.f32.mrf.mxu0
      %v2635 = vadd.f32 0.0, %v2634
      %2636 = vmatprep.mubr.bf16.mxu0 %v776
      %2637 = vmatmul.mubr.bf16.gmra.mxu0 %v775
      %v2638 = vpop.f32.mrf.mxu0
      %v2639 = vadd.f32 0.0, %v2638
      %v2640 = vpop.f32.mrf.mxu0
      %v2641 = vadd.f32 0.0, %v2640
      %v2642 = vpop.f32.mrf.mxu0
      %v2643 = vadd.f32 0.0, %v2642
      %v2644 = vpop.f32.mrf.mxu0
      %v2645 = vadd.f32 0.0, %v2644
      %2646 = vdwg.mxu0
      %2647 = vmatprep.subr.bf16.mxu0 %v2494
      %2648 = vmatpush1.bf16.msra.mxu0 %v2493
      %2649 = vmatprep.subr.bf16.mxu0 %v2487
      %2650 = vmatpush1.bf16.msra.mxu0 %v2486
      %2651 = vmatprep.subr.bf16.mxu0 %v2480
      %2652 = vmatpush1.bf16.msra.mxu0 %v2479
      %2653 = vmatprep.subr.bf16.mxu0 %v2473
      %2654 = vmatpush1.bf16.msra.mxu0 %v2472
      %2655 = vmatprep.subr.bf16.mxu0 %v2466
      %2656 = vmatpush1.bf16.msra.mxu0 %v2465
      %2657 = vmatprep.subr.bf16.mxu0 %v2459
      %2658 = vmatpush1.bf16.msra.mxu0 %v2458
      %2659 = vmatprep.subr.bf16.mxu0 %v2452
      %2660 = vmatpush1.bf16.msra.mxu0 %v2451
      %2661 = vmatprep.subr.bf16.mxu0 %v2445
      %2662 = vmatpush1.bf16.msra.mxu0 %v2444
      %2663 = vmatprep.subr.bf16.mxu0 %v2550
      %2664 = vmatpush2.bf16.msra.mxu0 %v2549
      %2665 = vmatprep.subr.bf16.mxu0 %v2543
      %2666 = vmatpush2.bf16.msra.mxu0 %v2542
      %2667 = vmatprep.subr.bf16.mxu0 %v2536
      %2668 = vmatpush2.bf16.msra.mxu0 %v2535
      %2669 = vmatprep.subr.bf16.mxu0 %v2529
      %2670 = vmatpush2.bf16.msra.mxu0 %v2528
      %2671 = vmatprep.subr.bf16.mxu0 %v2522
      %2672 = vmatpush2.bf16.msra.mxu0 %v2521
      %2673 = vmatprep.subr.bf16.mxu0 %v2515
      %2674 = vmatpush2.bf16.msra.mxu0 %v2514
      %2675 = vmatprep.subr.bf16.mxu0 %v2508
      %2676 = vmatpush2.bf16.msra.mxu0 %v2507
      %2677 = vmatprep.subr.bf16.mxu0 %v2501
      %2678 = vmatpush2.bf16.msra.mxu0 %v2500
      %2679 = vmatprep.mubr.bf16.mxu0 %v766
      %2680 = vmatmul.mubr.bf16.gmra.mxu0 %v765
      %v2681 = vpop.f32.mrf.mxu0
      %v2682 = vadd.f32 0.0, %v2681
      %v2683 = vpop.f32.mrf.mxu0
      %v2684 = vadd.f32 0.0, %v2683
      %v2685 = vpop.f32.mrf.mxu0
      %v2686 = vadd.f32 0.0, %v2685
      %v2687 = vpop.f32.mrf.mxu0
      %v2688 = vadd.f32 0.0, %v2687
      %2689 = vmatprep.mubr.bf16.mxu0 %v768
      %2690 = vmatmul.mubr.bf16.gmra.mxu0 %v767
      %v2691 = vpop.f32.mrf.mxu0
      %v2692 = vadd.f32 0.0, %v2691
      %v2693 = vpop.f32.mrf.mxu0
      %v2694 = vadd.f32 0.0, %v2693
      %v2695 = vpop.f32.mrf.mxu0
      %v2696 = vadd.f32 0.0, %v2695
      %v2697 = vpop.f32.mrf.mxu0
      %v2698 = vadd.f32 0.0, %v2697
      %2699 = vmatprep.mubr.bf16.mxu0 %v770
      %2700 = vmatmul.mubr.bf16.gmra.mxu0 %v769
      %v2701 = vpop.f32.mrf.mxu0
      %v2702 = vadd.f32 0.0, %v2701
      %v2703 = vpop.f32.mrf.mxu0
      %v2704 = vadd.f32 0.0, %v2703
      %v2705 = vpop.f32.mrf.mxu0
      %v2706 = vadd.f32 0.0, %v2705
      %v2707 = vpop.f32.mrf.mxu0
      %v2708 = vadd.f32 0.0, %v2707
      %2709 = vmatprep.mubr.bf16.mxu0 %v772
      %2710 = vmatmul.mubr.bf16.gmra.mxu0 %v771
      %v2711 = vpop.f32.mrf.mxu0
      %v2712 = vadd.f32 0.0, %v2711
      %v2713 = vpop.f32.mrf.mxu0
      %v2714 = vadd.f32 0.0, %v2713
      %v2715 = vpop.f32.mrf.mxu0
      %v2716 = vadd.f32 0.0, %v2715
      %v2717 = vpop.f32.mrf.mxu0
      %v2718 = vadd.f32 0.0, %v2717
      %2719 = vmatprep.mubr.bf16.mxu0 %v774
      %2720 = vmatmul.mubr.bf16.gmra.mxu0 %v773
      %v2721 = vpop.f32.mrf.mxu0
      %v2722 = vadd.f32 0.0, %v2721
      %v2723 = vpop.f32.mrf.mxu0
      %v2724 = vadd.f32 0.0, %v2723
      %v2725 = vpop.f32.mrf.mxu0
      %v2726 = vadd.f32 0.0, %v2725
      %v2727 = vpop.f32.mrf.mxu0
      %v2728 = vadd.f32 0.0, %v2727
      %2729 = vmatprep.mubr.bf16.mxu0 %v776
      %2730 = vmatmul.mubr.bf16.gmra.mxu0 %v775
      %v2731 = vpop.f32.mrf.mxu0
      %v2732 = vadd.f32 0.0, %v2731
      %v2733 = vpop.f32.mrf.mxu0
      %v2734 = vadd.f32 0.0, %v2733
      %v2735 = vpop.f32.mrf.mxu0
      %v2736 = vadd.f32 0.0, %v2735
      %v2737 = vpop.f32.mrf.mxu0
      %v2738 = vadd.f32 0.0, %v2737
      %2739 = vdwg.mxu0
      %2740 = vmatprep.subr.bf16.mxu0 %v2496
      %2741 = vmatpush1.bf16.msra.mxu0 %v2495
      %2742 = vmatprep.subr.bf16.mxu0 %v2489
      %2743 = vmatpush1.bf16.msra.mxu0 %v2488
      %2744 = vmatprep.subr.bf16.mxu0 %v2482
      %2745 = vmatpush1.bf16.msra.mxu0 %v2481
      %2746 = vmatprep.subr.bf16.mxu0 %v2475
      %2747 = vmatpush1.bf16.msra.mxu0 %v2474
      %2748 = vmatprep.subr.bf16.mxu0 %v2468
      %2749 = vmatpush1.bf16.msra.mxu0 %v2467
      %2750 = vmatprep.subr.bf16.mxu0 %v2461
      %2751 = vmatpush1.bf16.msra.mxu0 %v2460
      %2752 = vmatprep.subr.bf16.mxu0 %v2454
      %2753 = vmatpush1.bf16.msra.mxu0 %v2453
      %2754 = vmatprep.subr.bf16.mxu0 %v2447
      %2755 = vmatpush1.bf16.msra.mxu0 %v2446
      %2756 = vmatprep.subr.bf16.mxu0 %v2552
      %2757 = vmatpush2.bf16.msra.mxu0 %v2551
      %2758 = vmatprep.subr.bf16.mxu0 %v2545
      %2759 = vmatpush2.bf16.msra.mxu0 %v2544
      %2760 = vmatprep.subr.bf16.mxu0 %v2538
      %2761 = vmatpush2.bf16.msra.mxu0 %v2537
      %2762 = vmatprep.subr.bf16.mxu0 %v2531
      %2763 = vmatpush2.bf16.msra.mxu0 %v2530
      %2764 = vmatprep.subr.bf16.mxu0 %v2524
      %2765 = vmatpush2.bf16.msra.mxu0 %v2523
      %2766 = vmatprep.subr.bf16.mxu0 %v2517
      %2767 = vmatpush2.bf16.msra.mxu0 %v2516
      %2768 = vmatprep.subr.bf16.mxu0 %v2510
      %2769 = vmatpush2.bf16.msra.mxu0 %v2509
      %2770 = vmatprep.subr.bf16.mxu0 %v2503
      %2771 = vmatpush2.bf16.msra.mxu0 %v2502
      %2772 = vmatprep.mubr.bf16.mxu0 %v766
      %2773 = vmatmul.mubr.bf16.gmra.mxu0 %v765
      %v2774 = vpop.f32.mrf.mxu0
      %v2775 = vadd.f32 0.0, %v2774
      %v2776 = vpop.f32.mrf.mxu0
      %v2777 = vadd.f32 0.0, %v2776
      %v2778 = vpop.f32.mrf.mxu0
      %v2779 = vadd.f32 0.0, %v2778
      %v2780 = vpop.f32.mrf.mxu0
      %v2781 = vadd.f32 0.0, %v2780
      %2782 = vmatprep.mubr.bf16.mxu0 %v768
      %2783 = vmatmul.mubr.bf16.gmra.mxu0 %v767
      %v2784 = vpop.f32.mrf.mxu0
      %v2785 = vadd.f32 0.0, %v2784
      %v2786 = vpop.f32.mrf.mxu0
      %v2787 = vadd.f32 0.0, %v2786
      %v2788 = vpop.f32.mrf.mxu0
      %v2789 = vadd.f32 0.0, %v2788
      %v2790 = vpop.f32.mrf.mxu0
      %v2791 = vadd.f32 0.0, %v2790
      %2792 = vmatprep.mubr.bf16.mxu0 %v770
      %2793 = vmatmul.mubr.bf16.gmra.mxu0 %v769
      %v2794 = vpop.f32.mrf.mxu0
      %v2795 = vadd.f32 0.0, %v2794
      %v2796 = vpop.f32.mrf.mxu0
      %v2797 = vadd.f32 0.0, %v2796
      %v2798 = vpop.f32.mrf.mxu0
      %v2799 = vadd.f32 0.0, %v2798
      %v2800 = vpop.f32.mrf.mxu0
      %v2801 = vadd.f32 0.0, %v2800
      %2802 = vmatprep.mubr.bf16.mxu0 %v772
      %2803 = vmatmul.mubr.bf16.gmra.mxu0 %v771
      %v2804 = vpop.f32.mrf.mxu0
      %v2805 = vadd.f32 0.0, %v2804
      %v2806 = vpop.f32.mrf.mxu0
      %v2807 = vadd.f32 0.0, %v2806
      %v2808 = vpop.f32.mrf.mxu0
      %v2809 = vadd.f32 0.0, %v2808
      %v2810 = vpop.f32.mrf.mxu0
      %v2811 = vadd.f32 0.0, %v2810
      %2812 = vmatprep.mubr.bf16.mxu0 %v774
      %2813 = vmatmul.mubr.bf16.gmra.mxu0 %v773
      %v2814 = vpop.f32.mrf.mxu0
      %v2815 = vadd.f32 0.0, %v2814
      %v2816 = vpop.f32.mrf.mxu0
      %v2817 = vadd.f32 0.0, %v2816
      %v2818 = vpop.f32.mrf.mxu0
      %v2819 = vadd.f32 0.0, %v2818
      %v2820 = vpop.f32.mrf.mxu0
      %v2821 = vadd.f32 0.0, %v2820
      %2822 = vmatprep.mubr.bf16.mxu0 %v776
      %2823 = vmatmul.mubr.bf16.gmra.mxu0 %v775
      %v2824 = vpop.f32.mrf.mxu0
      %v2825 = vadd.f32 0.0, %v2824
      %v2826 = vpop.f32.mrf.mxu0
      %v2827 = vadd.f32 0.0, %v2826
      %v2828 = vpop.f32.mrf.mxu0
      %v2829 = vadd.f32 0.0, %v2828
      %v2830 = vpop.f32.mrf.mxu0
      %v2831 = vadd.f32 0.0, %v2830
      %2832 = vdwg.mxu0
      %2833 = vmatprep.subr.bf16.mxu0 0
      %2834 = vmatpush1.bf16.msra.mxu0 %v2497
      %2835 = vmatprep.subr.bf16.mxu0 0
      %2836 = vmatpush1.bf16.msra.mxu0 %v2490
      %2837 = vmatprep.subr.bf16.mxu0 0
      %2838 = vmatpush1.bf16.msra.mxu0 %v2483
      %2839 = vmatprep.subr.bf16.mxu0 0
      %2840 = vmatpush1.bf16.msra.mxu0 %v2476
      %2841 = vmatprep.subr.bf16.mxu0 0
      %2842 = vmatpush1.bf16.msra.mxu0 %v2469
      %2843 = vmatprep.subr.bf16.mxu0 0
      %2844 = vmatpush1.bf16.msra.mxu0 %v2462
      %2845 = vmatprep.subr.bf16.mxu0 0
      %2846 = vmatpush1.bf16.msra.mxu0 %v2455
      %2847 = vmatprep.subr.bf16.mxu0 0
      %2848 = vmatpush1.bf16.msra.mxu0 %v2448
      %2849 = vmatprep.subr.bf16.mxu0 0
      %2850 = vmatpush2.bf16.msra.mxu0 %v2553
      %2851 = vmatprep.subr.bf16.mxu0 0
      %2852 = vmatpush2.bf16.msra.mxu0 %v2546
      %2853 = vmatprep.subr.bf16.mxu0 0
      %2854 = vmatpush2.bf16.msra.mxu0 %v2539
      %2855 = vmatprep.subr.bf16.mxu0 0
      %2856 = vmatpush2.bf16.msra.mxu0 %v2532
      %2857 = vmatprep.subr.bf16.mxu0 0
      %2858 = vmatpush2.bf16.msra.mxu0 %v2525
      %2859 = vmatprep.subr.bf16.mxu0 0
      %2860 = vmatpush2.bf16.msra.mxu0 %v2518
      %2861 = vmatprep.subr.bf16.mxu0 0
      %2862 = vmatpush2.bf16.msra.mxu0 %v2511
      %2863 = vmatprep.subr.bf16.mxu0 0
      %2864 = vmatpush2.bf16.msra.mxu0 %v2504
      %2865 = vmatprep.mubr.bf16.mxu0 %v766
      %2866 = vmatmul.mubr.bf16.gmra.mxu0 %v765
      %v2867 = vpop.f32.mrf.mxu0
      %v2868 = vadd.f32 0.0, %v2867
      %v2869 = vpop.f32.mrf.mxu0
      %v2870 = vpop.f32.mrf.mxu0
      %v2871 = vadd.f32 0.0, %v2870
      %v2872 = vpop.f32.mrf.mxu0
      %2873 = vmatprep.mubr.bf16.mxu0 %v768
      %2874 = vmatmul.mubr.bf16.gmra.mxu0 %v767
      %v2875 = vpop.f32.mrf.mxu0
      %v2876 = vadd.f32 0.0, %v2875
      %v2877 = vpop.f32.mrf.mxu0
      %v2878 = vpop.f32.mrf.mxu0
      %v2879 = vadd.f32 0.0, %v2878
      %v2880 = vpop.f32.mrf.mxu0
      %2881 = vmatprep.mubr.bf16.mxu0 %v770
      %2882 = vmatmul.mubr.bf16.gmra.mxu0 %v769
      %v2883 = vpop.f32.mrf.mxu0
      %v2884 = vadd.f32 0.0, %v2883
      %v2885 = vpop.f32.mrf.mxu0
      %v2886 = vpop.f32.mrf.mxu0
      %v2887 = vadd.f32 0.0, %v2886
      %v2888 = vpop.f32.mrf.mxu0
      %2889 = vmatprep.mubr.bf16.mxu0 %v772
      %2890 = vmatmul.mubr.bf16.gmra.mxu0 %v771
      %v2891 = vpop.f32.mrf.mxu0
      %v2892 = vadd.f32 0.0, %v2891
      %v2893 = vpop.f32.mrf.mxu0
      %v2894 = vpop.f32.mrf.mxu0
      %v2895 = vadd.f32 0.0, %v2894
      %v2896 = vpop.f32.mrf.mxu0
      %2897 = vmatprep.mubr.bf16.mxu0 %v774
      %2898 = vmatmul.mubr.bf16.gmra.mxu0 %v773
      %v2899 = vpop.f32.mrf.mxu0
      %v2900 = vadd.f32 0.0, %v2899
      %v2901 = vpop.f32.mrf.mxu0
      %v2902 = vpop.f32.mrf.mxu0
      %v2903 = vadd.f32 0.0, %v2902
      %v2904 = vpop.f32.mrf.mxu0
      %2905 = vmatprep.mubr.bf16.mxu0 %v776
      %2906 = vmatmul.mubr.bf16.gmra.mxu0 %v775
      %v2907 = vpop.f32.mrf.mxu0
      %v2908 = vadd.f32 0.0, %v2907
      %v2909 = vpop.f32.mrf.mxu0
      %v2910 = vpop.f32.mrf.mxu0
      %v2911 = vadd.f32 0.0, %v2910
      %v2912 = vpop.f32.mrf.mxu0
      %2913 = vdwg.mxu0
      %2922 = vrot.lane.b32.xlu0 %v2797, 12
      %v2923 = vpop.permute.xlu0 %2922
      %2924 = vrot.lane.b32.xlu0 %v2884, 12
      %v2925 = vpop.permute.xlu0 %2924
      %2926 = vrot.lane.b32.xlu0 %v2801, 12
      %v2927 = vpop.permute.xlu0 %2926
      %2928 = vrot.lane.b32.xlu0 %v2887, 12
      %v2929 = vpop.permute.xlu0 %2928
      %2930 = vrot.lane.b32.xlu0 %v2807, 12
      %v2931 = vpop.permute.xlu0 %2930
      %2932 = vrot.lane.b32.xlu0 %v2892, 12
      %v2933 = vpop.permute.xlu0 %2932
      %2934 = vrot.lane.b32.xlu0 %v2811, 12
      %v2935 = vpop.permute.xlu0 %2934
      %2936 = vrot.lane.b32.xlu0 %v2895, 12
      %v2937 = vpop.permute.xlu0 %2936
      %v2938 = vsel %vm1173, %v2923, %v2925
      %v2939 = vsel %vm1173, %v2927, %v2929
      %v2940 = vsel %vm1173, %v2931, %v2933
      %v2941 = vsel %vm1173, %v2935, %v2937
      %2966 = vrot.lane.b32.xlu0 %v2609, 28
      %v2967 = vpop.permute.xlu0 %2966
      %2968 = vrot.lane.b32.xlu0 %v2611, 28
      %v2969 = vpop.permute.xlu0 %2968
      %2970 = vrot.lane.b32.xlu0 %v2702, 28
      %v2971 = vpop.permute.xlu0 %2970
      %2972 = vrot.lane.b32.xlu0 %v2704, 28
      %v2973 = vpop.permute.xlu0 %2972
      %2974 = vrot.lane.b32.xlu0 %v2795, 28
      %v2975 = vpop.permute.xlu0 %2974
      %2976 = vrot.lane.b32.xlu0 %v2797, 28
      %v2977 = vpop.permute.xlu0 %2976
      %2978 = vrot.lane.b32.xlu0 %v2613, 28
      %v2979 = vpop.permute.xlu0 %2978
      %2980 = vrot.lane.b32.xlu0 %v2615, 28
      %v2981 = vpop.permute.xlu0 %2980
      %2982 = vrot.lane.b32.xlu0 %v2706, 28
      %v2983 = vpop.permute.xlu0 %2982
      %2984 = vrot.lane.b32.xlu0 %v2708, 28
      %v2985 = vpop.permute.xlu0 %2984
      %2986 = vrot.lane.b32.xlu0 %v2799, 28
      %v2987 = vpop.permute.xlu0 %2986
      %2988 = vrot.lane.b32.xlu0 %v2801, 28
      %v2989 = vpop.permute.xlu0 %2988
      %2990 = vrot.lane.b32.xlu0 %v2619, 28
      %v2991 = vpop.permute.xlu0 %2990
      %2992 = vrot.lane.b32.xlu0 %v2621, 28
      %v2993 = vpop.permute.xlu0 %2992
      %2994 = vrot.lane.b32.xlu0 %v2712, 28
      %v2995 = vpop.permute.xlu0 %2994
      %2996 = vrot.lane.b32.xlu0 %v2714, 28
      %v2997 = vpop.permute.xlu0 %2996
      %2998 = vrot.lane.b32.xlu0 %v2805, 28
      %v2999 = vpop.permute.xlu0 %2998
      %3000 = vrot.lane.b32.xlu0 %v2807, 28
      %v3001 = vpop.permute.xlu0 %3000
      %3002 = vrot.lane.b32.xlu0 %v2623, 28
      %v3003 = vpop.permute.xlu0 %3002
      %3004 = vrot.lane.b32.xlu0 %v2625, 28
      %v3005 = vpop.permute.xlu0 %3004
      %3006 = vrot.lane.b32.xlu0 %v2716, 28
      %v3007 = vpop.permute.xlu0 %3006
      %3008 = vrot.lane.b32.xlu0 %v2718, 28
      %v3009 = vpop.permute.xlu0 %3008
      %3010 = vrot.lane.b32.xlu0 %v2809, 28
      %v3011 = vpop.permute.xlu0 %3010
      %3012 = vrot.lane.b32.xlu0 %v2811, 28
      %v3013 = vpop.permute.xlu0 %3012
      %v3014 = vsel %vm1250, %v2967, %v2969
      %v3015 = vsel %vm1250, %v2969, %v2971
      %v3016 = vsel %vm1250, %v2971, %v2973
      %v3017 = vsel %vm1250, %v2973, %v2975
      %v3018 = vsel %vm1250, %v2975, %v2977
      %v3019 = vsel %vm1250, %v2979, %v2981
      %v3020 = vsel %vm1250, %v2981, %v2983
      %v3021 = vsel %vm1250, %v2983, %v2985
      %v3022 = vsel %vm1250, %v2985, %v2987
      %v3023 = vsel %vm1250, %v2987, %v2989
      %v3024 = vsel %vm1250, %v2991, %v2993
      %v3025 = vsel %vm1250, %v2993, %v2995
      %v3026 = vsel %vm1250, %v2995, %v2997
      %v3027 = vsel %vm1250, %v2997, %v2999
      %v3028 = vsel %vm1250, %v2999, %v3001
      %v3029 = vsel %vm1250, %v3003, %v3005
      %v3030 = vsel %vm1250, %v3005, %v3007
      %v3031 = vsel %vm1250, %v3007, %v3009
      %v3032 = vsel %vm1250, %v3009, %v3011
      %v3033 = vsel %vm1250, %v3011, %v3013
      %v3062 = vsel %vm1250, %v2938, %v2967
      %v3063 = vsel %vm1250, %v2939, %v2979
      %v3064 = vsel %vm1250, %v2940, %v2991
      %v3065 = vsel %vm1250, %v2941, %v3003
      %3074 = vrot.lane.b32.xlu0 %v2777, 40
      %v3075 = vpop.permute.xlu0 %3074
      %3076 = vrot.lane.b32.xlu0 %v2868, 40
      %v3077 = vpop.permute.xlu0 %3076
      %3078 = vrot.lane.b32.xlu0 %v2781, 40
      %v3079 = vpop.permute.xlu0 %3078
      %3080 = vrot.lane.b32.xlu0 %v2871, 40
      %v3081 = vpop.permute.xlu0 %3080
      %3082 = vrot.lane.b32.xlu0 %v2787, 40
      %v3083 = vpop.permute.xlu0 %3082
      %3084 = vrot.lane.b32.xlu0 %v2876, 40
      %v3085 = vpop.permute.xlu0 %3084
      %3086 = vrot.lane.b32.xlu0 %v2791, 40
      %v3087 = vpop.permute.xlu0 %3086
      %3088 = vrot.lane.b32.xlu0 %v2879, 40
      %v3089 = vpop.permute.xlu0 %3088
      %v3090 = vsel %vm1327, %v3075, %v3077
      %v3091 = vsel %vm1327, %v3079, %v3081
      %v3092 = vsel %vm1327, %v3083, %v3085
      %v3093 = vsel %vm1327, %v3087, %v3089
      %3118 = vrot.lane.b32.xlu0 %v2589, 56
      %v3119 = vpop.permute.xlu0 %3118
      %3120 = vrot.lane.b32.xlu0 %v2591, 56
      %v3121 = vpop.permute.xlu0 %3120
      %3122 = vrot.lane.b32.xlu0 %v2682, 56
      %v3123 = vpop.permute.xlu0 %3122
      %3124 = vrot.lane.b32.xlu0 %v2684, 56
      %v3125 = vpop.permute.xlu0 %3124
      %3126 = vrot.lane.b32.xlu0 %v2775, 56
      %v3127 = vpop.permute.xlu0 %3126
      %3128 = vrot.lane.b32.xlu0 %v2777, 56
      %v3129 = vpop.permute.xlu0 %3128
      %3130 = vrot.lane.b32.xlu0 %v2593, 56
      %v3131 = vpop.permute.xlu0 %3130
      %3132 = vrot.lane.b32.xlu0 %v2595, 56
      %v3133 = vpop.permute.xlu0 %3132
      %3134 = vrot.lane.b32.xlu0 %v2686, 56
      %v3135 = vpop.permute.xlu0 %3134
      %3136 = vrot.lane.b32.xlu0 %v2688, 56
      %v3137 = vpop.permute.xlu0 %3136
      %3138 = vrot.lane.b32.xlu0 %v2779, 56
      %v3139 = vpop.permute.xlu0 %3138
      %3140 = vrot.lane.b32.xlu0 %v2781, 56
      %v3141 = vpop.permute.xlu0 %3140
      %3142 = vrot.lane.b32.xlu0 %v2599, 56
      %v3143 = vpop.permute.xlu0 %3142
      %3144 = vrot.lane.b32.xlu0 %v2601, 56
      %v3145 = vpop.permute.xlu0 %3144
      %3146 = vrot.lane.b32.xlu0 %v2692, 56
      %v3147 = vpop.permute.xlu0 %3146
      %3148 = vrot.lane.b32.xlu0 %v2694, 56
      %v3149 = vpop.permute.xlu0 %3148
      %3150 = vrot.lane.b32.xlu0 %v2785, 56
      %v3151 = vpop.permute.xlu0 %3150
      %3152 = vrot.lane.b32.xlu0 %v2787, 56
      %v3153 = vpop.permute.xlu0 %3152
      %3154 = vrot.lane.b32.xlu0 %v2603, 56
      %v3155 = vpop.permute.xlu0 %3154
      %3156 = vrot.lane.b32.xlu0 %v2605, 56
      %v3157 = vpop.permute.xlu0 %3156
      %3158 = vrot.lane.b32.xlu0 %v2696, 56
      %v3159 = vpop.permute.xlu0 %3158
      %3160 = vrot.lane.b32.xlu0 %v2698, 56
      %v3161 = vpop.permute.xlu0 %3160
      %3162 = vrot.lane.b32.xlu0 %v2789, 56
      %v3163 = vpop.permute.xlu0 %3162
      %3164 = vrot.lane.b32.xlu0 %v2791, 56
      %v3165 = vpop.permute.xlu0 %3164
      %v3166 = vsel %vm1404, %v3119, %v3121
      %v3167 = vsel %vm1404, %v3121, %v3123
      %v3168 = vsel %vm1404, %v3123, %v3125
      %v3169 = vsel %vm1404, %v3125, %v3127
      %v3170 = vsel %vm1404, %v3127, %v3129
      %v3171 = vsel %vm1404, %v3131, %v3133
      %v3172 = vsel %vm1404, %v3133, %v3135
      %v3173 = vsel %vm1404, %v3135, %v3137
      %v3174 = vsel %vm1404, %v3137, %v3139
      %v3175 = vsel %vm1404, %v3139, %v3141
      %v3176 = vsel %vm1404, %v3143, %v3145
      %v3177 = vsel %vm1404, %v3145, %v3147
      %v3178 = vsel %vm1404, %v3147, %v3149
      %v3179 = vsel %vm1404, %v3149, %v3151
      %v3180 = vsel %vm1404, %v3151, %v3153
      %v3181 = vsel %vm1404, %v3155, %v3157
      %v3182 = vsel %vm1404, %v3157, %v3159
      %v3183 = vsel %vm1404, %v3159, %v3161
      %v3184 = vsel %vm1404, %v3161, %v3163
      %v3185 = vsel %vm1404, %v3163, %v3165
      %v3214 = vsel %vm1404, %v3090, %v3119
      %v3215 = vsel %vm1404, %v3091, %v3131
      %v3216 = vsel %vm1404, %v3092, %v3143
      %v3217 = vsel %vm1404, %v3093, %v3155
      %v3218 = vsel %vm365, 0.0, %v3214
      %v3219 = vsel %vm366, 0.0, %v3166
      %v3220 = vsel %vm367, 0.0, %v3167
      %v3221 = vsel %vm368, 0.0, %v3168
      %v3222 = vsel %vm369, 0.0, %v3169
      %v3223 = vsel %vm370, 0.0, %v3170
      %v3224 = vsel %vm371, 0.0, %v3129
      %v3225 = vsel %vm365, 0.0, %v3215
      %v3226 = vsel %vm366, 0.0, %v3171
      %v3227 = vsel %vm367, 0.0, %v3172
      %v3228 = vsel %vm368, 0.0, %v3173
      %v3229 = vsel %vm369, 0.0, %v3174
      %v3230 = vsel %vm370, 0.0, %v3175
      %v3231 = vsel %vm371, 0.0, %v3141
      %v3232 = vsel %vm365, 0.0, %v3216
      %v3233 = vsel %vm366, 0.0, %v3176
      %v3234 = vsel %vm367, 0.0, %v3177
      %v3235 = vsel %vm368, 0.0, %v3178
      %v3236 = vsel %vm369, 0.0, %v3179
      %v3237 = vsel %vm370, 0.0, %v3180
      %v3238 = vsel %vm371, 0.0, %v3153
      %v3239 = vsel %vm365, 0.0, %v3217
      %v3240 = vsel %vm366, 0.0, %v3181
      %v3241 = vsel %vm367, 0.0, %v3182
      %v3242 = vsel %vm368, 0.0, %v3183
      %v3243 = vsel %vm369, 0.0, %v3184
      %v3244 = vsel %vm370, 0.0, %v3185
      %v3245 = vsel %vm371, 0.0, %v3165
      %v3246 = vadd.f32 %v3062, %v3218
      %v3247 = vadd.f32 %v3014, %v3219
      %v3248 = vadd.f32 %v3015, %v3220
      %v3249 = vadd.f32 %v3016, %v3221
      %v3250 = vadd.f32 %v3017, %v3222
      %v3251 = vadd.f32 %v3018, %v3223
      %v3252 = vadd.f32 %v2977, %v3224
      %v3253 = vadd.f32 %v3063, %v3225
      %v3254 = vadd.f32 %v3019, %v3226
      %v3255 = vadd.f32 %v3020, %v3227
      %v3256 = vadd.f32 %v3021, %v3228
      %v3257 = vadd.f32 %v3022, %v3229
      %v3258 = vadd.f32 %v3023, %v3230
      %v3259 = vadd.f32 %v2989, %v3231
      %v3260 = vadd.f32 %v3064, %v3232
      %v3261 = vadd.f32 %v3024, %v3233
      %v3262 = vadd.f32 %v3025, %v3234
      %v3263 = vadd.f32 %v3026, %v3235
      %v3264 = vadd.f32 %v3027, %v3236
      %v3265 = vadd.f32 %v3028, %v3237
      %v3266 = vadd.f32 %v3001, %v3238
      %v3267 = vadd.f32 %v3065, %v3239
      %v3268 = vadd.f32 %v3029, %v3240
      %v3269 = vadd.f32 %v3030, %v3241
      %v3270 = vadd.f32 %v3031, %v3242
      %v3271 = vadd.f32 %v3032, %v3243
      %v3272 = vadd.f32 %v3033, %v3244
      %v3273 = vadd.f32 %v3013, %v3245
      %v3274 = vsel %vm372, 0.0, %v2629
      %v3275 = vsel %vm373, 0.0, %v2631
      %v3276 = vsel %vm374, 0.0, %v2722
      %v3277 = vsel %vm375, 0.0, %v2724
      %v3278 = vsel %vm376, 0.0, %v2815
      %v3279 = vsel %vm377, 0.0, %v2817
      %v3280 = vsel %vm378, 0.0, %v2900
      %v3281 = vsel %vm372, 0.0, %v2633
      %v3282 = vsel %vm373, 0.0, %v2635
      %v3283 = vsel %vm374, 0.0, %v2726
      %v3284 = vsel %vm375, 0.0, %v2728
      %v3285 = vsel %vm376, 0.0, %v2819
      %v3286 = vsel %vm377, 0.0, %v2821
      %v3287 = vsel %vm378, 0.0, %v2903
      %v3288 = vsel %vm372, 0.0, %v2639
      %v3289 = vsel %vm373, 0.0, %v2641
      %v3290 = vsel %vm374, 0.0, %v2732
      %v3291 = vsel %vm375, 0.0, %v2734
      %v3292 = vsel %vm376, 0.0, %v2825
      %v3293 = vsel %vm377, 0.0, %v2827
      %v3294 = vsel %vm378, 0.0, %v2908
      %v3295 = vsel %vm372, 0.0, %v2643
      %v3296 = vsel %vm373, 0.0, %v2645
      %v3297 = vsel %vm374, 0.0, %v2736
      %v3298 = vsel %vm375, 0.0, %v2738
      %v3299 = vsel %vm376, 0.0, %v2829
      %v3300 = vsel %vm377, 0.0, %v2831
      %v3301 = vsel %vm378, 0.0, %v2911
      %v3302 = vadd.f32 %v3246, %v3274
      %v3303 = vadd.f32 %v3247, %v3275
      %v3304 = vadd.f32 %v3248, %v3276
      %v3305 = vadd.f32 %v3249, %v3277
      %v3306 = vadd.f32 %v3250, %v3278
      %v3307 = vadd.f32 %v3251, %v3279
      %v3308 = vadd.f32 %v3252, %v3280
      %v3309 = vadd.f32 %v3253, %v3281
      %v3310 = vadd.f32 %v3254, %v3282
      %v3311 = vadd.f32 %v3255, %v3283
      %v3312 = vadd.f32 %v3256, %v3284
      %v3313 = vadd.f32 %v3257, %v3285
      %v3314 = vadd.f32 %v3258, %v3286
      %v3315 = vadd.f32 %v3259, %v3287
      %v3316 = vadd.f32 %v3260, %v3288
      %v3317 = vadd.f32 %v3261, %v3289
      %v3318 = vadd.f32 %v3262, %v3290
      %v3319 = vadd.f32 %v3263, %v3291
      %v3320 = vadd.f32 %v3264, %v3292
      %v3321 = vadd.f32 %v3265, %v3293
      %v3322 = vadd.f32 %v3266, %v3294
      %v3323 = vadd.f32 %v3267, %v3295
      %v3324 = vadd.f32 %v3268, %v3296
      %v3325 = vadd.f32 %v3269, %v3297
      %v3326 = vadd.f32 %v3270, %v3298
      %v3327 = vadd.f32 %v3271, %v3299
      %v3328 = vadd.f32 %v3272, %v3300
      %v3329 = vadd.f32 %v3273, %v3301
      %3334 = vrot.lane.b32.xlu0 %v3308, 113
      %v3335 = vpop.permute.xlu0 %3334
      %3336 = vrot.lane.b32.xlu0 %v3315, 113
      %v3337 = vpop.permute.xlu0 %3336
      %3338 = vrot.lane.b32.xlu0 %v3322, 113
      %v3339 = vpop.permute.xlu0 %3338
      %3340 = vrot.lane.b32.xlu0 %v3329, 113
      %v3341 = vpop.permute.xlu0 %3340
      %3370 = vrot.lane.b32.xlu0 %v3302, 1
      %v3371 = vpop.permute.xlu0 %3370
      %3372 = vrot.lane.b32.xlu0 %v3303, 1
      %v3373 = vpop.permute.xlu0 %3372
      %3374 = vrot.lane.b32.xlu0 %v3304, 1
      %v3375 = vpop.permute.xlu0 %3374
      %3376 = vrot.lane.b32.xlu0 %v3305, 1
      %v3377 = vpop.permute.xlu0 %3376
      %3378 = vrot.lane.b32.xlu0 %v3306, 1
      %v3379 = vpop.permute.xlu0 %3378
      %3380 = vrot.lane.b32.xlu0 %v3307, 1
      %v3381 = vpop.permute.xlu0 %3380
      %3382 = vrot.lane.b32.xlu0 %v3308, 1
      %v3383 = vpop.permute.xlu0 %3382
      %3384 = vrot.lane.b32.xlu0 %v3309, 1
      %v3385 = vpop.permute.xlu0 %3384
      %3386 = vrot.lane.b32.xlu0 %v3310, 1
      %v3387 = vpop.permute.xlu0 %3386
      %3388 = vrot.lane.b32.xlu0 %v3311, 1
      %v3389 = vpop.permute.xlu0 %3388
      %3390 = vrot.lane.b32.xlu0 %v3312, 1
      %v3391 = vpop.permute.xlu0 %3390
      %3392 = vrot.lane.b32.xlu0 %v3313, 1
      %v3393 = vpop.permute.xlu0 %3392
      %3394 = vrot.lane.b32.xlu0 %v3314, 1
      %v3395 = vpop.permute.xlu0 %3394
      %3396 = vrot.lane.b32.xlu0 %v3315, 1
      %v3397 = vpop.permute.xlu0 %3396
      %3398 = vrot.lane.b32.xlu0 %v3316, 1
      %v3399 = vpop.permute.xlu0 %3398
      %3400 = vrot.lane.b32.xlu0 %v3317, 1
      %v3401 = vpop.permute.xlu0 %3400
      %3402 = vrot.lane.b32.xlu0 %v3318, 1
      %v3403 = vpop.permute.xlu0 %3402
      %3404 = vrot.lane.b32.xlu0 %v3319, 1
      %v3405 = vpop.permute.xlu0 %3404
      %3406 = vrot.lane.b32.xlu0 %v3320, 1
      %v3407 = vpop.permute.xlu0 %3406
      %3408 = vrot.lane.b32.xlu0 %v3321, 1
      %v3409 = vpop.permute.xlu0 %3408
      %3410 = vrot.lane.b32.xlu0 %v3322, 1
      %v3411 = vpop.permute.xlu0 %3410
      %3412 = vrot.lane.b32.xlu0 %v3323, 1
      %v3413 = vpop.permute.xlu0 %3412
      %3414 = vrot.lane.b32.xlu0 %v3324, 1
      %v3415 = vpop.permute.xlu0 %3414
      %3416 = vrot.lane.b32.xlu0 %v3325, 1
      %v3417 = vpop.permute.xlu0 %3416
      %3418 = vrot.lane.b32.xlu0 %v3326, 1
      %v3419 = vpop.permute.xlu0 %3418
      %3420 = vrot.lane.b32.xlu0 %v3327, 1
      %v3421 = vpop.permute.xlu0 %3420
      %3422 = vrot.lane.b32.xlu0 %v3328, 1
      %v3423 = vpop.permute.xlu0 %3422
      %3424 = vrot.lane.b32.xlu0 %v3329, 1
      %v3425 = vpop.permute.xlu0 %3424
      %v3426 = vsel %vm1665, %v3371, %v3373
      %v3427 = vsel %vm1665, %v3373, %v3375
      %v3428 = vsel %vm1665, %v3375, %v3377
      %v3429 = vsel %vm1665, %v3377, %v3379
      %v3430 = vsel %vm1665, %v3379, %v3381
      %v3431 = vsel %vm1665, %v3381, %v3383
      %v3432 = vsel %vm1665, %v3385, %v3387
      %v3433 = vsel %vm1665, %v3387, %v3389
      %v3434 = vsel %vm1665, %v3389, %v3391
      %v3435 = vsel %vm1665, %v3391, %v3393
      %v3436 = vsel %vm1665, %v3393, %v3395
      %v3437 = vsel %vm1665, %v3395, %v3397
      %v3438 = vsel %vm1665, %v3399, %v3401
      %v3439 = vsel %vm1665, %v3401, %v3403
      %v3440 = vsel %vm1665, %v3403, %v3405
      %v3441 = vsel %vm1665, %v3405, %v3407
      %v3442 = vsel %vm1665, %v3407, %v3409
      %v3443 = vsel %vm1665, %v3409, %v3411
      %v3444 = vsel %vm1665, %v3413, %v3415
      %v3445 = vsel %vm1665, %v3415, %v3417
      %v3446 = vsel %vm1665, %v3417, %v3419
      %v3447 = vsel %vm1665, %v3419, %v3421
      %v3448 = vsel %vm1665, %v3421, %v3423
      %v3449 = vsel %vm1665, %v3423, %v3425
      %v3478 = vsel %vm1665, %v3335, %v3371
      %v3479 = vsel %vm1665, %v3337, %v3385
      %v3480 = vsel %vm1665, %v3339, %v3399
      %v3481 = vsel %vm1665, %v3341, %v3413
      %v3482 = vsel %vm379, 0.0, %v3478
      %v3483 = vsel %vm380, 0.0, %v3426
      %v3484 = vsel %vm381, 0.0, %v3427
      %v3485 = vsel %vm382, 0.0, %v3428
      %v3486 = vsel %vm383, 0.0, %v3429
      %v3487 = vsel %vm384, 0.0, %v3430
      %v3488 = vsel %vm385, 0.0, %v3431
      %v3489 = vsel %vm379, 0.0, %v3479
      %v3490 = vsel %vm380, 0.0, %v3432
      %v3491 = vsel %vm381, 0.0, %v3433
      %v3492 = vsel %vm382, 0.0, %v3434
      %v3493 = vsel %vm383, 0.0, %v3435
      %v3494 = vsel %vm384, 0.0, %v3436
      %v3495 = vsel %vm385, 0.0, %v3437
      %v3496 = vsel %vm379, 0.0, %v3480
      %v3497 = vsel %vm380, 0.0, %v3438
      %v3498 = vsel %vm381, 0.0, %v3439
      %v3499 = vsel %vm382, 0.0, %v3440
      %v3500 = vsel %vm383, 0.0, %v3441
      %v3501 = vsel %vm384, 0.0, %v3442
      %v3502 = vsel %vm385, 0.0, %v3443
      %v3503 = vsel %vm379, 0.0, %v3481
      %v3504 = vsel %vm380, 0.0, %v3444
      %v3505 = vsel %vm381, 0.0, %v3445
      %v3506 = vsel %vm382, 0.0, %v3446
      %v3507 = vsel %vm383, 0.0, %v3447
      %v3508 = vsel %vm384, 0.0, %v3448
      %v3509 = vsel %vm385, 0.0, %v3449
      %3510 = vrot.lane.b32.xlu0 %v3302, 127
      %v3511 = vpop.permute.xlu0 %3510
      %3512 = vrot.lane.b32.xlu0 %v3303, 127
      %v3513 = vpop.permute.xlu0 %3512
      %3514 = vrot.lane.b32.xlu0 %v3304, 127
      %v3515 = vpop.permute.xlu0 %3514
      %3516 = vrot.lane.b32.xlu0 %v3305, 127
      %v3517 = vpop.permute.xlu0 %3516
      %3518 = vrot.lane.b32.xlu0 %v3306, 127
      %v3519 = vpop.permute.xlu0 %3518
      %3520 = vrot.lane.b32.xlu0 %v3307, 127
      %v3521 = vpop.permute.xlu0 %3520
      %3522 = vrot.lane.b32.xlu0 %v3308, 127
      %v3523 = vpop.permute.xlu0 %3522
      %3524 = vrot.lane.b32.xlu0 %v3309, 127
      %v3525 = vpop.permute.xlu0 %3524
      %3526 = vrot.lane.b32.xlu0 %v3310, 127
      %v3527 = vpop.permute.xlu0 %3526
      %3528 = vrot.lane.b32.xlu0 %v3311, 127
      %v3529 = vpop.permute.xlu0 %3528
      %3530 = vrot.lane.b32.xlu0 %v3312, 127
      %v3531 = vpop.permute.xlu0 %3530
      %3532 = vrot.lane.b32.xlu0 %v3313, 127
      %v3533 = vpop.permute.xlu0 %3532
      %3534 = vrot.lane.b32.xlu0 %v3314, 127
      %v3535 = vpop.permute.xlu0 %3534
      %3536 = vrot.lane.b32.xlu0 %v3315, 127
      %v3537 = vpop.permute.xlu0 %3536
      %3538 = vrot.lane.b32.xlu0 %v3316, 127
      %v3539 = vpop.permute.xlu0 %3538
      %3540 = vrot.lane.b32.xlu0 %v3317, 127
      %v3541 = vpop.permute.xlu0 %3540
      %3542 = vrot.lane.b32.xlu0 %v3318, 127
      %v3543 = vpop.permute.xlu0 %3542
      %3544 = vrot.lane.b32.xlu0 %v3319, 127
      %v3545 = vpop.permute.xlu0 %3544
      %3546 = vrot.lane.b32.xlu0 %v3320, 127
      %v3547 = vpop.permute.xlu0 %3546
      %3548 = vrot.lane.b32.xlu0 %v3321, 127
      %v3549 = vpop.permute.xlu0 %3548
      %3550 = vrot.lane.b32.xlu0 %v3322, 127
      %v3551 = vpop.permute.xlu0 %3550
      %3552 = vrot.lane.b32.xlu0 %v3323, 127
      %v3553 = vpop.permute.xlu0 %3552
      %3554 = vrot.lane.b32.xlu0 %v3324, 127
      %v3555 = vpop.permute.xlu0 %3554
      %3556 = vrot.lane.b32.xlu0 %v3325, 127
      %v3557 = vpop.permute.xlu0 %3556
      %3558 = vrot.lane.b32.xlu0 %v3326, 127
      %v3559 = vpop.permute.xlu0 %3558
      %3560 = vrot.lane.b32.xlu0 %v3327, 127
      %v3561 = vpop.permute.xlu0 %3560
      %3562 = vrot.lane.b32.xlu0 %v3328, 127
      %v3563 = vpop.permute.xlu0 %3562
      %3564 = vrot.lane.b32.xlu0 %v3329, 127
      %v3565 = vpop.permute.xlu0 %3564
      %v3566 = vsel %vm1806, %v3511, %v3513
      %v3567 = vsel %vm1806, %v3513, %v3515
      %v3568 = vsel %vm1806, %v3515, %v3517
      %v3569 = vsel %vm1806, %v3517, %v3519
      %v3570 = vsel %vm1806, %v3519, %v3521
      %v3571 = vsel %vm1806, %v3521, %v3523
      %v3572 = vsel %vm1806, %v3525, %v3527
      %v3573 = vsel %vm1806, %v3527, %v3529
      %v3574 = vsel %vm1806, %v3529, %v3531
      %v3575 = vsel %vm1806, %v3531, %v3533
      %v3576 = vsel %vm1806, %v3533, %v3535
      %v3577 = vsel %vm1806, %v3535, %v3537
      %v3578 = vsel %vm1806, %v3539, %v3541
      %v3579 = vsel %vm1806, %v3541, %v3543
      %v3580 = vsel %vm1806, %v3543, %v3545
      %v3581 = vsel %vm1806, %v3545, %v3547
      %v3582 = vsel %vm1806, %v3547, %v3549
      %v3583 = vsel %vm1806, %v3549, %v3551
      %v3584 = vsel %vm1806, %v3553, %v3555
      %v3585 = vsel %vm1806, %v3555, %v3557
      %v3586 = vsel %vm1806, %v3557, %v3559
      %v3587 = vsel %vm1806, %v3559, %v3561
      %v3588 = vsel %vm1806, %v3561, %v3563
      %v3589 = vsel %vm1806, %v3563, %v3565
      %3618 = vrot.lane.b32.xlu0 %v3302, 15
      %v3619 = vpop.permute.xlu0 %3618
      %3620 = vrot.lane.b32.xlu0 %v3309, 15
      %v3621 = vpop.permute.xlu0 %3620
      %3622 = vrot.lane.b32.xlu0 %v3316, 15
      %v3623 = vpop.permute.xlu0 %3622
      %3624 = vrot.lane.b32.xlu0 %v3323, 15
      %v3625 = vpop.permute.xlu0 %3624
      %v3630 = vsel %vm1871, %v3523, %v3619
      %v3631 = vsel %vm1871, %v3537, %v3621
      %v3632 = vsel %vm1871, %v3551, %v3623
      %v3633 = vsel %vm1871, %v3565, %v3625
      %v3634 = vsel %vm386, 0.0, %v3566
      %v3635 = vsel %vm387, 0.0, %v3567
      %v3636 = vsel %vm388, 0.0, %v3568
      %v3637 = vsel %vm389, 0.0, %v3569
      %v3638 = vsel %vm390, 0.0, %v3570
      %v3639 = vsel %vm391, 0.0, %v3571
      %v3640 = vsel %vm392, 0.0, %v3630
      %v3641 = vsel %vm386, 0.0, %v3572
      %v3642 = vsel %vm387, 0.0, %v3573
      %v3643 = vsel %vm388, 0.0, %v3574
      %v3644 = vsel %vm389, 0.0, %v3575
      %v3645 = vsel %vm390, 0.0, %v3576
      %v3646 = vsel %vm391, 0.0, %v3577
      %v3647 = vsel %vm392, 0.0, %v3631
      %v3648 = vsel %vm386, 0.0, %v3578
      %v3649 = vsel %vm387, 0.0, %v3579
      %v3650 = vsel %vm388, 0.0, %v3580
      %v3651 = vsel %vm389, 0.0, %v3581
      %v3652 = vsel %vm390, 0.0, %v3582
      %v3653 = vsel %vm391, 0.0, %v3583
      %v3654 = vsel %vm392, 0.0, %v3632
      %v3655 = vsel %vm386, 0.0, %v3584
      %v3656 = vsel %vm387, 0.0, %v3585
      %v3657 = vsel %vm388, 0.0, %v3586
      %v3658 = vsel %vm389, 0.0, %v3587
      %v3659 = vsel %vm390, 0.0, %v3588
      %v3660 = vsel %vm391, 0.0, %v3589
      %v3661 = vsel %vm392, 0.0, %v3633
      %v3662 = vpack.c.bf16 %v3489, %v3482
      %v3663 = vpack.c.bf16 %v3490, %v3483
      %v3664 = vpack.c.bf16 %v3491, %v3484
      %v3665 = vpack.c.bf16 %v3492, %v3485
      %v3666 = vpack.c.bf16 %v3493, %v3486
      %v3667 = vpack.c.bf16 %v3494, %v3487
      %v3668 = vpack.c.bf16 %v3495, %v3488
      %v3669 = vpack.c.bf16 %v3503, %v3496
      %v3670 = vpack.c.bf16 %v3504, %v3497
      %v3671 = vpack.c.bf16 %v3505, %v3498
      %v3672 = vpack.c.bf16 %v3506, %v3499
      %v3673 = vpack.c.bf16 %v3507, %v3500
      %v3674 = vpack.c.bf16 %v3508, %v3501
      %v3675 = vpack.c.bf16 %v3509, %v3502
      %v3690 = vunpack.c.l.b16 %v3662
      %v3691 = vunpack.c.l.b16 %v3663
      %v3692 = vunpack.c.l.b16 %v3664
      %v3693 = vunpack.c.l.b16 %v3665
      %v3694 = vunpack.c.l.b16 %v3666
      %v3695 = vunpack.c.l.b16 %v3667
      %v3696 = vunpack.c.l.b16 %v3668
      %v3697 = vunpack.c.h.b16 %v3662
      %v3698 = vunpack.c.h.b16 %v3663
      %v3699 = vunpack.c.h.b16 %v3664
      %v3700 = vunpack.c.h.b16 %v3665
      %v3701 = vunpack.c.h.b16 %v3666
      %v3702 = vunpack.c.h.b16 %v3667
      %v3703 = vunpack.c.h.b16 %v3668
      %v3704 = vunpack.c.l.b16 %v3669
      %v3705 = vunpack.c.l.b16 %v3670
      %v3706 = vunpack.c.l.b16 %v3671
      %v3707 = vunpack.c.l.b16 %v3672
      %v3708 = vunpack.c.l.b16 %v3673
      %v3709 = vunpack.c.l.b16 %v3674
      %v3710 = vunpack.c.l.b16 %v3675
      %v3711 = vunpack.c.h.b16 %v3669
      %v3712 = vunpack.c.h.b16 %v3670
      %v3713 = vunpack.c.h.b16 %v3671
      %v3714 = vunpack.c.h.b16 %v3672
      %v3715 = vunpack.c.h.b16 %v3673
      %v3716 = vunpack.c.h.b16 %v3674
      %v3717 = vunpack.c.h.b16 %v3675
      %v3718 = vpack.c.b16 %v3691, %v3690
      %v3719 = vpack.c.b16 %v3693, %v3692
      %v3720 = vpack.c.b16 %v3695, %v3694
      %v3721 = vpack.c.b16 %v3696, %v3696
      %v3722 = vpack.c.b16 %v3698, %v3697
      %v3723 = vpack.c.b16 %v3700, %v3699
      %v3724 = vpack.c.b16 %v3702, %v3701
      %v3725 = vpack.c.b16 %v3703, %v3703
      %v3726 = vpack.c.b16 %v3705, %v3704
      %v3727 = vpack.c.b16 %v3707, %v3706
      %v3728 = vpack.c.b16 %v3709, %v3708
      %v3729 = vpack.c.b16 %v3710, %v3710
      %v3730 = vpack.c.b16 %v3712, %v3711
      %v3731 = vpack.c.b16 %v3714, %v3713
      %v3732 = vpack.c.b16 %v3716, %v3715
      %v3733 = vpack.c.b16 %v3717, %v3717
      %s3750 = scalar_lea.vmem [#allocation2], 336
      %3751 = vst [vmem:[%s3750] sm:$0xff] %v3718
      %3752 = vst [vmem:[%s3750 + $0x8] sm:$0xff] %v3719
      %3753 = vst [vmem:[%s3750 + $0x10] sm:$0xff] %v3720
      %3754 = vst.msk [vmem:[%s3750 + $0x18] sm:$0xf] %vm1995, %v3721
      %3755 = vst [vmem:[%s3750 + $0x1c] sm:$0xff] %v3722
      %3756 = vst [vmem:[%s3750 + $0x24] sm:$0xff] %v3723
      %3757 = vst [vmem:[%s3750 + $0x2c] sm:$0xff] %v3724
      %3758 = vst.msk [vmem:[%s3750 + $0x34] sm:$0xf] %vm1995, %v3725
      %3759 = vst [vmem:[%s3750 + $0x38] sm:$0xff] %v3726
      %3760 = vst [vmem:[%s3750 + $0x40] sm:$0xff] %v3727
      %3761 = vst [vmem:[%s3750 + $0x48] sm:$0xff] %v3728
      %3762 = vst.msk [vmem:[%s3750 + $0x50] sm:$0xf] %vm1995, %v3729
      %3763 = vst [vmem:[%s3750 + $0x54] sm:$0xff] %v3730
      %3764 = vst [vmem:[%s3750 + $0x5c] sm:$0xff] %v3731
      %3765 = vst [vmem:[%s3750 + $0x64] sm:$0xff] %v3732
      %3766 = vst.msk [vmem:[%s3750 + $0x6c] sm:$0xf] %vm1995, %v3733
      %v3767 = vpack.c.bf16 %v3309, %v3302
      %v3768 = vpack.c.bf16 %v3310, %v3303
      %v3769 = vpack.c.bf16 %v3311, %v3304
      %v3770 = vpack.c.bf16 %v3312, %v3305
      %v3771 = vpack.c.bf16 %v3313, %v3306
      %v3772 = vpack.c.bf16 %v3314, %v3307
      %v3773 = vpack.c.bf16 %v3315, %v3308
      %v3774 = vpack.c.bf16 %v3323, %v3316
      %v3775 = vpack.c.bf16 %v3324, %v3317
      %v3776 = vpack.c.bf16 %v3325, %v3318
      %v3777 = vpack.c.bf16 %v3326, %v3319
      %v3778 = vpack.c.bf16 %v3327, %v3320
      %v3779 = vpack.c.bf16 %v3328, %v3321
      %v3780 = vpack.c.bf16 %v3329, %v3322
      %v3795 = vunpack.c.l.b16 %v3767
      %v3796 = vunpack.c.l.b16 %v3768
      %v3797 = vunpack.c.l.b16 %v3769
      %v3798 = vunpack.c.l.b16 %v3770
      %v3799 = vunpack.c.l.b16 %v3771
      %v3800 = vunpack.c.l.b16 %v3772
      %v3801 = vunpack.c.l.b16 %v3773
      %v3802 = vunpack.c.h.b16 %v3767
      %v3803 = vunpack.c.h.b16 %v3768
      %v3804 = vunpack.c.h.b16 %v3769
      %v3805 = vunpack.c.h.b16 %v3770
      %v3806 = vunpack.c.h.b16 %v3771
      %v3807 = vunpack.c.h.b16 %v3772
      %v3808 = vunpack.c.h.b16 %v3773
      %v3809 = vunpack.c.l.b16 %v3774
      %v3810 = vunpack.c.l.b16 %v3775
      %v3811 = vunpack.c.l.b16 %v3776
      %v3812 = vunpack.c.l.b16 %v3777
      %v3813 = vunpack.c.l.b16 %v3778
      %v3814 = vunpack.c.l.b16 %v3779
      %v3815 = vunpack.c.l.b16 %v3780
      %v3816 = vunpack.c.h.b16 %v3774
      %v3817 = vunpack.c.h.b16 %v3775
      %v3818 = vunpack.c.h.b16 %v3776
      %v3819 = vunpack.c.h.b16 %v3777
      %v3820 = vunpack.c.h.b16 %v3778
      %v3821 = vunpack.c.h.b16 %v3779
      %v3822 = vunpack.c.h.b16 %v3780
      %v3823 = vpack.c.b16 %v3796, %v3795
      %v3824 = vpack.c.b16 %v3798, %v3797
      %v3825 = vpack.c.b16 %v3800, %v3799
      %v3826 = vpack.c.b16 %v3801, %v3801
      %v3827 = vpack.c.b16 %v3803, %v3802
      %v3828 = vpack.c.b16 %v3805, %v3804
      %v3829 = vpack.c.b16 %v3807, %v3806
      %v3830 = vpack.c.b16 %v3808, %v3808
      %v3831 = vpack.c.b16 %v3810, %v3809
      %v3832 = vpack.c.b16 %v3812, %v3811
      %v3833 = vpack.c.b16 %v3814, %v3813
      %v3834 = vpack.c.b16 %v3815, %v3815
      %v3835 = vpack.c.b16 %v3817, %v3816
      %v3836 = vpack.c.b16 %v3819, %v3818
      %v3837 = vpack.c.b16 %v3821, %v3820
      %v3838 = vpack.c.b16 %v3822, %v3822
      %3855 = vst [vmem:[%s3750 + $0x70] sm:$0xff] %v3823
      %3856 = vst [vmem:[%s3750 + $0x78] sm:$0xff] %v3824
      %3857 = vst [vmem:[%s3750 + $0x80] sm:$0xff] %v3825
      %3858 = vst.msk [vmem:[%s3750 + $0x88] sm:$0xf] %vm1995, %v3826
      %3859 = vst [vmem:[%s3750 + $0x8c] sm:$0xff] %v3827
      %3860 = vst [vmem:[%s3750 + $0x94] sm:$0xff] %v3828
      %3861 = vst [vmem:[%s3750 + $0x9c] sm:$0xff] %v3829
      %3862 = vst.msk [vmem:[%s3750 + $0xa4] sm:$0xf] %vm1995, %v3830
      %3863 = vst [vmem:[%s3750 + $0xa8] sm:$0xff] %v3831
      %3864 = vst [vmem:[%s3750 + $0xb0] sm:$0xff] %v3832
      %3865 = vst [vmem:[%s3750 + $0xb8] sm:$0xff] %v3833
      %3866 = vst.msk [vmem:[%s3750 + $0xc0] sm:$0xf] %vm1995, %v3834
      %3867 = vst [vmem:[%s3750 + $0xc4] sm:$0xff] %v3835
      %3868 = vst [vmem:[%s3750 + $0xcc] sm:$0xff] %v3836
      %3869 = vst [vmem:[%s3750 + $0xd4] sm:$0xff] %v3837
      %3870 = vst.msk [vmem:[%s3750 + $0xdc] sm:$0xf] %vm1995, %v3838
      %v3871 = vpack.c.bf16 %v3641, %v3634
      %v3872 = vpack.c.bf16 %v3642, %v3635
      %v3873 = vpack.c.bf16 %v3643, %v3636
      %v3874 = vpack.c.bf16 %v3644, %v3637
      %v3875 = vpack.c.bf16 %v3645, %v3638
      %v3876 = vpack.c.bf16 %v3646, %v3639
      %v3877 = vpack.c.bf16 %v3647, %v3640
      %v3878 = vpack.c.bf16 %v3655, %v3648
      %v3879 = vpack.c.bf16 %v3656, %v3649
      %v3880 = vpack.c.bf16 %v3657, %v3650
      %v3881 = vpack.c.bf16 %v3658, %v3651
      %v3882 = vpack.c.bf16 %v3659, %v3652
      %v3883 = vpack.c.bf16 %v3660, %v3653
      %v3884 = vpack.c.bf16 %v3661, %v3654
      %v3899 = vunpack.c.l.b16 %v3871
      %v3900 = vunpack.c.l.b16 %v3872
      %v3901 = vunpack.c.l.b16 %v3873
      %v3902 = vunpack.c.l.b16 %v3874
      %v3903 = vunpack.c.l.b16 %v3875
      %v3904 = vunpack.c.l.b16 %v3876
      %v3905 = vunpack.c.l.b16 %v3877
      %v3906 = vunpack.c.h.b16 %v3871
      %v3907 = vunpack.c.h.b16 %v3872
      %v3908 = vunpack.c.h.b16 %v3873
      %v3909 = vunpack.c.h.b16 %v3874
      %v3910 = vunpack.c.h.b16 %v3875
      %v3911 = vunpack.c.h.b16 %v3876
      %v3912 = vunpack.c.h.b16 %v3877
      %v3913 = vunpack.c.l.b16 %v3878
      %v3914 = vunpack.c.l.b16 %v3879
      %v3915 = vunpack.c.l.b16 %v3880
      %v3916 = vunpack.c.l.b16 %v3881
      %v3917 = vunpack.c.l.b16 %v3882
      %v3918 = vunpack.c.l.b16 %v3883
      %v3919 = vunpack.c.l.b16 %v3884
      %v3920 = vunpack.c.h.b16 %v3878
      %v3921 = vunpack.c.h.b16 %v3879
      %v3922 = vunpack.c.h.b16 %v3880
      %v3923 = vunpack.c.h.b16 %v3881
      %v3924 = vunpack.c.h.b16 %v3882
      %v3925 = vunpack.c.h.b16 %v3883
      %v3926 = vunpack.c.h.b16 %v3884
      %v3927 = vpack.c.b16 %v3900, %v3899
      %v3928 = vpack.c.b16 %v3902, %v3901
      %v3929 = vpack.c.b16 %v3904, %v3903
      %v3930 = vpack.c.b16 %v3905, %v3905
      %v3931 = vpack.c.b16 %v3907, %v3906
      %v3932 = vpack.c.b16 %v3909, %v3908
      %v3933 = vpack.c.b16 %v3911, %v3910
      %v3934 = vpack.c.b16 %v3912, %v3912
      %v3935 = vpack.c.b16 %v3914, %v3913
      %v3936 = vpack.c.b16 %v3916, %v3915
      %v3937 = vpack.c.b16 %v3918, %v3917
      %v3938 = vpack.c.b16 %v3919, %v3919
      %v3939 = vpack.c.b16 %v3921, %v3920
      %v3940 = vpack.c.b16 %v3923, %v3922
      %v3941 = vpack.c.b16 %v3925, %v3924
      %v3942 = vpack.c.b16 %v3926, %v3926
      %3959 = vst [vmem:[%s3750 + $0xe0] sm:$0xff] %v3927
      %3960 = vst [vmem:[%s3750 + $0xe8] sm:$0xff] %v3928
      %3961 = vst [vmem:[%s3750 + $0xf0] sm:$0xff] %v3929
      %3962 = vst.msk [vmem:[%s3750 + $0xf8] sm:$0xf] %vm1995, %v3930
      %3963 = vst [vmem:[%s3750 + $0xfc] sm:$0xff] %v3931
      %3964 = vst [vmem:[%s3750 + $0x104] sm:$0xff] %v3932
      %3965 = vst [vmem:[%s3750 + $0x10c] sm:$0xff] %v3933
      %3966 = vst.msk [vmem:[%s3750 + $0x114] sm:$0xf] %vm1995, %v3934
      %3967 = vst [vmem:[%s3750 + $0x118] sm:$0xff] %v3935
      %3968 = vst [vmem:[%s3750 + $0x120] sm:$0xff] %v3936
      %3969 = vst [vmem:[%s3750 + $0x128] sm:$0xff] %v3937
      %3970 = vst.msk [vmem:[%s3750 + $0x130] sm:$0xf] %vm1995, %v3938
      %3971 = vst [vmem:[%s3750 + $0x134] sm:$0xff] %v3939
      %3972 = vst [vmem:[%s3750 + $0x13c] sm:$0xff] %v3940
      %3973 = vst [vmem:[%s3750 + $0x144] sm:$0xff] %v3941
      %3974 = vst.msk [vmem:[%s3750 + $0x14c] sm:$0xf] %vm1995, %v3942
      %v3975 = vld [vmem:[#allocation2] sm:$0xff]
      %v3976 = vld [vmem:[#allocation2 + $0x8] sm:$0xff]
      %v3977 = vld [vmem:[#allocation2 + $0x10] sm:$0xff]
      %v3978 = vld [vmem:[#allocation2 + $0x18] sm:$0xf]
      %v3979 = vld [vmem:[#allocation2 + $0x1c] sm:$0xff]
      %v3980 = vld [vmem:[#allocation2 + $0x24] sm:$0xff]
      %v3981 = vld [vmem:[#allocation2 + $0x2c] sm:$0xff]
      %v3982 = vld [vmem:[#allocation2 + $0x34] sm:$0xf]
      %v3983 = vld [vmem:[#allocation2 + $0x38] sm:$0xff]
      %v3984 = vld [vmem:[#allocation2 + $0x40] sm:$0xff]
      %v3985 = vld [vmem:[#allocation2 + $0x48] sm:$0xff]
      %v3986 = vld [vmem:[#allocation2 + $0x50] sm:$0xf]
      %v3987 = vld [vmem:[#allocation2 + $0x54] sm:$0xff]
      %v3988 = vld [vmem:[#allocation2 + $0x5c] sm:$0xff]
      %v3989 = vld [vmem:[#allocation2 + $0x64] sm:$0xff]
      %v3990 = vld [vmem:[#allocation2 + $0x6c] sm:$0xf]
      %v3991 = vld [vmem:[#allocation2 + $0x70] sm:$0xff]
      %v3992 = vld [vmem:[#allocation2 + $0x78] sm:$0xff]
      %v3993 = vld [vmem:[#allocation2 + $0x80] sm:$0xff]
      %v3994 = vld [vmem:[#allocation2 + $0x88] sm:$0xf]
      %v3995 = vld [vmem:[#allocation2 + $0x8c] sm:$0xff]
      %v3996 = vld [vmem:[#allocation2 + $0x94] sm:$0xff]
      %v3997 = vld [vmem:[#allocation2 + $0x9c] sm:$0xff]
      %v3998 = vld [vmem:[#allocation2 + $0xa4] sm:$0xf]
      %v3999 = vld [vmem:[#allocation2 + $0xa8] sm:$0xff]
      %v4000 = vld [vmem:[#allocation2 + $0xb0] sm:$0xff]
      %v4001 = vld [vmem:[#allocation2 + $0xb8] sm:$0xff]
      %v4002 = vld [vmem:[#allocation2 + $0xc0] sm:$0xf]
      %v4003 = vld [vmem:[#allocation2 + $0xc4] sm:$0xff]
      %v4004 = vld [vmem:[#allocation2 + $0xcc] sm:$0xff]
      %v4005 = vld [vmem:[#allocation2 + $0xd4] sm:$0xff]
      %v4006 = vld [vmem:[#allocation2 + $0xdc] sm:$0xf]
      %v4007 = vld [vmem:[#allocation2 + $0xe0] sm:$0xff]
      %v4008 = vld [vmem:[#allocation2 + $0xe8] sm:$0xff]
      %v4009 = vld [vmem:[#allocation2 + $0xf0] sm:$0xff]
      %v4010 = vld [vmem:[#allocation2 + $0xf8] sm:$0xf]
      %v4011 = vld [vmem:[#allocation2 + $0xfc] sm:$0xff]
      %v4012 = vld [vmem:[#allocation2 + $0x104] sm:$0xff]
      %v4013 = vld [vmem:[#allocation2 + $0x10c] sm:$0xff]
      %v4014 = vld [vmem:[#allocation2 + $0x114] sm:$0xf]
      %v4015 = vld [vmem:[#allocation2 + $0x118] sm:$0xff]
      %v4016 = vld [vmem:[#allocation2 + $0x120] sm:$0xff]
      %v4017 = vld [vmem:[#allocation2 + $0x128] sm:$0xff]
      %v4018 = vld [vmem:[#allocation2 + $0x130] sm:$0xf]
      %v4019 = vld [vmem:[#allocation2 + $0x134] sm:$0xff]
      %v4020 = vld [vmem:[#allocation2 + $0x13c] sm:$0xff]
      %v4021 = vld [vmem:[#allocation2 + $0x144] sm:$0xff]
      %v4022 = vld [vmem:[#allocation2 + $0x14c] sm:$0xf]
      %v4055 = vunpack.c.l.b16 %v192
      %v4056 = vunpack.c.l.b16 %v193
      %v4057 = vunpack.c.l.b16 %v194
      %v4058 = vunpack.c.l.b16 %v195
      %v4059 = vunpack.c.l.b16 %v196
      %v4060 = vunpack.c.l.b16 %v197
      %v4061 = vunpack.c.l.b16 %v198
      %v4062 = vunpack.c.l.b16 %v199
      %v4063 = vunpack.c.l.b16 %v200
      %v4064 = vunpack.c.l.b16 %v201
      %v4065 = vunpack.c.l.b16 %v202
      %v4066 = vunpack.c.l.b16 %v203
      %v4067 = vunpack.c.l.b16 %v204
      %v4068 = vunpack.c.l.b16 %v205
      %v4069 = vunpack.c.l.b16 %v206
      %v4070 = vunpack.c.l.b16 %v207
      %v4071 = vunpack.c.l.b16 %v208
      %v4072 = vunpack.c.l.b16 %v209
      %v4073 = vunpack.c.l.b16 %v210
      %v4074 = vunpack.c.l.b16 %v211
      %v4075 = vunpack.c.l.b16 %v212
      %v4076 = vunpack.c.l.b16 %v213
      %v4077 = vunpack.c.l.b16 %v214
      %v4078 = vunpack.c.l.b16 %v215
      %v4079 = vunpack.c.l.b16 %v216
      %v4080 = vunpack.c.l.b16 %v217
      %v4081 = vunpack.c.l.b16 %v218
      %v4082 = vunpack.c.l.b16 %v219
      %v4083 = vunpack.c.l.b16 %v220
      %v4084 = vunpack.c.l.b16 %v221
      %v4085 = vunpack.c.l.b16 %v222
      %v4086 = vunpack.c.l.b16 %v223
      %v4087 = vpack.c.b16 %v4056, %v4055
      %v4088 = vpack.c.b16 %v4058, %v4057
      %v4089 = vpack.c.b16 %v4060, %v4059
      %v4090 = vpack.c.b16 %v4062, %v4061
      %v4091 = vpack.c.b16 %v4064, %v4063
      %v4092 = vpack.c.b16 %v4066, %v4065
      %v4093 = vpack.c.b16 %v4068, %v4067
      %v4094 = vpack.c.b16 %v4070, %v4069
      %v4095 = vpack.c.b16 %v4072, %v4071
      %v4096 = vpack.c.b16 %v4074, %v4073
      %v4097 = vpack.c.b16 %v4076, %v4075
      %v4098 = vpack.c.b16 %v4078, %v4077
      %v4099 = vpack.c.b16 %v4080, %v4079
      %v4100 = vpack.c.b16 %v4082, %v4081
      %v4101 = vpack.c.b16 %v4084, %v4083
      %v4102 = vpack.c.b16 %v4086, %v4085
      %v4151 = vunpack.c.l.b16 %v3975
      %v4152 = vunpack.c.h.b16 %v3975
      %v4153 = vunpack.c.l.b16 %v3976
      %v4154 = vunpack.c.h.b16 %v3976
      %v4155 = vunpack.c.l.b16 %v3977
      %v4156 = vunpack.c.h.b16 %v3977
      %v4157 = vunpack.c.l.b16 %v3978
      %v4158 = vunpack.c.l.b16 %v3979
      %v4159 = vunpack.c.h.b16 %v3979
      %v4160 = vunpack.c.l.b16 %v3980
      %v4161 = vunpack.c.h.b16 %v3980
      %v4162 = vunpack.c.l.b16 %v3981
      %v4163 = vunpack.c.h.b16 %v3981
      %v4164 = vunpack.c.l.b16 %v3982
      %v4165 = vunpack.c.l.b16 %v3983
      %v4166 = vunpack.c.h.b16 %v3983
      %v4167 = vunpack.c.l.b16 %v3984
      %v4168 = vunpack.c.h.b16 %v3984
      %v4169 = vunpack.c.l.b16 %v3985
      %v4170 = vunpack.c.h.b16 %v3985
      %v4171 = vunpack.c.l.b16 %v3986
      %v4172 = vunpack.c.l.b16 %v3987
      %v4173 = vunpack.c.h.b16 %v3987
      %v4174 = vunpack.c.l.b16 %v3988
      %v4175 = vunpack.c.h.b16 %v3988
      %v4176 = vunpack.c.l.b16 %v3989
      %v4177 = vunpack.c.h.b16 %v3989
      %v4178 = vunpack.c.l.b16 %v3990
      %v4179 = vunpack.c.l.b16 %v3991
      %v4180 = vunpack.c.h.b16 %v3991
      %v4181 = vunpack.c.l.b16 %v3992
      %v4182 = vunpack.c.h.b16 %v3992
      %v4183 = vunpack.c.l.b16 %v3993
      %v4184 = vunpack.c.h.b16 %v3993
      %v4185 = vunpack.c.l.b16 %v3994
      %v4186 = vunpack.c.l.b16 %v3995
      %v4187 = vunpack.c.h.b16 %v3995
      %v4188 = vunpack.c.l.b16 %v3996
      %v4189 = vunpack.c.h.b16 %v3996
      %v4190 = vunpack.c.l.b16 %v3997
      %v4191 = vunpack.c.h.b16 %v3997
      %v4192 = vunpack.c.l.b16 %v3998
      %v4193 = vunpack.c.l.b16 %v3999
      %v4194 = vunpack.c.h.b16 %v3999
      %v4195 = vunpack.c.l.b16 %v4000
      %v4196 = vunpack.c.h.b16 %v4000
      %v4197 = vunpack.c.l.b16 %v4001
      %v4198 = vunpack.c.h.b16 %v4001
      %v4199 = vunpack.c.l.b16 %v4002
      %v4200 = vunpack.c.l.b16 %v4003
      %v4201 = vunpack.c.h.b16 %v4003
      %v4202 = vunpack.c.l.b16 %v4004
      %v4203 = vunpack.c.h.b16 %v4004
      %v4204 = vunpack.c.l.b16 %v4005
      %v4205 = vunpack.c.h.b16 %v4005
      %v4206 = vunpack.c.l.b16 %v4006
      %v4207 = vunpack.c.l.b16 %v4007
      %v4208 = vunpack.c.h.b16 %v4007
      %v4209 = vunpack.c.l.b16 %v4008
      %v4210 = vunpack.c.h.b16 %v4008
      %v4211 = vunpack.c.l.b16 %v4009
      %v4212 = vunpack.c.h.b16 %v4009
      %v4213 = vunpack.c.l.b16 %v4010
      %v4214 = vunpack.c.l.b16 %v4011
      %v4215 = vunpack.c.h.b16 %v4011
      %v4216 = vunpack.c.l.b16 %v4012
      %v4217 = vunpack.c.h.b16 %v4012
      %v4218 = vunpack.c.l.b16 %v4013
      %v4219 = vunpack.c.h.b16 %v4013
      %v4220 = vunpack.c.l.b16 %v4014
      %v4221 = vunpack.c.l.b16 %v4015
      %v4222 = vunpack.c.h.b16 %v4015
      %v4223 = vunpack.c.l.b16 %v4016
      %v4224 = vunpack.c.h.b16 %v4016
      %v4225 = vunpack.c.l.b16 %v4017
      %v4226 = vunpack.c.h.b16 %v4017
      %v4227 = vunpack.c.l.b16 %v4018
      %v4228 = vunpack.c.l.b16 %v4019
      %v4229 = vunpack.c.h.b16 %v4019
      %v4230 = vunpack.c.l.b16 %v4020
      %v4231 = vunpack.c.h.b16 %v4020
      %v4232 = vunpack.c.l.b16 %v4021
      %v4233 = vunpack.c.h.b16 %v4021
      %v4234 = vunpack.c.l.b16 %v4022
      %v4235 = vpack.c.b16 %v4158, %v4151
      %v4236 = vpack.c.b16 %v4159, %v4152
      %v4237 = vpack.c.b16 %v4160, %v4153
      %v4238 = vpack.c.b16 %v4161, %v4154
      %v4239 = vpack.c.b16 %v4162, %v4155
      %v4240 = vpack.c.b16 %v4163, %v4156
      %v4241 = vpack.c.b16 %v4164, %v4157
      %v4242 = vpack.c.b16 %v4172, %v4165
      %v4243 = vpack.c.b16 %v4173, %v4166
      %v4244 = vpack.c.b16 %v4174, %v4167
      %v4245 = vpack.c.b16 %v4175, %v4168
      %v4246 = vpack.c.b16 %v4176, %v4169
      %v4247 = vpack.c.b16 %v4177, %v4170
      %v4248 = vpack.c.b16 %v4178, %v4171
      %v4249 = vpack.c.b16 %v4186, %v4179
      %v4250 = vpack.c.b16 %v4187, %v4180
      %v4251 = vpack.c.b16 %v4188, %v4181
      %v4252 = vpack.c.b16 %v4189, %v4182
      %v4253 = vpack.c.b16 %v4190, %v4183
      %v4254 = vpack.c.b16 %v4191, %v4184
      %v4255 = vpack.c.b16 %v4192, %v4185
      %v4256 = vpack.c.b16 %v4200, %v4193
      %v4257 = vpack.c.b16 %v4201, %v4194
      %v4258 = vpack.c.b16 %v4202, %v4195
      %v4259 = vpack.c.b16 %v4203, %v4196
      %v4260 = vpack.c.b16 %v4204, %v4197
      %v4261 = vpack.c.b16 %v4205, %v4198
      %v4262 = vpack.c.b16 %v4206, %v4199
      %v4263 = vpack.c.b16 %v4214, %v4207
      %v4264 = vpack.c.b16 %v4215, %v4208
      %v4265 = vpack.c.b16 %v4216, %v4209
      %v4266 = vpack.c.b16 %v4217, %v4210
      %v4267 = vpack.c.b16 %v4218, %v4211
      %v4268 = vpack.c.b16 %v4219, %v4212
      %v4269 = vpack.c.b16 %v4220, %v4213
      %v4270 = vpack.c.b16 %v4228, %v4221
      %v4271 = vpack.c.b16 %v4229, %v4222
      %v4272 = vpack.c.b16 %v4230, %v4223
      %v4273 = vpack.c.b16 %v4231, %v4224
      %v4274 = vpack.c.b16 %v4232, %v4225
      %v4275 = vpack.c.b16 %v4233, %v4226
      %v4276 = vpack.c.b16 %v4234, %v4227
      %vm4319 = vcmask 785408
      %v4321 = vsel %vm4319, %v4087, 0
      %v4324 = vsel %vm4319, %v4088, 0
      %v4327 = vsel %vm4319, %v4089, 0
      %v4330 = vsel %vm4319, %v4090, 0
      %v4333 = vsel %vm4319, %v4091, 0
      %v4336 = vsel %vm4319, %v4092, 0
      %v4339 = vsel %vm4319, %v4093, 0
      %v4342 = vsel %vm4319, %v4094, 0
      %v4345 = vsel %vm4319, %v4095, 0
      %v4348 = vsel %vm4319, %v4096, 0
      %v4351 = vsel %vm4319, %v4097, 0
      %v4354 = vsel %vm4319, %v4098, 0
      %v4357 = vsel %vm4319, %v4099, 0
      %v4360 = vsel %vm4319, %v4100, 0
      %v4363 = vsel %vm4319, %v4101, 0
      %v4366 = vsel %vm4319, %v4102, 0
      %4368 = vmatprep.subr.bf16.mxu0 0
      %4369 = vmatpush1.bf16.msra.mxu0 0
      %4370 = vmatprep.subr.bf16.mxu0 0
      %4371 = vmatpush1.bf16.msra.mxu0 0
      %4372 = vmatprep.subr.bf16.mxu0 %v4271
      %4373 = vmatpush1.bf16.msra.mxu0 %v4270
      %4374 = vmatprep.subr.bf16.mxu0 %v4264
      %4375 = vmatpush1.bf16.msra.mxu0 %v4263
      %4376 = vmatprep.subr.bf16.mxu0 %v4257
      %4377 = vmatpush1.bf16.msra.mxu0 %v4256
      %4378 = vmatprep.subr.bf16.mxu0 %v4250
      %4379 = vmatpush1.bf16.msra.mxu0 %v4249
      %4380 = vmatprep.subr.bf16.mxu0 %v4243
      %4381 = vmatpush1.bf16.msra.mxu0 %v4242
      %4382 = vmatprep.subr.bf16.mxu0 %v4236
      %4383 = vmatpush1.bf16.msra.mxu0 %v4235
      %4384 = vmatprep.subr.bf16.mxu0 0
      %4385 = vmatpush2.bf16.msra.mxu0 0
      %4386 = vmatprep.subr.bf16.mxu0 0
      %4387 = vmatpush2.bf16.msra.mxu0 0
      %4388 = vmatprep.subr.bf16.mxu0 0
      %4389 = vmatpush2.bf16.msra.mxu0 0
      %4390 = vmatprep.subr.bf16.mxu0 0
      %4391 = vmatpush2.bf16.msra.mxu0 0
      %4392 = vmatprep.subr.bf16.mxu0 0
      %4393 = vmatpush2.bf16.msra.mxu0 0
      %4394 = vmatprep.subr.bf16.mxu0 0
      %4395 = vmatpush2.bf16.msra.mxu0 0
      %4396 = vmatprep.subr.bf16.mxu0 0
      %4397 = vmatpush2.bf16.msra.mxu0 0
      %4398 = vmatprep.subr.bf16.mxu0 0
      %4399 = vmatpush2.bf16.msra.mxu0 0
      %4400 = vmatprep.mubr.bf16.mxu0 0
      %4401 = vmatmul.mubr.bf16.gmra.mxu0 %v4321
      %v4402 = vpop.f32.mrf.mxu0
      %v4403 = vadd.f32 0.0, %v4402
      %v4404 = vpop.f32.mrf.mxu0
      %v4405 = vadd.f32 0.0, %v4404
      %v4406 = vpop.f32.mrf.mxu0
      %v4407 = vadd.f32 0.0, %v4406
      %v4408 = vpop.f32.mrf.mxu0
      %v4409 = vadd.f32 0.0, %v4408
      %4410 = vmatprep.mubr.bf16.mxu0 0
      %4411 = vmatmul.mubr.bf16.gmra.mxu0 %v4324
      %v4412 = vpop.f32.mrf.mxu0
      %v4413 = vadd.f32 0.0, %v4412
      %v4414 = vpop.f32.mrf.mxu0
      %v4415 = vadd.f32 0.0, %v4414
      %v4416 = vpop.f32.mrf.mxu0
      %v4417 = vadd.f32 0.0, %v4416
      %v4418 = vpop.f32.mrf.mxu0
      %v4419 = vadd.f32 0.0, %v4418
      %4420 = vmatprep.mubr.bf16.mxu0 0
      %4421 = vmatmul.mubr.bf16.gmra.mxu0 %v4327
      %v4422 = vpop.f32.mrf.mxu0
      %v4423 = vadd.f32 0.0, %v4422
      %v4424 = vpop.f32.mrf.mxu0
      %v4425 = vadd.f32 0.0, %v4424
      %v4426 = vpop.f32.mrf.mxu0
      %v4427 = vadd.f32 0.0, %v4426
      %v4428 = vpop.f32.mrf.mxu0
      %v4429 = vadd.f32 0.0, %v4428
      %4430 = vmatprep.mubr.bf16.mxu0 0
      %4431 = vmatmul.mubr.bf16.gmra.mxu0 %v4330
      %v4432 = vpop.f32.mrf.mxu0
      %v4433 = vadd.f32 0.0, %v4432
      %v4434 = vpop.f32.mrf.mxu0
      %v4435 = vadd.f32 0.0, %v4434
      %v4436 = vpop.f32.mrf.mxu0
      %v4437 = vadd.f32 0.0, %v4436
      %v4438 = vpop.f32.mrf.mxu0
      %v4439 = vadd.f32 0.0, %v4438
      %4440 = vmatprep.mubr.bf16.mxu0 0
      %4441 = vmatmul.mubr.bf16.gmra.mxu0 %v4333
      %v4442 = vpop.f32.mrf.mxu0
      %v4443 = vadd.f32 0.0, %v4442
      %v4444 = vpop.f32.mrf.mxu0
      %v4445 = vadd.f32 0.0, %v4444
      %v4446 = vpop.f32.mrf.mxu0
      %v4447 = vadd.f32 0.0, %v4446
      %v4448 = vpop.f32.mrf.mxu0
      %v4449 = vadd.f32 0.0, %v4448
      %4450 = vmatprep.mubr.bf16.mxu0 0
      %4451 = vmatmul.mubr.bf16.gmra.mxu0 %v4336
      %v4452 = vpop.f32.mrf.mxu0
      %v4453 = vadd.f32 0.0, %v4452
      %v4454 = vpop.f32.mrf.mxu0
      %v4455 = vadd.f32 0.0, %v4454
      %v4456 = vpop.f32.mrf.mxu0
      %v4457 = vadd.f32 0.0, %v4456
      %v4458 = vpop.f32.mrf.mxu0
      %v4459 = vadd.f32 0.0, %v4458
      %4460 = vmatprep.mubr.bf16.mxu0 0
      %4461 = vmatmul.mubr.bf16.gmra.mxu0 %v4339
      %v4462 = vpop.f32.mrf.mxu0
      %v4463 = vadd.f32 0.0, %v4462
      %v4464 = vpop.f32.mrf.mxu0
      %v4465 = vadd.f32 0.0, %v4464
      %v4466 = vpop.f32.mrf.mxu0
      %v4467 = vadd.f32 0.0, %v4466
      %v4468 = vpop.f32.mrf.mxu0
      %v4469 = vadd.f32 0.0, %v4468
      %4470 = vmatprep.mubr.bf16.mxu0 0
      %4471 = vmatmul.mubr.bf16.gmra.mxu0 %v4342
      %v4472 = vpop.f32.mrf.mxu0
      %v4473 = vadd.f32 0.0, %v4472
      %v4474 = vpop.f32.mrf.mxu0
      %v4475 = vadd.f32 0.0, %v4474
      %v4476 = vpop.f32.mrf.mxu0
      %v4477 = vadd.f32 0.0, %v4476
      %v4478 = vpop.f32.mrf.mxu0
      %v4479 = vadd.f32 0.0, %v4478
      %4480 = vmatprep.mubr.bf16.mxu0 0
      %4481 = vmatmul.mubr.bf16.gmra.mxu0 %v4345
      %v4482 = vpop.f32.mrf.mxu0
      %v4483 = vadd.f32 0.0, %v4482
      %v4484 = vpop.f32.mrf.mxu0
      %v4485 = vadd.f32 0.0, %v4484
      %v4486 = vpop.f32.mrf.mxu0
      %v4487 = vadd.f32 0.0, %v4486
      %v4488 = vpop.f32.mrf.mxu0
      %v4489 = vadd.f32 0.0, %v4488
      %4490 = vmatprep.mubr.bf16.mxu0 0
      %4491 = vmatmul.mubr.bf16.gmra.mxu0 %v4348
      %v4492 = vpop.f32.mrf.mxu0
      %v4493 = vadd.f32 0.0, %v4492
      %v4494 = vpop.f32.mrf.mxu0
      %v4495 = vadd.f32 0.0, %v4494
      %v4496 = vpop.f32.mrf.mxu0
      %v4497 = vadd.f32 0.0, %v4496
      %v4498 = vpop.f32.mrf.mxu0
      %v4499 = vadd.f32 0.0, %v4498
      %4500 = vmatprep.mubr.bf16.mxu0 0
      %4501 = vmatmul.mubr.bf16.gmra.mxu0 %v4351
      %v4502 = vpop.f32.mrf.mxu0
      %v4503 = vadd.f32 0.0, %v4502
      %v4504 = vpop.f32.mrf.mxu0
      %v4505 = vadd.f32 0.0, %v4504
      %v4506 = vpop.f32.mrf.mxu0
      %v4507 = vadd.f32 0.0, %v4506
      %v4508 = vpop.f32.mrf.mxu0
      %v4509 = vadd.f32 0.0, %v4508
      %4510 = vmatprep.mubr.bf16.mxu0 0
      %4511 = vmatmul.mubr.bf16.gmra.mxu0 %v4354
      %v4512 = vpop.f32.mrf.mxu0
      %v4513 = vadd.f32 0.0, %v4512
      %v4514 = vpop.f32.mrf.mxu0
      %v4515 = vadd.f32 0.0, %v4514
      %v4516 = vpop.f32.mrf.mxu0
      %v4517 = vadd.f32 0.0, %v4516
      %v4518 = vpop.f32.mrf.mxu0
      %v4519 = vadd.f32 0.0, %v4518
      %4520 = vmatprep.mubr.bf16.mxu0 0
      %4521 = vmatmul.mubr.bf16.gmra.mxu0 %v4357
      %v4522 = vpop.f32.mrf.mxu0
      %v4523 = vadd.f32 0.0, %v4522
      %v4524 = vpop.f32.mrf.mxu0
      %v4525 = vadd.f32 0.0, %v4524
      %v4526 = vpop.f32.mrf.mxu0
      %v4527 = vadd.f32 0.0, %v4526
      %v4528 = vpop.f32.mrf.mxu0
      %v4529 = vadd.f32 0.0, %v4528
      %4530 = vmatprep.mubr.bf16.mxu0 0
      %4531 = vmatmul.mubr.bf16.gmra.mxu0 %v4360
      %v4532 = vpop.f32.mrf.mxu0
      %v4533 = vadd.f32 0.0, %v4532
      %v4534 = vpop.f32.mrf.mxu0
      %v4535 = vadd.f32 0.0, %v4534
      %v4536 = vpop.f32.mrf.mxu0
      %v4537 = vadd.f32 0.0, %v4536
      %v4538 = vpop.f32.mrf.mxu0
      %v4539 = vadd.f32 0.0, %v4538
      %4540 = vmatprep.mubr.bf16.mxu0 0
      %4541 = vmatmul.mubr.bf16.gmra.mxu0 %v4363
      %v4542 = vpop.f32.mrf.mxu0
      %v4543 = vadd.f32 0.0, %v4542
      %v4544 = vpop.f32.mrf.mxu0
      %v4545 = vadd.f32 0.0, %v4544
      %v4546 = vpop.f32.mrf.mxu0
      %v4547 = vadd.f32 0.0, %v4546
      %v4548 = vpop.f32.mrf.mxu0
      %v4549 = vadd.f32 0.0, %v4548
      %4550 = vmatprep.mubr.bf16.mxu0 0
      %4551 = vmatmul.mubr.bf16.gmra.mxu0 %v4366
      %v4552 = vpop.f32.mrf.mxu0
      %v4553 = vadd.f32 0.0, %v4552
      %v4554 = vpop.f32.mrf.mxu0
      %v4555 = vadd.f32 0.0, %v4554
      %v4556 = vpop.f32.mrf.mxu0
      %v4557 = vadd.f32 0.0, %v4556
      %v4558 = vpop.f32.mrf.mxu0
      %v4559 = vadd.f32 0.0, %v4558
      %4560 = vdwg.mxu0
      %4561 = vmatprep.subr.bf16.mxu0 0
      %4562 = vmatpush1.bf16.msra.mxu0 0
      %4563 = vmatprep.subr.bf16.mxu0 0
      %4564 = vmatpush1.bf16.msra.mxu0 0
      %4565 = vmatprep.subr.bf16.mxu0 %v4273
      %4566 = vmatpush1.bf16.msra.mxu0 %v4272
      %4567 = vmatprep.subr.bf16.mxu0 %v4266
      %4568 = vmatpush1.bf16.msra.mxu0 %v4265
      %4569 = vmatprep.subr.bf16.mxu0 %v4259
      %4570 = vmatpush1.bf16.msra.mxu0 %v4258
      %4571 = vmatprep.subr.bf16.mxu0 %v4252
      %4572 = vmatpush1.bf16.msra.mxu0 %v4251
      %4573 = vmatprep.subr.bf16.mxu0 %v4245
      %4574 = vmatpush1.bf16.msra.mxu0 %v4244
      %4575 = vmatprep.subr.bf16.mxu0 %v4238
      %4576 = vmatpush1.bf16.msra.mxu0 %v4237
      %4577 = vmatprep.subr.bf16.mxu0 0
      %4578 = vmatpush2.bf16.msra.mxu0 0
      %4579 = vmatprep.subr.bf16.mxu0 0
      %4580 = vmatpush2.bf16.msra.mxu0 0
      %4581 = vmatprep.subr.bf16.mxu0 0
      %4582 = vmatpush2.bf16.msra.mxu0 0
      %4583 = vmatprep.subr.bf16.mxu0 0
      %4584 = vmatpush2.bf16.msra.mxu0 0
      %4585 = vmatprep.subr.bf16.mxu0 0
      %4586 = vmatpush2.bf16.msra.mxu0 0
      %4587 = vmatprep.subr.bf16.mxu0 0
      %4588 = vmatpush2.bf16.msra.mxu0 0
      %4589 = vmatprep.subr.bf16.mxu0 0
      %4590 = vmatpush2.bf16.msra.mxu0 0
      %4591 = vmatprep.subr.bf16.mxu0 0
      %4592 = vmatpush2.bf16.msra.mxu0 0
      %4593 = vmatprep.mubr.bf16.mxu0 0
      %4594 = vmatmul.mubr.bf16.gmra.mxu0 %v4321
      %v4595 = vpop.f32.mrf.mxu0
      %v4596 = vadd.f32 0.0, %v4595
      %v4597 = vpop.f32.mrf.mxu0
      %v4598 = vadd.f32 0.0, %v4597
      %v4599 = vpop.f32.mrf.mxu0
      %v4600 = vadd.f32 0.0, %v4599
      %v4601 = vpop.f32.mrf.mxu0
      %v4602 = vadd.f32 0.0, %v4601
      %4603 = vmatprep.mubr.bf16.mxu0 0
      %4604 = vmatmul.mubr.bf16.gmra.mxu0 %v4324
      %v4605 = vpop.f32.mrf.mxu0
      %v4606 = vadd.f32 0.0, %v4605
      %v4607 = vpop.f32.mrf.mxu0
      %v4608 = vadd.f32 0.0, %v4607
      %v4609 = vpop.f32.mrf.mxu0
      %v4610 = vadd.f32 0.0, %v4609
      %v4611 = vpop.f32.mrf.mxu0
      %v4612 = vadd.f32 0.0, %v4611
      %4613 = vmatprep.mubr.bf16.mxu0 0
      %4614 = vmatmul.mubr.bf16.gmra.mxu0 %v4327
      %v4615 = vpop.f32.mrf.mxu0
      %v4616 = vadd.f32 0.0, %v4615
      %v4617 = vpop.f32.mrf.mxu0
      %v4618 = vadd.f32 0.0, %v4617
      %v4619 = vpop.f32.mrf.mxu0
      %v4620 = vadd.f32 0.0, %v4619
      %v4621 = vpop.f32.mrf.mxu0
      %v4622 = vadd.f32 0.0, %v4621
      %4623 = vmatprep.mubr.bf16.mxu0 0
      %4624 = vmatmul.mubr.bf16.gmra.mxu0 %v4330
      %v4625 = vpop.f32.mrf.mxu0
      %v4626 = vadd.f32 0.0, %v4625
      %v4627 = vpop.f32.mrf.mxu0
      %v4628 = vadd.f32 0.0, %v4627
      %v4629 = vpop.f32.mrf.mxu0
      %v4630 = vadd.f32 0.0, %v4629
      %v4631 = vpop.f32.mrf.mxu0
      %v4632 = vadd.f32 0.0, %v4631
      %4633 = vmatprep.mubr.bf16.mxu0 0
      %4634 = vmatmul.mubr.bf16.gmra.mxu0 %v4333
      %v4635 = vpop.f32.mrf.mxu0
      %v4636 = vadd.f32 0.0, %v4635
      %v4637 = vpop.f32.mrf.mxu0
      %v4638 = vadd.f32 0.0, %v4637
      %v4639 = vpop.f32.mrf.mxu0
      %v4640 = vadd.f32 0.0, %v4639
      %v4641 = vpop.f32.mrf.mxu0
      %v4642 = vadd.f32 0.0, %v4641
      %4643 = vmatprep.mubr.bf16.mxu0 0
      %4644 = vmatmul.mubr.bf16.gmra.mxu0 %v4336
      %v4645 = vpop.f32.mrf.mxu0
      %v4646 = vadd.f32 0.0, %v4645
      %v4647 = vpop.f32.mrf.mxu0
      %v4648 = vadd.f32 0.0, %v4647
      %v4649 = vpop.f32.mrf.mxu0
      %v4650 = vadd.f32 0.0, %v4649
      %v4651 = vpop.f32.mrf.mxu0
      %v4652 = vadd.f32 0.0, %v4651
      %4653 = vmatprep.mubr.bf16.mxu0 0
      %4654 = vmatmul.mubr.bf16.gmra.mxu0 %v4339
      %v4655 = vpop.f32.mrf.mxu0
      %v4656 = vadd.f32 0.0, %v4655
      %v4657 = vpop.f32.mrf.mxu0
      %v4658 = vadd.f32 0.0, %v4657
      %v4659 = vpop.f32.mrf.mxu0
      %v4660 = vadd.f32 0.0, %v4659
      %v4661 = vpop.f32.mrf.mxu0
      %v4662 = vadd.f32 0.0, %v4661
      %4663 = vmatprep.mubr.bf16.mxu0 0
      %4664 = vmatmul.mubr.bf16.gmra.mxu0 %v4342
      %v4665 = vpop.f32.mrf.mxu0
      %v4666 = vadd.f32 0.0, %v4665
      %v4667 = vpop.f32.mrf.mxu0
      %v4668 = vadd.f32 0.0, %v4667
      %v4669 = vpop.f32.mrf.mxu0
      %v4670 = vadd.f32 0.0, %v4669
      %v4671 = vpop.f32.mrf.mxu0
      %v4672 = vadd.f32 0.0, %v4671
      %4673 = vmatprep.mubr.bf16.mxu0 0
      %4674 = vmatmul.mubr.bf16.gmra.mxu0 %v4345
      %v4675 = vpop.f32.mrf.mxu0
      %v4676 = vadd.f32 0.0, %v4675
      %v4677 = vpop.f32.mrf.mxu0
      %v4678 = vadd.f32 0.0, %v4677
      %v4679 = vpop.f32.mrf.mxu0
      %v4680 = vadd.f32 0.0, %v4679
      %v4681 = vpop.f32.mrf.mxu0
      %v4682 = vadd.f32 0.0, %v4681
      %4683 = vmatprep.mubr.bf16.mxu0 0
      %4684 = vmatmul.mubr.bf16.gmra.mxu0 %v4348
      %v4685 = vpop.f32.mrf.mxu0
      %v4686 = vadd.f32 0.0, %v4685
      %v4687 = vpop.f32.mrf.mxu0
      %v4688 = vadd.f32 0.0, %v4687
      %v4689 = vpop.f32.mrf.mxu0
      %v4690 = vadd.f32 0.0, %v4689
      %v4691 = vpop.f32.mrf.mxu0
      %v4692 = vadd.f32 0.0, %v4691
      %4693 = vmatprep.mubr.bf16.mxu0 0
      %4694 = vmatmul.mubr.bf16.gmra.mxu0 %v4351
      %v4695 = vpop.f32.mrf.mxu0
      %v4696 = vadd.f32 0.0, %v4695
      %v4697 = vpop.f32.mrf.mxu0
      %v4698 = vadd.f32 0.0, %v4697
      %v4699 = vpop.f32.mrf.mxu0
      %v4700 = vadd.f32 0.0, %v4699
      %v4701 = vpop.f32.mrf.mxu0
      %v4702 = vadd.f32 0.0, %v4701
      %4703 = vmatprep.mubr.bf16.mxu0 0
      %4704 = vmatmul.mubr.bf16.gmra.mxu0 %v4354
      %v4705 = vpop.f32.mrf.mxu0
      %v4706 = vadd.f32 0.0, %v4705
      %v4707 = vpop.f32.mrf.mxu0
      %v4708 = vadd.f32 0.0, %v4707
      %v4709 = vpop.f32.mrf.mxu0
      %v4710 = vadd.f32 0.0, %v4709
      %v4711 = vpop.f32.mrf.mxu0
      %v4712 = vadd.f32 0.0, %v4711
      %4713 = vmatprep.mubr.bf16.mxu0 0
      %4714 = vmatmul.mubr.bf16.gmra.mxu0 %v4357
      %v4715 = vpop.f32.mrf.mxu0
      %v4716 = vadd.f32 0.0, %v4715
      %v4717 = vpop.f32.mrf.mxu0
      %v4718 = vadd.f32 0.0, %v4717
      %v4719 = vpop.f32.mrf.mxu0
      %v4720 = vadd.f32 0.0, %v4719
      %v4721 = vpop.f32.mrf.mxu0
      %v4722 = vadd.f32 0.0, %v4721
      %4723 = vmatprep.mubr.bf16.mxu0 0
      %4724 = vmatmul.mubr.bf16.gmra.mxu0 %v4360
      %v4725 = vpop.f32.mrf.mxu0
      %v4726 = vadd.f32 0.0, %v4725
      %v4727 = vpop.f32.mrf.mxu0
      %v4728 = vadd.f32 0.0, %v4727
      %v4729 = vpop.f32.mrf.mxu0
      %v4730 = vadd.f32 0.0, %v4729
      %v4731 = vpop.f32.mrf.mxu0
      %v4732 = vadd.f32 0.0, %v4731
      %4733 = vmatprep.mubr.bf16.mxu0 0
      %4734 = vmatmul.mubr.bf16.gmra.mxu0 %v4363
      %v4735 = vpop.f32.mrf.mxu0
      %v4736 = vadd.f32 0.0, %v4735
      %v4737 = vpop.f32.mrf.mxu0
      %v4738 = vadd.f32 0.0, %v4737
      %v4739 = vpop.f32.mrf.mxu0
      %v4740 = vadd.f32 0.0, %v4739
      %v4741 = vpop.f32.mrf.mxu0
      %v4742 = vadd.f32 0.0, %v4741
      %4743 = vmatprep.mubr.bf16.mxu0 0
      %4744 = vmatmul.mubr.bf16.gmra.mxu0 %v4366
      %v4745 = vpop.f32.mrf.mxu0
      %v4746 = vadd.f32 0.0, %v4745
      %v4747 = vpop.f32.mrf.mxu0
      %v4748 = vadd.f32 0.0, %v4747
      %v4749 = vpop.f32.mrf.mxu0
      %v4750 = vadd.f32 0.0, %v4749
      %v4751 = vpop.f32.mrf.mxu0
      %v4752 = vadd.f32 0.0, %v4751
      %4753 = vdwg.mxu0
      %4754 = vmatprep.subr.bf16.mxu0 0
      %4755 = vmatpush1.bf16.msra.mxu0 0
      %4756 = vmatprep.subr.bf16.mxu0 0
      %4757 = vmatpush1.bf16.msra.mxu0 0
      %4758 = vmatprep.subr.bf16.mxu0 %v4275
      %4759 = vmatpush1.bf16.msra.mxu0 %v4274
      %4760 = vmatprep.subr.bf16.mxu0 %v4268
      %4761 = vmatpush1.bf16.msra.mxu0 %v4267
      %4762 = vmatprep.subr.bf16.mxu0 %v4261
      %4763 = vmatpush1.bf16.msra.mxu0 %v4260
      %4764 = vmatprep.subr.bf16.mxu0 %v4254
      %4765 = vmatpush1.bf16.msra.mxu0 %v4253
      %4766 = vmatprep.subr.bf16.mxu0 %v4247
      %4767 = vmatpush1.bf16.msra.mxu0 %v4246
      %4768 = vmatprep.subr.bf16.mxu0 %v4240
      %4769 = vmatpush1.bf16.msra.mxu0 %v4239
      %4770 = vmatprep.subr.bf16.mxu0 0
      %4771 = vmatpush2.bf16.msra.mxu0 0
      %4772 = vmatprep.subr.bf16.mxu0 0
      %4773 = vmatpush2.bf16.msra.mxu0 0
      %4774 = vmatprep.subr.bf16.mxu0 0
      %4775 = vmatpush2.bf16.msra.mxu0 0
      %4776 = vmatprep.subr.bf16.mxu0 0
      %4777 = vmatpush2.bf16.msra.mxu0 0
      %4778 = vmatprep.subr.bf16.mxu0 0
      %4779 = vmatpush2.bf16.msra.mxu0 0
      %4780 = vmatprep.subr.bf16.mxu0 0
      %4781 = vmatpush2.bf16.msra.mxu0 0
      %4782 = vmatprep.subr.bf16.mxu0 0
      %4783 = vmatpush2.bf16.msra.mxu0 0
      %4784 = vmatprep.subr.bf16.mxu0 0
      %4785 = vmatpush2.bf16.msra.mxu0 0
      %4786 = vmatprep.mubr.bf16.mxu0 0
      %4787 = vmatmul.mubr.bf16.gmra.mxu0 %v4321
      %v4788 = vpop.f32.mrf.mxu0
      %v4789 = vadd.f32 0.0, %v4788
      %v4790 = vpop.f32.mrf.mxu0
      %v4791 = vadd.f32 0.0, %v4790
      %v4792 = vpop.f32.mrf.mxu0
      %v4793 = vadd.f32 0.0, %v4792
      %v4794 = vpop.f32.mrf.mxu0
      %v4795 = vadd.f32 0.0, %v4794
      %4796 = vmatprep.mubr.bf16.mxu0 0
      %4797 = vmatmul.mubr.bf16.gmra.mxu0 %v4324
      %v4798 = vpop.f32.mrf.mxu0
      %v4799 = vadd.f32 0.0, %v4798
      %v4800 = vpop.f32.mrf.mxu0
      %v4801 = vadd.f32 0.0, %v4800
      %v4802 = vpop.f32.mrf.mxu0
      %v4803 = vadd.f32 0.0, %v4802
      %v4804 = vpop.f32.mrf.mxu0
      %v4805 = vadd.f32 0.0, %v4804
      %4806 = vmatprep.mubr.bf16.mxu0 0
      %4807 = vmatmul.mubr.bf16.gmra.mxu0 %v4327
      %v4808 = vpop.f32.mrf.mxu0
      %v4809 = vadd.f32 0.0, %v4808
      %v4810 = vpop.f32.mrf.mxu0
      %v4811 = vadd.f32 0.0, %v4810
      %v4812 = vpop.f32.mrf.mxu0
      %v4813 = vadd.f32 0.0, %v4812
      %v4814 = vpop.f32.mrf.mxu0
      %v4815 = vadd.f32 0.0, %v4814
      %4816 = vmatprep.mubr.bf16.mxu0 0
      %4817 = vmatmul.mubr.bf16.gmra.mxu0 %v4330
      %v4818 = vpop.f32.mrf.mxu0
      %v4819 = vadd.f32 0.0, %v4818
      %v4820 = vpop.f32.mrf.mxu0
      %v4821 = vadd.f32 0.0, %v4820
      %v4822 = vpop.f32.mrf.mxu0
      %v4823 = vadd.f32 0.0, %v4822
      %v4824 = vpop.f32.mrf.mxu0
      %v4825 = vadd.f32 0.0, %v4824
      %4826 = vmatprep.mubr.bf16.mxu0 0
      %4827 = vmatmul.mubr.bf16.gmra.mxu0 %v4333
      %v4828 = vpop.f32.mrf.mxu0
      %v4829 = vadd.f32 0.0, %v4828
      %v4830 = vpop.f32.mrf.mxu0
      %v4831 = vadd.f32 0.0, %v4830
      %v4832 = vpop.f32.mrf.mxu0
      %v4833 = vadd.f32 0.0, %v4832
      %v4834 = vpop.f32.mrf.mxu0
      %v4835 = vadd.f32 0.0, %v4834
      %4836 = vmatprep.mubr.bf16.mxu0 0
      %4837 = vmatmul.mubr.bf16.gmra.mxu0 %v4336
      %v4838 = vpop.f32.mrf.mxu0
      %v4839 = vadd.f32 0.0, %v4838
      %v4840 = vpop.f32.mrf.mxu0
      %v4841 = vadd.f32 0.0, %v4840
      %v4842 = vpop.f32.mrf.mxu0
      %v4843 = vadd.f32 0.0, %v4842
      %v4844 = vpop.f32.mrf.mxu0
      %v4845 = vadd.f32 0.0, %v4844
      %4846 = vmatprep.mubr.bf16.mxu0 0
      %4847 = vmatmul.mubr.bf16.gmra.mxu0 %v4339
      %v4848 = vpop.f32.mrf.mxu0
      %v4849 = vadd.f32 0.0, %v4848
      %v4850 = vpop.f32.mrf.mxu0
      %v4851 = vadd.f32 0.0, %v4850
      %v4852 = vpop.f32.mrf.mxu0
      %v4853 = vadd.f32 0.0, %v4852
      %v4854 = vpop.f32.mrf.mxu0
      %v4855 = vadd.f32 0.0, %v4854
      %4856 = vmatprep.mubr.bf16.mxu0 0
      %4857 = vmatmul.mubr.bf16.gmra.mxu0 %v4342
      %v4858 = vpop.f32.mrf.mxu0
      %v4859 = vadd.f32 0.0, %v4858
      %v4860 = vpop.f32.mrf.mxu0
      %v4861 = vadd.f32 0.0, %v4860
      %v4862 = vpop.f32.mrf.mxu0
      %v4863 = vadd.f32 0.0, %v4862
      %v4864 = vpop.f32.mrf.mxu0
      %v4865 = vadd.f32 0.0, %v4864
      %4866 = vmatprep.mubr.bf16.mxu0 0
      %4867 = vmatmul.mubr.bf16.gmra.mxu0 %v4345
      %v4868 = vpop.f32.mrf.mxu0
      %v4869 = vadd.f32 0.0, %v4868
      %v4870 = vpop.f32.mrf.mxu0
      %v4871 = vadd.f32 0.0, %v4870
      %v4872 = vpop.f32.mrf.mxu0
      %v4873 = vadd.f32 0.0, %v4872
      %v4874 = vpop.f32.mrf.mxu0
      %v4875 = vadd.f32 0.0, %v4874
      %4876 = vmatprep.mubr.bf16.mxu0 0
      %4877 = vmatmul.mubr.bf16.gmra.mxu0 %v4348
      %v4878 = vpop.f32.mrf.mxu0
      %v4879 = vadd.f32 0.0, %v4878
      %v4880 = vpop.f32.mrf.mxu0
      %v4881 = vadd.f32 0.0, %v4880
      %v4882 = vpop.f32.mrf.mxu0
      %v4883 = vadd.f32 0.0, %v4882
      %v4884 = vpop.f32.mrf.mxu0
      %v4885 = vadd.f32 0.0, %v4884
      %4886 = vmatprep.mubr.bf16.mxu0 0
      %4887 = vmatmul.mubr.bf16.gmra.mxu0 %v4351
      %v4888 = vpop.f32.mrf.mxu0
      %v4889 = vadd.f32 0.0, %v4888
      %v4890 = vpop.f32.mrf.mxu0
      %v4891 = vadd.f32 0.0, %v4890
      %v4892 = vpop.f32.mrf.mxu0
      %v4893 = vadd.f32 0.0, %v4892
      %v4894 = vpop.f32.mrf.mxu0
      %v4895 = vadd.f32 0.0, %v4894
      %4896 = vmatprep.mubr.bf16.mxu0 0
      %4897 = vmatmul.mubr.bf16.gmra.mxu0 %v4354
      %v4898 = vpop.f32.mrf.mxu0
      %v4899 = vadd.f32 0.0, %v4898
      %v4900 = vpop.f32.mrf.mxu0
      %v4901 = vadd.f32 0.0, %v4900
      %v4902 = vpop.f32.mrf.mxu0
      %v4903 = vadd.f32 0.0, %v4902
      %v4904 = vpop.f32.mrf.mxu0
      %v4905 = vadd.f32 0.0, %v4904
      %4906 = vmatprep.mubr.bf16.mxu0 0
      %4907 = vmatmul.mubr.bf16.gmra.mxu0 %v4357
      %v4908 = vpop.f32.mrf.mxu0
      %v4909 = vadd.f32 0.0, %v4908
      %v4910 = vpop.f32.mrf.mxu0
      %v4911 = vadd.f32 0.0, %v4910
      %v4912 = vpop.f32.mrf.mxu0
      %v4913 = vadd.f32 0.0, %v4912
      %v4914 = vpop.f32.mrf.mxu0
      %v4915 = vadd.f32 0.0, %v4914
      %4916 = vmatprep.mubr.bf16.mxu0 0
      %4917 = vmatmul.mubr.bf16.gmra.mxu0 %v4360
      %v4918 = vpop.f32.mrf.mxu0
      %v4919 = vadd.f32 0.0, %v4918
      %v4920 = vpop.f32.mrf.mxu0
      %v4921 = vadd.f32 0.0, %v4920
      %v4922 = vpop.f32.mrf.mxu0
      %v4923 = vadd.f32 0.0, %v4922
      %v4924 = vpop.f32.mrf.mxu0
      %v4925 = vadd.f32 0.0, %v4924
      %4926 = vmatprep.mubr.bf16.mxu0 0
      %4927 = vmatmul.mubr.bf16.gmra.mxu0 %v4363
      %v4928 = vpop.f32.mrf.mxu0
      %v4929 = vadd.f32 0.0, %v4928
      %v4930 = vpop.f32.mrf.mxu0
      %v4931 = vadd.f32 0.0, %v4930
      %v4932 = vpop.f32.mrf.mxu0
      %v4933 = vadd.f32 0.0, %v4932
      %v4934 = vpop.f32.mrf.mxu0
      %v4935 = vadd.f32 0.0, %v4934
      %4936 = vmatprep.mubr.bf16.mxu0 0
      %4937 = vmatmul.mubr.bf16.gmra.mxu0 %v4366
      %v4938 = vpop.f32.mrf.mxu0
      %v4939 = vadd.f32 0.0, %v4938
      %v4940 = vpop.f32.mrf.mxu0
      %v4941 = vadd.f32 0.0, %v4940
      %v4942 = vpop.f32.mrf.mxu0
      %v4943 = vadd.f32 0.0, %v4942
      %v4944 = vpop.f32.mrf.mxu0
      %v4945 = vadd.f32 0.0, %v4944
      %4946 = vdwg.mxu0
      %4947 = vmatprep.subr.bf16.mxu0 0
      %4948 = vmatpush1.bf16.msra.mxu0 0
      %4949 = vmatprep.subr.bf16.mxu0 0
      %4950 = vmatpush1.bf16.msra.mxu0 0
      %4951 = vmatprep.subr.bf16.mxu0 0
      %4952 = vmatpush1.bf16.msra.mxu0 %v4276
      %4953 = vmatprep.subr.bf16.mxu0 0
      %4954 = vmatpush1.bf16.msra.mxu0 %v4269
      %4955 = vmatprep.subr.bf16.mxu0 0
      %4956 = vmatpush1.bf16.msra.mxu0 %v4262
      %4957 = vmatprep.subr.bf16.mxu0 0
      %4958 = vmatpush1.bf16.msra.mxu0 %v4255
      %4959 = vmatprep.subr.bf16.mxu0 0
      %4960 = vmatpush1.bf16.msra.mxu0 %v4248
      %4961 = vmatprep.subr.bf16.mxu0 0
      %4962 = vmatpush1.bf16.msra.mxu0 %v4241
      %4963 = vmatprep.subr.bf16.mxu0 0
      %4964 = vmatpush2.bf16.msra.mxu0 0
      %4965 = vmatprep.subr.bf16.mxu0 0
      %4966 = vmatpush2.bf16.msra.mxu0 0
      %4967 = vmatprep.subr.bf16.mxu0 0
      %4968 = vmatpush2.bf16.msra.mxu0 0
      %4969 = vmatprep.subr.bf16.mxu0 0
      %4970 = vmatpush2.bf16.msra.mxu0 0
      %4971 = vmatprep.subr.bf16.mxu0 0
      %4972 = vmatpush2.bf16.msra.mxu0 0
      %4973 = vmatprep.subr.bf16.mxu0 0
      %4974 = vmatpush2.bf16.msra.mxu0 0
      %4975 = vmatprep.subr.bf16.mxu0 0
      %4976 = vmatpush2.bf16.msra.mxu0 0
      %4977 = vmatprep.subr.bf16.mxu0 0
      %4978 = vmatpush2.bf16.msra.mxu0 0
      %4979 = vmatprep.mubr.bf16.mxu0 0
      %4980 = vmatmul.mubr.bf16.gmra.mxu0 %v4321
      %v4981 = vpop.f32.mrf.mxu0
      %v4982 = vadd.f32 0.0, %v4981
      %v4983 = vpop.f32.mrf.mxu0
      %v4984 = vpop.f32.mrf.mxu0
      %v4985 = vadd.f32 0.0, %v4984
      %v4986 = vpop.f32.mrf.mxu0
      %4987 = vmatprep.mubr.bf16.mxu0 0
      %4988 = vmatmul.mubr.bf16.gmra.mxu0 %v4324
      %v4989 = vpop.f32.mrf.mxu0
      %v4990 = vadd.f32 0.0, %v4989
      %v4991 = vpop.f32.mrf.mxu0
      %v4992 = vpop.f32.mrf.mxu0
      %v4993 = vadd.f32 0.0, %v4992
      %v4994 = vpop.f32.mrf.mxu0
      %4995 = vmatprep.mubr.bf16.mxu0 0
      %4996 = vmatmul.mubr.bf16.gmra.mxu0 %v4327
      %v4997 = vpop.f32.mrf.mxu0
      %v4998 = vadd.f32 0.0, %v4997
      %v4999 = vpop.f32.mrf.mxu0
      %v5000 = vpop.f32.mrf.mxu0
      %v5001 = vadd.f32 0.0, %v5000
      %v5002 = vpop.f32.mrf.mxu0
      %5003 = vmatprep.mubr.bf16.mxu0 0
      %5004 = vmatmul.mubr.bf16.gmra.mxu0 %v4330
      %v5005 = vpop.f32.mrf.mxu0
      %v5006 = vadd.f32 0.0, %v5005
      %v5007 = vpop.f32.mrf.mxu0
      %v5008 = vpop.f32.mrf.mxu0
      %v5009 = vadd.f32 0.0, %v5008
      %v5010 = vpop.f32.mrf.mxu0
      %5011 = vmatprep.mubr.bf16.mxu0 0
      %5012 = vmatmul.mubr.bf16.gmra.mxu0 %v4333
      %v5013 = vpop.f32.mrf.mxu0
      %v5014 = vadd.f32 0.0, %v5013
      %v5015 = vpop.f32.mrf.mxu0
      %v5016 = vpop.f32.mrf.mxu0
      %v5017 = vadd.f32 0.0, %v5016
      %v5018 = vpop.f32.mrf.mxu0
      %5019 = vmatprep.mubr.bf16.mxu0 0
      %5020 = vmatmul.mubr.bf16.gmra.mxu0 %v4336
      %v5021 = vpop.f32.mrf.mxu0
      %v5022 = vadd.f32 0.0, %v5021
      %v5023 = vpop.f32.mrf.mxu0
      %v5024 = vpop.f32.mrf.mxu0
      %v5025 = vadd.f32 0.0, %v5024
      %v5026 = vpop.f32.mrf.mxu0
      %5027 = vmatprep.mubr.bf16.mxu0 0
      %5028 = vmatmul.mubr.bf16.gmra.mxu0 %v4339
      %v5029 = vpop.f32.mrf.mxu0
      %v5030 = vadd.f32 0.0, %v5029
      %v5031 = vpop.f32.mrf.mxu0
      %v5032 = vpop.f32.mrf.mxu0
      %v5033 = vadd.f32 0.0, %v5032
      %v5034 = vpop.f32.mrf.mxu0
      %5035 = vmatprep.mubr.bf16.mxu0 0
      %5036 = vmatmul.mubr.bf16.gmra.mxu0 %v4342
      %v5037 = vpop.f32.mrf.mxu0
      %v5038 = vadd.f32 0.0, %v5037
      %v5039 = vpop.f32.mrf.mxu0
      %v5040 = vpop.f32.mrf.mxu0
      %v5041 = vadd.f32 0.0, %v5040
      %v5042 = vpop.f32.mrf.mxu0
      %5043 = vmatprep.mubr.bf16.mxu0 0
      %5044 = vmatmul.mubr.bf16.gmra.mxu0 %v4345
      %v5045 = vpop.f32.mrf.mxu0
      %v5046 = vadd.f32 0.0, %v5045
      %v5047 = vpop.f32.mrf.mxu0
      %v5048 = vpop.f32.mrf.mxu0
      %v5049 = vadd.f32 0.0, %v5048
      %v5050 = vpop.f32.mrf.mxu0
      %5051 = vmatprep.mubr.bf16.mxu0 0
      %5052 = vmatmul.mubr.bf16.gmra.mxu0 %v4348
      %v5053 = vpop.f32.mrf.mxu0
      %v5054 = vadd.f32 0.0, %v5053
      %v5055 = vpop.f32.mrf.mxu0
      %v5056 = vpop.f32.mrf.mxu0
      %v5057 = vadd.f32 0.0, %v5056
      %v5058 = vpop.f32.mrf.mxu0
      %5059 = vmatprep.mubr.bf16.mxu0 0
      %5060 = vmatmul.mubr.bf16.gmra.mxu0 %v4351
      %v5061 = vpop.f32.mrf.mxu0
      %v5062 = vadd.f32 0.0, %v5061
      %v5063 = vpop.f32.mrf.mxu0
      %v5064 = vpop.f32.mrf.mxu0
      %v5065 = vadd.f32 0.0, %v5064
      %v5066 = vpop.f32.mrf.mxu0
      %5067 = vmatprep.mubr.bf16.mxu0 0
      %5068 = vmatmul.mubr.bf16.gmra.mxu0 %v4354
      %v5069 = vpop.f32.mrf.mxu0
      %v5070 = vadd.f32 0.0, %v5069
      %v5071 = vpop.f32.mrf.mxu0
      %v5072 = vpop.f32.mrf.mxu0
      %v5073 = vadd.f32 0.0, %v5072
      %v5074 = vpop.f32.mrf.mxu0
      %5075 = vmatprep.mubr.bf16.mxu0 0
      %5076 = vmatmul.mubr.bf16.gmra.mxu0 %v4357
      %v5077 = vpop.f32.mrf.mxu0
      %v5078 = vadd.f32 0.0, %v5077
      %v5079 = vpop.f32.mrf.mxu0
      %v5080 = vpop.f32.mrf.mxu0
      %v5081 = vadd.f32 0.0, %v5080
      %v5082 = vpop.f32.mrf.mxu0
      %5083 = vmatprep.mubr.bf16.mxu0 0
      %5084 = vmatmul.mubr.bf16.gmra.mxu0 %v4360
      %v5085 = vpop.f32.mrf.mxu0
      %v5086 = vadd.f32 0.0, %v5085
      %v5087 = vpop.f32.mrf.mxu0
      %v5088 = vpop.f32.mrf.mxu0
      %v5089 = vadd.f32 0.0, %v5088
      %v5090 = vpop.f32.mrf.mxu0
      %5091 = vmatprep.mubr.bf16.mxu0 0
      %5092 = vmatmul.mubr.bf16.gmra.mxu0 %v4363
      %v5093 = vpop.f32.mrf.mxu0
      %v5094 = vadd.f32 0.0, %v5093
      %v5095 = vpop.f32.mrf.mxu0
      %v5096 = vpop.f32.mrf.mxu0
      %v5097 = vadd.f32 0.0, %v5096
      %v5098 = vpop.f32.mrf.mxu0
      %5099 = vmatprep.mubr.bf16.mxu0 0
      %5100 = vmatmul.mubr.bf16.gmra.mxu0 %v4366
      %v5101 = vpop.f32.mrf.mxu0
      %v5102 = vadd.f32 0.0, %v5101
      %v5103 = vpop.f32.mrf.mxu0
      %v5104 = vpop.f32.mrf.mxu0
      %v5105 = vadd.f32 0.0, %v5104
      %v5106 = vpop.f32.mrf.mxu0
      %5107 = vdwg.mxu0
      %5108 = vst [vmem:[%s177] sm:$0xff] %v4403
      %5109 = vst [vmem:[%s177 + $0x8] sm:$0xff] %v4405
      %5110 = vst [vmem:[%s177 + $0x10] sm:$0xff] %v4596
      %5111 = vst [vmem:[%s177 + $0x18] sm:$0xff] %v4598
      %5112 = vst [vmem:[%s177 + $0x20] sm:$0xff] %v4789
      %5113 = vst [vmem:[%s177 + $0x28] sm:$0xff] %v4791
      %vm5114 = vcmask 130048
      %5115 = vst.msk [vmem:[%s177 + $0x30] sm:$0xff] %vm5114, %v4982
      %5116 = vst [vmem:[%s177 + $0x38] sm:$0xff] %v4407
      %5117 = vst [vmem:[%s177 + $0x40] sm:$0xff] %v4409
      %5118 = vst [vmem:[%s177 + $0x48] sm:$0xff] %v4600
      %5119 = vst [vmem:[%s177 + $0x50] sm:$0xff] %v4602
      %5120 = vst [vmem:[%s177 + $0x58] sm:$0xff] %v4793
      %5121 = vst [vmem:[%s177 + $0x60] sm:$0xff] %v4795
      %5122 = vst.msk [vmem:[%s177 + $0x68] sm:$0xff] %vm5114, %v4985
      %5123 = vst [vmem:[%s177 + $0x70] sm:$0xff] %v4413
      %5124 = vst [vmem:[%s177 + $0x78] sm:$0xff] %v4415
      %5125 = vst [vmem:[%s177 + $0x80] sm:$0xff] %v4606
      %5126 = vst [vmem:[%s177 + $0x88] sm:$0xff] %v4608
      %5127 = vst [vmem:[%s177 + $0x90] sm:$0xff] %v4799
      %5128 = vst [vmem:[%s177 + $0x98] sm:$0xff] %v4801
      %5129 = vst.msk [vmem:[%s177 + $0xa0] sm:$0xff] %vm5114, %v4990
      %5130 = vst [vmem:[%s177 + $0xa8] sm:$0xff] %v4417
      %5131 = vst [vmem:[%s177 + $0xb0] sm:$0xff] %v4419
      %5132 = vst [vmem:[%s177 + $0xb8] sm:$0xff] %v4610
      %5133 = vst [vmem:[%s177 + $0xc0] sm:$0xff] %v4612
      %5134 = vst [vmem:[%s177 + $0xc8] sm:$0xff] %v4803
      %5135 = vst [vmem:[%s177 + $0xd0] sm:$0xff] %v4805
      %5136 = vst.msk [vmem:[%s177 + $0xd8] sm:$0xff] %vm5114, %v4993
      %5137 = vst [vmem:[%s177 + $0xe0] sm:$0xff] %v4423
      %5138 = vst [vmem:[%s177 + $0xe8] sm:$0xff] %v4425
      %5139 = vst [vmem:[%s177 + $0xf0] sm:$0xff] %v4616
      %5140 = vst [vmem:[%s177 + $0xf8] sm:$0xff] %v4618
      %5141 = vst [vmem:[%s177 + $0x100] sm:$0xff] %v4809
      %5142 = vst [vmem:[%s177 + $0x108] sm:$0xff] %v4811
      %5143 = vst.msk [vmem:[%s177 + $0x110] sm:$0xff] %vm5114, %v4998
      %5144 = vst [vmem:[%s177 + $0x118] sm:$0xff] %v4427
      %5145 = vst [vmem:[%s177 + $0x120] sm:$0xff] %v4429
      %5146 = vst [vmem:[%s177 + $0x128] sm:$0xff] %v4620
      %5147 = vst [vmem:[%s177 + $0x130] sm:$0xff] %v4622
      %5148 = vst [vmem:[%s177 + $0x138] sm:$0xff] %v4813
      %5149 = vst [vmem:[%s177 + $0x140] sm:$0xff] %v4815
      %5150 = vst.msk [vmem:[%s177 + $0x148] sm:$0xff] %vm5114, %v5001
      %5151 = vst [vmem:[%s177 + $0x150] sm:$0xff] %v4433
      %5152 = vst [vmem:[%s177 + $0x158] sm:$0xff] %v4435
      %5153 = vst [vmem:[%s177 + $0x160] sm:$0xff] %v4626
      %5154 = vst [vmem:[%s177 + $0x168] sm:$0xff] %v4628
      %5155 = vst [vmem:[%s177 + $0x170] sm:$0xff] %v4819
      %5156 = vst [vmem:[%s177 + $0x178] sm:$0xff] %v4821
      %5157 = vst.msk [vmem:[%s177 + $0x180] sm:$0xff] %vm5114, %v5006
      %5158 = vst [vmem:[%s177 + $0x188] sm:$0xff] %v4437
      %5159 = vst [vmem:[%s177 + $0x190] sm:$0xff] %v4439
      %5160 = vst [vmem:[%s177 + $0x198] sm:$0xff] %v4630
      %5161 = vst [vmem:[%s177 + $0x1a0] sm:$0xff] %v4632
      %5162 = vst [vmem:[%s177 + $0x1a8] sm:$0xff] %v4823
      %5163 = vst [vmem:[%s177 + $0x1b0] sm:$0xff] %v4825
      %5164 = vst.msk [vmem:[%s177 + $0x1b8] sm:$0xff] %vm5114, %v5009
      %5165 = vst [vmem:[%s177 + $0x1c0] sm:$0xff] %v4443
      %5166 = vst [vmem:[%s177 + $0x1c8] sm:$0xff] %v4445
      %5167 = vst [vmem:[%s177 + $0x1d0] sm:$0xff] %v4636
      %5168 = vst [vmem:[%s177 + $0x1d8] sm:$0xff] %v4638
      %5169 = vst [vmem:[%s177 + $0x1e0] sm:$0xff] %v4829
      %5170 = vst [vmem:[%s177 + $0x1e8] sm:$0xff] %v4831
      %5171 = vst.msk [vmem:[%s177 + $0x1f0] sm:$0xff] %vm5114, %v5014
      %5172 = vst [vmem:[%s177 + $0x1f8] sm:$0xff] %v4447
      %5173 = vst [vmem:[%s177 + $0x200] sm:$0xff] %v4449
      %5174 = vst [vmem:[%s177 + $0x208] sm:$0xff] %v4640
      %5175 = vst [vmem:[%s177 + $0x210] sm:$0xff] %v4642
      %5176 = vst [vmem:[%s177 + $0x218] sm:$0xff] %v4833
      %5177 = vst [vmem:[%s177 + $0x220] sm:$0xff] %v4835
      %5178 = vst.msk [vmem:[%s177 + $0x228] sm:$0xff] %vm5114, %v5017
      %5179 = vst [vmem:[%s177 + $0x230] sm:$0xff] %v4453
      %5180 = vst [vmem:[%s177 + $0x238] sm:$0xff] %v4455
      %5181 = vst [vmem:[%s177 + $0x240] sm:$0xff] %v4646
      %5182 = vst [vmem:[%s177 + $0x248] sm:$0xff] %v4648
      %5183 = vst [vmem:[%s177 + $0x250] sm:$0xff] %v4839
      %5184 = vst [vmem:[%s177 + $0x258] sm:$0xff] %v4841
      %5185 = vst.msk [vmem:[%s177 + $0x260] sm:$0xff] %vm5114, %v5022
      %5186 = vst [vmem:[%s177 + $0x268] sm:$0xff] %v4457
      %5187 = vst [vmem:[%s177 + $0x270] sm:$0xff] %v4459
      %5188 = vst [vmem:[%s177 + $0x278] sm:$0xff] %v4650
      %5189 = vst [vmem:[%s177 + $0x280] sm:$0xff] %v4652
      %5190 = vst [vmem:[%s177 + $0x288] sm:$0xff] %v4843
      %5191 = vst [vmem:[%s177 + $0x290] sm:$0xff] %v4845
      %5192 = vst.msk [vmem:[%s177 + $0x298] sm:$0xff] %vm5114, %v5025
      %5193 = vst [vmem:[%s177 + $0x2a0] sm:$0xff] %v4463
      %5194 = vst [vmem:[%s177 + $0x2a8] sm:$0xff] %v4465
      %5195 = vst [vmem:[%s177 + $0x2b0] sm:$0xff] %v4656
      %5196 = vst [vmem:[%s177 + $0x2b8] sm:$0xff] %v4658
      %5197 = vst [vmem:[%s177 + $0x2c0] sm:$0xff] %v4849
      %5198 = vst [vmem:[%s177 + $0x2c8] sm:$0xff] %v4851
      %5199 = vst.msk [vmem:[%s177 + $0x2d0] sm:$0xff] %vm5114, %v5030
      %5200 = vst [vmem:[%s177 + $0x2d8] sm:$0xff] %v4467
      %5201 = vst [vmem:[%s177 + $0x2e0] sm:$0xff] %v4469
      %5202 = vst [vmem:[%s177 + $0x2e8] sm:$0xff] %v4660
      %5203 = vst [vmem:[%s177 + $0x2f0] sm:$0xff] %v4662
      %5204 = vst [vmem:[%s177 + $0x2f8] sm:$0xff] %v4853
      %5205 = vst [vmem:[%s177 + $0x300] sm:$0xff] %v4855
      %5206 = vst.msk [vmem:[%s177 + $0x308] sm:$0xff] %vm5114, %v5033
      %5207 = vst [vmem:[%s177 + $0x310] sm:$0xff] %v4473
      %5208 = vst [vmem:[%s177 + $0x318] sm:$0xff] %v4475
      %5209 = vst [vmem:[%s177 + $0x320] sm:$0xff] %v4666
      %5210 = vst [vmem:[%s177 + $0x328] sm:$0xff] %v4668
      %5211 = vst [vmem:[%s177 + $0x330] sm:$0xff] %v4859
      %5212 = vst [vmem:[%s177 + $0x338] sm:$0xff] %v4861
      %5213 = vst.msk [vmem:[%s177 + $0x340] sm:$0xff] %vm5114, %v5038
      %5214 = vst [vmem:[%s177 + $0x348] sm:$0xff] %v4477
      %5215 = vst [vmem:[%s177 + $0x350] sm:$0xff] %v4479
      %5216 = vst [vmem:[%s177 + $0x358] sm:$0xff] %v4670
      %5217 = vst [vmem:[%s177 + $0x360] sm:$0xff] %v4672
      %5218 = vst [vmem:[%s177 + $0x368] sm:$0xff] %v4863
      %5219 = vst [vmem:[%s177 + $0x370] sm:$0xff] %v4865
      %5220 = vst.msk [vmem:[%s177 + $0x378] sm:$0xff] %vm5114, %v5041
      %5221 = vst [vmem:[%s177 + $0x380] sm:$0xff] %v4483
      %5222 = vst [vmem:[%s177 + $0x388] sm:$0xff] %v4485
      %5223 = vst [vmem:[%s177 + $0x390] sm:$0xff] %v4676
      %5224 = vst [vmem:[%s177 + $0x398] sm:$0xff] %v4678
      %5225 = vst [vmem:[%s177 + $0x3a0] sm:$0xff] %v4869
      %5226 = vst [vmem:[%s177 + $0x3a8] sm:$0xff] %v4871
      %5227 = vst.msk [vmem:[%s177 + $0x3b0] sm:$0xff] %vm5114, %v5046
      %5228 = vst [vmem:[%s177 + $0x3b8] sm:$0xff] %v4487
      %5229 = vst [vmem:[%s177 + $0x3c0] sm:$0xff] %v4489
      %5230 = vst [vmem:[%s177 + $0x3c8] sm:$0xff] %v4680
      %5231 = vst [vmem:[%s177 + $0x3d0] sm:$0xff] %v4682
      %5232 = vst [vmem:[%s177 + $0x3d8] sm:$0xff] %v4873
      %5233 = vst [vmem:[%s177 + $0x3e0] sm:$0xff] %v4875
      %5234 = vst.msk [vmem:[%s177 + $0x3e8] sm:$0xff] %vm5114, %v5049
      %5235 = vst [vmem:[%s177 + $0x3f0] sm:$0xff] %v4493
      %5236 = vst [vmem:[%s177 + $0x3f8] sm:$0xff] %v4495
      %5237 = vst [vmem:[%s177 + $0x400] sm:$0xff] %v4686
      %5238 = vst [vmem:[%s177 + $0x408] sm:$0xff] %v4688
      %5239 = vst [vmem:[%s177 + $0x410] sm:$0xff] %v4879
      %5240 = vst [vmem:[%s177 + $0x418] sm:$0xff] %v4881
      %5241 = vst.msk [vmem:[%s177 + $0x420] sm:$0xff] %vm5114, %v5054
      %5242 = vst [vmem:[%s177 + $0x428] sm:$0xff] %v4497
      %5243 = vst [vmem:[%s177 + $0x430] sm:$0xff] %v4499
      %5244 = vst [vmem:[%s177 + $0x438] sm:$0xff] %v4690
      %5245 = vst [vmem:[%s177 + $0x440] sm:$0xff] %v4692
      %5246 = vst [vmem:[%s177 + $0x448] sm:$0xff] %v4883
      %5247 = vst [vmem:[%s177 + $0x450] sm:$0xff] %v4885
      %5248 = vst.msk [vmem:[%s177 + $0x458] sm:$0xff] %vm5114, %v5057
      %5249 = vst [vmem:[%s177 + $0x460] sm:$0xff] %v4503
      %5250 = vst [vmem:[%s177 + $0x468] sm:$0xff] %v4505
      %5251 = vst [vmem:[%s177 + $0x470] sm:$0xff] %v4696
      %5252 = vst [vmem:[%s177 + $0x478] sm:$0xff] %v4698
      %5253 = vst [vmem:[%s177 + $0x480] sm:$0xff] %v4889
      %5254 = vst [vmem:[%s177 + $0x488] sm:$0xff] %v4891
      %5255 = vst.msk [vmem:[%s177 + $0x490] sm:$0xff] %vm5114, %v5062
      %5256 = vst [vmem:[%s177 + $0x498] sm:$0xff] %v4507
      %5257 = vst [vmem:[%s177 + $0x4a0] sm:$0xff] %v4509
      %5258 = vst [vmem:[%s177 + $0x4a8] sm:$0xff] %v4700
      %5259 = vst [vmem:[%s177 + $0x4b0] sm:$0xff] %v4702
      %5260 = vst [vmem:[%s177 + $0x4b8] sm:$0xff] %v4893
      %5261 = vst [vmem:[%s177 + $0x4c0] sm:$0xff] %v4895
      %5262 = vst.msk [vmem:[%s177 + $0x4c8] sm:$0xff] %vm5114, %v5065
      %5263 = vst [vmem:[%s177 + $0x4d0] sm:$0xff] %v4513
      %5264 = vst [vmem:[%s177 + $0x4d8] sm:$0xff] %v4515
      %5265 = vst [vmem:[%s177 + $0x4e0] sm:$0xff] %v4706
      %5266 = vst [vmem:[%s177 + $0x4e8] sm:$0xff] %v4708
      %5267 = vst [vmem:[%s177 + $0x4f0] sm:$0xff] %v4899
      %5268 = vst [vmem:[%s177 + $0x4f8] sm:$0xff] %v4901
      %5269 = vst.msk [vmem:[%s177 + $0x500] sm:$0xff] %vm5114, %v5070
      %5270 = vst [vmem:[%s177 + $0x508] sm:$0xff] %v4517
      %5271 = vst [vmem:[%s177 + $0x510] sm:$0xff] %v4519
      %5272 = vst [vmem:[%s177 + $0x518] sm:$0xff] %v4710
      %5273 = vst [vmem:[%s177 + $0x520] sm:$0xff] %v4712
      %5274 = vst [vmem:[%s177 + $0x528] sm:$0xff] %v4903
      %5275 = vst [vmem:[%s177 + $0x530] sm:$0xff] %v4905
      %5276 = vst.msk [vmem:[%s177 + $0x538] sm:$0xff] %vm5114, %v5073
      %5277 = vst [vmem:[%s177 + $0x540] sm:$0xff] %v4523
      %5278 = vst [vmem:[%s177 + $0x548] sm:$0xff] %v4525
      %5279 = vst [vmem:[%s177 + $0x550] sm:$0xff] %v4716
      %5280 = vst [vmem:[%s177 + $0x558] sm:$0xff] %v4718
      %5281 = vst [vmem:[%s177 + $0x560] sm:$0xff] %v4909
      %5282 = vst [vmem:[%s177 + $0x568] sm:$0xff] %v4911
      %5283 = vst.msk [vmem:[%s177 + $0x570] sm:$0xff] %vm5114, %v5078
      %5284 = vst [vmem:[%s177 + $0x578] sm:$0xff] %v4527
      %5285 = vst [vmem:[%s177 + $0x580] sm:$0xff] %v4529
      %5286 = vst [vmem:[%s177 + $0x588] sm:$0xff] %v4720
      %5287 = vst [vmem:[%s177 + $0x590] sm:$0xff] %v4722
      %5288 = vst [vmem:[%s177 + $0x598] sm:$0xff] %v4913
      %5289 = vst [vmem:[%s177 + $0x5a0] sm:$0xff] %v4915
      %5290 = vst.msk [vmem:[%s177 + $0x5a8] sm:$0xff] %vm5114, %v5081
      %5291 = vst [vmem:[%s177 + $0x5b0] sm:$0xff] %v4533
      %5292 = vst [vmem:[%s177 + $0x5b8] sm:$0xff] %v4535
      %5293 = vst [vmem:[%s177 + $0x5c0] sm:$0xff] %v4726
      %5294 = vst [vmem:[%s177 + $0x5c8] sm:$0xff] %v4728
      %5295 = vst [vmem:[%s177 + $0x5d0] sm:$0xff] %v4919
      %5296 = vst [vmem:[%s177 + $0x5d8] sm:$0xff] %v4921
      %5297 = vst.msk [vmem:[%s177 + $0x5e0] sm:$0xff] %vm5114, %v5086
      %5298 = vst [vmem:[%s177 + $0x5e8] sm:$0xff] %v4537
      %5299 = vst [vmem:[%s177 + $0x5f0] sm:$0xff] %v4539
      %5300 = vst [vmem:[%s177 + $0x5f8] sm:$0xff] %v4730
      %5301 = vst [vmem:[%s177 + $0x600] sm:$0xff] %v4732
      %5302 = vst [vmem:[%s177 + $0x608] sm:$0xff] %v4923
      %5303 = vst [vmem:[%s177 + $0x610] sm:$0xff] %v4925
      %5304 = vst.msk [vmem:[%s177 + $0x618] sm:$0xff] %vm5114, %v5089
      %5305 = vst [vmem:[%s177 + $0x620] sm:$0xff] %v4543
      %5306 = vst [vmem:[%s177 + $0x628] sm:$0xff] %v4545
      %5307 = vst [vmem:[%s177 + $0x630] sm:$0xff] %v4736
      %5308 = vst [vmem:[%s177 + $0x638] sm:$0xff] %v4738
      %5309 = vst [vmem:[%s177 + $0x640] sm:$0xff] %v4929
      %5310 = vst [vmem:[%s177 + $0x648] sm:$0xff] %v4931
      %5311 = vst.msk [vmem:[%s177 + $0x650] sm:$0xff] %vm5114, %v5094
      %5312 = vst [vmem:[%s177 + $0x658] sm:$0xff] %v4547
      %5313 = vst [vmem:[%s177 + $0x660] sm:$0xff] %v4549
      %5314 = vst [vmem:[%s177 + $0x668] sm:$0xff] %v4740
      %5315 = vst [vmem:[%s177 + $0x670] sm:$0xff] %v4742
      %5316 = vst [vmem:[%s177 + $0x678] sm:$0xff] %v4933
      %5317 = vst [vmem:[%s177 + $0x680] sm:$0xff] %v4935
      %5318 = vst.msk [vmem:[%s177 + $0x688] sm:$0xff] %vm5114, %v5097
      %5319 = vst [vmem:[%s177 + $0x690] sm:$0xff] %v4553
      %5320 = vst [vmem:[%s177 + $0x698] sm:$0xff] %v4555
      %5321 = vst [vmem:[%s177 + $0x6a0] sm:$0xff] %v4746
      %5322 = vst [vmem:[%s177 + $0x6a8] sm:$0xff] %v4748
      %5323 = vst [vmem:[%s177 + $0x6b0] sm:$0xff] %v4939
      %5324 = vst [vmem:[%s177 + $0x6b8] sm:$0xff] %v4941
      %5325 = vst.msk [vmem:[%s177 + $0x6c0] sm:$0xff] %vm5114, %v5102
      %5326 = vst [vmem:[%s177 + $0x6c8] sm:$0xff] %v4557
      %5327 = vst [vmem:[%s177 + $0x6d0] sm:$0xff] %v4559
      %5328 = vst [vmem:[%s177 + $0x6d8] sm:$0xff] %v4750
      %5329 = vst [vmem:[%s177 + $0x6e0] sm:$0xff] %v4752
      %5330 = vst [vmem:[%s177 + $0x6e8] sm:$0xff] %v4943
      %5331 = vst [vmem:[%s177 + $0x6f0] sm:$0xff] %v4945
      %5332 = vst.msk [vmem:[%s177 + $0x6f8] sm:$0xff] %vm5114, %v5105
      %v5333 = vld [vmem:[%s3750] sm:$0xff]
      %v5334 = vld [vmem:[%s3750 + $0x8] sm:$0xff]
      %v5335 = vld [vmem:[%s3750 + $0x10] sm:$0xff]
      %v5336 = vld [vmem:[%s3750 + $0x18] sm:$0xf]
      %v5337 = vld [vmem:[%s3750 + $0x1c] sm:$0xff]
      %v5338 = vld [vmem:[%s3750 + $0x24] sm:$0xff]
      %v5339 = vld [vmem:[%s3750 + $0x2c] sm:$0xff]
      %v5340 = vld [vmem:[%s3750 + $0x34] sm:$0xf]
      %v5341 = vld [vmem:[%s3750 + $0x38] sm:$0xff]
      %v5342 = vld [vmem:[%s3750 + $0x40] sm:$0xff]
      %v5343 = vld [vmem:[%s3750 + $0x48] sm:$0xff]
      %v5344 = vld [vmem:[%s3750 + $0x50] sm:$0xf]
      %v5345 = vld [vmem:[%s3750 + $0x54] sm:$0xff]
      %v5346 = vld [vmem:[%s3750 + $0x5c] sm:$0xff]
      %v5347 = vld [vmem:[%s3750 + $0x64] sm:$0xff]
      %v5348 = vld [vmem:[%s3750 + $0x6c] sm:$0xf]
      %v5349 = vld [vmem:[%s3750 + $0x70] sm:$0xff]
      %v5350 = vld [vmem:[%s3750 + $0x78] sm:$0xff]
      %v5351 = vld [vmem:[%s3750 + $0x80] sm:$0xff]
      %v5352 = vld [vmem:[%s3750 + $0x88] sm:$0xf]
      %v5353 = vld [vmem:[%s3750 + $0x8c] sm:$0xff]
      %v5354 = vld [vmem:[%s3750 + $0x94] sm:$0xff]
      %v5355 = vld [vmem:[%s3750 + $0x9c] sm:$0xff]
      %v5356 = vld [vmem:[%s3750 + $0xa4] sm:$0xf]
      %v5357 = vld [vmem:[%s3750 + $0xa8] sm:$0xff]
      %v5358 = vld [vmem:[%s3750 + $0xb0] sm:$0xff]
      %v5359 = vld [vmem:[%s3750 + $0xb8] sm:$0xff]
      %v5360 = vld [vmem:[%s3750 + $0xc0] sm:$0xf]
      %v5361 = vld [vmem:[%s3750 + $0xc4] sm:$0xff]
      %v5362 = vld [vmem:[%s3750 + $0xcc] sm:$0xff]
      %v5363 = vld [vmem:[%s3750 + $0xd4] sm:$0xff]
      %v5364 = vld [vmem:[%s3750 + $0xdc] sm:$0xf]
      %v5365 = vld [vmem:[%s3750 + $0xe0] sm:$0xff]
      %v5366 = vld [vmem:[%s3750 + $0xe8] sm:$0xff]
      %v5367 = vld [vmem:[%s3750 + $0xf0] sm:$0xff]
      %v5368 = vld [vmem:[%s3750 + $0xf8] sm:$0xf]
      %v5369 = vld [vmem:[%s3750 + $0xfc] sm:$0xff]
      %v5370 = vld [vmem:[%s3750 + $0x104] sm:$0xff]
      %v5371 = vld [vmem:[%s3750 + $0x10c] sm:$0xff]
      %v5372 = vld [vmem:[%s3750 + $0x114] sm:$0xf]
      %v5373 = vld [vmem:[%s3750 + $0x118] sm:$0xff]
      %v5374 = vld [vmem:[%s3750 + $0x120] sm:$0xff]
      %v5375 = vld [vmem:[%s3750 + $0x128] sm:$0xff]
      %v5376 = vld [vmem:[%s3750 + $0x130] sm:$0xf]
      %v5377 = vld [vmem:[%s3750 + $0x134] sm:$0xff]
      %v5378 = vld [vmem:[%s3750 + $0x13c] sm:$0xff]
      %v5379 = vld [vmem:[%s3750 + $0x144] sm:$0xff]
      %v5380 = vld [vmem:[%s3750 + $0x14c] sm:$0xf]
      %v5429 = vunpack.c.l.b16 %v5333
      %v5430 = vunpack.c.h.b16 %v5333
      %v5431 = vunpack.c.l.b16 %v5334
      %v5432 = vunpack.c.h.b16 %v5334
      %v5433 = vunpack.c.l.b16 %v5335
      %v5434 = vunpack.c.h.b16 %v5335
      %v5435 = vunpack.c.l.b16 %v5336
      %v5436 = vunpack.c.l.b16 %v5337
      %v5437 = vunpack.c.h.b16 %v5337
      %v5438 = vunpack.c.l.b16 %v5338
      %v5439 = vunpack.c.h.b16 %v5338
      %v5440 = vunpack.c.l.b16 %v5339
      %v5441 = vunpack.c.h.b16 %v5339
      %v5442 = vunpack.c.l.b16 %v5340
      %v5443 = vunpack.c.l.b16 %v5341
      %v5444 = vunpack.c.h.b16 %v5341
      %v5445 = vunpack.c.l.b16 %v5342
      %v5446 = vunpack.c.h.b16 %v5342
      %v5447 = vunpack.c.l.b16 %v5343
      %v5448 = vunpack.c.h.b16 %v5343
      %v5449 = vunpack.c.l.b16 %v5344
      %v5450 = vunpack.c.l.b16 %v5345
      %v5451 = vunpack.c.h.b16 %v5345
      %v5452 = vunpack.c.l.b16 %v5346
      %v5453 = vunpack.c.h.b16 %v5346
      %v5454 = vunpack.c.l.b16 %v5347
      %v5455 = vunpack.c.h.b16 %v5347
      %v5456 = vunpack.c.l.b16 %v5348
      %v5457 = vunpack.c.l.b16 %v5349
      %v5458 = vunpack.c.h.b16 %v5349
      %v5459 = vunpack.c.l.b16 %v5350
      %v5460 = vunpack.c.h.b16 %v5350
      %v5461 = vunpack.c.l.b16 %v5351
      %v5462 = vunpack.c.h.b16 %v5351
      %v5463 = vunpack.c.l.b16 %v5352
      %v5464 = vunpack.c.l.b16 %v5353
      %v5465 = vunpack.c.h.b16 %v5353
      %v5466 = vunpack.c.l.b16 %v5354
      %v5467 = vunpack.c.h.b16 %v5354
      %v5468 = vunpack.c.l.b16 %v5355
      %v5469 = vunpack.c.h.b16 %v5355
      %v5470 = vunpack.c.l.b16 %v5356
      %v5471 = vunpack.c.l.b16 %v5357
      %v5472 = vunpack.c.h.b16 %v5357
      %v5473 = vunpack.c.l.b16 %v5358
      %v5474 = vunpack.c.h.b16 %v5358
      %v5475 = vunpack.c.l.b16 %v5359
      %v5476 = vunpack.c.h.b16 %v5359
      %v5477 = vunpack.c.l.b16 %v5360
      %v5478 = vunpack.c.l.b16 %v5361
      %v5479 = vunpack.c.h.b16 %v5361
      %v5480 = vunpack.c.l.b16 %v5362
      %v5481 = vunpack.c.h.b16 %v5362
      %v5482 = vunpack.c.l.b16 %v5363
      %v5483 = vunpack.c.h.b16 %v5363
      %v5484 = vunpack.c.l.b16 %v5364
      %v5485 = vunpack.c.l.b16 %v5365
      %v5486 = vunpack.c.h.b16 %v5365
      %v5487 = vunpack.c.l.b16 %v5366
      %v5488 = vunpack.c.h.b16 %v5366
      %v5489 = vunpack.c.l.b16 %v5367
      %v5490 = vunpack.c.h.b16 %v5367
      %v5491 = vunpack.c.l.b16 %v5368
      %v5492 = vunpack.c.l.b16 %v5369
      %v5493 = vunpack.c.h.b16 %v5369
      %v5494 = vunpack.c.l.b16 %v5370
      %v5495 = vunpack.c.h.b16 %v5370
      %v5496 = vunpack.c.l.b16 %v5371
      %v5497 = vunpack.c.h.b16 %v5371
      %v5498 = vunpack.c.l.b16 %v5372
      %v5499 = vunpack.c.l.b16 %v5373
      %v5500 = vunpack.c.h.b16 %v5373
      %v5501 = vunpack.c.l.b16 %v5374
      %v5502 = vunpack.c.h.b16 %v5374
      %v5503 = vunpack.c.l.b16 %v5375
      %v5504 = vunpack.c.h.b16 %v5375
      %v5505 = vunpack.c.l.b16 %v5376
      %v5506 = vunpack.c.l.b16 %v5377
      %v5507 = vunpack.c.h.b16 %v5377
      %v5508 = vunpack.c.l.b16 %v5378
      %v5509 = vunpack.c.h.b16 %v5378
      %v5510 = vunpack.c.l.b16 %v5379
      %v5511 = vunpack.c.h.b16 %v5379
      %v5512 = vunpack.c.l.b16 %v5380
      %v5513 = vpack.c.b16 %v5436, %v5429
      %v5514 = vpack.c.b16 %v5437, %v5430
      %v5515 = vpack.c.b16 %v5438, %v5431
      %v5516 = vpack.c.b16 %v5439, %v5432
      %v5517 = vpack.c.b16 %v5440, %v5433
      %v5518 = vpack.c.b16 %v5441, %v5434
      %v5519 = vpack.c.b16 %v5442, %v5435
      %v5520 = vpack.c.b16 %v5450, %v5443
      %v5521 = vpack.c.b16 %v5451, %v5444
      %v5522 = vpack.c.b16 %v5452, %v5445
      %v5523 = vpack.c.b16 %v5453, %v5446
      %v5524 = vpack.c.b16 %v5454, %v5447
      %v5525 = vpack.c.b16 %v5455, %v5448
      %v5526 = vpack.c.b16 %v5456, %v5449
      %v5527 = vpack.c.b16 %v5464, %v5457
      %v5528 = vpack.c.b16 %v5465, %v5458
      %v5529 = vpack.c.b16 %v5466, %v5459
      %v5530 = vpack.c.b16 %v5467, %v5460
      %v5531 = vpack.c.b16 %v5468, %v5461
      %v5532 = vpack.c.b16 %v5469, %v5462
      %v5533 = vpack.c.b16 %v5470, %v5463
      %v5534 = vpack.c.b16 %v5478, %v5471
      %v5535 = vpack.c.b16 %v5479, %v5472
      %v5536 = vpack.c.b16 %v5480, %v5473
      %v5537 = vpack.c.b16 %v5481, %v5474
      %v5538 = vpack.c.b16 %v5482, %v5475
      %v5539 = vpack.c.b16 %v5483, %v5476
      %v5540 = vpack.c.b16 %v5484, %v5477
      %v5541 = vpack.c.b16 %v5492, %v5485
      %v5542 = vpack.c.b16 %v5493, %v5486
      %v5543 = vpack.c.b16 %v5494, %v5487
      %v5544 = vpack.c.b16 %v5495, %v5488
      %v5545 = vpack.c.b16 %v5496, %v5489
      %v5546 = vpack.c.b16 %v5497, %v5490
      %v5547 = vpack.c.b16 %v5498, %v5491
      %v5548 = vpack.c.b16 %v5506, %v5499
      %v5549 = vpack.c.b16 %v5507, %v5500
      %v5550 = vpack.c.b16 %v5508, %v5501
      %v5551 = vpack.c.b16 %v5509, %v5502
      %v5552 = vpack.c.b16 %v5510, %v5503
      %v5553 = vpack.c.b16 %v5511, %v5504
      %v5554 = vpack.c.b16 %v5512, %v5505
      %5597 = vmatprep.subr.bf16.mxu0 0
      %5598 = vmatpush1.bf16.msra.mxu0 0
      %5599 = vmatprep.subr.bf16.mxu0 0
      %5600 = vmatpush1.bf16.msra.mxu0 0
      %5601 = vmatprep.subr.bf16.mxu0 %v5549
      %5602 = vmatpush1.bf16.msra.mxu0 %v5548
      %5603 = vmatprep.subr.bf16.mxu0 %v5542
      %5604 = vmatpush1.bf16.msra.mxu0 %v5541
      %5605 = vmatprep.subr.bf16.mxu0 %v5535
      %5606 = vmatpush1.bf16.msra.mxu0 %v5534
      %5607 = vmatprep.subr.bf16.mxu0 %v5528
      %5608 = vmatpush1.bf16.msra.mxu0 %v5527
      %5609 = vmatprep.subr.bf16.mxu0 %v5521
      %5610 = vmatpush1.bf16.msra.mxu0 %v5520
      %5611 = vmatprep.subr.bf16.mxu0 %v5514
      %5612 = vmatpush1.bf16.msra.mxu0 %v5513
      %5613 = vmatprep.subr.bf16.mxu0 0
      %5614 = vmatpush2.bf16.msra.mxu0 0
      %5615 = vmatprep.subr.bf16.mxu0 0
      %5616 = vmatpush2.bf16.msra.mxu0 0
      %5617 = vmatprep.subr.bf16.mxu0 0
      %5618 = vmatpush2.bf16.msra.mxu0 0
      %5619 = vmatprep.subr.bf16.mxu0 0
      %5620 = vmatpush2.bf16.msra.mxu0 0
      %5621 = vmatprep.subr.bf16.mxu0 0
      %5622 = vmatpush2.bf16.msra.mxu0 0
      %5623 = vmatprep.subr.bf16.mxu0 0
      %5624 = vmatpush2.bf16.msra.mxu0 0
      %5625 = vmatprep.subr.bf16.mxu0 0
      %5626 = vmatpush2.bf16.msra.mxu0 0
      %5627 = vmatprep.subr.bf16.mxu0 0
      %5628 = vmatpush2.bf16.msra.mxu0 0
      %5629 = vmatprep.mubr.bf16.mxu0 0
      %5630 = vmatmul.mubr.bf16.gmra.mxu0 %v4321
      %v5631 = vpop.f32.mrf.mxu0
      %v5632 = vadd.f32 0.0, %v5631
      %v5633 = vpop.f32.mrf.mxu0
      %v5634 = vadd.f32 0.0, %v5633
      %v5635 = vpop.f32.mrf.mxu0
      %v5636 = vadd.f32 0.0, %v5635
      %v5637 = vpop.f32.mrf.mxu0
      %v5638 = vadd.f32 0.0, %v5637
      %5639 = vmatprep.mubr.bf16.mxu0 0
      %5640 = vmatmul.mubr.bf16.gmra.mxu0 %v4324
      %v5641 = vpop.f32.mrf.mxu0
      %v5642 = vadd.f32 0.0, %v5641
      %v5643 = vpop.f32.mrf.mxu0
      %v5644 = vadd.f32 0.0, %v5643
      %v5645 = vpop.f32.mrf.mxu0
      %v5646 = vadd.f32 0.0, %v5645
      %v5647 = vpop.f32.mrf.mxu0
      %v5648 = vadd.f32 0.0, %v5647
      %5649 = vmatprep.mubr.bf16.mxu0 0
      %5650 = vmatmul.mubr.bf16.gmra.mxu0 %v4327
      %v5651 = vpop.f32.mrf.mxu0
      %v5652 = vadd.f32 0.0, %v5651
      %v5653 = vpop.f32.mrf.mxu0
      %v5654 = vadd.f32 0.0, %v5653
      %v5655 = vpop.f32.mrf.mxu0
      %v5656 = vadd.f32 0.0, %v5655
      %v5657 = vpop.f32.mrf.mxu0
      %v5658 = vadd.f32 0.0, %v5657
      %5659 = vmatprep.mubr.bf16.mxu0 0
      %5660 = vmatmul.mubr.bf16.gmra.mxu0 %v4330
      %v5661 = vpop.f32.mrf.mxu0
      %v5662 = vadd.f32 0.0, %v5661
      %v5663 = vpop.f32.mrf.mxu0
      %v5664 = vadd.f32 0.0, %v5663
      %v5665 = vpop.f32.mrf.mxu0
      %v5666 = vadd.f32 0.0, %v5665
      %v5667 = vpop.f32.mrf.mxu0
      %v5668 = vadd.f32 0.0, %v5667
      %5669 = vmatprep.mubr.bf16.mxu0 0
      %5670 = vmatmul.mubr.bf16.gmra.mxu0 %v4333
      %v5671 = vpop.f32.mrf.mxu0
      %v5672 = vadd.f32 0.0, %v5671
      %v5673 = vpop.f32.mrf.mxu0
      %v5674 = vadd.f32 0.0, %v5673
      %v5675 = vpop.f32.mrf.mxu0
      %v5676 = vadd.f32 0.0, %v5675
      %v5677 = vpop.f32.mrf.mxu0
      %v5678 = vadd.f32 0.0, %v5677
      %5679 = vmatprep.mubr.bf16.mxu0 0
      %5680 = vmatmul.mubr.bf16.gmra.mxu0 %v4336
      %v5681 = vpop.f32.mrf.mxu0
      %v5682 = vadd.f32 0.0, %v5681
      %v5683 = vpop.f32.mrf.mxu0
      %v5684 = vadd.f32 0.0, %v5683
      %v5685 = vpop.f32.mrf.mxu0
      %v5686 = vadd.f32 0.0, %v5685
      %v5687 = vpop.f32.mrf.mxu0
      %v5688 = vadd.f32 0.0, %v5687
      %5689 = vmatprep.mubr.bf16.mxu0 0
      %5690 = vmatmul.mubr.bf16.gmra.mxu0 %v4339
      %v5691 = vpop.f32.mrf.mxu0
      %v5692 = vadd.f32 0.0, %v5691
      %v5693 = vpop.f32.mrf.mxu0
      %v5694 = vadd.f32 0.0, %v5693
      %v5695 = vpop.f32.mrf.mxu0
      %v5696 = vadd.f32 0.0, %v5695
      %v5697 = vpop.f32.mrf.mxu0
      %v5698 = vadd.f32 0.0, %v5697
      %5699 = vmatprep.mubr.bf16.mxu0 0
      %5700 = vmatmul.mubr.bf16.gmra.mxu0 %v4342
      %v5701 = vpop.f32.mrf.mxu0
      %v5702 = vadd.f32 0.0, %v5701
      %v5703 = vpop.f32.mrf.mxu0
      %v5704 = vadd.f32 0.0, %v5703
      %v5705 = vpop.f32.mrf.mxu0
      %v5706 = vadd.f32 0.0, %v5705
      %v5707 = vpop.f32.mrf.mxu0
      %v5708 = vadd.f32 0.0, %v5707
      %5709 = vmatprep.mubr.bf16.mxu0 0
      %5710 = vmatmul.mubr.bf16.gmra.mxu0 %v4345
      %v5711 = vpop.f32.mrf.mxu0
      %v5712 = vadd.f32 0.0, %v5711
      %v5713 = vpop.f32.mrf.mxu0
      %v5714 = vadd.f32 0.0, %v5713
      %v5715 = vpop.f32.mrf.mxu0
      %v5716 = vadd.f32 0.0, %v5715
      %v5717 = vpop.f32.mrf.mxu0
      %v5718 = vadd.f32 0.0, %v5717
      %5719 = vmatprep.mubr.bf16.mxu0 0
      %5720 = vmatmul.mubr.bf16.gmra.mxu0 %v4348
      %v5721 = vpop.f32.mrf.mxu0
      %v5722 = vadd.f32 0.0, %v5721
      %v5723 = vpop.f32.mrf.mxu0
      %v5724 = vadd.f32 0.0, %v5723
      %v5725 = vpop.f32.mrf.mxu0
      %v5726 = vadd.f32 0.0, %v5725
      %v5727 = vpop.f32.mrf.mxu0
      %v5728 = vadd.f32 0.0, %v5727
      %5729 = vmatprep.mubr.bf16.mxu0 0
      %5730 = vmatmul.mubr.bf16.gmra.mxu0 %v4351
      %v5731 = vpop.f32.mrf.mxu0
      %v5732 = vadd.f32 0.0, %v5731
      %v5733 = vpop.f32.mrf.mxu0
      %v5734 = vadd.f32 0.0, %v5733
      %v5735 = vpop.f32.mrf.mxu0
      %v5736 = vadd.f32 0.0, %v5735
      %v5737 = vpop.f32.mrf.mxu0
      %v5738 = vadd.f32 0.0, %v5737
      %5739 = vmatprep.mubr.bf16.mxu0 0
      %5740 = vmatmul.mubr.bf16.gmra.mxu0 %v4354
      %v5741 = vpop.f32.mrf.mxu0
      %v5742 = vadd.f32 0.0, %v5741
      %v5743 = vpop.f32.mrf.mxu0
      %v5744 = vadd.f32 0.0, %v5743
      %v5745 = vpop.f32.mrf.mxu0
      %v5746 = vadd.f32 0.0, %v5745
      %v5747 = vpop.f32.mrf.mxu0
      %v5748 = vadd.f32 0.0, %v5747
      %5749 = vmatprep.mubr.bf16.mxu0 0
      %5750 = vmatmul.mubr.bf16.gmra.mxu0 %v4357
      %v5751 = vpop.f32.mrf.mxu0
      %v5752 = vadd.f32 0.0, %v5751
      %v5753 = vpop.f32.mrf.mxu0
      %v5754 = vadd.f32 0.0, %v5753
      %v5755 = vpop.f32.mrf.mxu0
      %v5756 = vadd.f32 0.0, %v5755
      %v5757 = vpop.f32.mrf.mxu0
      %v5758 = vadd.f32 0.0, %v5757
      %5759 = vmatprep.mubr.bf16.mxu0 0
      %5760 = vmatmul.mubr.bf16.gmra.mxu0 %v4360
      %v5761 = vpop.f32.mrf.mxu0
      %v5762 = vadd.f32 0.0, %v5761
      %v5763 = vpop.f32.mrf.mxu0
      %v5764 = vadd.f32 0.0, %v5763
      %v5765 = vpop.f32.mrf.mxu0
      %v5766 = vadd.f32 0.0, %v5765
      %v5767 = vpop.f32.mrf.mxu0
      %v5768 = vadd.f32 0.0, %v5767
      %5769 = vmatprep.mubr.bf16.mxu0 0
      %5770 = vmatmul.mubr.bf16.gmra.mxu0 %v4363
      %v5771 = vpop.f32.mrf.mxu0
      %v5772 = vadd.f32 0.0, %v5771
      %v5773 = vpop.f32.mrf.mxu0
      %v5774 = vadd.f32 0.0, %v5773
      %v5775 = vpop.f32.mrf.mxu0
      %v5776 = vadd.f32 0.0, %v5775
      %v5777 = vpop.f32.mrf.mxu0
      %v5778 = vadd.f32 0.0, %v5777
      %5779 = vmatprep.mubr.bf16.mxu0 0
      %5780 = vmatmul.mubr.bf16.gmra.mxu0 %v4366
      %v5781 = vpop.f32.mrf.mxu0
      %v5782 = vadd.f32 0.0, %v5781
      %v5783 = vpop.f32.mrf.mxu0
      %v5784 = vadd.f32 0.0, %v5783
      %v5785 = vpop.f32.mrf.mxu0
      %v5786 = vadd.f32 0.0, %v5785
      %v5787 = vpop.f32.mrf.mxu0
      %v5788 = vadd.f32 0.0, %v5787
      %5789 = vdwg.mxu0
      %5790 = vmatprep.subr.bf16.mxu0 0
      %5791 = vmatpush1.bf16.msra.mxu0 0
      %5792 = vmatprep.subr.bf16.mxu0 0
      %5793 = vmatpush1.bf16.msra.mxu0 0
      %5794 = vmatprep.subr.bf16.mxu0 %v5551
      %5795 = vmatpush1.bf16.msra.mxu0 %v5550
      %5796 = vmatprep.subr.bf16.mxu0 %v5544
      %5797 = vmatpush1.bf16.msra.mxu0 %v5543
      %5798 = vmatprep.subr.bf16.mxu0 %v5537
      %5799 = vmatpush1.bf16.msra.mxu0 %v5536
      %5800 = vmatprep.subr.bf16.mxu0 %v5530
      %5801 = vmatpush1.bf16.msra.mxu0 %v5529
      %5802 = vmatprep.subr.bf16.mxu0 %v5523
      %5803 = vmatpush1.bf16.msra.mxu0 %v5522
      %5804 = vmatprep.subr.bf16.mxu0 %v5516
      %5805 = vmatpush1.bf16.msra.mxu0 %v5515
      %5806 = vmatprep.subr.bf16.mxu0 0
      %5807 = vmatpush2.bf16.msra.mxu0 0
      %5808 = vmatprep.subr.bf16.mxu0 0
      %5809 = vmatpush2.bf16.msra.mxu0 0
      %5810 = vmatprep.subr.bf16.mxu0 0
      %5811 = vmatpush2.bf16.msra.mxu0 0
      %5812 = vmatprep.subr.bf16.mxu0 0
      %5813 = vmatpush2.bf16.msra.mxu0 0
      %5814 = vmatprep.subr.bf16.mxu0 0
      %5815 = vmatpush2.bf16.msra.mxu0 0
      %5816 = vmatprep.subr.bf16.mxu0 0
      %5817 = vmatpush2.bf16.msra.mxu0 0
      %5818 = vmatprep.subr.bf16.mxu0 0
      %5819 = vmatpush2.bf16.msra.mxu0 0
      %5820 = vmatprep.subr.bf16.mxu0 0
      %5821 = vmatpush2.bf16.msra.mxu0 0
      %5822 = vmatprep.mubr.bf16.mxu0 0
      %5823 = vmatmul.mubr.bf16.gmra.mxu0 %v4321
      %v5824 = vpop.f32.mrf.mxu0
      %v5825 = vadd.f32 0.0, %v5824
      %v5826 = vpop.f32.mrf.mxu0
      %v5827 = vadd.f32 0.0, %v5826
      %v5828 = vpop.f32.mrf.mxu0
      %v5829 = vadd.f32 0.0, %v5828
      %v5830 = vpop.f32.mrf.mxu0
      %v5831 = vadd.f32 0.0, %v5830
      %5832 = vmatprep.mubr.bf16.mxu0 0
      %5833 = vmatmul.mubr.bf16.gmra.mxu0 %v4324
      %v5834 = vpop.f32.mrf.mxu0
      %v5835 = vadd.f32 0.0, %v5834
      %v5836 = vpop.f32.mrf.mxu0
      %v5837 = vadd.f32 0.0, %v5836
      %v5838 = vpop.f32.mrf.mxu0
      %v5839 = vadd.f32 0.0, %v5838
      %v5840 = vpop.f32.mrf.mxu0
      %v5841 = vadd.f32 0.0, %v5840
      %5842 = vmatprep.mubr.bf16.mxu0 0
      %5843 = vmatmul.mubr.bf16.gmra.mxu0 %v4327
      %v5844 = vpop.f32.mrf.mxu0
      %v5845 = vadd.f32 0.0, %v5844
      %v5846 = vpop.f32.mrf.mxu0
      %v5847 = vadd.f32 0.0, %v5846
      %v5848 = vpop.f32.mrf.mxu0
      %v5849 = vadd.f32 0.0, %v5848
      %v5850 = vpop.f32.mrf.mxu0
      %v5851 = vadd.f32 0.0, %v5850
      %5852 = vmatprep.mubr.bf16.mxu0 0
      %5853 = vmatmul.mubr.bf16.gmra.mxu0 %v4330
      %v5854 = vpop.f32.mrf.mxu0
      %v5855 = vadd.f32 0.0, %v5854
      %v5856 = vpop.f32.mrf.mxu0
      %v5857 = vadd.f32 0.0, %v5856
      %v5858 = vpop.f32.mrf.mxu0
      %v5859 = vadd.f32 0.0, %v5858
      %v5860 = vpop.f32.mrf.mxu0
      %v5861 = vadd.f32 0.0, %v5860
      %5862 = vmatprep.mubr.bf16.mxu0 0
      %5863 = vmatmul.mubr.bf16.gmra.mxu0 %v4333
      %v5864 = vpop.f32.mrf.mxu0
      %v5865 = vadd.f32 0.0, %v5864
      %v5866 = vpop.f32.mrf.mxu0
      %v5867 = vadd.f32 0.0, %v5866
      %v5868 = vpop.f32.mrf.mxu0
      %v5869 = vadd.f32 0.0, %v5868
      %v5870 = vpop.f32.mrf.mxu0
      %v5871 = vadd.f32 0.0, %v5870
      %5872 = vmatprep.mubr.bf16.mxu0 0
      %5873 = vmatmul.mubr.bf16.gmra.mxu0 %v4336
      %v5874 = vpop.f32.mrf.mxu0
      %v5875 = vadd.f32 0.0, %v5874
      %v5876 = vpop.f32.mrf.mxu0
      %v5877 = vadd.f32 0.0, %v5876
      %v5878 = vpop.f32.mrf.mxu0
      %v5879 = vadd.f32 0.0, %v5878
      %v5880 = vpop.f32.mrf.mxu0
      %v5881 = vadd.f32 0.0, %v5880
      %5882 = vmatprep.mubr.bf16.mxu0 0
      %5883 = vmatmul.mubr.bf16.gmra.mxu0 %v4339
      %v5884 = vpop.f32.mrf.mxu0
      %v5885 = vadd.f32 0.0, %v5884
      %v5886 = vpop.f32.mrf.mxu0
      %v5887 = vadd.f32 0.0, %v5886
      %v5888 = vpop.f32.mrf.mxu0
      %v5889 = vadd.f32 0.0, %v5888
      %v5890 = vpop.f32.mrf.mxu0
      %v5891 = vadd.f32 0.0, %v5890
      %5892 = vmatprep.mubr.bf16.mxu0 0
      %5893 = vmatmul.mubr.bf16.gmra.mxu0 %v4342
      %v5894 = vpop.f32.mrf.mxu0
      %v5895 = vadd.f32 0.0, %v5894
      %v5896 = vpop.f32.mrf.mxu0
      %v5897 = vadd.f32 0.0, %v5896
      %v5898 = vpop.f32.mrf.mxu0
      %v5899 = vadd.f32 0.0, %v5898
      %v5900 = vpop.f32.mrf.mxu0
      %v5901 = vadd.f32 0.0, %v5900
      %5902 = vmatprep.mubr.bf16.mxu0 0
      %5903 = vmatmul.mubr.bf16.gmra.mxu0 %v4345
      %v5904 = vpop.f32.mrf.mxu0
      %v5905 = vadd.f32 0.0, %v5904
      %v5906 = vpop.f32.mrf.mxu0
      %v5907 = vadd.f32 0.0, %v5906
      %v5908 = vpop.f32.mrf.mxu0
      %v5909 = vadd.f32 0.0, %v5908
      %v5910 = vpop.f32.mrf.mxu0
      %v5911 = vadd.f32 0.0, %v5910
      %5912 = vmatprep.mubr.bf16.mxu0 0
      %5913 = vmatmul.mubr.bf16.gmra.mxu0 %v4348
      %v5914 = vpop.f32.mrf.mxu0
      %v5915 = vadd.f32 0.0, %v5914
      %v5916 = vpop.f32.mrf.mxu0
      %v5917 = vadd.f32 0.0, %v5916
      %v5918 = vpop.f32.mrf.mxu0
      %v5919 = vadd.f32 0.0, %v5918
      %v5920 = vpop.f32.mrf.mxu0
      %v5921 = vadd.f32 0.0, %v5920
      %5922 = vmatprep.mubr.bf16.mxu0 0
      %5923 = vmatmul.mubr.bf16.gmra.mxu0 %v4351
      %v5924 = vpop.f32.mrf.mxu0
      %v5925 = vadd.f32 0.0, %v5924
      %v5926 = vpop.f32.mrf.mxu0
      %v5927 = vadd.f32 0.0, %v5926
      %v5928 = vpop.f32.mrf.mxu0
      %v5929 = vadd.f32 0.0, %v5928
      %v5930 = vpop.f32.mrf.mxu0
      %v5931 = vadd.f32 0.0, %v5930
      %5932 = vmatprep.mubr.bf16.mxu0 0
      %5933 = vmatmul.mubr.bf16.gmra.mxu0 %v4354
      %v5934 = vpop.f32.mrf.mxu0
      %v5935 = vadd.f32 0.0, %v5934
      %v5936 = vpop.f32.mrf.mxu0
      %v5937 = vadd.f32 0.0, %v5936
      %v5938 = vpop.f32.mrf.mxu0
      %v5939 = vadd.f32 0.0, %v5938
      %v5940 = vpop.f32.mrf.mxu0
      %v5941 = vadd.f32 0.0, %v5940
      %5942 = vmatprep.mubr.bf16.mxu0 0
      %5943 = vmatmul.mubr.bf16.gmra.mxu0 %v4357
      %v5944 = vpop.f32.mrf.mxu0
      %v5945 = vadd.f32 0.0, %v5944
      %v5946 = vpop.f32.mrf.mxu0
      %v5947 = vadd.f32 0.0, %v5946
      %v5948 = vpop.f32.mrf.mxu0
      %v5949 = vadd.f32 0.0, %v5948
      %v5950 = vpop.f32.mrf.mxu0
      %v5951 = vadd.f32 0.0, %v5950
      %5952 = vmatprep.mubr.bf16.mxu0 0
      %5953 = vmatmul.mubr.bf16.gmra.mxu0 %v4360
      %v5954 = vpop.f32.mrf.mxu0
      %v5955 = vadd.f32 0.0, %v5954
      %v5956 = vpop.f32.mrf.mxu0
      %v5957 = vadd.f32 0.0, %v5956
      %v5958 = vpop.f32.mrf.mxu0
      %v5959 = vadd.f32 0.0, %v5958
      %v5960 = vpop.f32.mrf.mxu0
      %v5961 = vadd.f32 0.0, %v5960
      %5962 = vmatprep.mubr.bf16.mxu0 0
      %5963 = vmatmul.mubr.bf16.gmra.mxu0 %v4363
      %v5964 = vpop.f32.mrf.mxu0
      %v5965 = vadd.f32 0.0, %v5964
      %v5966 = vpop.f32.mrf.mxu0
      %v5967 = vadd.f32 0.0, %v5966
      %v5968 = vpop.f32.mrf.mxu0
      %v5969 = vadd.f32 0.0, %v5968
      %v5970 = vpop.f32.mrf.mxu0
      %v5971 = vadd.f32 0.0, %v5970
      %5972 = vmatprep.mubr.bf16.mxu0 0
      %5973 = vmatmul.mubr.bf16.gmra.mxu0 %v4366
      %v5974 = vpop.f32.mrf.mxu0
      %v5975 = vadd.f32 0.0, %v5974
      %v5976 = vpop.f32.mrf.mxu0
      %v5977 = vadd.f32 0.0, %v5976
      %v5978 = vpop.f32.mrf.mxu0
      %v5979 = vadd.f32 0.0, %v5978
      %v5980 = vpop.f32.mrf.mxu0
      %v5981 = vadd.f32 0.0, %v5980
      %5982 = vdwg.mxu0
      %5983 = vmatprep.subr.bf16.mxu0 0
      %5984 = vmatpush1.bf16.msra.mxu0 0
      %5985 = vmatprep.subr.bf16.mxu0 0
      %5986 = vmatpush1.bf16.msra.mxu0 0
      %5987 = vmatprep.subr.bf16.mxu0 %v5553
      %5988 = vmatpush1.bf16.msra.mxu0 %v5552
      %5989 = vmatprep.subr.bf16.mxu0 %v5546
      %5990 = vmatpush1.bf16.msra.mxu0 %v5545
      %5991 = vmatprep.subr.bf16.mxu0 %v5539
      %5992 = vmatpush1.bf16.msra.mxu0 %v5538
      %5993 = vmatprep.subr.bf16.mxu0 %v5532
      %5994 = vmatpush1.bf16.msra.mxu0 %v5531
      %5995 = vmatprep.subr.bf16.mxu0 %v5525
      %5996 = vmatpush1.bf16.msra.mxu0 %v5524
      %5997 = vmatprep.subr.bf16.mxu0 %v5518
      %5998 = vmatpush1.bf16.msra.mxu0 %v5517
      %5999 = vmatprep.subr.bf16.mxu0 0
      %6000 = vmatpush2.bf16.msra.mxu0 0
      %6001 = vmatprep.subr.bf16.mxu0 0
      %6002 = vmatpush2.bf16.msra.mxu0 0
      %6003 = vmatprep.subr.bf16.mxu0 0
      %6004 = vmatpush2.bf16.msra.mxu0 0
      %6005 = vmatprep.subr.bf16.mxu0 0
      %6006 = vmatpush2.bf16.msra.mxu0 0
      %6007 = vmatprep.subr.bf16.mxu0 0
      %6008 = vmatpush2.bf16.msra.mxu0 0
      %6009 = vmatprep.subr.bf16.mxu0 0
      %6010 = vmatpush2.bf16.msra.mxu0 0
      %6011 = vmatprep.subr.bf16.mxu0 0
      %6012 = vmatpush2.bf16.msra.mxu0 0
      %6013 = vmatprep.subr.bf16.mxu0 0
      %6014 = vmatpush2.bf16.msra.mxu0 0
      %6015 = vmatprep.mubr.bf16.mxu0 0
      %6016 = vmatmul.mubr.bf16.gmra.mxu0 %v4321
      %v6017 = vpop.f32.mrf.mxu0
      %v6018 = vadd.f32 0.0, %v6017
      %v6019 = vpop.f32.mrf.mxu0
      %v6020 = vadd.f32 0.0, %v6019
      %v6021 = vpop.f32.mrf.mxu0
      %v6022 = vadd.f32 0.0, %v6021
      %v6023 = vpop.f32.mrf.mxu0
      %v6024 = vadd.f32 0.0, %v6023
      %6025 = vmatprep.mubr.bf16.mxu0 0
      %6026 = vmatmul.mubr.bf16.gmra.mxu0 %v4324
      %v6027 = vpop.f32.mrf.mxu0
      %v6028 = vadd.f32 0.0, %v6027
      %v6029 = vpop.f32.mrf.mxu0
      %v6030 = vadd.f32 0.0, %v6029
      %v6031 = vpop.f32.mrf.mxu0
      %v6032 = vadd.f32 0.0, %v6031
      %v6033 = vpop.f32.mrf.mxu0
      %v6034 = vadd.f32 0.0, %v6033
      %6035 = vmatprep.mubr.bf16.mxu0 0
      %6036 = vmatmul.mubr.bf16.gmra.mxu0 %v4327
      %v6037 = vpop.f32.mrf.mxu0
      %v6038 = vadd.f32 0.0, %v6037
      %v6039 = vpop.f32.mrf.mxu0
      %v6040 = vadd.f32 0.0, %v6039
      %v6041 = vpop.f32.mrf.mxu0
      %v6042 = vadd.f32 0.0, %v6041
      %v6043 = vpop.f32.mrf.mxu0
      %v6044 = vadd.f32 0.0, %v6043
      %6045 = vmatprep.mubr.bf16.mxu0 0
      %6046 = vmatmul.mubr.bf16.gmra.mxu0 %v4330
      %v6047 = vpop.f32.mrf.mxu0
      %v6048 = vadd.f32 0.0, %v6047
      %v6049 = vpop.f32.mrf.mxu0
      %v6050 = vadd.f32 0.0, %v6049
      %v6051 = vpop.f32.mrf.mxu0
      %v6052 = vadd.f32 0.0, %v6051
      %v6053 = vpop.f32.mrf.mxu0
      %v6054 = vadd.f32 0.0, %v6053
      %6055 = vmatprep.mubr.bf16.mxu0 0
      %6056 = vmatmul.mubr.bf16.gmra.mxu0 %v4333
      %v6057 = vpop.f32.mrf.mxu0
      %v6058 = vadd.f32 0.0, %v6057
      %v6059 = vpop.f32.mrf.mxu0
      %v6060 = vadd.f32 0.0, %v6059
      %v6061 = vpop.f32.mrf.mxu0
      %v6062 = vadd.f32 0.0, %v6061
      %v6063 = vpop.f32.mrf.mxu0
      %v6064 = vadd.f32 0.0, %v6063
      %6065 = vmatprep.mubr.bf16.mxu0 0
      %6066 = vmatmul.mubr.bf16.gmra.mxu0 %v4336
      %v6067 = vpop.f32.mrf.mxu0
      %v6068 = vadd.f32 0.0, %v6067
      %v6069 = vpop.f32.mrf.mxu0
      %v6070 = vadd.f32 0.0, %v6069
      %v6071 = vpop.f32.mrf.mxu0
      %v6072 = vadd.f32 0.0, %v6071
      %v6073 = vpop.f32.mrf.mxu0
      %v6074 = vadd.f32 0.0, %v6073
      %6075 = vmatprep.mubr.bf16.mxu0 0
      %6076 = vmatmul.mubr.bf16.gmra.mxu0 %v4339
      %v6077 = vpop.f32.mrf.mxu0
      %v6078 = vadd.f32 0.0, %v6077
      %v6079 = vpop.f32.mrf.mxu0
      %v6080 = vadd.f32 0.0, %v6079
      %v6081 = vpop.f32.mrf.mxu0
      %v6082 = vadd.f32 0.0, %v6081
      %v6083 = vpop.f32.mrf.mxu0
      %v6084 = vadd.f32 0.0, %v6083
      %6085 = vmatprep.mubr.bf16.mxu0 0
      %6086 = vmatmul.mubr.bf16.gmra.mxu0 %v4342
      %v6087 = vpop.f32.mrf.mxu0
      %v6088 = vadd.f32 0.0, %v6087
      %v6089 = vpop.f32.mrf.mxu0
      %v6090 = vadd.f32 0.0, %v6089
      %v6091 = vpop.f32.mrf.mxu0
      %v6092 = vadd.f32 0.0, %v6091
      %v6093 = vpop.f32.mrf.mxu0
      %v6094 = vadd.f32 0.0, %v6093
      %6095 = vmatprep.mubr.bf16.mxu0 0
      %6096 = vmatmul.mubr.bf16.gmra.mxu0 %v4345
      %v6097 = vpop.f32.mrf.mxu0
      %v6098 = vadd.f32 0.0, %v6097
      %v6099 = vpop.f32.mrf.mxu0
      %v6100 = vadd.f32 0.0, %v6099
      %v6101 = vpop.f32.mrf.mxu0
      %v6102 = vadd.f32 0.0, %v6101
      %v6103 = vpop.f32.mrf.mxu0
      %v6104 = vadd.f32 0.0, %v6103
      %6105 = vmatprep.mubr.bf16.mxu0 0
      %6106 = vmatmul.mubr.bf16.gmra.mxu0 %v4348
      %v6107 = vpop.f32.mrf.mxu0
      %v6108 = vadd.f32 0.0, %v6107
      %v6109 = vpop.f32.mrf.mxu0
      %v6110 = vadd.f32 0.0, %v6109
      %v6111 = vpop.f32.mrf.mxu0
      %v6112 = vadd.f32 0.0, %v6111
      %v6113 = vpop.f32.mrf.mxu0
      %v6114 = vadd.f32 0.0, %v6113
      %6115 = vmatprep.mubr.bf16.mxu0 0
      %6116 = vmatmul.mubr.bf16.gmra.mxu0 %v4351
      %v6117 = vpop.f32.mrf.mxu0
      %v6118 = vadd.f32 0.0, %v6117
      %v6119 = vpop.f32.mrf.mxu0
      %v6120 = vadd.f32 0.0, %v6119
      %v6121 = vpop.f32.mrf.mxu0
      %v6122 = vadd.f32 0.0, %v6121
      %v6123 = vpop.f32.mrf.mxu0
      %v6124 = vadd.f32 0.0, %v6123
      %6125 = vmatprep.mubr.bf16.mxu0 0
      %6126 = vmatmul.mubr.bf16.gmra.mxu0 %v4354
      %v6127 = vpop.f32.mrf.mxu0
      %v6128 = vadd.f32 0.0, %v6127
      %v6129 = vpop.f32.mrf.mxu0
      %v6130 = vadd.f32 0.0, %v6129
      %v6131 = vpop.f32.mrf.mxu0
      %v6132 = vadd.f32 0.0, %v6131
      %v6133 = vpop.f32.mrf.mxu0
      %v6134 = vadd.f32 0.0, %v6133
      %6135 = vmatprep.mubr.bf16.mxu0 0
      %6136 = vmatmul.mubr.bf16.gmra.mxu0 %v4357
      %v6137 = vpop.f32.mrf.mxu0
      %v6138 = vadd.f32 0.0, %v6137
      %v6139 = vpop.f32.mrf.mxu0
      %v6140 = vadd.f32 0.0, %v6139
      %v6141 = vpop.f32.mrf.mxu0
      %v6142 = vadd.f32 0.0, %v6141
      %v6143 = vpop.f32.mrf.mxu0
      %v6144 = vadd.f32 0.0, %v6143
      %6145 = vmatprep.mubr.bf16.mxu0 0
      %6146 = vmatmul.mubr.bf16.gmra.mxu0 %v4360
      %v6147 = vpop.f32.mrf.mxu0
      %v6148 = vadd.f32 0.0, %v6147
      %v6149 = vpop.f32.mrf.mxu0
      %v6150 = vadd.f32 0.0, %v6149
      %v6151 = vpop.f32.mrf.mxu0
      %v6152 = vadd.f32 0.0, %v6151
      %v6153 = vpop.f32.mrf.mxu0
      %v6154 = vadd.f32 0.0, %v6153
      %6155 = vmatprep.mubr.bf16.mxu0 0
      %6156 = vmatmul.mubr.bf16.gmra.mxu0 %v4363
      %v6157 = vpop.f32.mrf.mxu0
      %v6158 = vadd.f32 0.0, %v6157
      %v6159 = vpop.f32.mrf.mxu0
      %v6160 = vadd.f32 0.0, %v6159
      %v6161 = vpop.f32.mrf.mxu0
      %v6162 = vadd.f32 0.0, %v6161
      %v6163 = vpop.f32.mrf.mxu0
      %v6164 = vadd.f32 0.0, %v6163
      %6165 = vmatprep.mubr.bf16.mxu0 0
      %6166 = vmatmul.mubr.bf16.gmra.mxu0 %v4366
      %v6167 = vpop.f32.mrf.mxu0
      %v6168 = vadd.f32 0.0, %v6167
      %v6169 = vpop.f32.mrf.mxu0
      %v6170 = vadd.f32 0.0, %v6169
      %v6171 = vpop.f32.mrf.mxu0
      %v6172 = vadd.f32 0.0, %v6171
      %v6173 = vpop.f32.mrf.mxu0
      %v6174 = vadd.f32 0.0, %v6173
      %6175 = vdwg.mxu0
      %6176 = vmatprep.subr.bf16.mxu0 0
      %6177 = vmatpush1.bf16.msra.mxu0 0
      %6178 = vmatprep.subr.bf16.mxu0 0
      %6179 = vmatpush1.bf16.msra.mxu0 0
      %6180 = vmatprep.subr.bf16.mxu0 0
      %6181 = vmatpush1.bf16.msra.mxu0 %v5554
      %6182 = vmatprep.subr.bf16.mxu0 0
      %6183 = vmatpush1.bf16.msra.mxu0 %v5547
      %6184 = vmatprep.subr.bf16.mxu0 0
      %6185 = vmatpush1.bf16.msra.mxu0 %v5540
      %6186 = vmatprep.subr.bf16.mxu0 0
      %6187 = vmatpush1.bf16.msra.mxu0 %v5533
      %6188 = vmatprep.subr.bf16.mxu0 0
      %6189 = vmatpush1.bf16.msra.mxu0 %v5526
      %6190 = vmatprep.subr.bf16.mxu0 0
      %6191 = vmatpush1.bf16.msra.mxu0 %v5519
      %6192 = vmatprep.subr.bf16.mxu0 0
      %6193 = vmatpush2.bf16.msra.mxu0 0
      %6194 = vmatprep.subr.bf16.mxu0 0
      %6195 = vmatpush2.bf16.msra.mxu0 0
      %6196 = vmatprep.subr.bf16.mxu0 0
      %6197 = vmatpush2.bf16.msra.mxu0 0
      %6198 = vmatprep.subr.bf16.mxu0 0
      %6199 = vmatpush2.bf16.msra.mxu0 0
      %6200 = vmatprep.subr.bf16.mxu0 0
      %6201 = vmatpush2.bf16.msra.mxu0 0
      %6202 = vmatprep.subr.bf16.mxu0 0
      %6203 = vmatpush2.bf16.msra.mxu0 0
      %6204 = vmatprep.subr.bf16.mxu0 0
      %6205 = vmatpush2.bf16.msra.mxu0 0
      %6206 = vmatprep.subr.bf16.mxu0 0
      %6207 = vmatpush2.bf16.msra.mxu0 0
      %6208 = vmatprep.mubr.bf16.mxu0 0
      %6209 = vmatmul.mubr.bf16.gmra.mxu0 %v4321
      %v6210 = vpop.f32.mrf.mxu0
      %v6211 = vadd.f32 0.0, %v6210
      %v6212 = vpop.f32.mrf.mxu0
      %v6213 = vpop.f32.mrf.mxu0
      %v6214 = vadd.f32 0.0, %v6213
      %v6215 = vpop.f32.mrf.mxu0
      %6216 = vmatprep.mubr.bf16.mxu0 0
      %6217 = vmatmul.mubr.bf16.gmra.mxu0 %v4324
      %v6218 = vpop.f32.mrf.mxu0
      %v6219 = vadd.f32 0.0, %v6218
      %v6220 = vpop.f32.mrf.mxu0
      %v6221 = vpop.f32.mrf.mxu0
      %v6222 = vadd.f32 0.0, %v6221
      %v6223 = vpop.f32.mrf.mxu0
      %6224 = vmatprep.mubr.bf16.mxu0 0
      %6225 = vmatmul.mubr.bf16.gmra.mxu0 %v4327
      %v6226 = vpop.f32.mrf.mxu0
      %v6227 = vadd.f32 0.0, %v6226
      %v6228 = vpop.f32.mrf.mxu0
      %v6229 = vpop.f32.mrf.mxu0
      %v6230 = vadd.f32 0.0, %v6229
      %v6231 = vpop.f32.mrf.mxu0
      %6232 = vmatprep.mubr.bf16.mxu0 0
      %6233 = vmatmul.mubr.bf16.gmra.mxu0 %v4330
      %v6234 = vpop.f32.mrf.mxu0
      %v6235 = vadd.f32 0.0, %v6234
      %v6236 = vpop.f32.mrf.mxu0
      %v6237 = vpop.f32.mrf.mxu0
      %v6238 = vadd.f32 0.0, %v6237
      %v6239 = vpop.f32.mrf.mxu0
      %6240 = vmatprep.mubr.bf16.mxu0 0
      %6241 = vmatmul.mubr.bf16.gmra.mxu0 %v4333
      %v6242 = vpop.f32.mrf.mxu0
      %v6243 = vadd.f32 0.0, %v6242
      %v6244 = vpop.f32.mrf.mxu0
      %v6245 = vpop.f32.mrf.mxu0
      %v6246 = vadd.f32 0.0, %v6245
      %v6247 = vpop.f32.mrf.mxu0
      %6248 = vmatprep.mubr.bf16.mxu0 0
      %6249 = vmatmul.mubr.bf16.gmra.mxu0 %v4336
      %v6250 = vpop.f32.mrf.mxu0
      %v6251 = vadd.f32 0.0, %v6250
      %v6252 = vpop.f32.mrf.mxu0
      %v6253 = vpop.f32.mrf.mxu0
      %v6254 = vadd.f32 0.0, %v6253
      %v6255 = vpop.f32.mrf.mxu0
      %6256 = vmatprep.mubr.bf16.mxu0 0
      %6257 = vmatmul.mubr.bf16.gmra.mxu0 %v4339
      %v6258 = vpop.f32.mrf.mxu0
      %v6259 = vadd.f32 0.0, %v6258
      %v6260 = vpop.f32.mrf.mxu0
      %v6261 = vpop.f32.mrf.mxu0
      %v6262 = vadd.f32 0.0, %v6261
      %v6263 = vpop.f32.mrf.mxu0
      %6264 = vmatprep.mubr.bf16.mxu0 0
      %6265 = vmatmul.mubr.bf16.gmra.mxu0 %v4342
      %v6266 = vpop.f32.mrf.mxu0
      %v6267 = vadd.f32 0.0, %v6266
      %v6268 = vpop.f32.mrf.mxu0
      %v6269 = vpop.f32.mrf.mxu0
      %v6270 = vadd.f32 0.0, %v6269
      %v6271 = vpop.f32.mrf.mxu0
      %6272 = vmatprep.mubr.bf16.mxu0 0
      %6273 = vmatmul.mubr.bf16.gmra.mxu0 %v4345
      %v6274 = vpop.f32.mrf.mxu0
      %v6275 = vadd.f32 0.0, %v6274
      %v6276 = vpop.f32.mrf.mxu0
      %v6277 = vpop.f32.mrf.mxu0
      %v6278 = vadd.f32 0.0, %v6277
      %v6279 = vpop.f32.mrf.mxu0
      %6280 = vmatprep.mubr.bf16.mxu0 0
      %6281 = vmatmul.mubr.bf16.gmra.mxu0 %v4348
      %v6282 = vpop.f32.mrf.mxu0
      %v6283 = vadd.f32 0.0, %v6282
      %v6284 = vpop.f32.mrf.mxu0
      %v6285 = vpop.f32.mrf.mxu0
      %v6286 = vadd.f32 0.0, %v6285
      %v6287 = vpop.f32.mrf.mxu0
      %6288 = vmatprep.mubr.bf16.mxu0 0
      %6289 = vmatmul.mubr.bf16.gmra.mxu0 %v4351
      %v6290 = vpop.f32.mrf.mxu0
      %v6291 = vadd.f32 0.0, %v6290
      %v6292 = vpop.f32.mrf.mxu0
      %v6293 = vpop.f32.mrf.mxu0
      %v6294 = vadd.f32 0.0, %v6293
      %v6295 = vpop.f32.mrf.mxu0
      %6296 = vmatprep.mubr.bf16.mxu0 0
      %6297 = vmatmul.mubr.bf16.gmra.mxu0 %v4354
      %v6298 = vpop.f32.mrf.mxu0
      %v6299 = vadd.f32 0.0, %v6298
      %v6300 = vpop.f32.mrf.mxu0
      %v6301 = vpop.f32.mrf.mxu0
      %v6302 = vadd.f32 0.0, %v6301
      %v6303 = vpop.f32.mrf.mxu0
      %6304 = vmatprep.mubr.bf16.mxu0 0
      %6305 = vmatmul.mubr.bf16.gmra.mxu0 %v4357
      %v6306 = vpop.f32.mrf.mxu0
      %v6307 = vadd.f32 0.0, %v6306
      %v6308 = vpop.f32.mrf.mxu0
      %v6309 = vpop.f32.mrf.mxu0
      %v6310 = vadd.f32 0.0, %v6309
      %v6311 = vpop.f32.mrf.mxu0
      %6312 = vmatprep.mubr.bf16.mxu0 0
      %6313 = vmatmul.mubr.bf16.gmra.mxu0 %v4360
      %v6314 = vpop.f32.mrf.mxu0
      %v6315 = vadd.f32 0.0, %v6314
      %v6316 = vpop.f32.mrf.mxu0
      %v6317 = vpop.f32.mrf.mxu0
      %v6318 = vadd.f32 0.0, %v6317
      %v6319 = vpop.f32.mrf.mxu0
      %6320 = vmatprep.mubr.bf16.mxu0 0
      %6321 = vmatmul.mubr.bf16.gmra.mxu0 %v4363
      %v6322 = vpop.f32.mrf.mxu0
      %v6323 = vadd.f32 0.0, %v6322
      %v6324 = vpop.f32.mrf.mxu0
      %v6325 = vpop.f32.mrf.mxu0
      %v6326 = vadd.f32 0.0, %v6325
      %v6327 = vpop.f32.mrf.mxu0
      %6328 = vmatprep.mubr.bf16.mxu0 0
      %6329 = vmatmul.mubr.bf16.gmra.mxu0 %v4366
      %v6330 = vpop.f32.mrf.mxu0
      %v6331 = vadd.f32 0.0, %v6330
      %v6332 = vpop.f32.mrf.mxu0
      %v6333 = vpop.f32.mrf.mxu0
      %v6334 = vadd.f32 0.0, %v6333
      %v6335 = vpop.f32.mrf.mxu0
      %6336 = vdwg.mxu0
      %s6337 = scalar_lea.vmem %s177, 1792
      %6338 = vst [vmem:[%s6337] sm:$0xff] %v5632
      %6339 = vst [vmem:[%s6337 + $0x8] sm:$0xff] %v5634
      %6340 = vst [vmem:[%s6337 + $0x10] sm:$0xff] %v5825
      %6341 = vst [vmem:[%s6337 + $0x18] sm:$0xff] %v5827
      %6342 = vst [vmem:[%s6337 + $0x20] sm:$0xff] %v6018
      %6343 = vst [vmem:[%s6337 + $0x28] sm:$0xff] %v6020
      %6344 = vst.msk [vmem:[%s6337 + $0x30] sm:$0xff] %vm5114, %v6211
      %6345 = vst [vmem:[%s6337 + $0x38] sm:$0xff] %v5636
      %6346 = vst [vmem:[%s6337 + $0x40] sm:$0xff] %v5638
      %6347 = vst [vmem:[%s6337 + $0x48] sm:$0xff] %v5829
      %6348 = vst [vmem:[%s6337 + $0x50] sm:$0xff] %v5831
      %6349 = vst [vmem:[%s6337 + $0x58] sm:$0xff] %v6022
      %6350 = vst [vmem:[%s6337 + $0x60] sm:$0xff] %v6024
      %6351 = vst.msk [vmem:[%s6337 + $0x68] sm:$0xff] %vm5114, %v6214
      %6352 = vst [vmem:[%s6337 + $0x70] sm:$0xff] %v5642
      %6353 = vst [vmem:[%s6337 + $0x78] sm:$0xff] %v5644
      %6354 = vst [vmem:[%s6337 + $0x80] sm:$0xff] %v5835
      %6355 = vst [vmem:[%s6337 + $0x88] sm:$0xff] %v5837
      %6356 = vst [vmem:[%s6337 + $0x90] sm:$0xff] %v6028
      %6357 = vst [vmem:[%s6337 + $0x98] sm:$0xff] %v6030
      %6358 = vst.msk [vmem:[%s6337 + $0xa0] sm:$0xff] %vm5114, %v6219
      %6359 = vst [vmem:[%s6337 + $0xa8] sm:$0xff] %v5646
      %6360 = vst [vmem:[%s6337 + $0xb0] sm:$0xff] %v5648
      %6361 = vst [vmem:[%s6337 + $0xb8] sm:$0xff] %v5839
      %6362 = vst [vmem:[%s6337 + $0xc0] sm:$0xff] %v5841
      %6363 = vst [vmem:[%s6337 + $0xc8] sm:$0xff] %v6032
      %6364 = vst [vmem:[%s6337 + $0xd0] sm:$0xff] %v6034
      %6365 = vst.msk [vmem:[%s6337 + $0xd8] sm:$0xff] %vm5114, %v6222
      %6366 = vst [vmem:[%s6337 + $0xe0] sm:$0xff] %v5652
      %6367 = vst [vmem:[%s6337 + $0xe8] sm:$0xff] %v5654
      %6368 = vst [vmem:[%s6337 + $0xf0] sm:$0xff] %v5845
      %6369 = vst [vmem:[%s6337 + $0xf8] sm:$0xff] %v5847
      %6370 = vst [vmem:[%s6337 + $0x100] sm:$0xff] %v6038
      %6371 = vst [vmem:[%s6337 + $0x108] sm:$0xff] %v6040
      %6372 = vst.msk [vmem:[%s6337 + $0x110] sm:$0xff] %vm5114, %v6227
      %6373 = vst [vmem:[%s6337 + $0x118] sm:$0xff] %v5656
      %6374 = vst [vmem:[%s6337 + $0x120] sm:$0xff] %v5658
      %6375 = vst [vmem:[%s6337 + $0x128] sm:$0xff] %v5849
      %6376 = vst [vmem:[%s6337 + $0x130] sm:$0xff] %v5851
      %6377 = vst [vmem:[%s6337 + $0x138] sm:$0xff] %v6042
      %6378 = vst [vmem:[%s6337 + $0x140] sm:$0xff] %v6044
      %6379 = vst.msk [vmem:[%s6337 + $0x148] sm:$0xff] %vm5114, %v6230
      %6380 = vst [vmem:[%s6337 + $0x150] sm:$0xff] %v5662
      %6381 = vst [vmem:[%s6337 + $0x158] sm:$0xff] %v5664
      %6382 = vst [vmem:[%s6337 + $0x160] sm:$0xff] %v5855
      %6383 = vst [vmem:[%s6337 + $0x168] sm:$0xff] %v5857
      %6384 = vst [vmem:[%s6337 + $0x170] sm:$0xff] %v6048
      %6385 = vst [vmem:[%s6337 + $0x178] sm:$0xff] %v6050
      %6386 = vst.msk [vmem:[%s6337 + $0x180] sm:$0xff] %vm5114, %v6235
      %6387 = vst [vmem:[%s6337 + $0x188] sm:$0xff] %v5666
      %6388 = vst [vmem:[%s6337 + $0x190] sm:$0xff] %v5668
      %6389 = vst [vmem:[%s6337 + $0x198] sm:$0xff] %v5859
      %6390 = vst [vmem:[%s6337 + $0x1a0] sm:$0xff] %v5861
      %6391 = vst [vmem:[%s6337 + $0x1a8] sm:$0xff] %v6052
      %6392 = vst [vmem:[%s6337 + $0x1b0] sm:$0xff] %v6054
      %6393 = vst.msk [vmem:[%s6337 + $0x1b8] sm:$0xff] %vm5114, %v6238
      %6394 = vst [vmem:[%s6337 + $0x1c0] sm:$0xff] %v5672
      %6395 = vst [vmem:[%s6337 + $0x1c8] sm:$0xff] %v5674
      %6396 = vst [vmem:[%s6337 + $0x1d0] sm:$0xff] %v5865
      %6397 = vst [vmem:[%s6337 + $0x1d8] sm:$0xff] %v5867
      %6398 = vst [vmem:[%s6337 + $0x1e0] sm:$0xff] %v6058
      %6399 = vst [vmem:[%s6337 + $0x1e8] sm:$0xff] %v6060
      %6400 = vst.msk [vmem:[%s6337 + $0x1f0] sm:$0xff] %vm5114, %v6243
      %6401 = vst [vmem:[%s6337 + $0x1f8] sm:$0xff] %v5676
      %6402 = vst [vmem:[%s6337 + $0x200] sm:$0xff] %v5678
      %6403 = vst [vmem:[%s6337 + $0x208] sm:$0xff] %v5869
      %6404 = vst [vmem:[%s6337 + $0x210] sm:$0xff] %v5871
      %6405 = vst [vmem:[%s6337 + $0x218] sm:$0xff] %v6062
      %6406 = vst [vmem:[%s6337 + $0x220] sm:$0xff] %v6064
      %6407 = vst.msk [vmem:[%s6337 + $0x228] sm:$0xff] %vm5114, %v6246
      %6408 = vst [vmem:[%s6337 + $0x230] sm:$0xff] %v5682
      %6409 = vst [vmem:[%s6337 + $0x238] sm:$0xff] %v5684
      %6410 = vst [vmem:[%s6337 + $0x240] sm:$0xff] %v5875
      %6411 = vst [vmem:[%s6337 + $0x248] sm:$0xff] %v5877
      %6412 = vst [vmem:[%s6337 + $0x250] sm:$0xff] %v6068
      %6413 = vst [vmem:[%s6337 + $0x258] sm:$0xff] %v6070
      %6414 = vst.msk [vmem:[%s6337 + $0x260] sm:$0xff] %vm5114, %v6251
      %6415 = vst [vmem:[%s6337 + $0x268] sm:$0xff] %v5686
      %6416 = vst [vmem:[%s6337 + $0x270] sm:$0xff] %v5688
      %6417 = vst [vmem:[%s6337 + $0x278] sm:$0xff] %v5879
      %6418 = vst [vmem:[%s6337 + $0x280] sm:$0xff] %v5881
      %6419 = vst [vmem:[%s6337 + $0x288] sm:$0xff] %v6072
      %6420 = vst [vmem:[%s6337 + $0x290] sm:$0xff] %v6074
      %6421 = vst.msk [vmem:[%s6337 + $0x298] sm:$0xff] %vm5114, %v6254
      %6422 = vst [vmem:[%s6337 + $0x2a0] sm:$0xff] %v5692
      %6423 = vst [vmem:[%s6337 + $0x2a8] sm:$0xff] %v5694
      %6424 = vst [vmem:[%s6337 + $0x2b0] sm:$0xff] %v5885
      %6425 = vst [vmem:[%s6337 + $0x2b8] sm:$0xff] %v5887
      %6426 = vst [vmem:[%s6337 + $0x2c0] sm:$0xff] %v6078
      %6427 = vst [vmem:[%s6337 + $0x2c8] sm:$0xff] %v6080
      %6428 = vst.msk [vmem:[%s6337 + $0x2d0] sm:$0xff] %vm5114, %v6259
      %6429 = vst [vmem:[%s6337 + $0x2d8] sm:$0xff] %v5696
      %6430 = vst [vmem:[%s6337 + $0x2e0] sm:$0xff] %v5698
      %6431 = vst [vmem:[%s6337 + $0x2e8] sm:$0xff] %v5889
      %6432 = vst [vmem:[%s6337 + $0x2f0] sm:$0xff] %v5891
      %6433 = vst [vmem:[%s6337 + $0x2f8] sm:$0xff] %v6082
      %6434 = vst [vmem:[%s6337 + $0x300] sm:$0xff] %v6084
      %6435 = vst.msk [vmem:[%s6337 + $0x308] sm:$0xff] %vm5114, %v6262
      %6436 = vst [vmem:[%s6337 + $0x310] sm:$0xff] %v5702
      %6437 = vst [vmem:[%s6337 + $0x318] sm:$0xff] %v5704
      %6438 = vst [vmem:[%s6337 + $0x320] sm:$0xff] %v5895
      %6439 = vst [vmem:[%s6337 + $0x328] sm:$0xff] %v5897
      %6440 = vst [vmem:[%s6337 + $0x330] sm:$0xff] %v6088
      %6441 = vst [vmem:[%s6337 + $0x338] sm:$0xff] %v6090
      %6442 = vst.msk [vmem:[%s6337 + $0x340] sm:$0xff] %vm5114, %v6267
      %6443 = vst [vmem:[%s6337 + $0x348] sm:$0xff] %v5706
      %6444 = vst [vmem:[%s6337 + $0x350] sm:$0xff] %v5708
      %6445 = vst [vmem:[%s6337 + $0x358] sm:$0xff] %v5899
      %6446 = vst [vmem:[%s6337 + $0x360] sm:$0xff] %v5901
      %6447 = vst [vmem:[%s6337 + $0x368] sm:$0xff] %v6092
      %6448 = vst [vmem:[%s6337 + $0x370] sm:$0xff] %v6094
      %6449 = vst.msk [vmem:[%s6337 + $0x378] sm:$0xff] %vm5114, %v6270
      %6450 = vst [vmem:[%s6337 + $0x380] sm:$0xff] %v5712
      %6451 = vst [vmem:[%s6337 + $0x388] sm:$0xff] %v5714
      %6452 = vst [vmem:[%s6337 + $0x390] sm:$0xff] %v5905
      %6453 = vst [vmem:[%s6337 + $0x398] sm:$0xff] %v5907
      %6454 = vst [vmem:[%s6337 + $0x3a0] sm:$0xff] %v6098
      %6455 = vst [vmem:[%s6337 + $0x3a8] sm:$0xff] %v6100
      %6456 = vst.msk [vmem:[%s6337 + $0x3b0] sm:$0xff] %vm5114, %v6275
      %6457 = vst [vmem:[%s6337 + $0x3b8] sm:$0xff] %v5716
      %6458 = vst [vmem:[%s6337 + $0x3c0] sm:$0xff] %v5718
      %6459 = vst [vmem:[%s6337 + $0x3c8] sm:$0xff] %v5909
      %6460 = vst [vmem:[%s6337 + $0x3d0] sm:$0xff] %v5911
      %6461 = vst [vmem:[%s6337 + $0x3d8] sm:$0xff] %v6102
      %6462 = vst [vmem:[%s6337 + $0x3e0] sm:$0xff] %v6104
      %6463 = vst.msk [vmem:[%s6337 + $0x3e8] sm:$0xff] %vm5114, %v6278
      %6464 = vst [vmem:[%s6337 + $0x3f0] sm:$0xff] %v5722
      %6465 = vst [vmem:[%s6337 + $0x3f8] sm:$0xff] %v5724
      %6466 = vst [vmem:[%s6337 + $0x400] sm:$0xff] %v5915
      %6467 = vst [vmem:[%s6337 + $0x408] sm:$0xff] %v5917
      %6468 = vst [vmem:[%s6337 + $0x410] sm:$0xff] %v6108
      %6469 = vst [vmem:[%s6337 + $0x418] sm:$0xff] %v6110
      %6470 = vst.msk [vmem:[%s6337 + $0x420] sm:$0xff] %vm5114, %v6283
      %6471 = vst [vmem:[%s6337 + $0x428] sm:$0xff] %v5726
      %6472 = vst [vmem:[%s6337 + $0x430] sm:$0xff] %v5728
      %6473 = vst [vmem:[%s6337 + $0x438] sm:$0xff] %v5919
      %6474 = vst [vmem:[%s6337 + $0x440] sm:$0xff] %v5921
      %6475 = vst [vmem:[%s6337 + $0x448] sm:$0xff] %v6112
      %6476 = vst [vmem:[%s6337 + $0x450] sm:$0xff] %v6114
      %6477 = vst.msk [vmem:[%s6337 + $0x458] sm:$0xff] %vm5114, %v6286
      %6478 = vst [vmem:[%s6337 + $0x460] sm:$0xff] %v5732
      %6479 = vst [vmem:[%s6337 + $0x468] sm:$0xff] %v5734
      %6480 = vst [vmem:[%s6337 + $0x470] sm:$0xff] %v5925
      %6481 = vst [vmem:[%s6337 + $0x478] sm:$0xff] %v5927
      %6482 = vst [vmem:[%s6337 + $0x480] sm:$0xff] %v6118
      %6483 = vst [vmem:[%s6337 + $0x488] sm:$0xff] %v6120
      %6484 = vst.msk [vmem:[%s6337 + $0x490] sm:$0xff] %vm5114, %v6291
      %6485 = vst [vmem:[%s6337 + $0x498] sm:$0xff] %v5736
      %6486 = vst [vmem:[%s6337 + $0x4a0] sm:$0xff] %v5738
      %6487 = vst [vmem:[%s6337 + $0x4a8] sm:$0xff] %v5929
      %6488 = vst [vmem:[%s6337 + $0x4b0] sm:$0xff] %v5931
      %6489 = vst [vmem:[%s6337 + $0x4b8] sm:$0xff] %v6122
      %6490 = vst [vmem:[%s6337 + $0x4c0] sm:$0xff] %v6124
      %6491 = vst.msk [vmem:[%s6337 + $0x4c8] sm:$0xff] %vm5114, %v6294
      %6492 = vst [vmem:[%s6337 + $0x4d0] sm:$0xff] %v5742
      %6493 = vst [vmem:[%s6337 + $0x4d8] sm:$0xff] %v5744
      %6494 = vst [vmem:[%s6337 + $0x4e0] sm:$0xff] %v5935
      %6495 = vst [vmem:[%s6337 + $0x4e8] sm:$0xff] %v5937
      %6496 = vst [vmem:[%s6337 + $0x4f0] sm:$0xff] %v6128
      %6497 = vst [vmem:[%s6337 + $0x4f8] sm:$0xff] %v6130
      %6498 = vst.msk [vmem:[%s6337 + $0x500] sm:$0xff] %vm5114, %v6299
      %6499 = vst [vmem:[%s6337 + $0x508] sm:$0xff] %v5746
      %6500 = vst [vmem:[%s6337 + $0x510] sm:$0xff] %v5748
      %6501 = vst [vmem:[%s6337 + $0x518] sm:$0xff] %v5939
      %6502 = vst [vmem:[%s6337 + $0x520] sm:$0xff] %v5941
      %6503 = vst [vmem:[%s6337 + $0x528] sm:$0xff] %v6132
      %6504 = vst [vmem:[%s6337 + $0x530] sm:$0xff] %v6134
      %6505 = vst.msk [vmem:[%s6337 + $0x538] sm:$0xff] %vm5114, %v6302
      %6506 = vst [vmem:[%s6337 + $0x540] sm:$0xff] %v5752
      %6507 = vst [vmem:[%s6337 + $0x548] sm:$0xff] %v5754
      %6508 = vst [vmem:[%s6337 + $0x550] sm:$0xff] %v5945
      %6509 = vst [vmem:[%s6337 + $0x558] sm:$0xff] %v5947
      %6510 = vst [vmem:[%s6337 + $0x560] sm:$0xff] %v6138
      %6511 = vst [vmem:[%s6337 + $0x568] sm:$0xff] %v6140
      %6512 = vst.msk [vmem:[%s6337 + $0x570] sm:$0xff] %vm5114, %v6307
      %6513 = vst [vmem:[%s6337 + $0x578] sm:$0xff] %v5756
      %6514 = vst [vmem:[%s6337 + $0x580] sm:$0xff] %v5758
      %6515 = vst [vmem:[%s6337 + $0x588] sm:$0xff] %v5949
      %6516 = vst [vmem:[%s6337 + $0x590] sm:$0xff] %v5951
      %6517 = vst [vmem:[%s6337 + $0x598] sm:$0xff] %v6142
      %6518 = vst [vmem:[%s6337 + $0x5a0] sm:$0xff] %v6144
      %6519 = vst.msk [vmem:[%s6337 + $0x5a8] sm:$0xff] %vm5114, %v6310
      %6520 = vst [vmem:[%s6337 + $0x5b0] sm:$0xff] %v5762
      %6521 = vst [vmem:[%s6337 + $0x5b8] sm:$0xff] %v5764
      %6522 = vst [vmem:[%s6337 + $0x5c0] sm:$0xff] %v5955
      %6523 = vst [vmem:[%s6337 + $0x5c8] sm:$0xff] %v5957
      %6524 = vst [vmem:[%s6337 + $0x5d0] sm:$0xff] %v6148
      %6525 = vst [vmem:[%s6337 + $0x5d8] sm:$0xff] %v6150
      %6526 = vst.msk [vmem:[%s6337 + $0x5e0] sm:$0xff] %vm5114, %v6315
      %6527 = vst [vmem:[%s6337 + $0x5e8] sm:$0xff] %v5766
      %6528 = vst [vmem:[%s6337 + $0x5f0] sm:$0xff] %v5768
      %6529 = vst [vmem:[%s6337 + $0x5f8] sm:$0xff] %v5959
      %6530 = vst [vmem:[%s6337 + $0x600] sm:$0xff] %v5961
      %6531 = vst [vmem:[%s6337 + $0x608] sm:$0xff] %v6152
      %6532 = vst [vmem:[%s6337 + $0x610] sm:$0xff] %v6154
      %6533 = vst.msk [vmem:[%s6337 + $0x618] sm:$0xff] %vm5114, %v6318
      %6534 = vst [vmem:[%s6337 + $0x620] sm:$0xff] %v5772
      %6535 = vst [vmem:[%s6337 + $0x628] sm:$0xff] %v5774
      %6536 = vst [vmem:[%s6337 + $0x630] sm:$0xff] %v5965
      %6537 = vst [vmem:[%s6337 + $0x638] sm:$0xff] %v5967
      %6538 = vst [vmem:[%s6337 + $0x640] sm:$0xff] %v6158
      %6539 = vst [vmem:[%s6337 + $0x648] sm:$0xff] %v6160
      %6540 = vst.msk [vmem:[%s6337 + $0x650] sm:$0xff] %vm5114, %v6323
      %6541 = vst [vmem:[%s6337 + $0x658] sm:$0xff] %v5776
      %6542 = vst [vmem:[%s6337 + $0x660] sm:$0xff] %v5778
      %6543 = vst [vmem:[%s6337 + $0x668] sm:$0xff] %v5969
      %6544 = vst [vmem:[%s6337 + $0x670] sm:$0xff] %v5971
      %6545 = vst [vmem:[%s6337 + $0x678] sm:$0xff] %v6162
      %6546 = vst [vmem:[%s6337 + $0x680] sm:$0xff] %v6164
      %6547 = vst.msk [vmem:[%s6337 + $0x688] sm:$0xff] %vm5114, %v6326
      %6548 = vst [vmem:[%s6337 + $0x690] sm:$0xff] %v5782
      %6549 = vst [vmem:[%s6337 + $0x698] sm:$0xff] %v5784
      %6550 = vst [vmem:[%s6337 + $0x6a0] sm:$0xff] %v5975
      %6551 = vst [vmem:[%s6337 + $0x6a8] sm:$0xff] %v5977
      %6552 = vst [vmem:[%s6337 + $0x6b0] sm:$0xff] %v6168
      %6553 = vst [vmem:[%s6337 + $0x6b8] sm:$0xff] %v6170
      %6554 = vst.msk [vmem:[%s6337 + $0x6c0] sm:$0xff] %vm5114, %v6331
      %6555 = vst [vmem:[%s6337 + $0x6c8] sm:$0xff] %v5786
      %6556 = vst [vmem:[%s6337 + $0x6d0] sm:$0xff] %v5788
      %6557 = vst [vmem:[%s6337 + $0x6d8] sm:$0xff] %v5979
      %6558 = vst [vmem:[%s6337 + $0x6e0] sm:$0xff] %v5981
      %6559 = vst [vmem:[%s6337 + $0x6e8] sm:$0xff] %v6172
      %6560 = vst [vmem:[%s6337 + $0x6f0] sm:$0xff] %v6174
      %6561 = vst.msk [vmem:[%s6337 + $0x6f8] sm:$0xff] %vm5114, %v6334
      %s6562 = smul.u32 2, %s14
      %p6563 = scmp.lt.s32.totalorder %s6562, 3
      %s6564 = scalar_select %p6563, %s6562, 3
      %s6565 = smul.addr %s6564, 224
      %s6566 = smul.addr %s6565, 8
      %s6567 = scalar_lea.vmem %s3, %s6566
      // Predicated region
      $region33: #{kernel_generated_1_forward.1} parent=31 // pred_check
        %p6568 = pneg %p100
      $region34: #{kernel_generated_1_forward.1} parent=31 // pred_check_branch
        %6570 = sbr.rel (%p6568) target = $region36
      $region35: #{kernel_generated_1_forward.1} parent=31 // pred_region
        %s6571 = smul.u32 2, %s14
      $region36: #{kernel_generated_1_forward.1} parent=31 // pred_fallthru
        _
    $region32: #{kernel_generated_1_forward.1} parent=5 // pred_fallthru
      _
    %p6572 = scmp.le.s32.totalorder 2, %s9
    // Predicated region
    $region37: #{kernel_generated_1_forward.1} parent=5 // pred_check
      %p6573 = pneg %p6572
    $region38: #{kernel_generated_1_forward.1} parent=5 // pred_check_branch
      %6575 = sbr.rel (%p6573) target = $region40
    $region39: #{kernel_generated_1_forward.1} parent=5 // pred_region
      %s6576 = ssub.s32 %s9, 2
      // Predicated region
      $region41: #{kernel_generated_1_forward.1} parent=39 // pred_check
        %p6577 = pneg %p106
      $region42: #{kernel_generated_1_forward.1} parent=39 // pred_check_branch
        %6579 = sbr.rel (%p6577) target = $region44
      $region43: #{kernel_generated_1_forward.1} parent=39 // pred_region
        %s6580 = smul.u32 2, %s15
        %p6581 = scmp.lt.s32.totalorder %s6580, 3
        %s6582 = scalar_select %p6581, %s6580, 3
        %s6583 = smul.addr %s6582, 224
        %s6584 = smul.addr %s6583, 8
        %s6585 = scalar_lea.vmem %s3, %s6584
      $region44: #{kernel_generated_1_forward.1} parent=39 // pred_fallthru
        _
    $region40: #{kernel_generated_1_forward.1} parent=5 // pred_fallthru
      _
  $region6: #{kernel_generated_1_forward.1} parent=0 // loop_footer
    %s13 = sadd.s32 1, %s9
  $region7: #{kernel_generated_1_forward.1} parent=0 // loop_footer_branch
    %8 = sbr.rel target = $region3
  $region8: #{kernel_generated_1_forward.1} parent=0 // loop_exit
    _

</llo_original>
